<compile_context>
chip_gen: v7x
topology: tpu7x:2x2x1
jax: 0.10.0
libtpu: 0.0.40
codegen_flags: <defaults>
</compile_context>

<pallas_src>
import jax
import jax.numpy as jnp
from jax.experimental import pallas as pl
from jax.experimental.pallas import tpu as pltpu

LANES = 128  # pad all channel / feature dims to a full vreg lane width


# ---------------------------------------------------------------------------
# Pallas kernels
# ---------------------------------------------------------------------------
def _conv_relu_pool_kernel(p_ref, w_ref, b_ref, o_ref):
    """Fused conv-as-GEMM + 2x2 max-pool + bias + ReLU (no VMEM scratch).

    p_ref : [4, M4, K] bf16  quadrant-major im2col patches: p_ref[q] holds the
                             patches of pool-window member q = hp*2 + wp, rows
                             ordered (b, h', w'), columns ordered (kh, kw, cin).
    w_ref : [K, 128]   bf16  conv weight, Cout zero-padded to 128 lanes.
    b_ref : [1, 128]   f32   bias, zero-padded.
    o_ref : [M4, 128]  bf16  pooled activations, rows (b, h', w'), lane-dense.
    """
    w = w_ref[...]
    d0 = jnp.dot(p_ref[0], w, preferred_element_type=jnp.float32)
    d1 = jnp.dot(p_ref[1], w, preferred_element_type=jnp.float32)
    d2 = jnp.dot(p_ref[2], w, preferred_element_type=jnp.float32)
    d3 = jnp.dot(p_ref[3], w, preferred_element_type=jnp.float32)
    m = jnp.maximum(jnp.maximum(d0, d1), jnp.maximum(d2, d3))
    # bias is per-channel-constant and ReLU is monotonic, so both commute with the
    # pooling max:  relu(max_q(conv_q) + b) == maxpool(relu(conv + b)).
    o_ref[...] = jnp.maximum(m + b_ref[...], 0.0).astype(o_ref.dtype)


def conv_relu_pool(patches, w2d, b2d):
    _, m4, _ = patches.shape
    return pl.pallas_call(
        _conv_relu_pool_kernel,
        out_shape=jax.ShapeDtypeStruct((m4, LANES), jnp.bfloat16),
        in_specs=[pl.BlockSpec(memory_space=pltpu.MemorySpace.VMEM)] * 3,
        out_specs=pl.BlockSpec(memory_space=pltpu.MemorySpace.VMEM),
    )(patches, w2d, b2d)


def _fc_head_kernel(x_ref, w1_ref, b1_ref, w2_ref, b2_ref, w3_ref, b3_ref, o_ref):
    """fc1+ReLU -> fc2+ReLU -> fc3 fused; all weights VMEM resident.

    x_ref : [B, 3200] bf16   conv2 pooled output, flattened per batch in
                             (h, w, c_pad128) order (lanes c>=16 are exactly 0).
    w1_ref: [3200,128] bf16  fc1 weight with torch's view(B,-1) (C,H,W) flatten
                             permutation folded in: w1[s*128+c, n] = fc1_w[n, c*25+s].
    w2/w3 : [128, 128] bf16  fc2/fc3 weights, zero-padded to 128x128.
    o_ref : [B, 128]   f32   lane-dense logits; valid columns are [:, :10].
    """
    h = jnp.dot(x_ref[...], w1_ref[...], preferred_element_type=jnp.float32)
    h = jnp.maximum(h + b1_ref[...], 0.0)
    h = jnp.dot(h.astype(jnp.bfloat16), w2_ref[...], preferred_element_type=jnp.float32)
    h = jnp.maximum(h + b2_ref[...], 0.0)
    h = jnp.dot(h.astype(jnp.bfloat16), w3_ref[...], preferred_element_type=jnp.float32)
    o_ref[...] = h + b3_ref[...]


def fc_head(xf, w1, b1, w2, b2, w3, b3):
    bsz = xf.shape[0]
    return pl.pallas_call(
        _fc_head_kernel,
        out_shape=jax.ShapeDtypeStruct((bsz, LANES), jnp.float32),
        in_specs=[pl.BlockSpec(memory_space=pltpu.MemorySpace.VMEM)] * 7,
        out_specs=pl.BlockSpec(memory_space=pltpu.MemorySpace.VMEM),
    )(xf, w1, b1, w2, b2, w3, b3)


# ---------------------------------------------------------------------------
# im2col glue (XLA): quadrant-major patches built with stride-2 slices
# (no big 7-D transpose copy)
# ---------------------------------------------------------------------------
def _quadrant_patches(x, k):
    """x: [B, H, W, C] (already spatially padded), conv output Ho=H-k+1 even.

    Returns bf16 [4, B*(Ho/2)*(Wo/2), k*k*C]: axis 0 is the pool-window member
    q = hp*2 + wp, axis 1 is (b, h', w'), columns are (kh, kw, cin)."""
    x = x.astype(jnp.bfloat16)
    B, H, W, C = x.shape
    Ho, Wo = H - k + 1, W - k + 1
    m4 = B * (Ho // 2) * (Wo // 2)
    quads = []
    for hp in range(2):
        for wp in range(2):
            cols = [x[:, hp + kh: hp + kh + Ho: 2, wp + kw: wp + kw + Wo: 2, :]
                    for kh in range(k) for kw in range(k)]
            q = jnp.stack(cols, axis=3)               # [B, Ho/2, Wo/2, k*k, C]
            quads.append(q.reshape(m4, k * k * C))
    return jnp.stack(quads, axis=0)                   # [4, m4, k*k*C]


# ---------------------------------------------------------------------------
# Parameters (torch layout) + one-time kernel-layout prep
# ---------------------------------------------------------------------------
def init_params(key):
    ks = jax.random.split(key, 10)

    def u(k, shape, fan_in):
        bound = 1.0 / jnp.sqrt(jnp.float32(fan_in))
        return jax.random.uniform(k, shape, jnp.float32, -bound, bound)

    return {
        "conv1_w": u(ks[0], (6, 1, 5, 5), 1 * 5 * 5),
        "conv1_b": u(ks[1], (6,), 1 * 5 * 5),
        "conv2_w": u(ks[2], (16, 6, 5, 5), 6 * 5 * 5),
        "conv2_b": u(ks[3], (16,), 6 * 5 * 5),
        "fc1_w": u(ks[4], (120, 400), 400),
        "fc1_b": u(ks[5], (120,), 400),
        "fc2_w": u(ks[6], (84, 120), 120),
        "fc2_b": u(ks[7], (84,), 120),
        "fc3_w": u(ks[8], (10, 84), 84),
        "fc3_b": u(ks[9], (10,), 84),
    }


def _pad_to(a, shape):
    return jnp.pad(a, [(0, t - s) for s, t in zip(a.shape, shape)])


def prepare_params(p):
    """One-time weight re-layout (outside the jitted forward).

    Conv weights -> bf16 [K, 128] with columns = Cout (zero-padded); conv2's K rows
    are (kh, kw, cin_pad128) to match the lane-padded activations.  fc weights ->
    bf16 lane-padded, with torch's (C,H,W) flatten permutation folded into fc1."""
    bf = jnp.bfloat16
    w1 = p["conv1_w"].transpose(2, 3, 1, 0).reshape(25, 6)            # (kh,kw,cin) x cout
    w2 = p["conv2_w"].transpose(2, 3, 1, 0)                           # [5,5,6,16]
    w2 = _pad_to(w2, (5, 5, LANES, LANES)).reshape(25 * LANES, LANES)  # K=3200, lane-padded cin/cout
    f1 = p["fc1_w"].reshape(120, 16, 25).transpose(2, 1, 0)           # [s, c, n]
    f1 = _pad_to(f1, (25, LANES, LANES)).reshape(25 * LANES, LANES)    # rows = s*128 + c
    return {
        "c1_w": _pad_to(w1, (25, LANES)).astype(bf),
        "c1_b": _pad_to(p["conv1_b"].reshape(1, 6), (1, LANES)),
        "c2_w": w2.astype(bf),
        "c2_b": _pad_to(p["conv2_b"].reshape(1, 16), (1, LANES)),
        "f1_w": f1.astype(bf),
        "f1_b": _pad_to(p["fc1_b"].reshape(1, 120), (1, LANES)),
        "f2_w": _pad_to(p["fc2_w"].T, (LANES, LANES)).astype(bf),
        "f2_b": _pad_to(p["fc2_b"].reshape(1, 84), (1, LANES)),
        "f3_w": _pad_to(p["fc3_w"].T, (LANES, LANES)).astype(bf),
        "f3_b": _pad_to(p["fc3_b"].reshape(1, 10), (1, LANES)),
    }


# ---------------------------------------------------------------------------
# LeNet forward
# ---------------------------------------------------------------------------
@jax.jit
def lenet_forward(kp, x):
    B = x.shape[0]
    # conv1: Conv2d(1->6, k5, pad=2) + ReLU + MaxPool(2,2)
    x1 = x.transpose(0, 2, 3, 1)                          # channel-last (Cin=1)
    x1 = jnp.pad(x1, ((0, 0), (2, 2), (2, 2), (0, 0)))    # spatial pad 2 -> 32x32
    p1 = _quadrant_patches(x1, 5)                         # [4, B*196, 25] bf16
    a1 = conv_relu_pool(p1, kp["c1_w"], kp["c1_b"])       # [B*196, 128] bf16 (6 valid)
    # conv2: Conv2d(6->16, k5, pad=0) + ReLU + MaxPool(2,2); channels stay padded
    # to 128 lanes (extra lanes are exactly zero, weight rows for them are zero).
    x2 = a1.reshape(B, 14, 14, LANES)
    p2 = _quadrant_patches(x2, 5)                         # [4, B*25, 3200] bf16
    a2 = conv_relu_pool(p2, kp["c2_w"], kp["c2_b"])       # [B*25, 128] bf16 (16 valid)
    # fc1 -> fc2 -> fc3 in one kernel.  The per-batch (h,w,c) flatten is a free XLA
    # reshape here; torch's (c,h,w) view ordering is folded into f1_w's layout.
    xf = a2.reshape(B, 25 * LANES)                        # [B, 3200]
    out = fc_head(xf, kp["f1_w"], kp["f1_b"], kp["f2_w"], kp["f2_b"],
                  kp["f3_w"], kp["f3_b"])                 # [B, 128] lane-dense
    return out[:, :10]


# ---------------------------------------------------------------------------
# Pure-JAX reference (torch semantics) for a correctness sanity check
# ---------------------------------------------------------------------------
def lenet_reference(p, x):
    def conv(x, w, b, pad):
        y = jax.lax.conv_general_dilated(
            x, w, window_strides=(1, 1), padding=[(pad, pad), (pad, pad)],
            dimension_numbers=("NCHW", "OIHW", "NCHW"))
        return y + b.reshape(1, -1, 1, 1)

    def pool2(y):
        B, C, H, W = y.shape
        return y.reshape(B, C, H // 2, 2, W // 2, 2).max(axis=(3, 5))

    y = pool2(jax.nn.relu(conv(x, p["conv1_w"], p["conv1_b"], 2)))
    y = pool2(jax.nn.relu(conv(y, p["conv2_w"], p["conv2_b"], 0)))
    y = y.reshape(y.shape[0], -1)
    y = jax.nn.relu(y @ p["fc1_w"].T + p["fc1_b"])
    y = jax.nn.relu(y @ p["fc2_w"].T + p["fc2_b"])
    return y @ p["fc3_w"].T + p["fc3_b"]


if __name__ == "__main__":
    key = jax.random.PRNGKey(0)
    pkey, xkey = jax.random.split(key)
    params = init_params(pkey)
    kparams = prepare_params(params)   # one-time weight re-layout (outside jit)
    # LeNet's fc1 expects 16*5*5 features, which implies 28x28 single-channel input.
    x = jax.random.normal(xkey, (2, 1, 28, 28), jnp.float32)
    out = lenet_forward(kparams, x)
    jax.block_until_ready(out)
    assert out.shape == (2, 10), out.shape
    ref = lenet_reference(params, x)
    err = float(jnp.max(jnp.abs(out - ref)))
    assert err < 5e-2, f"max abs err vs reference: {err}"
    print("KERNEL_OK")
</pallas_src>

<mosaic_0001>
module attributes {stable_mosaic.version = 11 : i64} {
  func.func @_conv_relu_pool_kernel(%arg0: memref<4x392x25xbf16, #tpu.memory_space<vmem>>, %arg1: memref<25x128xbf16, #tpu.memory_space<vmem>>, %arg2: memref<1x128xf32, #tpu.memory_space<vmem>>, %arg3: memref<392x128xbf16, #tpu.memory_space<vmem>>) attributes {dimension_semantics = [], scalar_prefetch = 0 : i64, scratch_operands = 0 : i64, tpu.core_type = #tpu.core_type<tc>} {
    %c0 = arith.constant 0 : index
    %c0_0 = arith.constant 0 : index
    %0 = vector.load %arg1[%c0, %c0_0] : memref<25x128xbf16, #tpu.memory_space<vmem>>, vector<25x128xbf16>
    %c0_1 = arith.constant 0 : index
    %c0_2 = arith.constant 0 : index
    %c0_3 = arith.constant 0 : index
    %1 = vector.load %arg0[%c0_1, %c0_2, %c0_3] : memref<4x392x25xbf16, #tpu.memory_space<vmem>>, vector<1x392x25xbf16>
    %2 = vector.shape_cast %1 : vector<1x392x25xbf16> to vector<392x25xbf16>
    %cst = arith.constant dense<0.000000e+00> : vector<392x128xf32>
    %3 = tpu.matmul %2, %0, %cst {dimension_numbers = #tpu.dot_dimension_numbers<[1], [0], [0], [1], [0, 0, 1, 1], [], []>} : vector<392x25xbf16>, vector<25x128xbf16>, vector<392x128xf32> -> vector<392x128xf32>
    %c1 = arith.constant 1 : index
    %c0_4 = arith.constant 0 : index
    %c0_5 = arith.constant 0 : index
    %4 = vector.load %arg0[%c1, %c0_4, %c0_5] : memref<4x392x25xbf16, #tpu.memory_space<vmem>>, vector<1x392x25xbf16>
    %5 = vector.shape_cast %4 : vector<1x392x25xbf16> to vector<392x25xbf16>
    %cst_6 = arith.constant dense<0.000000e+00> : vector<392x128xf32>
    %6 = tpu.matmul %5, %0, %cst_6 {dimension_numbers = #tpu.dot_dimension_numbers<[1], [0], [0], [1], [0, 0, 1, 1], [], []>} : vector<392x25xbf16>, vector<25x128xbf16>, vector<392x128xf32> -> vector<392x128xf32>
    %c2 = arith.constant 2 : index
    %c0_7 = arith.constant 0 : index
    %c0_8 = arith.constant 0 : index
    %7 = vector.load %arg0[%c2, %c0_7, %c0_8] : memref<4x392x25xbf16, #tpu.memory_space<vmem>>, vector<1x392x25xbf16>
    %8 = vector.shape_cast %7 : vector<1x392x25xbf16> to vector<392x25xbf16>
    %cst_9 = arith.constant dense<0.000000e+00> : vector<392x128xf32>
    %9 = tpu.matmul %8, %0, %cst_9 {dimension_numbers = #tpu.dot_dimension_numbers<[1], [0], [0], [1], [0, 0, 1, 1], [], []>} : vector<392x25xbf16>, vector<25x128xbf16>, vector<392x128xf32> -> vector<392x128xf32>
    %c3 = arith.constant 3 : index
    %c0_10 = arith.constant 0 : index
    %c0_11 = arith.constant 0 : index
    %10 = vector.load %arg0[%c3, %c0_10, %c0_11] : memref<4x392x25xbf16, #tpu.memory_space<vmem>>, vector<1x392x25xbf16>
    %11 = vector.shape_cast %10 : vector<1x392x25xbf16> to vector<392x25xbf16>
    %cst_12 = arith.constant dense<0.000000e+00> : vector<392x128xf32>
    %12 = tpu.matmul %11, %0, %cst_12 {dimension_numbers = #tpu.dot_dimension_numbers<[1], [0], [0], [1], [0, 0, 1, 1], [], []>} : vector<392x25xbf16>, vector<25x128xbf16>, vector<392x128xf32> -> vector<392x128xf32>
    %13 = arith.maximumf %3, %6 : vector<392x128xf32>
    %14 = arith.maximumf %9, %12 : vector<392x128xf32>
    %15 = arith.maximumf %13, %14 : vector<392x128xf32>
    %c0_13 = arith.constant 0 : index
    %c0_14 = arith.constant 0 : index
    %16 = vector.load %arg2[%c0_13, %c0_14] : memref<1x128xf32, #tpu.memory_space<vmem>>, vector<1x128xf32>
    %17 = vector.broadcast %16 : vector<1x128xf32> to vector<392x128xf32>
    %18 = arith.addf %15, %17 : vector<392x128xf32>
    %cst_15 = arith.constant 0.000000e+00 : f32
    %19 = vector.broadcast %cst_15 : f32 to vector<392x128xf32>
    %20 = arith.maximumf %18, %19 : vector<392x128xf32>
    %21 = arith.truncf %20 : vector<392x128xf32> to vector<392x128xbf16>
    %c0_16 = arith.constant 0 : index
    %c0_17 = arith.constant 0 : index
    %22 = vector.load %arg3[%c0_16, %c0_17] : memref<392x128xbf16, #tpu.memory_space<vmem>>, vector<392x128xbf16>
    tpu.vector_store %arg3[%c0_16, %c0_17], %21 {strides = array<i32>} : memref<392x128xbf16, #tpu.memory_space<vmem>>, vector<392x128xbf16>,
    return
  }
}

module attributes {stable_mosaic.version = 11 : i64} {
  func.func @_conv_relu_pool_kernel(%arg0: memref<4x50x3200xbf16, #tpu.memory_space<vmem>>, %arg1: memref<3200x128xbf16, #tpu.memory_space<vmem>>, %arg2: memref<1x128xf32, #tpu.memory_space<vmem>>, %arg3: memref<50x128xbf16, #tpu.memory_space<vmem>>) attributes {dimension_semantics = [], scalar_prefetch = 0 : i64, scratch_operands = 0 : i64, tpu.core_type = #tpu.core_type<tc>} {
    %c0 = arith.constant 0 : index
    %c0_0 = arith.constant 0 : index
    %0 = vector.load %arg1[%c0, %c0_0] : memref<3200x128xbf16, #tpu.memory_space<vmem>>, vector<3200x128xbf16>
    %c0_1 = arith.constant 0 : index
    %c0_2 = arith.constant 0 : index
    %c0_3 = arith.constant 0 : index
    %1 = vector.load %arg0[%c0_1, %c0_2, %c0_3] : memref<4x50x3200xbf16, #tpu.memory_space<vmem>>, vector<1x50x3200xbf16>
    %2 = vector.shape_cast %1 : vector<1x50x3200xbf16> to vector<50x3200xbf16>
    %cst = arith.constant dense<0.000000e+00> : vector<50x128xf32>
    %3 = tpu.matmul %2, %0, %cst {dimension_numbers = #tpu.dot_dimension_numbers<[1], [0], [0], [1], [0, 0, 1, 1], [], []>} : vector<50x3200xbf16>, vector<3200x128xbf16>, vector<50x128xf32> -> vector<50x128xf32>
    %c1 = arith.constant 1 : index
    %c0_4 = arith.constant 0 : index
    %c0_5 = arith.constant 0 : index
    %4 = vector.load %arg0[%c1, %c0_4, %c0_5] : memref<4x50x3200xbf16, #tpu.memory_space<vmem>>, vector<1x50x3200xbf16>
    %5 = vector.shape_cast %4 : vector<1x50x3200xbf16> to vector<50x3200xbf16>
    %cst_6 = arith.constant dense<0.000000e+00> : vector<50x128xf32>
    %6 = tpu.matmul %5, %0, %cst_6 {dimension_numbers = #tpu.dot_dimension_numbers<[1], [0], [0], [1], [0, 0, 1, 1], [], []>} : vector<50x3200xbf16>, vector<3200x128xbf16>, vector<50x128xf32> -> vector<50x128xf32>
    %c2 = arith.constant 2 : index
    %c0_7 = arith.constant 0 : index
    %c0_8 = arith.constant 0 : index
    %7 = vector.load %arg0[%c2, %c0_7, %c0_8] : memref<4x50x3200xbf16, #tpu.memory_space<vmem>>, vector<1x50x3200xbf16>
    %8 = vector.shape_cast %7 : vector<1x50x3200xbf16> to vector<50x3200xbf16>
    %cst_9 = arith.constant dense<0.000000e+00> : vector<50x128xf32>
    %9 = tpu.matmul %8, %0, %cst_9 {dimension_numbers = #tpu.dot_dimension_numbers<[1], [0], [0], [1], [0, 0, 1, 1], [], []>} : vector<50x3200xbf16>, vector<3200x128xbf16>, vector<50x128xf32> -> vector<50x128xf32>
    %c3 = arith.constant 3 : index
    %c0_10 = arith.constant 0 : index
    %c0_11 = arith.constant 0 : index
    %10 = vector.load %arg0[%c3, %c0_10, %c0_11] : memref<4x50x3200xbf16, #tpu.memory_space<vmem>>, vector<1x50x3200xbf16>
    %11 = vector.shape_cast %10 : vector<1x50x3200xbf16> to vector<50x3200xbf16>
    %cst_12 = arith.constant dense<0.000000e+00> : vector<50x128xf32>
    %12 = tpu.matmul %11, %0, %cst_12 {dimension_numbers = #tpu.dot_dimension_numbers<[1], [0], [0], [1], [0, 0, 1, 1], [], []>} : vector<50x3200xbf16>, vector<3200x128xbf16>, vector<50x128xf32> -> vector<50x128xf32>
    %13 = arith.maximumf %3, %6 : vector<50x128xf32>
    %14 = arith.maximumf %9, %12 : vector<50x128xf32>
    %15 = arith.maximumf %13, %14 : vector<50x128xf32>
    %c0_13 = arith.constant 0 : index
    %c0_14 = arith.constant 0 : index
    %16 = vector.load %arg2[%c0_13, %c0_14] : memref<1x128xf32, #tpu.memory_space<vmem>>, vector<1x128xf32>
    %17 = vector.broadcast %16 : vector<1x128xf32> to vector<50x128xf32>
    %18 = arith.addf %15, %17 : vector<50x128xf32>
    %cst_15 = arith.constant 0.000000e+00 : f32
    %19 = vector.broadcast %cst_15 : f32 to vector<50x128xf32>
    %20 = arith.maximumf %18, %19 : vector<50x128xf32>
    %21 = arith.truncf %20 : vector<50x128xf32> to vector<50x128xbf16>
    %c0_16 = arith.constant 0 : index
    %c0_17 = arith.constant 0 : index
    %22 = vector.load %arg3[%c0_16, %c0_17] : memref<50x128xbf16, #tpu.memory_space<vmem>>, vector<50x128xbf16>
    tpu.vector_store %arg3[%c0_16, %c0_17], %21 {strides = array<i32>} : memref<50x128xbf16, #tpu.memory_space<vmem>>, vector<50x128xbf16>,
    return
  }
}

module attributes {stable_mosaic.version = 11 : i64} {
  func.func @_fc_head_kernel(%arg0: memref<2x3200xbf16, #tpu.memory_space<vmem>>, %arg1: memref<3200x128xbf16, #tpu.memory_space<vmem>>, %arg2: memref<1x128xf32, #tpu.memory_space<vmem>>, %arg3: memref<128x128xbf16, #tpu.memory_space<vmem>>, %arg4: memref<1x128xf32, #tpu.memory_space<vmem>>, %arg5: memref<128x128xbf16, #tpu.memory_space<vmem>>, %arg6: memref<1x128xf32, #tpu.memory_space<vmem>>, %arg7: memref<2x128xf32, #tpu.memory_space<vmem>>) attributes {dimension_semantics = [], scalar_prefetch = 0 : i64, scratch_operands = 0 : i64, tpu.core_type = #tpu.core_type<tc>} {
    %c0 = arith.constant 0 : index
    %c0_0 = arith.constant 0 : index
    %0 = vector.load %arg0[%c0, %c0_0] : memref<2x3200xbf16, #tpu.memory_space<vmem>>, vector<2x3200xbf16>
    %c0_1 = arith.constant 0 : index
    %c0_2 = arith.constant 0 : index
    %1 = vector.load %arg1[%c0_1, %c0_2] : memref<3200x128xbf16, #tpu.memory_space<vmem>>, vector<3200x128xbf16>
    %cst = arith.constant dense<0.000000e+00> : vector<2x128xf32>
    %2 = tpu.matmul %0, %1, %cst {dimension_numbers = #tpu.dot_dimension_numbers<[1], [0], [0], [1], [0, 0, 1, 1], [], []>} : vector<2x3200xbf16>, vector<3200x128xbf16>, vector<2x128xf32> -> vector<2x128xf32>
    %c0_3 = arith.constant 0 : index
    %c0_4 = arith.constant 0 : index
    %3 = vector.load %arg2[%c0_3, %c0_4] : memref<1x128xf32, #tpu.memory_space<vmem>>, vector<1x128xf32>
    %4 = vector.broadcast %3 : vector<1x128xf32> to vector<2x128xf32>
    %5 = arith.addf %2, %4 : vector<2x128xf32>
    %cst_5 = arith.constant 0.000000e+00 : f32
    %6 = vector.broadcast %cst_5 : f32 to vector<2x128xf32>
    %7 = arith.maximumf %5, %6 : vector<2x128xf32>
    %8 = arith.truncf %7 : vector<2x128xf32> to vector<2x128xbf16>
    %c0_6 = arith.constant 0 : index
    %c0_7 = arith.constant 0 : index
    %9 = vector.load %arg3[%c0_6, %c0_7] : memref<128x128xbf16, #tpu.memory_space<vmem>>, vector<128x128xbf16>
    %cst_8 = arith.constant dense<0.000000e+00> : vector<2x128xf32>
    %10 = tpu.matmul %8, %9, %cst_8 {dimension_numbers = #tpu.dot_dimension_numbers<[1], [0], [0], [1], [0, 0, 1, 1], [], []>} : vector<2x128xbf16>, vector<128x128xbf16>, vector<2x128xf32> -> vector<2x128xf32>
    %c0_9 = arith.constant 0 : index
    %c0_10 = arith.constant 0 : index
    %11 = vector.load %arg4[%c0_9, %c0_10] : memref<1x128xf32, #tpu.memory_space<vmem>>, vector<1x128xf32>
    %12 = vector.broadcast %11 : vector<1x128xf32> to vector<2x128xf32>
    %13 = arith.addf %10, %12 : vector<2x128xf32>
    %cst_11 = arith.constant 0.000000e+00 : f32
    %14 = vector.broadcast %cst_11 : f32 to vector<2x128xf32>
    %15 = arith.maximumf %13, %14 : vector<2x128xf32>
    %16 = arith.truncf %15 : vector<2x128xf32> to vector<2x128xbf16>
    %c0_12 = arith.constant 0 : index
    %c0_13 = arith.constant 0 : index
    %17 = vector.load %arg5[%c0_12, %c0_13] : memref<128x128xbf16, #tpu.memory_space<vmem>>, vector<128x128xbf16>
    %cst_14 = arith.constant dense<0.000000e+00> : vector<2x128xf32>
    %18 = tpu.matmul %16, %17, %cst_14 {dimension_numbers = #tpu.dot_dimension_numbers<[1], [0], [0], [1], [0, 0, 1, 1], [], []>} : vector<2x128xbf16>, vector<128x128xbf16>, vector<2x128xf32> -> vector<2x128xf32>
    %c0_15 = arith.constant 0 : index
    %c0_16 = arith.constant 0 : index
    %19 = vector.load %arg6[%c0_15, %c0_16] : memref<1x128xf32, #tpu.memory_space<vmem>>, vector<1x128xf32>
    %20 = vector.broadcast %19 : vector<1x128xf32> to vector<2x128xf32>
    %21 = arith.addf %18, %20 : vector<2x128xf32>
    %c0_17 = arith.constant 0 : index
    %c0_18 = arith.constant 0 : index
    %22 = vector.load %arg7[%c0_17, %c0_18] : memref<2x128xf32, #tpu.memory_space<vmem>>, vector<2x128xf32>
    tpu.vector_store %arg7[%c0_17, %c0_18], %21 {strides = array<i32>} : memref<2x128xf32, #tpu.memory_space<vmem>>, vector<2x128xf32>,
    return
  }
}

</mosaic_0001>

<llo_original>
// kernel: lenet_forward.3
$region0: #{lenet_forward.3}
  #allocation0 [shape = 'u32[]', space=smem, size = 0x4, offset = 0x4, fixed_abs, tag = 'smem constant byte address 0x4 - core index']
  #allocation1 [shape = 'u32[144,128]{1,0:T(1,128)}', space=vmem, size = 0x12000, scoped, tag = 'internal scratch']
  %s0 = inlined_call_operand.vmem [shape: bf16[4,392,25], index: 0, kind: input, shape index: {}]
  %s1 = inlined_call_operand.vmem [shape: bf16[25,128], index: 1, kind: input, shape index: {}]
  %s2 = inlined_call_operand.vmem [shape: f32[1,128], index: 2, kind: input, shape index: {}]
  %s3 = inlined_call_operand.vmem [shape: bf16[392,128], index: 3, kind: output, shape index: {}]
  %s4 = sld [smem:[#allocation0]]
  $region22: #{lenet_forward.3} parent=0
    _
  %s6 = ssub.s32 1, %s4
  %s7 = scalar_select 0, %s6, %s4
  // Predicated region
  $region2: #{lenet_forward.3} parent=0 // pred_check
    _
  $region3: #{lenet_forward.3} parent=0 // pred_check_branch
    %9 = sbr.rel (0) target = $region5
  $region4: #{lenet_forward.3} parent=0 // pred_region
    _
  $region5: #{lenet_forward.3} parent=0 // pred_fallthru
    _
  // Predicated region
  $region6: #{lenet_forward.3} parent=0 // pred_check
    _
  $region7: #{lenet_forward.3} parent=0 // pred_check_branch
    %11 = sbr.rel (0) target = $region9
  $region8: #{lenet_forward.3} parent=0 // pred_region
    _
  $region9: #{lenet_forward.3} parent=0 // pred_fallthru
    _
  // Predicated region
  $region10: #{lenet_forward.3} parent=0 // pred_check
    _
  $region11: #{lenet_forward.3} parent=0 // pred_check_branch
    %13 = sbr.rel (0) target = $region13
  $region12: #{lenet_forward.3} parent=0 // pred_region
    _
  $region13: #{lenet_forward.3} parent=0 // pred_fallthru
    _
  %v15 = vld [vmem:[%s1] sm:$0xf]
  %v16 = vld [vmem:[%s1 + $0x4] sm:$0xf]
  %v17 = vld [vmem:[%s1 + $0x8] sm:$0xf]
  %v18 = vld [vmem:[%s1 + $0xc] sm:$0x1]
  %v19 = vld [vmem:[%s0] sm:$0xf]
  %v20 = vld [vmem:[%s0 + $0x4] sm:$0xf]
  %v21 = vld [vmem:[%s0 + $0x8] sm:$0xf]
  %v22 = vld [vmem:[%s0 + $0xc] sm:$0xf]
  %v23 = vld [vmem:[%s0 + $0x10] sm:$0xf]
  %v24 = vld [vmem:[%s0 + $0x14] sm:$0xf]
  %v25 = vld [vmem:[%s0 + $0x18] sm:$0xf]
  %v26 = vld [vmem:[%s0 + $0x1c] sm:$0xf]
  %v27 = vld [vmem:[%s0 + $0x20] sm:$0xf]
  %v28 = vld [vmem:[%s0 + $0x24] sm:$0xf]
  %v29 = vld [vmem:[%s0 + $0x28] sm:$0xf]
  %v30 = vld [vmem:[%s0 + $0x2c] sm:$0xf]
  %v31 = vld [vmem:[%s0 + $0x30] sm:$0xf]
  %v32 = vld [vmem:[%s0 + $0x34] sm:$0xf]
  %v33 = vld [vmem:[%s0 + $0x38] sm:$0xf]
  %v34 = vld [vmem:[%s0 + $0x3c] sm:$0xf]
  %v35 = vld [vmem:[%s0 + $0x40] sm:$0xf]
  %v36 = vld [vmem:[%s0 + $0x44] sm:$0xf]
  %v37 = vld [vmem:[%s0 + $0x48] sm:$0xf]
  %v38 = vld [vmem:[%s0 + $0x4c] sm:$0xf]
  %v39 = vld [vmem:[%s0 + $0x50] sm:$0xf]
  %v40 = vld [vmem:[%s0 + $0x54] sm:$0xf]
  %v41 = vld [vmem:[%s0 + $0x58] sm:$0xf]
  %v42 = vld [vmem:[%s0 + $0x5c] sm:$0xf]
  %v43 = vld [vmem:[%s0 + $0x60] sm:$0xf]
  %v44 = vld [vmem:[%s0 + $0x64] sm:$0xf]
  %v45 = vld [vmem:[%s0 + $0x68] sm:$0xf]
  %v46 = vld [vmem:[%s0 + $0x6c] sm:$0xf]
  %v47 = vld [vmem:[%s0 + $0x70] sm:$0xf]
  %v48 = vld [vmem:[%s0 + $0x74] sm:$0xf]
  %v49 = vld [vmem:[%s0 + $0x78] sm:$0xf]
  %v50 = vld [vmem:[%s0 + $0x7c] sm:$0xf]
  %v51 = vld [vmem:[%s0 + $0x80] sm:$0xf]
  %v52 = vld [vmem:[%s0 + $0x84] sm:$0xf]
  %v53 = vld [vmem:[%s0 + $0x88] sm:$0xf]
  %v54 = vld [vmem:[%s0 + $0x8c] sm:$0xf]
  %v55 = vld [vmem:[%s0 + $0x90] sm:$0xf]
  %v56 = vld [vmem:[%s0 + $0x94] sm:$0xf]
  %v57 = vld [vmem:[%s0 + $0x98] sm:$0xf]
  %v58 = vld [vmem:[%s0 + $0x9c] sm:$0xf]
  %v59 = vld [vmem:[%s0 + $0xa0] sm:$0xf]
  %v60 = vld [vmem:[%s0 + $0xa4] sm:$0xf]
  %v61 = vld [vmem:[%s0 + $0xa8] sm:$0xf]
  %v62 = vld [vmem:[%s0 + $0xac] sm:$0xf]
  %v63 = vld [vmem:[%s0 + $0xb0] sm:$0xf]
  %v64 = vld [vmem:[%s0 + $0xb4] sm:$0xf]
  %v65 = vld [vmem:[%s0 + $0xb8] sm:$0xf]
  %v66 = vld [vmem:[%s0 + $0xbc] sm:$0xf]
  %v67 = vld [vmem:[%s0 + $0xc0] sm:$0xf]
  %v117 = vunpack.c.l.b16 %v19
  %v118 = vunpack.c.l.b16 %v20
  %v119 = vunpack.c.l.b16 %v21
  %v120 = vunpack.c.l.b16 %v22
  %v121 = vunpack.c.l.b16 %v23
  %v122 = vunpack.c.l.b16 %v24
  %v123 = vunpack.c.l.b16 %v25
  %v124 = vunpack.c.l.b16 %v26
  %v125 = vunpack.c.l.b16 %v27
  %v126 = vunpack.c.l.b16 %v28
  %v127 = vunpack.c.l.b16 %v29
  %v128 = vunpack.c.l.b16 %v30
  %v129 = vunpack.c.l.b16 %v31
  %v130 = vunpack.c.l.b16 %v32
  %v131 = vunpack.c.l.b16 %v33
  %v132 = vunpack.c.l.b16 %v34
  %v133 = vunpack.c.l.b16 %v35
  %v134 = vunpack.c.l.b16 %v36
  %v135 = vunpack.c.l.b16 %v37
  %v136 = vunpack.c.l.b16 %v38
  %v137 = vunpack.c.l.b16 %v39
  %v138 = vunpack.c.l.b16 %v40
  %v139 = vunpack.c.l.b16 %v41
  %v140 = vunpack.c.l.b16 %v42
  %v141 = vunpack.c.l.b16 %v43
  %v142 = vunpack.c.l.b16 %v44
  %v143 = vunpack.c.l.b16 %v45
  %v144 = vunpack.c.l.b16 %v46
  %v145 = vunpack.c.l.b16 %v47
  %v146 = vunpack.c.l.b16 %v48
  %v147 = vunpack.c.l.b16 %v49
  %v148 = vunpack.c.l.b16 %v50
  %v149 = vunpack.c.l.b16 %v51
  %v150 = vunpack.c.l.b16 %v52
  %v151 = vunpack.c.l.b16 %v53
  %v152 = vunpack.c.l.b16 %v54
  %v153 = vunpack.c.l.b16 %v55
  %v154 = vunpack.c.l.b16 %v56
  %v155 = vunpack.c.l.b16 %v57
  %v156 = vunpack.c.l.b16 %v58
  %v157 = vunpack.c.l.b16 %v59
  %v158 = vunpack.c.l.b16 %v60
  %v159 = vunpack.c.l.b16 %v61
  %v160 = vunpack.c.l.b16 %v62
  %v161 = vunpack.c.l.b16 %v63
  %v162 = vunpack.c.l.b16 %v64
  %v163 = vunpack.c.l.b16 %v65
  %v164 = vunpack.c.l.b16 %v66
  %v165 = vunpack.c.l.b16 %v67
  %v166 = vpack.c.b16 %v118, %v117
  %v167 = vpack.c.b16 %v120, %v119
  %v168 = vpack.c.b16 %v122, %v121
  %v169 = vpack.c.b16 %v124, %v123
  %v170 = vpack.c.b16 %v126, %v125
  %v171 = vpack.c.b16 %v128, %v127
  %v172 = vpack.c.b16 %v130, %v129
  %v173 = vpack.c.b16 %v132, %v131
  %v174 = vpack.c.b16 %v134, %v133
  %v175 = vpack.c.b16 %v136, %v135
  %v176 = vpack.c.b16 %v138, %v137
  %v177 = vpack.c.b16 %v140, %v139
  %v178 = vpack.c.b16 %v142, %v141
  %v179 = vpack.c.b16 %v144, %v143
  %v180 = vpack.c.b16 %v146, %v145
  %v181 = vpack.c.b16 %v148, %v147
  %v182 = vpack.c.b16 %v150, %v149
  %v183 = vpack.c.b16 %v152, %v151
  %v184 = vpack.c.b16 %v154, %v153
  %v185 = vpack.c.b16 %v156, %v155
  %v186 = vpack.c.b16 %v158, %v157
  %v187 = vpack.c.b16 %v160, %v159
  %v188 = vpack.c.b16 %v162, %v161
  %v189 = vpack.c.b16 %v164, %v163
  %v190 = vpack.c.b16 %v165, %v165
  %v195 = vunpack.c.l.b16 %v15
  %v196 = vunpack.c.l.b16 %v16
  %v197 = vunpack.c.l.b16 %v17
  %v198 = vunpack.c.l.b16 %v18
  %v199 = vpack.c.b16 %v196, %v195
  %v200 = vpack.c.b16 %v198, %v197
  %vm202 = vcmask 203776
  %v204 = vsel %vm202, %v166, 0
  %v207 = vsel %vm202, %v167, 0
  %v210 = vsel %vm202, %v168, 0
  %v213 = vsel %vm202, %v169, 0
  %v216 = vsel %vm202, %v170, 0
  %v219 = vsel %vm202, %v171, 0
  %v222 = vsel %vm202, %v172, 0
  %v225 = vsel %vm202, %v173, 0
  %v228 = vsel %vm202, %v174, 0
  %v231 = vsel %vm202, %v175, 0
  %v234 = vsel %vm202, %v176, 0
  %v237 = vsel %vm202, %v177, 0
  %v240 = vsel %vm202, %v178, 0
  %v243 = vsel %vm202, %v179, 0
  %v246 = vsel %vm202, %v180, 0
  %v249 = vsel %vm202, %v181, 0
  %v252 = vsel %vm202, %v182, 0
  %v255 = vsel %vm202, %v183, 0
  %v258 = vsel %vm202, %v184, 0
  %v261 = vsel %vm202, %v185, 0
  %v264 = vsel %vm202, %v186, 0
  %v267 = vsel %vm202, %v187, 0
  %v270 = vsel %vm202, %v188, 0
  %v273 = vsel %vm202, %v189, 0
  %v276 = vsel %vm202, %v190, 0
  %vm278 = vcmask 1043456
  %vm279 = vcmask 1044480
  %v280 = vsel %vm278, 4294967295, 65535
  %v281 = vsel %vm279, %v280, 0
  %v283 = vand.u32 %v200, %v281
  %285 = vmatprep.subr.bf16.mxu0 0
  %286 = vmatpush1.bf16.msra.mxu0 %v199
  %287 = vmatprep.subr.bf16.mxu0 0
  %288 = vmatpush1.bf16.msra.mxu0 %v283
  %289 = vmatprep.subr.bf16.mxu0 0
  %290 = vmatpush1.bf16.msra.mxu0 0
  %291 = vmatprep.subr.bf16.mxu0 0
  %292 = vmatpush1.bf16.msra.mxu0 0
  %293 = vmatprep.subr.bf16.mxu0 0
  %294 = vmatpush1.bf16.msra.mxu0 0
  %295 = vmatprep.subr.bf16.mxu0 0
  %296 = vmatpush1.bf16.msra.mxu0 0
  %297 = vmatprep.subr.bf16.mxu0 0
  %298 = vmatpush1.bf16.msra.mxu0 0
  %299 = vmatprep.subr.bf16.mxu0 0
  %300 = vmatpush1.bf16.msra.mxu0 0
  %301 = vmatprep.subr.bf16.mxu0 0
  %302 = vmatpush1.bf16.msra.mxu0 0
  %303 = vmatprep.subr.bf16.mxu0 0
  %304 = vmatpush1.bf16.msra.mxu0 0
  %305 = vmatprep.subr.bf16.mxu0 0
  %306 = vmatpush1.bf16.msra.mxu0 0
  %307 = vmatprep.subr.bf16.mxu0 0
  %308 = vmatpush1.bf16.msra.mxu0 0
  %309 = vmatprep.subr.bf16.mxu0 0
  %310 = vmatpush1.bf16.msra.mxu0 0
  %311 = vmatprep.subr.bf16.mxu0 0
  %312 = vmatpush1.bf16.msra.mxu0 0
  %313 = vmatprep.subr.bf16.mxu0 0
  %314 = vmatpush1.bf16.msra.mxu0 0
  %315 = vmatprep.subr.bf16.mxu0 0
  %316 = vmatpush1.bf16.msra.mxu0 0
  %317 = vmatprep.mubr.bf16.mxu0 0
  %318 = vmatmul.mubr.bf16.gmra.mrb[0].mxu0 %v204
  %v319 = vpop.f32.mrb[0].mxu0
  %v320 = vadd.f32 0.0, %v319
  %v321 = vpop.f32.mrb[0].mxu0
  %v322 = vpop.f32.mrb[0].mxu0
  %v323 = vadd.f32 0.0, %v322
  %v324 = vpop.f32.mrb[0].mxu0
  %325 = vmatprep.mubr.bf16.mxu0 0
  %326 = vmatmul.mubr.bf16.gmra.mrb[0].mxu0 %v207
  %v327 = vpop.f32.mrb[0].mxu0
  %v328 = vadd.f32 0.0, %v327
  %v329 = vpop.f32.mrb[0].mxu0
  %v330 = vpop.f32.mrb[0].mxu0
  %v331 = vadd.f32 0.0, %v330
  %v332 = vpop.f32.mrb[0].mxu0
  %333 = vmatprep.mubr.bf16.mxu0 0
  %334 = vmatmul.mubr.bf16.gmra.mrb[0].mxu0 %v210
  %v335 = vpop.f32.mrb[0].mxu0
  %v336 = vadd.f32 0.0, %v335
  %v337 = vpop.f32.mrb[0].mxu0
  %v338 = vpop.f32.mrb[0].mxu0
  %v339 = vadd.f32 0.0, %v338
  %v340 = vpop.f32.mrb[0].mxu0
  %341 = vmatprep.mubr.bf16.mxu0 0
  %342 = vmatmul.mubr.bf16.gmra.mrb[0].mxu0 %v213
  %v343 = vpop.f32.mrb[0].mxu0
  %v344 = vadd.f32 0.0, %v343
  %v345 = vpop.f32.mrb[0].mxu0
  %v346 = vpop.f32.mrb[0].mxu0
  %v347 = vadd.f32 0.0, %v346
  %v348 = vpop.f32.mrb[0].mxu0
  %349 = vmatprep.mubr.bf16.mxu0 0
  %350 = vmatmul.mubr.bf16.gmra.mrb[0].mxu0 %v216
  %v351 = vpop.f32.mrb[0].mxu0
  %v352 = vadd.f32 0.0, %v351
  %v353 = vpop.f32.mrb[0].mxu0
  %v354 = vpop.f32.mrb[0].mxu0
  %v355 = vadd.f32 0.0, %v354
  %v356 = vpop.f32.mrb[0].mxu0
  %357 = vmatprep.mubr.bf16.mxu0 0
  %358 = vmatmul.mubr.bf16.gmra.mrb[0].mxu0 %v219
  %v359 = vpop.f32.mrb[0].mxu0
  %v360 = vadd.f32 0.0, %v359
  %v361 = vpop.f32.mrb[0].mxu0
  %v362 = vpop.f32.mrb[0].mxu0
  %v363 = vadd.f32 0.0, %v362
  %v364 = vpop.f32.mrb[0].mxu0
  %365 = vmatprep.mubr.bf16.mxu0 0
  %366 = vmatmul.mubr.bf16.gmra.mrb[0].mxu0 %v222
  %v367 = vpop.f32.mrb[0].mxu0
  %v368 = vadd.f32 0.0, %v367
  %v369 = vpop.f32.mrb[0].mxu0
  %v370 = vpop.f32.mrb[0].mxu0
  %v371 = vadd.f32 0.0, %v370
  %v372 = vpop.f32.mrb[0].mxu0
  %373 = vmatprep.mubr.bf16.mxu0 0
  %374 = vmatmul.mubr.bf16.gmra.mrb[0].mxu0 %v225
  %v375 = vpop.f32.mrb[0].mxu0
  %v376 = vadd.f32 0.0, %v375
  %v377 = vpop.f32.mrb[0].mxu0
  %v378 = vpop.f32.mrb[0].mxu0
  %v379 = vadd.f32 0.0, %v378
  %v380 = vpop.f32.mrb[0].mxu0
  %381 = vmatprep.mubr.bf16.mxu0 0
  %382 = vmatmul.mubr.bf16.gmra.mrb[0].mxu0 %v228
  %v383 = vpop.f32.mrb[0].mxu0
  %v384 = vadd.f32 0.0, %v383
  %v385 = vpop.f32.mrb[0].mxu0
  %v386 = vpop.f32.mrb[0].mxu0
  %v387 = vadd.f32 0.0, %v386
  %v388 = vpop.f32.mrb[0].mxu0
  %389 = vmatprep.mubr.bf16.mxu0 0
  %390 = vmatmul.mubr.bf16.gmra.mrb[0].mxu0 %v231
  %v391 = vpop.f32.mrb[0].mxu0
  %v392 = vadd.f32 0.0, %v391
  %v393 = vpop.f32.mrb[0].mxu0
  %v394 = vpop.f32.mrb[0].mxu0
  %v395 = vadd.f32 0.0, %v394
  %v396 = vpop.f32.mrb[0].mxu0
  %397 = vmatprep.mubr.bf16.mxu0 0
  %398 = vmatmul.mubr.bf16.gmra.mrb[0].mxu0 %v234
  %v399 = vpop.f32.mrb[0].mxu0
  %v400 = vadd.f32 0.0, %v399
  %v401 = vpop.f32.mrb[0].mxu0
  %v402 = vpop.f32.mrb[0].mxu0
  %v403 = vadd.f32 0.0, %v402
  %v404 = vpop.f32.mrb[0].mxu0
  %405 = vmatprep.mubr.bf16.mxu0 0
  %406 = vmatmul.mubr.bf16.gmra.mrb[0].mxu0 %v237
  %v407 = vpop.f32.mrb[0].mxu0
  %v408 = vadd.f32 0.0, %v407
  %v409 = vpop.f32.mrb[0].mxu0
  %v410 = vpop.f32.mrb[0].mxu0
  %v411 = vadd.f32 0.0, %v410
  %v412 = vpop.f32.mrb[0].mxu0
  %413 = vmatprep.mubr.bf16.mxu0 0
  %414 = vmatmul.mubr.bf16.gmra.mrb[0].mxu0 %v240
  %v415 = vpop.f32.mrb[0].mxu0
  %v416 = vadd.f32 0.0, %v415
  %v417 = vpop.f32.mrb[0].mxu0
  %v418 = vpop.f32.mrb[0].mxu0
  %v419 = vadd.f32 0.0, %v418
  %v420 = vpop.f32.mrb[0].mxu0
  %421 = vmatprep.mubr.bf16.mxu0 0
  %422 = vmatmul.mubr.bf16.gmra.mrb[0].mxu0 %v243
  %v423 = vpop.f32.mrb[0].mxu0
  %v424 = vadd.f32 0.0, %v423
  %v425 = vpop.f32.mrb[0].mxu0
  %v426 = vpop.f32.mrb[0].mxu0
  %v427 = vadd.f32 0.0, %v426
  %v428 = vpop.f32.mrb[0].mxu0
  %429 = vmatprep.mubr.bf16.mxu0 0
  %430 = vmatmul.mubr.bf16.gmra.mrb[0].mxu0 %v246
  %v431 = vpop.f32.mrb[0].mxu0
  %v432 = vadd.f32 0.0, %v431
  %v433 = vpop.f32.mrb[0].mxu0
  %v434 = vpop.f32.mrb[0].mxu0
  %v435 = vadd.f32 0.0, %v434
  %v436 = vpop.f32.mrb[0].mxu0
  %437 = vmatprep.mubr.bf16.mxu0 0
  %438 = vmatmul.mubr.bf16.gmra.mrb[0].mxu0 %v249
  %v439 = vpop.f32.mrb[0].mxu0
  %v440 = vadd.f32 0.0, %v439
  %v441 = vpop.f32.mrb[0].mxu0
  %v442 = vpop.f32.mrb[0].mxu0
  %v443 = vadd.f32 0.0, %v442
  %v444 = vpop.f32.mrb[0].mxu0
  %445 = vmatprep.mubr.bf16.mxu0 0
  %446 = vmatmul.mubr.bf16.gmra.mrb[0].mxu0 %v252
  %v447 = vpop.f32.mrb[0].mxu0
  %v448 = vadd.f32 0.0, %v447
  %v449 = vpop.f32.mrb[0].mxu0
  %v450 = vpop.f32.mrb[0].mxu0
  %v451 = vadd.f32 0.0, %v450
  %v452 = vpop.f32.mrb[0].mxu0
  %453 = vmatprep.mubr.bf16.mxu0 0
  %454 = vmatmul.mubr.bf16.gmra.mrb[0].mxu0 %v255
  %v455 = vpop.f32.mrb[0].mxu0
  %v456 = vadd.f32 0.0, %v455
  %v457 = vpop.f32.mrb[0].mxu0
  %v458 = vpop.f32.mrb[0].mxu0
  %v459 = vadd.f32 0.0, %v458
  %v460 = vpop.f32.mrb[0].mxu0
  %461 = vmatprep.mubr.bf16.mxu0 0
  %462 = vmatmul.mubr.bf16.gmra.mrb[0].mxu0 %v258
  %v463 = vpop.f32.mrb[0].mxu0
  %v464 = vadd.f32 0.0, %v463
  %v465 = vpop.f32.mrb[0].mxu0
  %v466 = vpop.f32.mrb[0].mxu0
  %v467 = vadd.f32 0.0, %v466
  %v468 = vpop.f32.mrb[0].mxu0
  %469 = vmatprep.mubr.bf16.mxu0 0
  %470 = vmatmul.mubr.bf16.gmra.mrb[0].mxu0 %v261
  %v471 = vpop.f32.mrb[0].mxu0
  %v472 = vadd.f32 0.0, %v471
  %v473 = vpop.f32.mrb[0].mxu0
  %v474 = vpop.f32.mrb[0].mxu0
  %v475 = vadd.f32 0.0, %v474
  %v476 = vpop.f32.mrb[0].mxu0
  %477 = vmatprep.mubr.bf16.mxu0 0
  %478 = vmatmul.mubr.bf16.gmra.mrb[0].mxu0 %v264
  %v479 = vpop.f32.mrb[0].mxu0
  %v480 = vadd.f32 0.0, %v479
  %v481 = vpop.f32.mrb[0].mxu0
  %v482 = vpop.f32.mrb[0].mxu0
  %v483 = vadd.f32 0.0, %v482
  %v484 = vpop.f32.mrb[0].mxu0
  %485 = vmatprep.mubr.bf16.mxu0 0
  %486 = vmatmul.mubr.bf16.gmra.mrb[0].mxu0 %v267
  %v487 = vpop.f32.mrb[0].mxu0
  %v488 = vadd.f32 0.0, %v487
  %v489 = vpop.f32.mrb[0].mxu0
  %v490 = vpop.f32.mrb[0].mxu0
  %v491 = vadd.f32 0.0, %v490
  %v492 = vpop.f32.mrb[0].mxu0
  %493 = vmatprep.mubr.bf16.mxu0 0
  %494 = vmatmul.mubr.bf16.gmra.mrb[0].mxu0 %v270
  %v495 = vpop.f32.mrb[0].mxu0
  %v496 = vadd.f32 0.0, %v495
  %v497 = vpop.f32.mrb[0].mxu0
  %v498 = vpop.f32.mrb[0].mxu0
  %v499 = vadd.f32 0.0, %v498
  %v500 = vpop.f32.mrb[0].mxu0
  %501 = vmatprep.mubr.bf16.mxu0 0
  %502 = vmatmul.mubr.bf16.gmra.mrb[0].mxu0 %v273
  %v503 = vpop.f32.mrb[0].mxu0
  %v504 = vadd.f32 0.0, %v503
  %v505 = vpop.f32.mrb[0].mxu0
  %v506 = vpop.f32.mrb[0].mxu0
  %v507 = vadd.f32 0.0, %v506
  %v508 = vpop.f32.mrb[0].mxu0
  %509 = vmatprep.mubr.bf16.mxu0 0
  %510 = vmatmul.mubr.bf16.gmra.mrb[0].mxu0 %v276
  %v511 = vpop.f32.mrb[0].mxu0
  %v512 = vadd.f32 0.0, %v511
  %v513 = vpop.f32.mrb[0].mxu0
  %v514 = vpop.f32.mrb[0].mxu0
  %v515 = vpop.f32.mrb[0].mxu0
  %516 = vdwg.mxu0
  %s517 = scalar_lea.vmem %s0, 196
  %v518 = vld [vmem:[%s517] sm:$0xf]
  %v519 = vld [vmem:[%s517 + $0x4] sm:$0xf]
  %v520 = vld [vmem:[%s517 + $0x8] sm:$0xf]
  %v521 = vld [vmem:[%s517 + $0xc] sm:$0xf]
  %v522 = vld [vmem:[%s517 + $0x10] sm:$0xf]
  %v523 = vld [vmem:[%s517 + $0x14] sm:$0xf]
  %v524 = vld [vmem:[%s517 + $0x18] sm:$0xf]
  %v525 = vld [vmem:[%s517 + $0x1c] sm:$0xf]
  %v526 = vld [vmem:[%s517 + $0x20] sm:$0xf]
  %v527 = vld [vmem:[%s517 + $0x24] sm:$0xf]
  %v528 = vld [vmem:[%s517 + $0x28] sm:$0xf]
  %v529 = vld [vmem:[%s517 + $0x2c] sm:$0xf]
  %v530 = vld [vmem:[%s517 + $0x30] sm:$0xf]
  %v531 = vld [vmem:[%s517 + $0x34] sm:$0xf]
  %v532 = vld [vmem:[%s517 + $0x38] sm:$0xf]
  %v533 = vld [vmem:[%s517 + $0x3c] sm:$0xf]
  %v534 = vld [vmem:[%s517 + $0x40] sm:$0xf]
  %v535 = vld [vmem:[%s517 + $0x44] sm:$0xf]
  %v536 = vld [vmem:[%s517 + $0x48] sm:$0xf]
  %v537 = vld [vmem:[%s517 + $0x4c] sm:$0xf]
  %v538 = vld [vmem:[%s517 + $0x50] sm:$0xf]
  %v539 = vld [vmem:[%s517 + $0x54] sm:$0xf]
  %v540 = vld [vmem:[%s517 + $0x58] sm:$0xf]
  %v541 = vld [vmem:[%s517 + $0x5c] sm:$0xf]
  %v542 = vld [vmem:[%s517 + $0x60] sm:$0xf]
  %v543 = vld [vmem:[%s517 + $0x64] sm:$0xf]
  %v544 = vld [vmem:[%s517 + $0x68] sm:$0xf]
  %v545 = vld [vmem:[%s517 + $0x6c] sm:$0xf]
  %v546 = vld [vmem:[%s517 + $0x70] sm:$0xf]
  %v547 = vld [vmem:[%s517 + $0x74] sm:$0xf]
  %v548 = vld [vmem:[%s517 + $0x78] sm:$0xf]
  %v549 = vld [vmem:[%s517 + $0x7c] sm:$0xf]
  %v550 = vld [vmem:[%s517 + $0x80] sm:$0xf]
  %v551 = vld [vmem:[%s517 + $0x84] sm:$0xf]
  %v552 = vld [vmem:[%s517 + $0x88] sm:$0xf]
  %v553 = vld [vmem:[%s517 + $0x8c] sm:$0xf]
  %v554 = vld [vmem:[%s517 + $0x90] sm:$0xf]
  %v555 = vld [vmem:[%s517 + $0x94] sm:$0xf]
  %v556 = vld [vmem:[%s517 + $0x98] sm:$0xf]
  %v557 = vld [vmem:[%s517 + $0x9c] sm:$0xf]
  %v558 = vld [vmem:[%s517 + $0xa0] sm:$0xf]
  %v559 = vld [vmem:[%s517 + $0xa4] sm:$0xf]
  %v560 = vld [vmem:[%s517 + $0xa8] sm:$0xf]
  %v561 = vld [vmem:[%s517 + $0xac] sm:$0xf]
  %v562 = vld [vmem:[%s517 + $0xb0] sm:$0xf]
  %v563 = vld [vmem:[%s517 + $0xb4] sm:$0xf]
  %v564 = vld [vmem:[%s517 + $0xb8] sm:$0xf]
  %v565 = vld [vmem:[%s517 + $0xbc] sm:$0xf]
  %v566 = vld [vmem:[%s517 + $0xc0] sm:$0xf]
  %v616 = vunpack.c.l.b16 %v518
  %v617 = vunpack.c.l.b16 %v519
  %v618 = vunpack.c.l.b16 %v520
  %v619 = vunpack.c.l.b16 %v521
  %v620 = vunpack.c.l.b16 %v522
  %v621 = vunpack.c.l.b16 %v523
  %v622 = vunpack.c.l.b16 %v524
  %v623 = vunpack.c.l.b16 %v525
  %v624 = vunpack.c.l.b16 %v526
  %v625 = vunpack.c.l.b16 %v527
  %v626 = vunpack.c.l.b16 %v528
  %v627 = vunpack.c.l.b16 %v529
  %v628 = vunpack.c.l.b16 %v530
  %v629 = vunpack.c.l.b16 %v531
  %v630 = vunpack.c.l.b16 %v532
  %v631 = vunpack.c.l.b16 %v533
  %v632 = vunpack.c.l.b16 %v534
  %v633 = vunpack.c.l.b16 %v535
  %v634 = vunpack.c.l.b16 %v536
  %v635 = vunpack.c.l.b16 %v537
  %v636 = vunpack.c.l.b16 %v538
  %v637 = vunpack.c.l.b16 %v539
  %v638 = vunpack.c.l.b16 %v540
  %v639 = vunpack.c.l.b16 %v541
  %v640 = vunpack.c.l.b16 %v542
  %v641 = vunpack.c.l.b16 %v543
  %v642 = vunpack.c.l.b16 %v544
  %v643 = vunpack.c.l.b16 %v545
  %v644 = vunpack.c.l.b16 %v546
  %v645 = vunpack.c.l.b16 %v547
  %v646 = vunpack.c.l.b16 %v548
  %v647 = vunpack.c.l.b16 %v549
  %v648 = vunpack.c.l.b16 %v550
  %v649 = vunpack.c.l.b16 %v551
  %v650 = vunpack.c.l.b16 %v552
  %v651 = vunpack.c.l.b16 %v553
  %v652 = vunpack.c.l.b16 %v554
  %v653 = vunpack.c.l.b16 %v555
  %v654 = vunpack.c.l.b16 %v556
  %v655 = vunpack.c.l.b16 %v557
  %v656 = vunpack.c.l.b16 %v558
  %v657 = vunpack.c.l.b16 %v559
  %v658 = vunpack.c.l.b16 %v560
  %v659 = vunpack.c.l.b16 %v561
  %v660 = vunpack.c.l.b16 %v562
  %v661 = vunpack.c.l.b16 %v563
  %v662 = vunpack.c.l.b16 %v564
  %v663 = vunpack.c.l.b16 %v565
  %v664 = vunpack.c.l.b16 %v566
  %v665 = vpack.c.b16 %v617, %v616
  %v666 = vpack.c.b16 %v619, %v618
  %v667 = vpack.c.b16 %v621, %v620
  %v668 = vpack.c.b16 %v623, %v622
  %v669 = vpack.c.b16 %v625, %v624
  %v670 = vpack.c.b16 %v627, %v626
  %v671 = vpack.c.b16 %v629, %v628
  %v672 = vpack.c.b16 %v631, %v630
  %v673 = vpack.c.b16 %v633, %v632
  %v674 = vpack.c.b16 %v635, %v634
  %v675 = vpack.c.b16 %v637, %v636
  %v676 = vpack.c.b16 %v639, %v638
  %v677 = vpack.c.b16 %v641, %v640
  %v678 = vpack.c.b16 %v643, %v642
  %v679 = vpack.c.b16 %v645, %v644
  %v680 = vpack.c.b16 %v647, %v646
  %v681 = vpack.c.b16 %v649, %v648
  %v682 = vpack.c.b16 %v651, %v650
  %v683 = vpack.c.b16 %v653, %v652
  %v684 = vpack.c.b16 %v655, %v654
  %v685 = vpack.c.b16 %v657, %v656
  %v686 = vpack.c.b16 %v659, %v658
  %v687 = vpack.c.b16 %v661, %v660
  %v688 = vpack.c.b16 %v663, %v662
  %v689 = vpack.c.b16 %v664, %v664
  %v691 = vsel %vm202, %v665, 0
  %v694 = vsel %vm202, %v666, 0
  %v697 = vsel %vm202, %v667, 0
  %v700 = vsel %vm202, %v668, 0
  %v703 = vsel %vm202, %v669, 0
  %v706 = vsel %vm202, %v670, 0
  %v709 = vsel %vm202, %v671, 0
  %v712 = vsel %vm202, %v672, 0
  %v715 = vsel %vm202, %v673, 0
  %v718 = vsel %vm202, %v674, 0
  %v721 = vsel %vm202, %v675, 0
  %v724 = vsel %vm202, %v676, 0
  %v727 = vsel %vm202, %v677, 0
  %v730 = vsel %vm202, %v678, 0
  %v733 = vsel %vm202, %v679, 0
  %v736 = vsel %vm202, %v680, 0
  %v739 = vsel %vm202, %v681, 0
  %v742 = vsel %vm202, %v682, 0
  %v745 = vsel %vm202, %v683, 0
  %v748 = vsel %vm202, %v684, 0
  %v751 = vsel %vm202, %v685, 0
  %v754 = vsel %vm202, %v686, 0
  %v757 = vsel %vm202, %v687, 0
  %v760 = vsel %vm202, %v688, 0
  %v763 = vsel %vm202, %v689, 0
  %765 = vmatprep.subr.bf16.mxu0 0
  %766 = vmatpush1.bf16.msra.mxu0 %v199
  %767 = vmatprep.subr.bf16.mxu0 0
  %768 = vmatpush1.bf16.msra.mxu0 %v283
  %769 = vmatprep.subr.bf16.mxu0 0
  %770 = vmatpush1.bf16.msra.mxu0 0
  %771 = vmatprep.subr.bf16.mxu0 0
  %772 = vmatpush1.bf16.msra.mxu0 0
  %773 = vmatprep.subr.bf16.mxu0 0
  %774 = vmatpush1.bf16.msra.mxu0 0
  %775 = vmatprep.subr.bf16.mxu0 0
  %776 = vmatpush1.bf16.msra.mxu0 0
  %777 = vmatprep.subr.bf16.mxu0 0
  %778 = vmatpush1.bf16.msra.mxu0 0
  %779 = vmatprep.subr.bf16.mxu0 0
  %780 = vmatpush1.bf16.msra.mxu0 0
  %781 = vmatprep.subr.bf16.mxu0 0
  %782 = vmatpush1.bf16.msra.mxu0 0
  %783 = vmatprep.subr.bf16.mxu0 0
  %784 = vmatpush1.bf16.msra.mxu0 0
  %785 = vmatprep.subr.bf16.mxu0 0
  %786 = vmatpush1.bf16.msra.mxu0 0
  %787 = vmatprep.subr.bf16.mxu0 0
  %788 = vmatpush1.bf16.msra.mxu0 0
  %789 = vmatprep.subr.bf16.mxu0 0
  %790 = vmatpush1.bf16.msra.mxu0 0
  %791 = vmatprep.subr.bf16.mxu0 0
  %792 = vmatpush1.bf16.msra.mxu0 0
  %793 = vmatprep.subr.bf16.mxu0 0
  %794 = vmatpush1.bf16.msra.mxu0 0
  %795 = vmatprep.subr.bf16.mxu0 0
  %796 = vmatpush1.bf16.msra.mxu0 0
  %797 = vmatprep.mubr.bf16.mxu0 0
  %798 = vmatmul.mubr.bf16.gmra.mrb[0].mxu0 %v691
  %v799 = vpop.f32.mrb[0].mxu0
  %v800 = vadd.f32 0.0, %v799
  %v801 = vpop.f32.mrb[0].mxu0
  %v802 = vpop.f32.mrb[0].mxu0
  %v803 = vadd.f32 0.0, %v802
  %v804 = vpop.f32.mrb[0].mxu0
  %805 = vmatprep.mubr.bf16.mxu0 0
  %806 = vmatmul.mubr.bf16.gmra.mrb[0].mxu0 %v694
  %v807 = vpop.f32.mrb[0].mxu0
  %v808 = vadd.f32 0.0, %v807
  %v809 = vpop.f32.mrb[0].mxu0
  %v810 = vpop.f32.mrb[0].mxu0
  %v811 = vadd.f32 0.0, %v810
  %v812 = vpop.f32.mrb[0].mxu0
  %813 = vmatprep.mubr.bf16.mxu0 0
  %814 = vmatmul.mubr.bf16.gmra.mrb[0].mxu0 %v697
  %v815 = vpop.f32.mrb[0].mxu0
  %v816 = vadd.f32 0.0, %v815
  %v817 = vpop.f32.mrb[0].mxu0
  %v818 = vpop.f32.mrb[0].mxu0
  %v819 = vadd.f32 0.0, %v818
  %v820 = vpop.f32.mrb[0].mxu0
  %821 = vmatprep.mubr.bf16.mxu0 0
  %822 = vmatmul.mubr.bf16.gmra.mrb[0].mxu0 %v700
  %v823 = vpop.f32.mrb[0].mxu0
  %v824 = vadd.f32 0.0, %v823
  %v825 = vpop.f32.mrb[0].mxu0
  %v826 = vpop.f32.mrb[0].mxu0
  %v827 = vadd.f32 0.0, %v826
  %v828 = vpop.f32.mrb[0].mxu0
  %829 = vmatprep.mubr.bf16.mxu0 0
  %830 = vmatmul.mubr.bf16.gmra.mrb[0].mxu0 %v703
  %v831 = vpop.f32.mrb[0].mxu0
  %v832 = vadd.f32 0.0, %v831
  %v833 = vpop.f32.mrb[0].mxu0
  %v834 = vpop.f32.mrb[0].mxu0
  %v835 = vadd.f32 0.0, %v834
  %v836 = vpop.f32.mrb[0].mxu0
  %837 = vmatprep.mubr.bf16.mxu0 0
  %838 = vmatmul.mubr.bf16.gmra.mrb[0].mxu0 %v706
  %v839 = vpop.f32.mrb[0].mxu0
  %v840 = vadd.f32 0.0, %v839
  %v841 = vpop.f32.mrb[0].mxu0
  %v842 = vpop.f32.mrb[0].mxu0
  %v843 = vadd.f32 0.0, %v842
  %v844 = vpop.f32.mrb[0].mxu0
  %845 = vmatprep.mubr.bf16.mxu0 0
  %846 = vmatmul.mubr.bf16.gmra.mrb[0].mxu0 %v709
  %v847 = vpop.f32.mrb[0].mxu0
  %v848 = vadd.f32 0.0, %v847
  %v849 = vpop.f32.mrb[0].mxu0
  %v850 = vpop.f32.mrb[0].mxu0
  %v851 = vadd.f32 0.0, %v850
  %v852 = vpop.f32.mrb[0].mxu0
  %853 = vmatprep.mubr.bf16.mxu0 0
  %854 = vmatmul.mubr.bf16.gmra.mrb[0].mxu0 %v712
  %v855 = vpop.f32.mrb[0].mxu0
  %v856 = vadd.f32 0.0, %v855
  %v857 = vpop.f32.mrb[0].mxu0
  %v858 = vpop.f32.mrb[0].mxu0
  %v859 = vadd.f32 0.0, %v858
  %v860 = vpop.f32.mrb[0].mxu0
  %861 = vmatprep.mubr.bf16.mxu0 0
  %862 = vmatmul.mubr.bf16.gmra.mrb[0].mxu0 %v715
  %v863 = vpop.f32.mrb[0].mxu0
  %v864 = vadd.f32 0.0, %v863
  %v865 = vpop.f32.mrb[0].mxu0
  %v866 = vpop.f32.mrb[0].mxu0
  %v867 = vadd.f32 0.0, %v866
  %v868 = vpop.f32.mrb[0].mxu0
  %869 = vmatprep.mubr.bf16.mxu0 0
  %870 = vmatmul.mubr.bf16.gmra.mrb[0].mxu0 %v718
  %v871 = vpop.f32.mrb[0].mxu0
  %v872 = vadd.f32 0.0, %v871
  %v873 = vpop.f32.mrb[0].mxu0
  %v874 = vpop.f32.mrb[0].mxu0
  %v875 = vadd.f32 0.0, %v874
  %v876 = vpop.f32.mrb[0].mxu0
  %877 = vmatprep.mubr.bf16.mxu0 0
  %878 = vmatmul.mubr.bf16.gmra.mrb[0].mxu0 %v721
  %v879 = vpop.f32.mrb[0].mxu0
  %v880 = vadd.f32 0.0, %v879
  %v881 = vpop.f32.mrb[0].mxu0
  %v882 = vpop.f32.mrb[0].mxu0
  %v883 = vadd.f32 0.0, %v882
  %v884 = vpop.f32.mrb[0].mxu0
  %885 = vmatprep.mubr.bf16.mxu0 0
  %886 = vmatmul.mubr.bf16.gmra.mrb[0].mxu0 %v724
  %v887 = vpop.f32.mrb[0].mxu0
  %v888 = vadd.f32 0.0, %v887
  %v889 = vpop.f32.mrb[0].mxu0
  %v890 = vpop.f32.mrb[0].mxu0
  %v891 = vadd.f32 0.0, %v890
  %v892 = vpop.f32.mrb[0].mxu0
  %893 = vmatprep.mubr.bf16.mxu0 0
  %894 = vmatmul.mubr.bf16.gmra.mrb[0].mxu0 %v727
  %v895 = vpop.f32.mrb[0].mxu0
  %v896 = vadd.f32 0.0, %v895
  %v897 = vpop.f32.mrb[0].mxu0
  %v898 = vpop.f32.mrb[0].mxu0
  %v899 = vadd.f32 0.0, %v898
  %v900 = vpop.f32.mrb[0].mxu0
  %901 = vmatprep.mubr.bf16.mxu0 0
  %902 = vmatmul.mubr.bf16.gmra.mrb[0].mxu0 %v730
  %v903 = vpop.f32.mrb[0].mxu0
  %v904 = vadd.f32 0.0, %v903
  %v905 = vpop.f32.mrb[0].mxu0
  %v906 = vpop.f32.mrb[0].mxu0
  %v907 = vadd.f32 0.0, %v906
  %v908 = vpop.f32.mrb[0].mxu0
  %909 = vmatprep.mubr.bf16.mxu0 0
  %910 = vmatmul.mubr.bf16.gmra.mrb[0].mxu0 %v733
  %v911 = vpop.f32.mrb[0].mxu0
  %v912 = vadd.f32 0.0, %v911
  %v913 = vpop.f32.mrb[0].mxu0
  %v914 = vpop.f32.mrb[0].mxu0
  %v915 = vadd.f32 0.0, %v914
  %v916 = vpop.f32.mrb[0].mxu0
  %917 = vmatprep.mubr.bf16.mxu0 0
  %918 = vmatmul.mubr.bf16.gmra.mrb[0].mxu0 %v736
  %v919 = vpop.f32.mrb[0].mxu0
  %v920 = vadd.f32 0.0, %v919
  %v921 = vpop.f32.mrb[0].mxu0
  %v922 = vpop.f32.mrb[0].mxu0
  %v923 = vadd.f32 0.0, %v922
  %v924 = vpop.f32.mrb[0].mxu0
  %925 = vmatprep.mubr.bf16.mxu0 0
  %926 = vmatmul.mubr.bf16.gmra.mrb[0].mxu0 %v739
  %v927 = vpop.f32.mrb[0].mxu0
  %v928 = vadd.f32 0.0, %v927
  %v929 = vpop.f32.mrb[0].mxu0
  %v930 = vpop.f32.mrb[0].mxu0
  %v931 = vadd.f32 0.0, %v930
  %v932 = vpop.f32.mrb[0].mxu0
  %933 = vmatprep.mubr.bf16.mxu0 0
  %934 = vmatmul.mubr.bf16.gmra.mrb[0].mxu0 %v742
  %v935 = vpop.f32.mrb[0].mxu0
  %v936 = vadd.f32 0.0, %v935
  %v937 = vpop.f32.mrb[0].mxu0
  %v938 = vpop.f32.mrb[0].mxu0
  %v939 = vadd.f32 0.0, %v938
  %v940 = vpop.f32.mrb[0].mxu0
  %941 = vmatprep.mubr.bf16.mxu0 0
  %942 = vmatmul.mubr.bf16.gmra.mrb[0].mxu0 %v745
  %v943 = vpop.f32.mrb[0].mxu0
  %v944 = vadd.f32 0.0, %v943
  %v945 = vpop.f32.mrb[0].mxu0
  %v946 = vpop.f32.mrb[0].mxu0
  %v947 = vadd.f32 0.0, %v946
  %v948 = vpop.f32.mrb[0].mxu0
  %949 = vmatprep.mubr.bf16.mxu0 0
  %950 = vmatmul.mubr.bf16.gmra.mrb[0].mxu0 %v748
  %v951 = vpop.f32.mrb[0].mxu0
  %v952 = vadd.f32 0.0, %v951
  %v953 = vpop.f32.mrb[0].mxu0
  %v954 = vpop.f32.mrb[0].mxu0
  %v955 = vadd.f32 0.0, %v954
  %v956 = vpop.f32.mrb[0].mxu0
  %957 = vmatprep.mubr.bf16.mxu0 0
  %958 = vmatmul.mubr.bf16.gmra.mrb[0].mxu0 %v751
  %v959 = vpop.f32.mrb[0].mxu0
  %v960 = vadd.f32 0.0, %v959
  %v961 = vpop.f32.mrb[0].mxu0
  %v962 = vpop.f32.mrb[0].mxu0
  %v963 = vadd.f32 0.0, %v962
  %v964 = vpop.f32.mrb[0].mxu0
  %965 = vmatprep.mubr.bf16.mxu0 0
  %966 = vmatmul.mubr.bf16.gmra.mrb[0].mxu0 %v754
  %v967 = vpop.f32.mrb[0].mxu0
  %v968 = vadd.f32 0.0, %v967
  %v969 = vpop.f32.mrb[0].mxu0
  %v970 = vpop.f32.mrb[0].mxu0
  %v971 = vadd.f32 0.0, %v970
  %v972 = vpop.f32.mrb[0].mxu0
  %973 = vmatprep.mubr.bf16.mxu0 0
  %974 = vmatmul.mubr.bf16.gmra.mrb[0].mxu0 %v757
  %v975 = vpop.f32.mrb[0].mxu0
  %v976 = vadd.f32 0.0, %v975
  %v977 = vpop.f32.mrb[0].mxu0
  %v978 = vpop.f32.mrb[0].mxu0
  %v979 = vadd.f32 0.0, %v978
  %v980 = vpop.f32.mrb[0].mxu0
  %981 = vmatprep.mubr.bf16.mxu0 0
  %982 = vmatmul.mubr.bf16.gmra.mrb[0].mxu0 %v760
  %v983 = vpop.f32.mrb[0].mxu0
  %v984 = vadd.f32 0.0, %v983
  %v985 = vpop.f32.mrb[0].mxu0
  %v986 = vpop.f32.mrb[0].mxu0
  %v987 = vadd.f32 0.0, %v986
  %v988 = vpop.f32.mrb[0].mxu0
  %989 = vmatprep.mubr.bf16.mxu0 0
  %990 = vmatmul.mubr.bf16.gmra.mrb[0].mxu0 %v763
  %v991 = vpop.f32.mrb[0].mxu0
  %v992 = vadd.f32 0.0, %v991
  %v993 = vpop.f32.mrb[0].mxu0
  %v994 = vpop.f32.mrb[0].mxu0
  %v995 = vpop.f32.mrb[0].mxu0
  %996 = vdwg.mxu0
  %s997 = scalar_lea.vmem %s0, 392
  %v998 = vld [vmem:[%s997] sm:$0xf]
  %v999 = vld [vmem:[%s997 + $0x4] sm:$0xf]
  %v1000 = vld [vmem:[%s997 + $0x8] sm:$0xf]
  %v1001 = vld [vmem:[%s997 + $0xc] sm:$0xf]
  %v1002 = vld [vmem:[%s997 + $0x10] sm:$0xf]
  %v1003 = vld [vmem:[%s997 + $0x14] sm:$0xf]
  %v1004 = vld [vmem:[%s997 + $0x18] sm:$0xf]
  %v1005 = vld [vmem:[%s997 + $0x1c] sm:$0xf]
  %v1006 = vld [vmem:[%s997 + $0x20] sm:$0xf]
  %v1007 = vld [vmem:[%s997 + $0x24] sm:$0xf]
  %v1008 = vld [vmem:[%s997 + $0x28] sm:$0xf]
  %v1009 = vld [vmem:[%s997 + $0x2c] sm:$0xf]
  %v1010 = vld [vmem:[%s997 + $0x30] sm:$0xf]
  %v1011 = vld [vmem:[%s997 + $0x34] sm:$0xf]
  %v1012 = vld [vmem:[%s997 + $0x38] sm:$0xf]
  %v1013 = vld [vmem:[%s997 + $0x3c] sm:$0xf]
  %v1014 = vld [vmem:[%s997 + $0x40] sm:$0xf]
  %v1015 = vld [vmem:[%s997 + $0x44] sm:$0xf]
  %v1016 = vld [vmem:[%s997 + $0x48] sm:$0xf]
  %v1017 = vld [vmem:[%s997 + $0x4c] sm:$0xf]
  %v1018 = vld [vmem:[%s997 + $0x50] sm:$0xf]
  %v1019 = vld [vmem:[%s997 + $0x54] sm:$0xf]
  %v1020 = vld [vmem:[%s997 + $0x58] sm:$0xf]
  %v1021 = vld [vmem:[%s997 + $0x5c] sm:$0xf]
  %v1022 = vld [vmem:[%s997 + $0x60] sm:$0xf]
  %v1023 = vld [vmem:[%s997 + $0x64] sm:$0xf]
  %v1024 = vld [vmem:[%s997 + $0x68] sm:$0xf]
  %v1025 = vld [vmem:[%s997 + $0x6c] sm:$0xf]
  %v1026 = vld [vmem:[%s997 + $0x70] sm:$0xf]
  %v1027 = vld [vmem:[%s997 + $0x74] sm:$0xf]
  %v1028 = vld [vmem:[%s997 + $0x78] sm:$0xf]
  %v1029 = vld [vmem:[%s997 + $0x7c] sm:$0xf]
  %v1030 = vld [vmem:[%s997 + $0x80] sm:$0xf]
  %v1031 = vld [vmem:[%s997 + $0x84] sm:$0xf]
  %v1032 = vld [vmem:[%s997 + $0x88] sm:$0xf]
  %v1033 = vld [vmem:[%s997 + $0x8c] sm:$0xf]
  %v1034 = vld [vmem:[%s997 + $0x90] sm:$0xf]
  %v1035 = vld [vmem:[%s997 + $0x94] sm:$0xf]
  %v1036 = vld [vmem:[%s997 + $0x98] sm:$0xf]
  %v1037 = vld [vmem:[%s997 + $0x9c] sm:$0xf]
  %v1038 = vld [vmem:[%s997 + $0xa0] sm:$0xf]
  %v1039 = vld [vmem:[%s997 + $0xa4] sm:$0xf]
  %v1040 = vld [vmem:[%s997 + $0xa8] sm:$0xf]
  %v1041 = vld [vmem:[%s997 + $0xac] sm:$0xf]
  %v1042 = vld [vmem:[%s997 + $0xb0] sm:$0xf]
  %v1043 = vld [vmem:[%s997 + $0xb4] sm:$0xf]
  %v1044 = vld [vmem:[%s997 + $0xb8] sm:$0xf]
  %v1045 = vld [vmem:[%s997 + $0xbc] sm:$0xf]
  %v1046 = vld [vmem:[%s997 + $0xc0] sm:$0xf]
  %v1096 = vunpack.c.l.b16 %v998
  %v1097 = vunpack.c.l.b16 %v999
  %v1098 = vunpack.c.l.b16 %v1000
  %v1099 = vunpack.c.l.b16 %v1001
  %v1100 = vunpack.c.l.b16 %v1002
  %v1101 = vunpack.c.l.b16 %v1003
  %v1102 = vunpack.c.l.b16 %v1004
  %v1103 = vunpack.c.l.b16 %v1005
  %v1104 = vunpack.c.l.b16 %v1006
  %v1105 = vunpack.c.l.b16 %v1007
  %v1106 = vunpack.c.l.b16 %v1008
  %v1107 = vunpack.c.l.b16 %v1009
  %v1108 = vunpack.c.l.b16 %v1010
  %v1109 = vunpack.c.l.b16 %v1011
  %v1110 = vunpack.c.l.b16 %v1012
  %v1111 = vunpack.c.l.b16 %v1013
  %v1112 = vunpack.c.l.b16 %v1014
  %v1113 = vunpack.c.l.b16 %v1015
  %v1114 = vunpack.c.l.b16 %v1016
  %v1115 = vunpack.c.l.b16 %v1017
  %v1116 = vunpack.c.l.b16 %v1018
  %v1117 = vunpack.c.l.b16 %v1019
  %v1118 = vunpack.c.l.b16 %v1020
  %v1119 = vunpack.c.l.b16 %v1021
  %v1120 = vunpack.c.l.b16 %v1022
  %v1121 = vunpack.c.l.b16 %v1023
  %v1122 = vunpack.c.l.b16 %v1024
  %v1123 = vunpack.c.l.b16 %v1025
  %v1124 = vunpack.c.l.b16 %v1026
  %v1125 = vunpack.c.l.b16 %v1027
  %v1126 = vunpack.c.l.b16 %v1028
  %v1127 = vunpack.c.l.b16 %v1029
  %v1128 = vunpack.c.l.b16 %v1030
  %v1129 = vunpack.c.l.b16 %v1031
  %v1130 = vunpack.c.l.b16 %v1032
  %v1131 = vunpack.c.l.b16 %v1033
  %v1132 = vunpack.c.l.b16 %v1034
  %v1133 = vunpack.c.l.b16 %v1035
  %v1134 = vunpack.c.l.b16 %v1036
  %v1135 = vunpack.c.l.b16 %v1037
  %v1136 = vunpack.c.l.b16 %v1038
  %v1137 = vunpack.c.l.b16 %v1039
  %v1138 = vunpack.c.l.b16 %v1040
  %v1139 = vunpack.c.l.b16 %v1041
  %v1140 = vunpack.c.l.b16 %v1042
  %v1141 = vunpack.c.l.b16 %v1043
  %v1142 = vunpack.c.l.b16 %v1044
  %v1143 = vunpack.c.l.b16 %v1045
  %v1144 = vunpack.c.l.b16 %v1046
  %v1145 = vpack.c.b16 %v1097, %v1096
  %v1146 = vpack.c.b16 %v1099, %v1098
  %v1147 = vpack.c.b16 %v1101, %v1100
  %v1148 = vpack.c.b16 %v1103, %v1102
  %v1149 = vpack.c.b16 %v1105, %v1104
  %v1150 = vpack.c.b16 %v1107, %v1106
  %v1151 = vpack.c.b16 %v1109, %v1108
  %v1152 = vpack.c.b16 %v1111, %v1110
  %v1153 = vpack.c.b16 %v1113, %v1112
  %v1154 = vpack.c.b16 %v1115, %v1114
  %v1155 = vpack.c.b16 %v1117, %v1116
  %v1156 = vpack.c.b16 %v1119, %v1118
  %v1157 = vpack.c.b16 %v1121, %v1120
  %v1158 = vpack.c.b16 %v1123, %v1122
  %v1159 = vpack.c.b16 %v1125, %v1124
  %v1160 = vpack.c.b16 %v1127, %v1126
  %v1161 = vpack.c.b16 %v1129, %v1128
  %v1162 = vpack.c.b16 %v1131, %v1130
  %v1163 = vpack.c.b16 %v1133, %v1132
  %v1164 = vpack.c.b16 %v1135, %v1134
  %v1165 = vpack.c.b16 %v1137, %v1136
  %v1166 = vpack.c.b16 %v1139, %v1138
  %v1167 = vpack.c.b16 %v1141, %v1140
  %v1168 = vpack.c.b16 %v1143, %v1142
  %v1169 = vpack.c.b16 %v1144, %v1144
  %v1171 = vsel %vm202, %v1145, 0
  %v1174 = vsel %vm202, %v1146, 0
  %v1177 = vsel %vm202, %v1147, 0
  %v1180 = vsel %vm202, %v1148, 0
  %v1183 = vsel %vm202, %v1149, 0
  %v1186 = vsel %vm202, %v1150, 0
  %v1189 = vsel %vm202, %v1151, 0
  %v1192 = vsel %vm202, %v1152, 0
  %v1195 = vsel %vm202, %v1153, 0
  %v1198 = vsel %vm202, %v1154, 0
  %v1201 = vsel %vm202, %v1155, 0
  %v1204 = vsel %vm202, %v1156, 0
  %v1207 = vsel %vm202, %v1157, 0
  %v1210 = vsel %vm202, %v1158, 0
  %v1213 = vsel %vm202, %v1159, 0
  %v1216 = vsel %vm202, %v1160, 0
  %v1219 = vsel %vm202, %v1161, 0
  %v1222 = vsel %vm202, %v1162, 0
  %v1225 = vsel %vm202, %v1163, 0
  %v1228 = vsel %vm202, %v1164, 0
  %v1231 = vsel %vm202, %v1165, 0
  %v1234 = vsel %vm202, %v1166, 0
  %v1237 = vsel %vm202, %v1167, 0
  %v1240 = vsel %vm202, %v1168, 0
  %v1243 = vsel %vm202, %v1169, 0
  %1245 = vmatprep.subr.bf16.mxu0 0
  %1246 = vmatpush1.bf16.msra.mxu0 %v199
  %1247 = vmatprep.subr.bf16.mxu0 0
  %1248 = vmatpush1.bf16.msra.mxu0 %v283
  %1249 = vmatprep.subr.bf16.mxu0 0
  %1250 = vmatpush1.bf16.msra.mxu0 0
  %1251 = vmatprep.subr.bf16.mxu0 0
  %1252 = vmatpush1.bf16.msra.mxu0 0
  %1253 = vmatprep.subr.bf16.mxu0 0
  %1254 = vmatpush1.bf16.msra.mxu0 0
  %1255 = vmatprep.subr.bf16.mxu0 0
  %1256 = vmatpush1.bf16.msra.mxu0 0
  %1257 = vmatprep.subr.bf16.mxu0 0
  %1258 = vmatpush1.bf16.msra.mxu0 0
  %1259 = vmatprep.subr.bf16.mxu0 0
  %1260 = vmatpush1.bf16.msra.mxu0 0
  %1261 = vmatprep.subr.bf16.mxu0 0
  %1262 = vmatpush1.bf16.msra.mxu0 0
  %1263 = vmatprep.subr.bf16.mxu0 0
  %1264 = vmatpush1.bf16.msra.mxu0 0
  %1265 = vmatprep.subr.bf16.mxu0 0
  %1266 = vmatpush1.bf16.msra.mxu0 0
  %1267 = vmatprep.subr.bf16.mxu0 0
  %1268 = vmatpush1.bf16.msra.mxu0 0
  %1269 = vmatprep.subr.bf16.mxu0 0
  %1270 = vmatpush1.bf16.msra.mxu0 0
  %1271 = vmatprep.subr.bf16.mxu0 0
  %1272 = vmatpush1.bf16.msra.mxu0 0
  %1273 = vmatprep.subr.bf16.mxu0 0
  %1274 = vmatpush1.bf16.msra.mxu0 0
  %1275 = vmatprep.subr.bf16.mxu0 0
  %1276 = vmatpush1.bf16.msra.mxu0 0
  %1277 = vmatprep.mubr.bf16.mxu0 0
  %1278 = vmatmul.mubr.bf16.gmra.mrb[0].mxu0 %v1171
  %v1279 = vpop.f32.mrb[0].mxu0
  %v1280 = vadd.f32 0.0, %v1279
  %v1281 = vpop.f32.mrb[0].mxu0
  %v1282 = vpop.f32.mrb[0].mxu0
  %v1283 = vadd.f32 0.0, %v1282
  %v1284 = vpop.f32.mrb[0].mxu0
  %1285 = vmatprep.mubr.bf16.mxu0 0
  %1286 = vmatmul.mubr.bf16.gmra.mrb[0].mxu0 %v1174
  %v1287 = vpop.f32.mrb[0].mxu0
  %v1288 = vadd.f32 0.0, %v1287
  %v1289 = vpop.f32.mrb[0].mxu0
  %v1290 = vpop.f32.mrb[0].mxu0
  %v1291 = vadd.f32 0.0, %v1290
  %v1292 = vpop.f32.mrb[0].mxu0
  %1293 = vmatprep.mubr.bf16.mxu0 0
  %1294 = vmatmul.mubr.bf16.gmra.mrb[0].mxu0 %v1177
  %v1295 = vpop.f32.mrb[0].mxu0
  %v1296 = vadd.f32 0.0, %v1295
  %v1297 = vpop.f32.mrb[0].mxu0
  %v1298 = vpop.f32.mrb[0].mxu0
  %v1299 = vadd.f32 0.0, %v1298
  %v1300 = vpop.f32.mrb[0].mxu0
  %1301 = vmatprep.mubr.bf16.mxu0 0
  %1302 = vmatmul.mubr.bf16.gmra.mrb[0].mxu0 %v1180
  %v1303 = vpop.f32.mrb[0].mxu0
  %v1304 = vadd.f32 0.0, %v1303
  %v1305 = vpop.f32.mrb[0].mxu0
  %v1306 = vpop.f32.mrb[0].mxu0
  %v1307 = vadd.f32 0.0, %v1306
  %v1308 = vpop.f32.mrb[0].mxu0
  %1309 = vmatprep.mubr.bf16.mxu0 0
  %1310 = vmatmul.mubr.bf16.gmra.mrb[0].mxu0 %v1183
  %v1311 = vpop.f32.mrb[0].mxu0
  %v1312 = vadd.f32 0.0, %v1311
  %v1313 = vpop.f32.mrb[0].mxu0
  %v1314 = vpop.f32.mrb[0].mxu0
  %v1315 = vadd.f32 0.0, %v1314
  %v1316 = vpop.f32.mrb[0].mxu0
  %1317 = vmatprep.mubr.bf16.mxu0 0
  %1318 = vmatmul.mubr.bf16.gmra.mrb[0].mxu0 %v1186
  %v1319 = vpop.f32.mrb[0].mxu0
  %v1320 = vadd.f32 0.0, %v1319
  %v1321 = vpop.f32.mrb[0].mxu0
  %v1322 = vpop.f32.mrb[0].mxu0
  %v1323 = vadd.f32 0.0, %v1322
  %v1324 = vpop.f32.mrb[0].mxu0
  %1325 = vmatprep.mubr.bf16.mxu0 0
  %1326 = vmatmul.mubr.bf16.gmra.mrb[0].mxu0 %v1189
  %v1327 = vpop.f32.mrb[0].mxu0
  %v1328 = vadd.f32 0.0, %v1327
  %v1329 = vpop.f32.mrb[0].mxu0
  %v1330 = vpop.f32.mrb[0].mxu0
  %v1331 = vadd.f32 0.0, %v1330
  %v1332 = vpop.f32.mrb[0].mxu0
  %1333 = vmatprep.mubr.bf16.mxu0 0
  %1334 = vmatmul.mubr.bf16.gmra.mrb[0].mxu0 %v1192
  %v1335 = vpop.f32.mrb[0].mxu0
  %v1336 = vadd.f32 0.0, %v1335
  %v1337 = vpop.f32.mrb[0].mxu0
  %v1338 = vpop.f32.mrb[0].mxu0
  %v1339 = vadd.f32 0.0, %v1338
  %v1340 = vpop.f32.mrb[0].mxu0
  %1341 = vmatprep.mubr.bf16.mxu0 0
  %1342 = vmatmul.mubr.bf16.gmra.mrb[0].mxu0 %v1195
  %v1343 = vpop.f32.mrb[0].mxu0
  %v1344 = vadd.f32 0.0, %v1343
  %v1345 = vpop.f32.mrb[0].mxu0
  %v1346 = vpop.f32.mrb[0].mxu0
  %v1347 = vadd.f32 0.0, %v1346
  %v1348 = vpop.f32.mrb[0].mxu0
  %1349 = vmatprep.mubr.bf16.mxu0 0
  %1350 = vmatmul.mubr.bf16.gmra.mrb[0].mxu0 %v1198
  %v1351 = vpop.f32.mrb[0].mxu0
  %v1352 = vadd.f32 0.0, %v1351
  %v1353 = vpop.f32.mrb[0].mxu0
  %v1354 = vpop.f32.mrb[0].mxu0
  %v1355 = vadd.f32 0.0, %v1354
  %v1356 = vpop.f32.mrb[0].mxu0
  %1357 = vmatprep.mubr.bf16.mxu0 0
  %1358 = vmatmul.mubr.bf16.gmra.mrb[0].mxu0 %v1201
  %v1359 = vpop.f32.mrb[0].mxu0
  %v1360 = vadd.f32 0.0, %v1359
  %v1361 = vpop.f32.mrb[0].mxu0
  %v1362 = vpop.f32.mrb[0].mxu0
  %v1363 = vadd.f32 0.0, %v1362
  %v1364 = vpop.f32.mrb[0].mxu0
  %1365 = vmatprep.mubr.bf16.mxu0 0
  %1366 = vmatmul.mubr.bf16.gmra.mrb[0].mxu0 %v1204
  %v1367 = vpop.f32.mrb[0].mxu0
  %v1368 = vadd.f32 0.0, %v1367
  %v1369 = vpop.f32.mrb[0].mxu0
  %v1370 = vpop.f32.mrb[0].mxu0
  %v1371 = vadd.f32 0.0, %v1370
  %v1372 = vpop.f32.mrb[0].mxu0
  %1373 = vmatprep.mubr.bf16.mxu0 0
  %1374 = vmatmul.mubr.bf16.gmra.mrb[0].mxu0 %v1207
  %v1375 = vpop.f32.mrb[0].mxu0
  %v1376 = vadd.f32 0.0, %v1375
  %v1377 = vpop.f32.mrb[0].mxu0
  %v1378 = vpop.f32.mrb[0].mxu0
  %v1379 = vadd.f32 0.0, %v1378
  %v1380 = vpop.f32.mrb[0].mxu0
  %1381 = vmatprep.mubr.bf16.mxu0 0
  %1382 = vmatmul.mubr.bf16.gmra.mrb[0].mxu0 %v1210
  %v1383 = vpop.f32.mrb[0].mxu0
  %v1384 = vadd.f32 0.0, %v1383
  %v1385 = vpop.f32.mrb[0].mxu0
  %v1386 = vpop.f32.mrb[0].mxu0
  %v1387 = vadd.f32 0.0, %v1386
  %v1388 = vpop.f32.mrb[0].mxu0
  %1389 = vmatprep.mubr.bf16.mxu0 0
  %1390 = vmatmul.mubr.bf16.gmra.mrb[0].mxu0 %v1213
  %v1391 = vpop.f32.mrb[0].mxu0
  %v1392 = vadd.f32 0.0, %v1391
  %v1393 = vpop.f32.mrb[0].mxu0
  %v1394 = vpop.f32.mrb[0].mxu0
  %v1395 = vadd.f32 0.0, %v1394
  %v1396 = vpop.f32.mrb[0].mxu0
  %1397 = vmatprep.mubr.bf16.mxu0 0
  %1398 = vmatmul.mubr.bf16.gmra.mrb[0].mxu0 %v1216
  %v1399 = vpop.f32.mrb[0].mxu0
  %v1400 = vadd.f32 0.0, %v1399
  %v1401 = vpop.f32.mrb[0].mxu0
  %v1402 = vpop.f32.mrb[0].mxu0
  %v1403 = vadd.f32 0.0, %v1402
  %v1404 = vpop.f32.mrb[0].mxu0
  %1405 = vmatprep.mubr.bf16.mxu0 0
  %1406 = vmatmul.mubr.bf16.gmra.mrb[0].mxu0 %v1219
  %v1407 = vpop.f32.mrb[0].mxu0
  %v1408 = vadd.f32 0.0, %v1407
  %v1409 = vpop.f32.mrb[0].mxu0
  %v1410 = vpop.f32.mrb[0].mxu0
  %v1411 = vadd.f32 0.0, %v1410
  %v1412 = vpop.f32.mrb[0].mxu0
  %1413 = vmatprep.mubr.bf16.mxu0 0
  %1414 = vmatmul.mubr.bf16.gmra.mrb[0].mxu0 %v1222
  %v1415 = vpop.f32.mrb[0].mxu0
  %v1416 = vadd.f32 0.0, %v1415
  %v1417 = vpop.f32.mrb[0].mxu0
  %v1418 = vpop.f32.mrb[0].mxu0
  %v1419 = vadd.f32 0.0, %v1418
  %v1420 = vpop.f32.mrb[0].mxu0
  %1421 = vmatprep.mubr.bf16.mxu0 0
  %1422 = vmatmul.mubr.bf16.gmra.mrb[0].mxu0 %v1225
  %v1423 = vpop.f32.mrb[0].mxu0
  %v1424 = vadd.f32 0.0, %v1423
  %v1425 = vpop.f32.mrb[0].mxu0
  %v1426 = vpop.f32.mrb[0].mxu0
  %v1427 = vadd.f32 0.0, %v1426
  %v1428 = vpop.f32.mrb[0].mxu0
  %1429 = vmatprep.mubr.bf16.mxu0 0
  %1430 = vmatmul.mubr.bf16.gmra.mrb[0].mxu0 %v1228
  %v1431 = vpop.f32.mrb[0].mxu0
  %v1432 = vadd.f32 0.0, %v1431
  %v1433 = vpop.f32.mrb[0].mxu0
  %v1434 = vpop.f32.mrb[0].mxu0
  %v1435 = vadd.f32 0.0, %v1434
  %v1436 = vpop.f32.mrb[0].mxu0
  %1437 = vmatprep.mubr.bf16.mxu0 0
  %1438 = vmatmul.mubr.bf16.gmra.mrb[0].mxu0 %v1231
  %v1439 = vpop.f32.mrb[0].mxu0
  %v1440 = vadd.f32 0.0, %v1439
  %v1441 = vpop.f32.mrb[0].mxu0
  %v1442 = vpop.f32.mrb[0].mxu0
  %v1443 = vadd.f32 0.0, %v1442
  %v1444 = vpop.f32.mrb[0].mxu0
  %1445 = vmatprep.mubr.bf16.mxu0 0
  %1446 = vmatmul.mubr.bf16.gmra.mrb[0].mxu0 %v1234
  %v1447 = vpop.f32.mrb[0].mxu0
  %v1448 = vadd.f32 0.0, %v1447
  %v1449 = vpop.f32.mrb[0].mxu0
  %v1450 = vpop.f32.mrb[0].mxu0
  %v1451 = vadd.f32 0.0, %v1450
  %v1452 = vpop.f32.mrb[0].mxu0
  %1453 = vmatprep.mubr.bf16.mxu0 0
  %1454 = vmatmul.mubr.bf16.gmra.mrb[0].mxu0 %v1237
  %v1455 = vpop.f32.mrb[0].mxu0
  %v1456 = vadd.f32 0.0, %v1455
  %v1457 = vpop.f32.mrb[0].mxu0
  %v1458 = vpop.f32.mrb[0].mxu0
  %v1459 = vadd.f32 0.0, %v1458
  %v1460 = vpop.f32.mrb[0].mxu0
  %1461 = vmatprep.mubr.bf16.mxu0 0
  %1462 = vmatmul.mubr.bf16.gmra.mrb[0].mxu0 %v1240
  %v1463 = vpop.f32.mrb[0].mxu0
  %v1464 = vadd.f32 0.0, %v1463
  %v1465 = vpop.f32.mrb[0].mxu0
  %v1466 = vpop.f32.mrb[0].mxu0
  %v1467 = vadd.f32 0.0, %v1466
  %v1468 = vpop.f32.mrb[0].mxu0
  %1469 = vmatprep.mubr.bf16.mxu0 0
  %1470 = vmatmul.mubr.bf16.gmra.mrb[0].mxu0 %v1243
  %v1471 = vpop.f32.mrb[0].mxu0
  %v1472 = vadd.f32 0.0, %v1471
  %v1473 = vpop.f32.mrb[0].mxu0
  %v1474 = vpop.f32.mrb[0].mxu0
  %v1475 = vpop.f32.mrb[0].mxu0
  %1476 = vdwg.mxu0
  %s1477 = scalar_lea.vmem %s0, 588
  %v1478 = vld [vmem:[%s1477] sm:$0xf]
  %v1479 = vld [vmem:[%s1477 + $0x4] sm:$0xf]
  %v1480 = vld [vmem:[%s1477 + $0x8] sm:$0xf]
  %v1481 = vld [vmem:[%s1477 + $0xc] sm:$0xf]
  %v1482 = vld [vmem:[%s1477 + $0x10] sm:$0xf]
  %v1483 = vld [vmem:[%s1477 + $0x14] sm:$0xf]
  %v1484 = vld [vmem:[%s1477 + $0x18] sm:$0xf]
  %v1485 = vld [vmem:[%s1477 + $0x1c] sm:$0xf]
  %v1486 = vld [vmem:[%s1477 + $0x20] sm:$0xf]
  %v1487 = vld [vmem:[%s1477 + $0x24] sm:$0xf]
  %v1488 = vld [vmem:[%s1477 + $0x28] sm:$0xf]
  %v1489 = vld [vmem:[%s1477 + $0x2c] sm:$0xf]
  %v1490 = vld [vmem:[%s1477 + $0x30] sm:$0xf]
  %v1491 = vld [vmem:[%s1477 + $0x34] sm:$0xf]
  %v1492 = vld [vmem:[%s1477 + $0x38] sm:$0xf]
  %v1493 = vld [vmem:[%s1477 + $0x3c] sm:$0xf]
  %v1494 = vld [vmem:[%s1477 + $0x40] sm:$0xf]
  %v1495 = vld [vmem:[%s1477 + $0x44] sm:$0xf]
  %v1496 = vld [vmem:[%s1477 + $0x48] sm:$0xf]
  %v1497 = vld [vmem:[%s1477 + $0x4c] sm:$0xf]
  %v1498 = vld [vmem:[%s1477 + $0x50] sm:$0xf]
  %v1499 = vld [vmem:[%s1477 + $0x54] sm:$0xf]
  %v1500 = vld [vmem:[%s1477 + $0x58] sm:$0xf]
  %v1501 = vld [vmem:[%s1477 + $0x5c] sm:$0xf]
  %v1502 = vld [vmem:[%s1477 + $0x60] sm:$0xf]
  %v1503 = vld [vmem:[%s1477 + $0x64] sm:$0xf]
  %v1504 = vld [vmem:[%s1477 + $0x68] sm:$0xf]
  %v1505 = vld [vmem:[%s1477 + $0x6c] sm:$0xf]
  %v1506 = vld [vmem:[%s1477 + $0x70] sm:$0xf]
  %v1507 = vld [vmem:[%s1477 + $0x74] sm:$0xf]
  %v1508 = vld [vmem:[%s1477 + $0x78] sm:$0xf]
  %v1509 = vld [vmem:[%s1477 + $0x7c] sm:$0xf]
  %v1510 = vld [vmem:[%s1477 + $0x80] sm:$0xf]
  %v1511 = vld [vmem:[%s1477 + $0x84] sm:$0xf]
  %v1512 = vld [vmem:[%s1477 + $0x88] sm:$0xf]
  %v1513 = vld [vmem:[%s1477 + $0x8c] sm:$0xf]
  %v1514 = vld [vmem:[%s1477 + $0x90] sm:$0xf]
  %v1515 = vld [vmem:[%s1477 + $0x94] sm:$0xf]
  %v1516 = vld [vmem:[%s1477 + $0x98] sm:$0xf]
  %v1517 = vld [vmem:[%s1477 + $0x9c] sm:$0xf]
  %v1518 = vld [vmem:[%s1477 + $0xa0] sm:$0xf]
  %v1519 = vld [vmem:[%s1477 + $0xa4] sm:$0xf]
  %v1520 = vld [vmem:[%s1477 + $0xa8] sm:$0xf]
  %v1521 = vld [vmem:[%s1477 + $0xac] sm:$0xf]
  %v1522 = vld [vmem:[%s1477 + $0xb0] sm:$0xf]
  %v1523 = vld [vmem:[%s1477 + $0xb4] sm:$0xf]
  %v1524 = vld [vmem:[%s1477 + $0xb8] sm:$0xf]
  %v1525 = vld [vmem:[%s1477 + $0xbc] sm:$0xf]
  %v1526 = vld [vmem:[%s1477 + $0xc0] sm:$0xf]
  %v1576 = vunpack.c.l.b16 %v1478
  %v1577 = vunpack.c.l.b16 %v1479
  %v1578 = vunpack.c.l.b16 %v1480
  %v1579 = vunpack.c.l.b16 %v1481
  %v1580 = vunpack.c.l.b16 %v1482
  %v1581 = vunpack.c.l.b16 %v1483
  %v1582 = vunpack.c.l.b16 %v1484
  %v1583 = vunpack.c.l.b16 %v1485
  %v1584 = vunpack.c.l.b16 %v1486
  %v1585 = vunpack.c.l.b16 %v1487
  %v1586 = vunpack.c.l.b16 %v1488
  %v1587 = vunpack.c.l.b16 %v1489
  %v1588 = vunpack.c.l.b16 %v1490
  %v1589 = vunpack.c.l.b16 %v1491
  %v1590 = vunpack.c.l.b16 %v1492
  %v1591 = vunpack.c.l.b16 %v1493
  %v1592 = vunpack.c.l.b16 %v1494
  %v1593 = vunpack.c.l.b16 %v1495
  %v1594 = vunpack.c.l.b16 %v1496
  %v1595 = vunpack.c.l.b16 %v1497
  %v1596 = vunpack.c.l.b16 %v1498
  %v1597 = vunpack.c.l.b16 %v1499
  %v1598 = vunpack.c.l.b16 %v1500
  %v1599 = vunpack.c.l.b16 %v1501
  %v1600 = vunpack.c.l.b16 %v1502
  %v1601 = vunpack.c.l.b16 %v1503
  %v1602 = vunpack.c.l.b16 %v1504
  %v1603 = vunpack.c.l.b16 %v1505
  %v1604 = vunpack.c.l.b16 %v1506
  %v1605 = vunpack.c.l.b16 %v1507
  %v1606 = vunpack.c.l.b16 %v1508
  %v1607 = vunpack.c.l.b16 %v1509
  %v1608 = vunpack.c.l.b16 %v1510
  %v1609 = vunpack.c.l.b16 %v1511
  %v1610 = vunpack.c.l.b16 %v1512
  %v1611 = vunpack.c.l.b16 %v1513
  %v1612 = vunpack.c.l.b16 %v1514
  %v1613 = vunpack.c.l.b16 %v1515
  %v1614 = vunpack.c.l.b16 %v1516
  %v1615 = vunpack.c.l.b16 %v1517
  %v1616 = vunpack.c.l.b16 %v1518
  %v1617 = vunpack.c.l.b16 %v1519
  %v1618 = vunpack.c.l.b16 %v1520
  %v1619 = vunpack.c.l.b16 %v1521
  %v1620 = vunpack.c.l.b16 %v1522
  %v1621 = vunpack.c.l.b16 %v1523
  %v1622 = vunpack.c.l.b16 %v1524
  %v1623 = vunpack.c.l.b16 %v1525
  %v1624 = vunpack.c.l.b16 %v1526
  %v1625 = vpack.c.b16 %v1577, %v1576
  %v1626 = vpack.c.b16 %v1579, %v1578
  %v1627 = vpack.c.b16 %v1581, %v1580
  %v1628 = vpack.c.b16 %v1583, %v1582
  %v1629 = vpack.c.b16 %v1585, %v1584
  %v1630 = vpack.c.b16 %v1587, %v1586
  %v1631 = vpack.c.b16 %v1589, %v1588
  %v1632 = vpack.c.b16 %v1591, %v1590
  %v1633 = vpack.c.b16 %v1593, %v1592
  %v1634 = vpack.c.b16 %v1595, %v1594
  %v1635 = vpack.c.b16 %v1597, %v1596
  %v1636 = vpack.c.b16 %v1599, %v1598
  %v1637 = vpack.c.b16 %v1601, %v1600
  %v1638 = vpack.c.b16 %v1603, %v1602
  %v1639 = vpack.c.b16 %v1605, %v1604
  %v1640 = vpack.c.b16 %v1607, %v1606
  %v1641 = vpack.c.b16 %v1609, %v1608
  %v1642 = vpack.c.b16 %v1611, %v1610
  %v1643 = vpack.c.b16 %v1613, %v1612
  %v1644 = vpack.c.b16 %v1615, %v1614
  %v1645 = vpack.c.b16 %v1617, %v1616
  %v1646 = vpack.c.b16 %v1619, %v1618
  %v1647 = vpack.c.b16 %v1621, %v1620
  %v1648 = vpack.c.b16 %v1623, %v1622
  %v1649 = vpack.c.b16 %v1624, %v1624
  %v1651 = vsel %vm202, %v1625, 0
  %v1654 = vsel %vm202, %v1626, 0
  %v1657 = vsel %vm202, %v1627, 0
  %v1660 = vsel %vm202, %v1628, 0
  %v1663 = vsel %vm202, %v1629, 0
  %v1666 = vsel %vm202, %v1630, 0
  %v1669 = vsel %vm202, %v1631, 0
  %v1672 = vsel %vm202, %v1632, 0
  %v1675 = vsel %vm202, %v1633, 0
  %v1678 = vsel %vm202, %v1634, 0
  %v1681 = vsel %vm202, %v1635, 0
  %v1684 = vsel %vm202, %v1636, 0
  %v1687 = vsel %vm202, %v1637, 0
  %v1690 = vsel %vm202, %v1638, 0
  %v1693 = vsel %vm202, %v1639, 0
  %v1696 = vsel %vm202, %v1640, 0
  %v1699 = vsel %vm202, %v1641, 0
  %v1702 = vsel %vm202, %v1642, 0
  %v1705 = vsel %vm202, %v1643, 0
  %v1708 = vsel %vm202, %v1644, 0
  %v1711 = vsel %vm202, %v1645, 0
  %v1714 = vsel %vm202, %v1646, 0
  %v1717 = vsel %vm202, %v1647, 0
  %v1720 = vsel %vm202, %v1648, 0
  %v1723 = vsel %vm202, %v1649, 0
  %1725 = vmatprep.subr.bf16.mxu0 0
  %1726 = vmatpush1.bf16.msra.mxu0 %v199
  %1727 = vmatprep.subr.bf16.mxu0 0
  %1728 = vmatpush1.bf16.msra.mxu0 %v283
  %1729 = vmatprep.subr.bf16.mxu0 0
  %1730 = vmatpush1.bf16.msra.mxu0 0
  %1731 = vmatprep.subr.bf16.mxu0 0
  %1732 = vmatpush1.bf16.msra.mxu0 0
  %1733 = vmatprep.subr.bf16.mxu0 0
  %1734 = vmatpush1.bf16.msra.mxu0 0
  %1735 = vmatprep.subr.bf16.mxu0 0
  %1736 = vmatpush1.bf16.msra.mxu0 0
  %1737 = vmatprep.subr.bf16.mxu0 0
  %1738 = vmatpush1.bf16.msra.mxu0 0
  %1739 = vmatprep.subr.bf16.mxu0 0
  %1740 = vmatpush1.bf16.msra.mxu0 0
  %1741 = vmatprep.subr.bf16.mxu0 0
  %1742 = vmatpush1.bf16.msra.mxu0 0
  %1743 = vmatprep.subr.bf16.mxu0 0
  %1744 = vmatpush1.bf16.msra.mxu0 0
  %1745 = vmatprep.subr.bf16.mxu0 0
  %1746 = vmatpush1.bf16.msra.mxu0 0
  %1747 = vmatprep.subr.bf16.mxu0 0
  %1748 = vmatpush1.bf16.msra.mxu0 0
  %1749 = vmatprep.subr.bf16.mxu0 0
  %1750 = vmatpush1.bf16.msra.mxu0 0
  %1751 = vmatprep.subr.bf16.mxu0 0
  %1752 = vmatpush1.bf16.msra.mxu0 0
  %1753 = vmatprep.subr.bf16.mxu0 0
  %1754 = vmatpush1.bf16.msra.mxu0 0
  %1755 = vmatprep.subr.bf16.mxu0 0
  %1756 = vmatpush1.bf16.msra.mxu0 0
  %1757 = vmatprep.mubr.bf16.mxu0 0
  %1758 = vmatmul.mubr.bf16.gmra.mrb[0].mxu0 %v1651
  %v1759 = vpop.f32.mrb[0].mxu0
  %v1760 = vadd.f32 0.0, %v1759
  %v1761 = vpop.f32.mrb[0].mxu0
  %v1762 = vpop.f32.mrb[0].mxu0
  %v1763 = vadd.f32 0.0, %v1762
  %v1764 = vpop.f32.mrb[0].mxu0
  %1765 = vmatprep.mubr.bf16.mxu0 0
  %1766 = vmatmul.mubr.bf16.gmra.mrb[0].mxu0 %v1654
  %v1767 = vpop.f32.mrb[0].mxu0
  %v1768 = vadd.f32 0.0, %v1767
  %v1769 = vpop.f32.mrb[0].mxu0
  %v1770 = vpop.f32.mrb[0].mxu0
  %v1771 = vadd.f32 0.0, %v1770
  %v1772 = vpop.f32.mrb[0].mxu0
  %1773 = vmatprep.mubr.bf16.mxu0 0
  %1774 = vmatmul.mubr.bf16.gmra.mrb[0].mxu0 %v1657
  %v1775 = vpop.f32.mrb[0].mxu0
  %v1776 = vadd.f32 0.0, %v1775
  %v1777 = vpop.f32.mrb[0].mxu0
  %v1778 = vpop.f32.mrb[0].mxu0
  %v1779 = vadd.f32 0.0, %v1778
  %v1780 = vpop.f32.mrb[0].mxu0
  %1781 = vmatprep.mubr.bf16.mxu0 0
  %1782 = vmatmul.mubr.bf16.gmra.mrb[0].mxu0 %v1660
  %v1783 = vpop.f32.mrb[0].mxu0
  %v1784 = vadd.f32 0.0, %v1783
  %v1785 = vpop.f32.mrb[0].mxu0
  %v1786 = vpop.f32.mrb[0].mxu0
  %v1787 = vadd.f32 0.0, %v1786
  %v1788 = vpop.f32.mrb[0].mxu0
  %1789 = vmatprep.mubr.bf16.mxu0 0
  %1790 = vmatmul.mubr.bf16.gmra.mrb[0].mxu0 %v1663
  %v1791 = vpop.f32.mrb[0].mxu0
  %v1792 = vadd.f32 0.0, %v1791
  %v1793 = vpop.f32.mrb[0].mxu0
  %v1794 = vpop.f32.mrb[0].mxu0
  %v1795 = vadd.f32 0.0, %v1794
  %v1796 = vpop.f32.mrb[0].mxu0
  %1797 = vmatprep.mubr.bf16.mxu0 0
  %1798 = vmatmul.mubr.bf16.gmra.mrb[0].mxu0 %v1666
  %v1799 = vpop.f32.mrb[0].mxu0
  %v1800 = vadd.f32 0.0, %v1799
  %v1801 = vpop.f32.mrb[0].mxu0
  %v1802 = vpop.f32.mrb[0].mxu0
  %v1803 = vadd.f32 0.0, %v1802
  %v1804 = vpop.f32.mrb[0].mxu0
  %1805 = vmatprep.mubr.bf16.mxu0 0
  %1806 = vmatmul.mubr.bf16.gmra.mrb[0].mxu0 %v1669
  %v1807 = vpop.f32.mrb[0].mxu0
  %v1808 = vadd.f32 0.0, %v1807
  %v1809 = vpop.f32.mrb[0].mxu0
  %v1810 = vpop.f32.mrb[0].mxu0
  %v1811 = vadd.f32 0.0, %v1810
  %v1812 = vpop.f32.mrb[0].mxu0
  %1813 = vmatprep.mubr.bf16.mxu0 0
  %1814 = vmatmul.mubr.bf16.gmra.mrb[0].mxu0 %v1672
  %v1815 = vpop.f32.mrb[0].mxu0
  %v1816 = vadd.f32 0.0, %v1815
  %v1817 = vpop.f32.mrb[0].mxu0
  %v1818 = vpop.f32.mrb[0].mxu0
  %v1819 = vadd.f32 0.0, %v1818
  %v1820 = vpop.f32.mrb[0].mxu0
  %1821 = vmatprep.mubr.bf16.mxu0 0
  %1822 = vmatmul.mubr.bf16.gmra.mrb[0].mxu0 %v1675
  %v1823 = vpop.f32.mrb[0].mxu0
  %v1824 = vadd.f32 0.0, %v1823
  %v1825 = vpop.f32.mrb[0].mxu0
  %v1826 = vpop.f32.mrb[0].mxu0
  %v1827 = vadd.f32 0.0, %v1826
  %v1828 = vpop.f32.mrb[0].mxu0
  %1829 = vmatprep.mubr.bf16.mxu0 0
  %1830 = vmatmul.mubr.bf16.gmra.mrb[0].mxu0 %v1678
  %v1831 = vpop.f32.mrb[0].mxu0
  %v1832 = vadd.f32 0.0, %v1831
  %v1833 = vpop.f32.mrb[0].mxu0
  %v1834 = vpop.f32.mrb[0].mxu0
  %v1835 = vadd.f32 0.0, %v1834
  %v1836 = vpop.f32.mrb[0].mxu0
  %1837 = vmatprep.mubr.bf16.mxu0 0
  %1838 = vmatmul.mubr.bf16.gmra.mrb[0].mxu0 %v1681
  %v1839 = vpop.f32.mrb[0].mxu0
  %v1840 = vadd.f32 0.0, %v1839
  %v1841 = vpop.f32.mrb[0].mxu0
  %v1842 = vpop.f32.mrb[0].mxu0
  %v1843 = vadd.f32 0.0, %v1842
  %v1844 = vpop.f32.mrb[0].mxu0
  %1845 = vmatprep.mubr.bf16.mxu0 0
  %1846 = vmatmul.mubr.bf16.gmra.mrb[0].mxu0 %v1684
  %v1847 = vpop.f32.mrb[0].mxu0
  %v1848 = vadd.f32 0.0, %v1847
  %v1849 = vpop.f32.mrb[0].mxu0
  %v1850 = vpop.f32.mrb[0].mxu0
  %v1851 = vadd.f32 0.0, %v1850
  %v1852 = vpop.f32.mrb[0].mxu0
  %1853 = vmatprep.mubr.bf16.mxu0 0
  %1854 = vmatmul.mubr.bf16.gmra.mrb[0].mxu0 %v1687
  %v1855 = vpop.f32.mrb[0].mxu0
  %v1856 = vadd.f32 0.0, %v1855
  %v1857 = vpop.f32.mrb[0].mxu0
  %v1858 = vpop.f32.mrb[0].mxu0
  %v1859 = vadd.f32 0.0, %v1858
  %v1860 = vpop.f32.mrb[0].mxu0
  %1861 = vmatprep.mubr.bf16.mxu0 0
  %1862 = vmatmul.mubr.bf16.gmra.mrb[0].mxu0 %v1690
  %v1863 = vpop.f32.mrb[0].mxu0
  %v1864 = vadd.f32 0.0, %v1863
  %v1865 = vpop.f32.mrb[0].mxu0
  %v1866 = vpop.f32.mrb[0].mxu0
  %v1867 = vadd.f32 0.0, %v1866
  %v1868 = vpop.f32.mrb[0].mxu0
  %1869 = vmatprep.mubr.bf16.mxu0 0
  %1870 = vmatmul.mubr.bf16.gmra.mrb[0].mxu0 %v1693
  %v1871 = vpop.f32.mrb[0].mxu0
  %v1872 = vadd.f32 0.0, %v1871
  %v1873 = vpop.f32.mrb[0].mxu0
  %v1874 = vpop.f32.mrb[0].mxu0
  %v1875 = vadd.f32 0.0, %v1874
  %v1876 = vpop.f32.mrb[0].mxu0
  %1877 = vmatprep.mubr.bf16.mxu0 0
  %1878 = vmatmul.mubr.bf16.gmra.mrb[0].mxu0 %v1696
  %v1879 = vpop.f32.mrb[0].mxu0
  %v1880 = vadd.f32 0.0, %v1879
  %v1881 = vpop.f32.mrb[0].mxu0
  %v1882 = vpop.f32.mrb[0].mxu0
  %v1883 = vadd.f32 0.0, %v1882
  %v1884 = vpop.f32.mrb[0].mxu0
  %1885 = vmatprep.mubr.bf16.mxu0 0
  %1886 = vmatmul.mubr.bf16.gmra.mrb[0].mxu0 %v1699
  %v1887 = vpop.f32.mrb[0].mxu0
  %v1888 = vadd.f32 0.0, %v1887
  %v1889 = vpop.f32.mrb[0].mxu0
  %v1890 = vpop.f32.mrb[0].mxu0
  %v1891 = vadd.f32 0.0, %v1890
  %v1892 = vpop.f32.mrb[0].mxu0
  %1893 = vmatprep.mubr.bf16.mxu0 0
  %1894 = vmatmul.mubr.bf16.gmra.mrb[0].mxu0 %v1702
  %v1895 = vpop.f32.mrb[0].mxu0
  %v1896 = vadd.f32 0.0, %v1895
  %v1897 = vpop.f32.mrb[0].mxu0
  %v1898 = vpop.f32.mrb[0].mxu0
  %v1899 = vadd.f32 0.0, %v1898
  %v1900 = vpop.f32.mrb[0].mxu0
  %1901 = vmatprep.mubr.bf16.mxu0 0
  %1902 = vmatmul.mubr.bf16.gmra.mrb[0].mxu0 %v1705
  %v1903 = vpop.f32.mrb[0].mxu0
  %v1904 = vadd.f32 0.0, %v1903
  %v1905 = vpop.f32.mrb[0].mxu0
  %v1906 = vpop.f32.mrb[0].mxu0
  %v1907 = vadd.f32 0.0, %v1906
  %v1908 = vpop.f32.mrb[0].mxu0
  %1909 = vmatprep.mubr.bf16.mxu0 0
  %1910 = vmatmul.mubr.bf16.gmra.mrb[0].mxu0 %v1708
  %v1911 = vpop.f32.mrb[0].mxu0
  %v1912 = vadd.f32 0.0, %v1911
  %v1913 = vpop.f32.mrb[0].mxu0
  %v1914 = vpop.f32.mrb[0].mxu0
  %v1915 = vadd.f32 0.0, %v1914
  %v1916 = vpop.f32.mrb[0].mxu0
  %1917 = vmatprep.mubr.bf16.mxu0 0
  %1918 = vmatmul.mubr.bf16.gmra.mrb[0].mxu0 %v1711
  %v1919 = vpop.f32.mrb[0].mxu0
  %v1920 = vadd.f32 0.0, %v1919
  %v1921 = vpop.f32.mrb[0].mxu0
  %v1922 = vpop.f32.mrb[0].mxu0
  %v1923 = vadd.f32 0.0, %v1922
  %v1924 = vpop.f32.mrb[0].mxu0
  %1925 = vmatprep.mubr.bf16.mxu0 0
  %1926 = vmatmul.mubr.bf16.gmra.mrb[0].mxu0 %v1714
  %v1927 = vpop.f32.mrb[0].mxu0
  %v1928 = vadd.f32 0.0, %v1927
  %v1929 = vpop.f32.mrb[0].mxu0
  %v1930 = vpop.f32.mrb[0].mxu0
  %v1931 = vadd.f32 0.0, %v1930
  %v1932 = vpop.f32.mrb[0].mxu0
  %1933 = vmatprep.mubr.bf16.mxu0 0
  %1934 = vmatmul.mubr.bf16.gmra.mrb[0].mxu0 %v1717
  %v1935 = vpop.f32.mrb[0].mxu0
  %v1936 = vadd.f32 0.0, %v1935
  %v1937 = vpop.f32.mrb[0].mxu0
  %v1938 = vpop.f32.mrb[0].mxu0
  %v1939 = vadd.f32 0.0, %v1938
  %v1940 = vpop.f32.mrb[0].mxu0
  %1941 = vmatprep.mubr.bf16.mxu0 0
  %1942 = vmatmul.mubr.bf16.gmra.mrb[0].mxu0 %v1720
  %v1943 = vpop.f32.mrb[0].mxu0
  %v1944 = vadd.f32 0.0, %v1943
  %v1945 = vpop.f32.mrb[0].mxu0
  %v1946 = vpop.f32.mrb[0].mxu0
  %v1947 = vadd.f32 0.0, %v1946
  %v1948 = vpop.f32.mrb[0].mxu0
  %1949 = vmatprep.mubr.bf16.mxu0 0
  %1950 = vmatmul.mubr.bf16.gmra.mrb[0].mxu0 %v1723
  %v1951 = vpop.f32.mrb[0].mxu0
  %v1952 = vadd.f32 0.0, %v1951
  %v1953 = vpop.f32.mrb[0].mxu0
  %v1954 = vpop.f32.mrb[0].mxu0
  %v1955 = vpop.f32.mrb[0].mxu0
  %1956 = vdwg.mxu0
  %v1957 = vmax.f32 %v320, %v800
  %v1958 = vmax.f32 %v323, %v803
  %v1959 = vmax.f32 %v328, %v808
  %v1960 = vmax.f32 %v331, %v811
  %v1961 = vmax.f32 %v336, %v816
  %v1962 = vmax.f32 %v339, %v819
  %v1963 = vmax.f32 %v344, %v824
  %v1964 = vmax.f32 %v347, %v827
  %v1965 = vmax.f32 %v352, %v832
  %v1966 = vmax.f32 %v355, %v835
  %v1967 = vmax.f32 %v360, %v840
  %v1968 = vmax.f32 %v363, %v843
  %v1969 = vmax.f32 %v368, %v848
  %v1970 = vmax.f32 %v371, %v851
  %v1971 = vmax.f32 %v376, %v856
  %v1972 = vmax.f32 %v379, %v859
  %v1973 = vmax.f32 %v384, %v864
  %v1974 = vmax.f32 %v387, %v867
  %v1975 = vmax.f32 %v392, %v872
  %v1976 = vmax.f32 %v395, %v875
  %v1977 = vmax.f32 %v400, %v880
  %v1978 = vmax.f32 %v403, %v883
  %v1979 = vmax.f32 %v408, %v888
  %v1980 = vmax.f32 %v411, %v891
  %v1981 = vmax.f32 %v416, %v896
  %v1982 = vmax.f32 %v419, %v899
  %v1983 = vmax.f32 %v424, %v904
  %v1984 = vmax.f32 %v427, %v907
  %v1985 = vmax.f32 %v432, %v912
  %v1986 = vmax.f32 %v435, %v915
  %v1987 = vmax.f32 %v440, %v920
  %v1988 = vmax.f32 %v443, %v923
  %v1989 = vmax.f32 %v448, %v928
  %v1990 = vmax.f32 %v451, %v931
  %v1991 = vmax.f32 %v456, %v936
  %v1992 = vmax.f32 %v459, %v939
  %v1993 = vmax.f32 %v464, %v944
  %v1994 = vmax.f32 %v467, %v947
  %v1995 = vmax.f32 %v472, %v952
  %v1996 = vmax.f32 %v475, %v955
  %v1997 = vmax.f32 %v480, %v960
  %v1998 = vmax.f32 %v483, %v963
  %v1999 = vmax.f32 %v488, %v968
  %v2000 = vmax.f32 %v491, %v971
  %v2001 = vmax.f32 %v496, %v976
  %v2002 = vmax.f32 %v499, %v979
  %v2003 = vmax.f32 %v504, %v984
  %v2004 = vmax.f32 %v507, %v987
  %v2005 = vmax.f32 %v512, %v992
  %v2006 = vmax.f32 %v1280, %v1760
  %v2007 = vmax.f32 %v1283, %v1763
  %v2008 = vmax.f32 %v1288, %v1768
  %v2009 = vmax.f32 %v1291, %v1771
  %v2010 = vmax.f32 %v1296, %v1776
  %v2011 = vmax.f32 %v1299, %v1779
  %v2012 = vmax.f32 %v1304, %v1784
  %v2013 = vmax.f32 %v1307, %v1787
  %v2014 = vmax.f32 %v1312, %v1792
  %v2015 = vmax.f32 %v1315, %v1795
  %v2016 = vmax.f32 %v1320, %v1800
  %v2017 = vmax.f32 %v1323, %v1803
  %v2018 = vmax.f32 %v1328, %v1808
  %v2019 = vmax.f32 %v1331, %v1811
  %v2020 = vmax.f32 %v1336, %v1816
  %v2021 = vmax.f32 %v1339, %v1819
  %v2022 = vmax.f32 %v1344, %v1824
  %v2023 = vmax.f32 %v1347, %v1827
  %v2024 = vmax.f32 %v1352, %v1832
  %v2025 = vmax.f32 %v1355, %v1835
  %v2026 = vmax.f32 %v1360, %v1840
  %v2027 = vmax.f32 %v1363, %v1843
  %v2028 = vmax.f32 %v1368, %v1848
  %v2029 = vmax.f32 %v1371, %v1851
  %v2030 = vmax.f32 %v1376, %v1856
  %v2031 = vmax.f32 %v1379, %v1859
  %v2032 = vmax.f32 %v1384, %v1864
  %v2033 = vmax.f32 %v1387, %v1867
  %v2034 = vmax.f32 %v1392, %v1872
  %v2035 = vmax.f32 %v1395, %v1875
  %v2036 = vmax.f32 %v1400, %v1880
  %v2037 = vmax.f32 %v1403, %v1883
  %v2038 = vmax.f32 %v1408, %v1888
  %v2039 = vmax.f32 %v1411, %v1891
  %v2040 = vmax.f32 %v1416, %v1896
  %v2041 = vmax.f32 %v1419, %v1899
  %v2042 = vmax.f32 %v1424, %v1904
  %v2043 = vmax.f32 %v1427, %v1907
  %v2044 = vmax.f32 %v1432, %v1912
  %v2045 = vmax.f32 %v1435, %v1915
  %v2046 = vmax.f32 %v1440, %v1920
  %v2047 = vmax.f32 %v1443, %v1923
  %v2048 = vmax.f32 %v1448, %v1928
  %v2049 = vmax.f32 %v1451, %v1931
  %v2050 = vmax.f32 %v1456, %v1936
  %v2051 = vmax.f32 %v1459, %v1939
  %v2052 = vmax.f32 %v1464, %v1944
  %v2053 = vmax.f32 %v1467, %v1947
  %v2054 = vmax.f32 %v1472, %v1952
  %v2055 = vmax.f32 %v1957, %v2006
  %v2056 = vmax.f32 %v1958, %v2007
  %v2057 = vmax.f32 %v1959, %v2008
  %v2058 = vmax.f32 %v1960, %v2009
  %v2059 = vmax.f32 %v1961, %v2010
  %v2060 = vmax.f32 %v1962, %v2011
  %v2061 = vmax.f32 %v1963, %v2012
  %v2062 = vmax.f32 %v1964, %v2013
  %v2063 = vmax.f32 %v1965, %v2014
  %v2064 = vmax.f32 %v1966, %v2015
  %v2065 = vmax.f32 %v1967, %v2016
  %v2066 = vmax.f32 %v1968, %v2017
  %v2067 = vmax.f32 %v1969, %v2018
  %v2068 = vmax.f32 %v1970, %v2019
  %v2069 = vmax.f32 %v1971, %v2020
  %v2070 = vmax.f32 %v1972, %v2021
  %v2071 = vmax.f32 %v1973, %v2022
  %v2072 = vmax.f32 %v1974, %v2023
  %v2073 = vmax.f32 %v1975, %v2024
  %v2074 = vmax.f32 %v1976, %v2025
  %v2075 = vmax.f32 %v1977, %v2026
  %v2076 = vmax.f32 %v1978, %v2027
  %v2077 = vmax.f32 %v1979, %v2028
  %v2078 = vmax.f32 %v1980, %v2029
  %v2079 = vmax.f32 %v1981, %v2030
  %v2080 = vmax.f32 %v1982, %v2031
  %v2081 = vmax.f32 %v1983, %v2032
  %v2082 = vmax.f32 %v1984, %v2033
  %v2083 = vmax.f32 %v1985, %v2034
  %v2084 = vmax.f32 %v1986, %v2035
  %v2085 = vmax.f32 %v1987, %v2036
  %v2086 = vmax.f32 %v1988, %v2037
  %v2087 = vmax.f32 %v1989, %v2038
  %v2088 = vmax.f32 %v1990, %v2039
  %v2089 = vmax.f32 %v1991, %v2040
  %v2090 = vmax.f32 %v1992, %v2041
  %v2091 = vmax.f32 %v1993, %v2042
  %v2092 = vmax.f32 %v1994, %v2043
  %v2093 = vmax.f32 %v1995, %v2044
  %v2094 = vmax.f32 %v1996, %v2045
  %v2095 = vmax.f32 %v1997, %v2046
  %v2096 = vmax.f32 %v1998, %v2047
  %v2097 = vmax.f32 %v1999, %v2048
  %v2098 = vmax.f32 %v2000, %v2049
  %v2099 = vmax.f32 %v2001, %v2050
  %v2100 = vmax.f32 %v2002, %v2051
  %v2101 = vmax.f32 %v2003, %v2052
  %v2102 = vmax.f32 %v2004, %v2053
  %v2103 = vmax.f32 %v2005, %v2054
  %v2104 = vld [vmem:[%s2] sm:$0x1]
  %v2106 = vlaneseq
  %v2107 = vshrl.u32 %v2106, 7
  %v2108 = vsub.s32 0, %v2107
  %v2109 = vrot.slane %v2104, %v2108
  %v2111 = vadd.f32 %v2055, %v2109
  %v2112 = vadd.f32 %v2056, %v2109
  %v2113 = vadd.f32 %v2057, %v2109
  %v2114 = vadd.f32 %v2058, %v2109
  %v2115 = vadd.f32 %v2059, %v2109
  %v2116 = vadd.f32 %v2060, %v2109
  %v2117 = vadd.f32 %v2061, %v2109
  %v2118 = vadd.f32 %v2062, %v2109
  %v2119 = vadd.f32 %v2063, %v2109
  %v2120 = vadd.f32 %v2064, %v2109
  %v2121 = vadd.f32 %v2065, %v2109
  %v2122 = vadd.f32 %v2066, %v2109
  %v2123 = vadd.f32 %v2067, %v2109
  %v2124 = vadd.f32 %v2068, %v2109
  %v2125 = vadd.f32 %v2069, %v2109
  %v2126 = vadd.f32 %v2070, %v2109
  %v2127 = vadd.f32 %v2071, %v2109
  %v2128 = vadd.f32 %v2072, %v2109
  %v2129 = vadd.f32 %v2073, %v2109
  %v2130 = vadd.f32 %v2074, %v2109
  %v2131 = vadd.f32 %v2075, %v2109
  %v2132 = vadd.f32 %v2076, %v2109
  %v2133 = vadd.f32 %v2077, %v2109
  %v2134 = vadd.f32 %v2078, %v2109
  %v2135 = vadd.f32 %v2079, %v2109
  %v2136 = vadd.f32 %v2080, %v2109
  %v2137 = vadd.f32 %v2081, %v2109
  %v2138 = vadd.f32 %v2082, %v2109
  %v2139 = vadd.f32 %v2083, %v2109
  %v2140 = vadd.f32 %v2084, %v2109
  %v2141 = vadd.f32 %v2085, %v2109
  %v2142 = vadd.f32 %v2086, %v2109
  %v2143 = vadd.f32 %v2087, %v2109
  %v2144 = vadd.f32 %v2088, %v2109
  %v2145 = vadd.f32 %v2089, %v2109
  %v2146 = vadd.f32 %v2090, %v2109
  %v2147 = vadd.f32 %v2091, %v2109
  %v2148 = vadd.f32 %v2092, %v2109
  %v2149 = vadd.f32 %v2093, %v2109
  %v2150 = vadd.f32 %v2094, %v2109
  %v2151 = vadd.f32 %v2095, %v2109
  %v2152 = vadd.f32 %v2096, %v2109
  %v2153 = vadd.f32 %v2097, %v2109
  %v2154 = vadd.f32 %v2098, %v2109
  %v2155 = vadd.f32 %v2099, %v2109
  %v2156 = vadd.f32 %v2100, %v2109
  %v2157 = vadd.f32 %v2101, %v2109
  %v2158 = vadd.f32 %v2102, %v2109
  %v2159 = vadd.f32 %v2103, %v2109
  %v2160 = vmax.f32 %v2111, 0.0
  %v2161 = vmax.f32 %v2112, 0.0
  %v2162 = vmax.f32 %v2113, 0.0
  %v2163 = vmax.f32 %v2114, 0.0
  %v2164 = vmax.f32 %v2115, 0.0
  %v2165 = vmax.f32 %v2116, 0.0
  %v2166 = vmax.f32 %v2117, 0.0
  %v2167 = vmax.f32 %v2118, 0.0
  %v2168 = vmax.f32 %v2119, 0.0
  %v2169 = vmax.f32 %v2120, 0.0
  %v2170 = vmax.f32 %v2121, 0.0
  %v2171 = vmax.f32 %v2122, 0.0
  %v2172 = vmax.f32 %v2123, 0.0
  %v2173 = vmax.f32 %v2124, 0.0
  %v2174 = vmax.f32 %v2125, 0.0
  %v2175 = vmax.f32 %v2126, 0.0
  %v2176 = vmax.f32 %v2127, 0.0
  %v2177 = vmax.f32 %v2128, 0.0
  %v2178 = vmax.f32 %v2129, 0.0
  %v2179 = vmax.f32 %v2130, 0.0
  %v2180 = vmax.f32 %v2131, 0.0
  %v2181 = vmax.f32 %v2132, 0.0
  %v2182 = vmax.f32 %v2133, 0.0
  %v2183 = vmax.f32 %v2134, 0.0
  %v2184 = vmax.f32 %v2135, 0.0
  %v2185 = vmax.f32 %v2136, 0.0
  %v2186 = vmax.f32 %v2137, 0.0
  %v2187 = vmax.f32 %v2138, 0.0
  %v2188 = vmax.f32 %v2139, 0.0
  %v2189 = vmax.f32 %v2140, 0.0
  %v2190 = vmax.f32 %v2141, 0.0
  %v2191 = vmax.f32 %v2142, 0.0
  %v2192 = vmax.f32 %v2143, 0.0
  %v2193 = vmax.f32 %v2144, 0.0
  %v2194 = vmax.f32 %v2145, 0.0
  %v2195 = vmax.f32 %v2146, 0.0
  %v2196 = vmax.f32 %v2147, 0.0
  %v2197 = vmax.f32 %v2148, 0.0
  %v2198 = vmax.f32 %v2149, 0.0
  %v2199 = vmax.f32 %v2150, 0.0
  %v2200 = vmax.f32 %v2151, 0.0
  %v2201 = vmax.f32 %v2152, 0.0
  %v2202 = vmax.f32 %v2153, 0.0
  %v2203 = vmax.f32 %v2154, 0.0
  %v2204 = vmax.f32 %v2155, 0.0
  %v2205 = vmax.f32 %v2156, 0.0
  %v2206 = vmax.f32 %v2157, 0.0
  %v2207 = vmax.f32 %v2158, 0.0
  %v2208 = vmax.f32 %v2159, 0.0
  %v2209 = vpack.c.bf16 %v2161, %v2160
  %v2210 = vpack.c.bf16 %v2163, %v2162
  %v2211 = vpack.c.bf16 %v2165, %v2164
  %v2212 = vpack.c.bf16 %v2167, %v2166
  %v2213 = vpack.c.bf16 %v2169, %v2168
  %v2214 = vpack.c.bf16 %v2171, %v2170
  %v2215 = vpack.c.bf16 %v2173, %v2172
  %v2216 = vpack.c.bf16 %v2175, %v2174
  %v2217 = vpack.c.bf16 %v2177, %v2176
  %v2218 = vpack.c.bf16 %v2179, %v2178
  %v2219 = vpack.c.bf16 %v2181, %v2180
  %v2220 = vpack.c.bf16 %v2183, %v2182
  %v2221 = vpack.c.bf16 %v2185, %v2184
  %v2222 = vpack.c.bf16 %v2187, %v2186
  %v2223 = vpack.c.bf16 %v2189, %v2188
  %v2224 = vpack.c.bf16 %v2191, %v2190
  %v2225 = vpack.c.bf16 %v2193, %v2192
  %v2226 = vpack.c.bf16 %v2195, %v2194
  %v2227 = vpack.c.bf16 %v2197, %v2196
  %v2228 = vpack.c.bf16 %v2199, %v2198
  %v2229 = vpack.c.bf16 %v2201, %v2200
  %v2230 = vpack.c.bf16 %v2203, %v2202
  %v2231 = vpack.c.bf16 %v2205, %v2204
  %v2232 = vpack.c.bf16 %v2207, %v2206
  %v2233 = vpack.c.bf16 %v2208, %v2208
  %v2259 = vunpack.c.l.b16 %v2209
  %v2260 = vunpack.c.h.b16 %v2209
  %v2261 = vunpack.c.l.b16 %v2210
  %v2262 = vunpack.c.h.b16 %v2210
  %v2263 = vunpack.c.l.b16 %v2211
  %v2264 = vunpack.c.h.b16 %v2211
  %v2265 = vunpack.c.l.b16 %v2212
  %v2266 = vunpack.c.h.b16 %v2212
  %v2267 = vunpack.c.l.b16 %v2213
  %v2268 = vunpack.c.h.b16 %v2213
  %v2269 = vunpack.c.l.b16 %v2214
  %v2270 = vunpack.c.h.b16 %v2214
  %v2271 = vunpack.c.l.b16 %v2215
  %v2272 = vunpack.c.h.b16 %v2215
  %v2273 = vunpack.c.l.b16 %v2216
  %v2274 = vunpack.c.h.b16 %v2216
  %v2275 = vunpack.c.l.b16 %v2217
  %v2276 = vunpack.c.h.b16 %v2217
  %v2277 = vunpack.c.l.b16 %v2218
  %v2278 = vunpack.c.h.b16 %v2218
  %v2279 = vunpack.c.l.b16 %v2219
  %v2280 = vunpack.c.h.b16 %v2219
  %v2281 = vunpack.c.l.b16 %v2220
  %v2282 = vunpack.c.h.b16 %v2220
  %v2283 = vunpack.c.l.b16 %v2221
  %v2284 = vunpack.c.h.b16 %v2221
  %v2285 = vunpack.c.l.b16 %v2222
  %v2286 = vunpack.c.h.b16 %v2222
  %v2287 = vunpack.c.l.b16 %v2223
  %v2288 = vunpack.c.h.b16 %v2223
  %v2289 = vunpack.c.l.b16 %v2224
  %v2290 = vunpack.c.h.b16 %v2224
  %v2291 = vunpack.c.l.b16 %v2225
  %v2292 = vunpack.c.h.b16 %v2225
  %v2293 = vunpack.c.l.b16 %v2226
  %v2294 = vunpack.c.h.b16 %v2226
  %v2295 = vunpack.c.l.b16 %v2227
  %v2296 = vunpack.c.h.b16 %v2227
  %v2297 = vunpack.c.l.b16 %v2228
  %v2298 = vunpack.c.h.b16 %v2228
  %v2299 = vunpack.c.l.b16 %v2229
  %v2300 = vunpack.c.h.b16 %v2229
  %v2301 = vunpack.c.l.b16 %v2230
  %v2302 = vunpack.c.h.b16 %v2230
  %v2303 = vunpack.c.l.b16 %v2231
  %v2304 = vunpack.c.h.b16 %v2231
  %v2305 = vunpack.c.l.b16 %v2232
  %v2306 = vunpack.c.h.b16 %v2232
  %v2307 = vunpack.c.l.b16 %v2233
  %v2308 = vpack.c.b16 %v2259, %v2259
  %v2309 = vpack.c.b16 %v2260, %v2260
  %v2310 = vpack.c.b16 %v2261, %v2261
  %v2311 = vpack.c.b16 %v2262, %v2262
  %v2312 = vpack.c.b16 %v2263, %v2263
  %v2313 = vpack.c.b16 %v2264, %v2264
  %v2314 = vpack.c.b16 %v2265, %v2265
  %v2315 = vpack.c.b16 %v2266, %v2266
  %v2316 = vpack.c.b16 %v2267, %v2267
  %v2317 = vpack.c.b16 %v2268, %v2268
  %v2318 = vpack.c.b16 %v2269, %v2269
  %v2319 = vpack.c.b16 %v2270, %v2270
  %v2320 = vpack.c.b16 %v2271, %v2271
  %v2321 = vpack.c.b16 %v2272, %v2272
  %v2322 = vpack.c.b16 %v2273, %v2273
  %v2323 = vpack.c.b16 %v2274, %v2274
  %v2324 = vpack.c.b16 %v2275, %v2275
  %v2325 = vpack.c.b16 %v2276, %v2276
  %v2326 = vpack.c.b16 %v2277, %v2277
  %v2327 = vpack.c.b16 %v2278, %v2278
  %v2328 = vpack.c.b16 %v2279, %v2279
  %v2329 = vpack.c.b16 %v2280, %v2280
  %v2330 = vpack.c.b16 %v2281, %v2281
  %v2331 = vpack.c.b16 %v2282, %v2282
  %v2332 = vpack.c.b16 %v2283, %v2283
  %v2333 = vpack.c.b16 %v2284, %v2284
  %v2334 = vpack.c.b16 %v2285, %v2285
  %v2335 = vpack.c.b16 %v2286, %v2286
  %v2336 = vpack.c.b16 %v2287, %v2287
  %v2337 = vpack.c.b16 %v2288, %v2288
  %v2338 = vpack.c.b16 %v2289, %v2289
  %v2339 = vpack.c.b16 %v2290, %v2290
  %v2340 = vpack.c.b16 %v2291, %v2291
  %v2341 = vpack.c.b16 %v2292, %v2292
  %v2342 = vpack.c.b16 %v2293, %v2293
  %v2343 = vpack.c.b16 %v2294, %v2294
  %v2344 = vpack.c.b16 %v2295, %v2295
  %v2345 = vpack.c.b16 %v2296, %v2296
  %v2346 = vpack.c.b16 %v2297, %v2297
  %v2347 = vpack.c.b16 %v2298, %v2298
  %v2348 = vpack.c.b16 %v2299, %v2299
  %v2349 = vpack.c.b16 %v2300, %v2300
  %v2350 = vpack.c.b16 %v2301, %v2301
  %v2351 = vpack.c.b16 %v2302, %v2302
  %v2352 = vpack.c.b16 %v2303, %v2303
  %v2353 = vpack.c.b16 %v2304, %v2304
  %v2354 = vpack.c.b16 %v2305, %v2305
  %v2355 = vpack.c.b16 %v2306, %v2306
  %v2356 = vpack.c.b16 %v2307, %v2307
  %2406 = vst [vmem:[%s3] sm:$0xf] %v2308
  %2407 = vst [vmem:[%s3 + $0x4] sm:$0xf] %v2309
  %2408 = vst [vmem:[%s3 + $0x8] sm:$0xf] %v2310
  %2409 = vst [vmem:[%s3 + $0xc] sm:$0xf] %v2311
  %2410 = vst [vmem:[%s3 + $0x10] sm:$0xf] %v2312
  %2411 = vst [vmem:[%s3 + $0x14] sm:$0xf] %v2313
  %2412 = vst [vmem:[%s3 + $0x18] sm:$0xf] %v2314
  %2413 = vst [vmem:[%s3 + $0x1c] sm:$0xf] %v2315
  %2414 = vst [vmem:[%s3 + $0x20] sm:$0xf] %v2316
  %2415 = vst [vmem:[%s3 + $0x24] sm:$0xf] %v2317
  %2416 = vst [vmem:[%s3 + $0x28] sm:$0xf] %v2318
  %2417 = vst [vmem:[%s3 + $0x2c] sm:$0xf] %v2319
  %2418 = vst [vmem:[%s3 + $0x30] sm:$0xf] %v2320
  %2419 = vst [vmem:[%s3 + $0x34] sm:$0xf] %v2321
  %2420 = vst [vmem:[%s3 + $0x38] sm:$0xf] %v2322
  %2421 = vst [vmem:[%s3 + $0x3c] sm:$0xf] %v2323
  %2422 = vst [vmem:[%s3 + $0x40] sm:$0xf] %v2324
  %2423 = vst [vmem:[%s3 + $0x44] sm:$0xf] %v2325
  %2424 = vst [vmem:[%s3 + $0x48] sm:$0xf] %v2326
  %2425 = vst [vmem:[%s3 + $0x4c] sm:$0xf] %v2327
  %2426 = vst [vmem:[%s3 + $0x50] sm:$0xf] %v2328
  %2427 = vst [vmem:[%s3 + $0x54] sm:$0xf] %v2329
  %2428 = vst [vmem:[%s3 + $0x58] sm:$0xf] %v2330
  %2429 = vst [vmem:[%s3 + $0x5c] sm:$0xf] %v2331
  %2430 = vst [vmem:[%s3 + $0x60] sm:$0xf] %v2332
  %2431 = vst [vmem:[%s3 + $0x64] sm:$0xf] %v2333
  %2432 = vst [vmem:[%s3 + $0x68] sm:$0xf] %v2334
  %2433 = vst [vmem:[%s3 + $0x6c] sm:$0xf] %v2335
  %2434 = vst [vmem:[%s3 + $0x70] sm:$0xf] %v2336
  %2435 = vst [vmem:[%s3 + $0x74] sm:$0xf] %v2337
  %2436 = vst [vmem:[%s3 + $0x78] sm:$0xf] %v2338
  %2437 = vst [vmem:[%s3 + $0x7c] sm:$0xf] %v2339
  %2438 = vst [vmem:[%s3 + $0x80] sm:$0xf] %v2340
  %2439 = vst [vmem:[%s3 + $0x84] sm:$0xf] %v2341
  %2440 = vst [vmem:[%s3 + $0x88] sm:$0xf] %v2342
  %2441 = vst [vmem:[%s3 + $0x8c] sm:$0xf] %v2343
  %2442 = vst [vmem:[%s3 + $0x90] sm:$0xf] %v2344
  %2443 = vst [vmem:[%s3 + $0x94] sm:$0xf] %v2345
  %2444 = vst [vmem:[%s3 + $0x98] sm:$0xf] %v2346
  %2445 = vst [vmem:[%s3 + $0x9c] sm:$0xf] %v2347
  %2446 = vst [vmem:[%s3 + $0xa0] sm:$0xf] %v2348
  %2447 = vst [vmem:[%s3 + $0xa4] sm:$0xf] %v2349
  %2448 = vst [vmem:[%s3 + $0xa8] sm:$0xf] %v2350
  %2449 = vst [vmem:[%s3 + $0xac] sm:$0xf] %v2351
  %2450 = vst [vmem:[%s3 + $0xb0] sm:$0xf] %v2352
  %2451 = vst [vmem:[%s3 + $0xb4] sm:$0xf] %v2353
  %2452 = vst [vmem:[%s3 + $0xb8] sm:$0xf] %v2354
  %2453 = vst [vmem:[%s3 + $0xbc] sm:$0xf] %v2355
  %2454 = vst [vmem:[%s3 + $0xc0] sm:$0xf] %v2356
  // Predicated region
  $region14: #{lenet_forward.3} parent=0 // pred_check
    _
  $region15: #{lenet_forward.3} parent=0 // pred_check_branch
    %2456 = sbr.rel (0) target = $region17
  $region16: #{lenet_forward.3} parent=0 // pred_region
    _
  $region17: #{lenet_forward.3} parent=0 // pred_fallthru
    _
  // Predicated region
  $region18: #{lenet_forward.3} parent=0 // pred_check
    _
  $region19: #{lenet_forward.3} parent=0 // pred_check_branch
    %2458 = sbr.rel (0) target = $region21
  $region20: #{lenet_forward.3} parent=0 // pred_region
    _
  $region21: #{lenet_forward.3} parent=0 // pred_fallthru
    _

// kernel: lenet_forward.5
$region0: #{lenet_forward.5}
  #allocation0 [shape = 'u32[]', space=smem, size = 0x4, offset = 0x4, fixed_abs, tag = 'smem constant byte address 0x4 - core index']
  #allocation1 [shape = 'u32[144,128]{1,0:T(1,128)}', space=vmem, size = 0x12000, scoped, tag = 'internal scratch']
  %s0 = inlined_call_operand.vmem [shape: bf16[2,3200], index: 0, kind: input, shape index: {}]
  %s1 = inlined_call_operand.vmem [shape: bf16[3200,128], index: 1, kind: input, shape index: {}]
  %s2 = inlined_call_operand.vmem [shape: f32[1,128], index: 2, kind: input, shape index: {}]
  %s3 = inlined_call_operand.vmem [shape: bf16[128,128], index: 3, kind: input, shape index: {}]
  %s4 = inlined_call_operand.vmem [shape: f32[1,128], index: 4, kind: input, shape index: {}]
  %s5 = inlined_call_operand.vmem [shape: bf16[128,128], index: 5, kind: input, shape index: {}]
  %s6 = inlined_call_operand.vmem [shape: f32[1,128], index: 6, kind: input, shape index: {}]
  %s7 = inlined_call_operand.hbm [shape: f32[2,128], index: 7, kind: output, shape index: {}]
  %s8 = sld [smem:[#allocation0]]
  $region38: #{lenet_forward.5} parent=0
    _
  %s10 = ssub.s32 1, %s8
  %s11 = scalar_select 0, %s10, %s8
  $region1: #{lenet_forward.5} parent=0
    #allocation2 [shape = 'u8[1024]{0}', space=vmem, size = 0x400, scoped, tag = 'output window, operand 0, single buffered']
    #allocation3 [shape = 's32[1]{0}', space=sflag, size = 0x4, scoped, tag = 'scoped memory for lenet_forward.5']
    %12 = vsyncpa [#allocation3], 0
    // Predicated region
    $region2: #{lenet_forward.5} parent=1 // pred_check
      _
    $region3: #{lenet_forward.5} parent=1 // pred_check_branch
      %14 = sbr.rel (0) target = $region5
    $region4: #{lenet_forward.5} parent=1 // pred_region
      _
    $region5: #{lenet_forward.5} parent=1 // pred_fallthru
      _
    // Predicated region
    $region6: #{lenet_forward.5} parent=1 // pred_check
      _
    $region7: #{lenet_forward.5} parent=1 // pred_check_branch
      %16 = sbr.rel (0) target = $region9
    $region8: #{lenet_forward.5} parent=1 // pred_region
      _
    $region9: #{lenet_forward.5} parent=1 // pred_fallthru
      _
    // Predicated region
    $region10: #{lenet_forward.5} parent=1 // pred_check
      _
    $region11: #{lenet_forward.5} parent=1 // pred_check_branch
      %18 = sbr.rel (0) target = $region13
    $region12: #{lenet_forward.5} parent=1 // pred_region
      _
    $region13: #{lenet_forward.5} parent=1 // pred_fallthru
      _
    // Predicated region
    $region14: #{lenet_forward.5} parent=1 // pred_check
      _
    $region15: #{lenet_forward.5} parent=1 // pred_check_branch
      %20 = sbr.rel (0) target = $region17
    $region16: #{lenet_forward.5} parent=1 // pred_region
      _
    $region17: #{lenet_forward.5} parent=1 // pred_fallthru
      _
    // Predicated region
    $region18: #{lenet_forward.5} parent=1 // pred_check
      _
    $region19: #{lenet_forward.5} parent=1 // pred_check_branch
      %22 = sbr.rel (0) target = $region21
    $region20: #{lenet_forward.5} parent=1 // pred_region
      _
    $region21: #{lenet_forward.5} parent=1 // pred_fallthru
      _
    // Predicated region
    $region22: #{lenet_forward.5} parent=1 // pred_check
      _
    $region23: #{lenet_forward.5} parent=1 // pred_check_branch
      %24 = sbr.rel (0) target = $region25
    $region24: #{lenet_forward.5} parent=1 // pred_region
      _
    $region25: #{lenet_forward.5} parent=1 // pred_fallthru
      _
    // Predicated region
    $region26: #{lenet_forward.5} parent=1 // pred_check
      _
    $region27: #{lenet_forward.5} parent=1 // pred_check_branch
      %26 = sbr.rel (0) target = $region29
    $region28: #{lenet_forward.5} parent=1 // pred_region
      _
    $region29: #{lenet_forward.5} parent=1 // pred_fallthru
      _
    %v28 = vld [vmem:[%s0] sm:$0xff]
    %v29 = vld [vmem:[%s0 + $0x8] sm:$0xff]
    %v30 = vld [vmem:[%s0 + $0x10] sm:$0xff]
    %v31 = vld [vmem:[%s0 + $0x18] sm:$0x1]
    %v32 = vld [vmem:[%s1] sm:$0xf]
    %v33 = vld [vmem:[%s1 + $0x4] sm:$0xf]
    %v34 = vld [vmem:[%s1 + $0x8] sm:$0xf]
    %v35 = vld [vmem:[%s1 + $0xc] sm:$0xf]
    %v36 = vld [vmem:[%s1 + $0x10] sm:$0xf]
    %v37 = vld [vmem:[%s1 + $0x14] sm:$0xf]
    %v38 = vld [vmem:[%s1 + $0x18] sm:$0xf]
    %v39 = vld [vmem:[%s1 + $0x1c] sm:$0xf]
    %v40 = vld [vmem:[%s1 + $0x20] sm:$0xf]
    %v41 = vld [vmem:[%s1 + $0x24] sm:$0xf]
    %v42 = vld [vmem:[%s1 + $0x28] sm:$0xf]
    %v43 = vld [vmem:[%s1 + $0x2c] sm:$0xf]
    %v44 = vld [vmem:[%s1 + $0x30] sm:$0xf]
    %v45 = vld [vmem:[%s1 + $0x34] sm:$0xf]
    %v46 = vld [vmem:[%s1 + $0x38] sm:$0xf]
    %v47 = vld [vmem:[%s1 + $0x3c] sm:$0xf]
    %v48 = vld [vmem:[%s1 + $0x40] sm:$0xf]
    %v49 = vld [vmem:[%s1 + $0x44] sm:$0xf]
    %v50 = vld [vmem:[%s1 + $0x48] sm:$0xf]
    %v51 = vld [vmem:[%s1 + $0x4c] sm:$0xf]
    %v52 = vld [vmem:[%s1 + $0x50] sm:$0xf]
    %v53 = vld [vmem:[%s1 + $0x54] sm:$0xf]
    %v54 = vld [vmem:[%s1 + $0x58] sm:$0xf]
    %v55 = vld [vmem:[%s1 + $0x5c] sm:$0xf]
    %v56 = vld [vmem:[%s1 + $0x60] sm:$0xf]
    %v57 = vld [vmem:[%s1 + $0x64] sm:$0xf]
    %v58 = vld [vmem:[%s1 + $0x68] sm:$0xf]
    %v59 = vld [vmem:[%s1 + $0x6c] sm:$0xf]
    %v60 = vld [vmem:[%s1 + $0x70] sm:$0xf]
    %v61 = vld [vmem:[%s1 + $0x74] sm:$0xf]
    %v62 = vld [vmem:[%s1 + $0x78] sm:$0xf]
    %v63 = vld [vmem:[%s1 + $0x7c] sm:$0xf]
    %v64 = vld [vmem:[%s1 + $0x80] sm:$0xf]
    %v65 = vld [vmem:[%s1 + $0x84] sm:$0xf]
    %v66 = vld [vmem:[%s1 + $0x88] sm:$0xf]
    %v67 = vld [vmem:[%s1 + $0x8c] sm:$0xf]
    %v68 = vld [vmem:[%s1 + $0x90] sm:$0xf]
    %v69 = vld [vmem:[%s1 + $0x94] sm:$0xf]
    %v70 = vld [vmem:[%s1 + $0x98] sm:$0xf]
    %v71 = vld [vmem:[%s1 + $0x9c] sm:$0xf]
    %v72 = vld [vmem:[%s1 + $0xa0] sm:$0xf]
    %v73 = vld [vmem:[%s1 + $0xa4] sm:$0xf]
    %v74 = vld [vmem:[%s1 + $0xa8] sm:$0xf]
    %v75 = vld [vmem:[%s1 + $0xac] sm:$0xf]
    %v76 = vld [vmem:[%s1 + $0xb0] sm:$0xf]
    %v77 = vld [vmem:[%s1 + $0xb4] sm:$0xf]
    %v78 = vld [vmem:[%s1 + $0xb8] sm:$0xf]
    %v79 = vld [vmem:[%s1 + $0xbc] sm:$0xf]
    %v80 = vld [vmem:[%s1 + $0xc0] sm:$0xf]
    %v81 = vld [vmem:[%s1 + $0xc4] sm:$0xf]
    %v82 = vld [vmem:[%s1 + $0xc8] sm:$0xf]
    %v83 = vld [vmem:[%s1 + $0xcc] sm:$0xf]
    %v84 = vld [vmem:[%s1 + $0xd0] sm:$0xf]
    %v85 = vld [vmem:[%s1 + $0xd4] sm:$0xf]
    %v86 = vld [vmem:[%s1 + $0xd8] sm:$0xf]
    %v87 = vld [vmem:[%s1 + $0xdc] sm:$0xf]
    %v88 = vld [vmem:[%s1 + $0xe0] sm:$0xf]
    %v89 = vld [vmem:[%s1 + $0xe4] sm:$0xf]
    %v90 = vld [vmem:[%s1 + $0xe8] sm:$0xf]
    %v91 = vld [vmem:[%s1 + $0xec] sm:$0xf]
    %v92 = vld [vmem:[%s1 + $0xf0] sm:$0xf]
    %v93 = vld [vmem:[%s1 + $0xf4] sm:$0xf]
    %v94 = vld [vmem:[%s1 + $0xf8] sm:$0xf]
    %v95 = vld [vmem:[%s1 + $0xfc] sm:$0xf]
    %v96 = vld [vmem:[%s1 + $0x100] sm:$0xf]
    %v97 = vld [vmem:[%s1 + $0x104] sm:$0xf]
    %v98 = vld [vmem:[%s1 + $0x108] sm:$0xf]
    %v99 = vld [vmem:[%s1 + $0x10c] sm:$0xf]
    %v100 = vld [vmem:[%s1 + $0x110] sm:$0xf]
    %v101 = vld [vmem:[%s1 + $0x114] sm:$0xf]
    %v102 = vld [vmem:[%s1 + $0x118] sm:$0xf]
    %v103 = vld [vmem:[%s1 + $0x11c] sm:$0xf]
    %v104 = vld [vmem:[%s1 + $0x120] sm:$0xf]
    %v105 = vld [vmem:[%s1 + $0x124] sm:$0xf]
    %v106 = vld [vmem:[%s1 + $0x128] sm:$0xf]
    %v107 = vld [vmem:[%s1 + $0x12c] sm:$0xf]
    %v108 = vld [vmem:[%s1 + $0x130] sm:$0xf]
    %v109 = vld [vmem:[%s1 + $0x134] sm:$0xf]
    %v110 = vld [vmem:[%s1 + $0x138] sm:$0xf]
    %v111 = vld [vmem:[%s1 + $0x13c] sm:$0xf]
    %v112 = vld [vmem:[%s1 + $0x140] sm:$0xf]
    %v113 = vld [vmem:[%s1 + $0x144] sm:$0xf]
    %v114 = vld [vmem:[%s1 + $0x148] sm:$0xf]
    %v115 = vld [vmem:[%s1 + $0x14c] sm:$0xf]
    %v116 = vld [vmem:[%s1 + $0x150] sm:$0xf]
    %v117 = vld [vmem:[%s1 + $0x154] sm:$0xf]
    %v118 = vld [vmem:[%s1 + $0x158] sm:$0xf]
    %v119 = vld [vmem:[%s1 + $0x15c] sm:$0xf]
    %v120 = vld [vmem:[%s1 + $0x160] sm:$0xf]
    %v121 = vld [vmem:[%s1 + $0x164] sm:$0xf]
    %v122 = vld [vmem:[%s1 + $0x168] sm:$0xf]
    %v123 = vld [vmem:[%s1 + $0x16c] sm:$0xf]
    %v124 = vld [vmem:[%s1 + $0x170] sm:$0xf]
    %v125 = vld [vmem:[%s1 + $0x174] sm:$0xf]
    %v126 = vld [vmem:[%s1 + $0x178] sm:$0xf]
    %v127 = vld [vmem:[%s1 + $0x17c] sm:$0xf]
    %v128 = vld [vmem:[%s1 + $0x180] sm:$0xf]
    %v129 = vld [vmem:[%s1 + $0x184] sm:$0xf]
    %v130 = vld [vmem:[%s1 + $0x188] sm:$0xf]
    %v131 = vld [vmem:[%s1 + $0x18c] sm:$0xf]
    %v132 = vld [vmem:[%s1 + $0x190] sm:$0xf]
    %v133 = vld [vmem:[%s1 + $0x194] sm:$0xf]
    %v134 = vld [vmem:[%s1 + $0x198] sm:$0xf]
    %v135 = vld [vmem:[%s1 + $0x19c] sm:$0xf]
    %v136 = vld [vmem:[%s1 + $0x1a0] sm:$0xf]
    %v137 = vld [vmem:[%s1 + $0x1a4] sm:$0xf]
    %v138 = vld [vmem:[%s1 + $0x1a8] sm:$0xf]
    %v139 = vld [vmem:[%s1 + $0x1ac] sm:$0xf]
    %v140 = vld [vmem:[%s1 + $0x1b0] sm:$0xf]
    %v141 = vld [vmem:[%s1 + $0x1b4] sm:$0xf]
    %v142 = vld [vmem:[%s1 + $0x1b8] sm:$0xf]
    %v143 = vld [vmem:[%s1 + $0x1bc] sm:$0xf]
    %v144 = vld [vmem:[%s1 + $0x1c0] sm:$0xf]
    %v145 = vld [vmem:[%s1 + $0x1c4] sm:$0xf]
    %v146 = vld [vmem:[%s1 + $0x1c8] sm:$0xf]
    %v147 = vld [vmem:[%s1 + $0x1cc] sm:$0xf]
    %v148 = vld [vmem:[%s1 + $0x1d0] sm:$0xf]
    %v149 = vld [vmem:[%s1 + $0x1d4] sm:$0xf]
    %v150 = vld [vmem:[%s1 + $0x1d8] sm:$0xf]
    %v151 = vld [vmem:[%s1 + $0x1dc] sm:$0xf]
    %v152 = vld [vmem:[%s1 + $0x1e0] sm:$0xf]
    %v153 = vld [vmem:[%s1 + $0x1e4] sm:$0xf]
    %v154 = vld [vmem:[%s1 + $0x1e8] sm:$0xf]
    %v155 = vld [vmem:[%s1 + $0x1ec] sm:$0xf]
    %v156 = vld [vmem:[%s1 + $0x1f0] sm:$0xf]
    %v157 = vld [vmem:[%s1 + $0x1f4] sm:$0xf]
    %v158 = vld [vmem:[%s1 + $0x1f8] sm:$0xf]
    %v159 = vld [vmem:[%s1 + $0x1fc] sm:$0xf]
    %v160 = vld [vmem:[%s1 + $0x200] sm:$0xf]
    %v161 = vld [vmem:[%s1 + $0x204] sm:$0xf]
    %v162 = vld [vmem:[%s1 + $0x208] sm:$0xf]
    %v163 = vld [vmem:[%s1 + $0x20c] sm:$0xf]
    %v164 = vld [vmem:[%s1 + $0x210] sm:$0xf]
    %v165 = vld [vmem:[%s1 + $0x214] sm:$0xf]
    %v166 = vld [vmem:[%s1 + $0x218] sm:$0xf]
    %v167 = vld [vmem:[%s1 + $0x21c] sm:$0xf]
    %v168 = vld [vmem:[%s1 + $0x220] sm:$0xf]
    %v169 = vld [vmem:[%s1 + $0x224] sm:$0xf]
    %v170 = vld [vmem:[%s1 + $0x228] sm:$0xf]
    %v171 = vld [vmem:[%s1 + $0x22c] sm:$0xf]
    %v172 = vld [vmem:[%s1 + $0x230] sm:$0xf]
    %v173 = vld [vmem:[%s1 + $0x234] sm:$0xf]
    %v174 = vld [vmem:[%s1 + $0x238] sm:$0xf]
    %v175 = vld [vmem:[%s1 + $0x23c] sm:$0xf]
    %v176 = vld [vmem:[%s1 + $0x240] sm:$0xf]
    %v177 = vld [vmem:[%s1 + $0x244] sm:$0xf]
    %v178 = vld [vmem:[%s1 + $0x248] sm:$0xf]
    %v179 = vld [vmem:[%s1 + $0x24c] sm:$0xf]
    %v180 = vld [vmem:[%s1 + $0x250] sm:$0xf]
    %v181 = vld [vmem:[%s1 + $0x254] sm:$0xf]
    %v182 = vld [vmem:[%s1 + $0x258] sm:$0xf]
    %v183 = vld [vmem:[%s1 + $0x25c] sm:$0xf]
    %v184 = vld [vmem:[%s1 + $0x260] sm:$0xf]
    %v185 = vld [vmem:[%s1 + $0x264] sm:$0xf]
    %v186 = vld [vmem:[%s1 + $0x268] sm:$0xf]
    %v187 = vld [vmem:[%s1 + $0x26c] sm:$0xf]
    %v188 = vld [vmem:[%s1 + $0x270] sm:$0xf]
    %v189 = vld [vmem:[%s1 + $0x274] sm:$0xf]
    %v190 = vld [vmem:[%s1 + $0x278] sm:$0xf]
    %v191 = vld [vmem:[%s1 + $0x27c] sm:$0xf]
    %v192 = vld [vmem:[%s1 + $0x280] sm:$0xf]
    %v193 = vld [vmem:[%s1 + $0x284] sm:$0xf]
    %v194 = vld [vmem:[%s1 + $0x288] sm:$0xf]
    %v195 = vld [vmem:[%s1 + $0x28c] sm:$0xf]
    %v196 = vld [vmem:[%s1 + $0x290] sm:$0xf]
    %v197 = vld [vmem:[%s1 + $0x294] sm:$0xf]
    %v198 = vld [vmem:[%s1 + $0x298] sm:$0xf]
    %v199 = vld [vmem:[%s1 + $0x29c] sm:$0xf]
    %v200 = vld [vmem:[%s1 + $0x2a0] sm:$0xf]
    %v201 = vld [vmem:[%s1 + $0x2a4] sm:$0xf]
    %v202 = vld [vmem:[%s1 + $0x2a8] sm:$0xf]
    %v203 = vld [vmem:[%s1 + $0x2ac] sm:$0xf]
    %v204 = vld [vmem:[%s1 + $0x2b0] sm:$0xf]
    %v205 = vld [vmem:[%s1 + $0x2b4] sm:$0xf]
    %v206 = vld [vmem:[%s1 + $0x2b8] sm:$0xf]
    %v207 = vld [vmem:[%s1 + $0x2bc] sm:$0xf]
    %v208 = vld [vmem:[%s1 + $0x2c0] sm:$0xf]
    %v209 = vld [vmem:[%s1 + $0x2c4] sm:$0xf]
    %v210 = vld [vmem:[%s1 + $0x2c8] sm:$0xf]
    %v211 = vld [vmem:[%s1 + $0x2cc] sm:$0xf]
    %v212 = vld [vmem:[%s1 + $0x2d0] sm:$0xf]
    %v213 = vld [vmem:[%s1 + $0x2d4] sm:$0xf]
    %v214 = vld [vmem:[%s1 + $0x2d8] sm:$0xf]
    %v215 = vld [vmem:[%s1 + $0x2dc] sm:$0xf]
    %v216 = vld [vmem:[%s1 + $0x2e0] sm:$0xf]
    %v217 = vld [vmem:[%s1 + $0x2e4] sm:$0xf]
    %v218 = vld [vmem:[%s1 + $0x2e8] sm:$0xf]
    %v219 = vld [vmem:[%s1 + $0x2ec] sm:$0xf]
    %v220 = vld [vmem:[%s1 + $0x2f0] sm:$0xf]
    %v221 = vld [vmem:[%s1 + $0x2f4] sm:$0xf]
    %v222 = vld [vmem:[%s1 + $0x2f8] sm:$0xf]
    %v223 = vld [vmem:[%s1 + $0x2fc] sm:$0xf]
    %v224 = vld [vmem:[%s1 + $0x300] sm:$0xf]
    %v225 = vld [vmem:[%s1 + $0x304] sm:$0xf]
    %v226 = vld [vmem:[%s1 + $0x308] sm:$0xf]
    %v227 = vld [vmem:[%s1 + $0x30c] sm:$0xf]
    %v228 = vld [vmem:[%s1 + $0x310] sm:$0xf]
    %v229 = vld [vmem:[%s1 + $0x314] sm:$0xf]
    %v230 = vld [vmem:[%s1 + $0x318] sm:$0xf]
    %v231 = vld [vmem:[%s1 + $0x31c] sm:$0xf]
    %v232 = vld [vmem:[%s1 + $0x320] sm:$0xf]
    %v233 = vld [vmem:[%s1 + $0x324] sm:$0xf]
    %v234 = vld [vmem:[%s1 + $0x328] sm:$0xf]
    %v235 = vld [vmem:[%s1 + $0x32c] sm:$0xf]
    %v236 = vld [vmem:[%s1 + $0x330] sm:$0xf]
    %v237 = vld [vmem:[%s1 + $0x334] sm:$0xf]
    %v238 = vld [vmem:[%s1 + $0x338] sm:$0xf]
    %v239 = vld [vmem:[%s1 + $0x33c] sm:$0xf]
    %v240 = vld [vmem:[%s1 + $0x340] sm:$0xf]
    %v241 = vld [vmem:[%s1 + $0x344] sm:$0xf]
    %v242 = vld [vmem:[%s1 + $0x348] sm:$0xf]
    %v243 = vld [vmem:[%s1 + $0x34c] sm:$0xf]
    %v244 = vld [vmem:[%s1 + $0x350] sm:$0xf]
    %v245 = vld [vmem:[%s1 + $0x354] sm:$0xf]
    %v246 = vld [vmem:[%s1 + $0x358] sm:$0xf]
    %v247 = vld [vmem:[%s1 + $0x35c] sm:$0xf]
    %v248 = vld [vmem:[%s1 + $0x360] sm:$0xf]
    %v249 = vld [vmem:[%s1 + $0x364] sm:$0xf]
    %v250 = vld [vmem:[%s1 + $0x368] sm:$0xf]
    %v251 = vld [vmem:[%s1 + $0x36c] sm:$0xf]
    %v252 = vld [vmem:[%s1 + $0x370] sm:$0xf]
    %v253 = vld [vmem:[%s1 + $0x374] sm:$0xf]
    %v254 = vld [vmem:[%s1 + $0x378] sm:$0xf]
    %v255 = vld [vmem:[%s1 + $0x37c] sm:$0xf]
    %v256 = vld [vmem:[%s1 + $0x380] sm:$0xf]
    %v257 = vld [vmem:[%s1 + $0x384] sm:$0xf]
    %v258 = vld [vmem:[%s1 + $0x388] sm:$0xf]
    %v259 = vld [vmem:[%s1 + $0x38c] sm:$0xf]
    %v260 = vld [vmem:[%s1 + $0x390] sm:$0xf]
    %v261 = vld [vmem:[%s1 + $0x394] sm:$0xf]
    %v262 = vld [vmem:[%s1 + $0x398] sm:$0xf]
    %v263 = vld [vmem:[%s1 + $0x39c] sm:$0xf]
    %v264 = vld [vmem:[%s1 + $0x3a0] sm:$0xf]
    %v265 = vld [vmem:[%s1 + $0x3a4] sm:$0xf]
    %v266 = vld [vmem:[%s1 + $0x3a8] sm:$0xf]
    %v267 = vld [vmem:[%s1 + $0x3ac] sm:$0xf]
    %v268 = vld [vmem:[%s1 + $0x3b0] sm:$0xf]
    %v269 = vld [vmem:[%s1 + $0x3b4] sm:$0xf]
    %v270 = vld [vmem:[%s1 + $0x3b8] sm:$0xf]
    %v271 = vld [vmem:[%s1 + $0x3bc] sm:$0xf]
    %v272 = vld [vmem:[%s1 + $0x3c0] sm:$0xf]
    %v273 = vld [vmem:[%s1 + $0x3c4] sm:$0xf]
    %v274 = vld [vmem:[%s1 + $0x3c8] sm:$0xf]
    %v275 = vld [vmem:[%s1 + $0x3cc] sm:$0xf]
    %v276 = vld [vmem:[%s1 + $0x3d0] sm:$0xf]
    %v277 = vld [vmem:[%s1 + $0x3d4] sm:$0xf]
    %v278 = vld [vmem:[%s1 + $0x3d8] sm:$0xf]
    %v279 = vld [vmem:[%s1 + $0x3dc] sm:$0xf]
    %v280 = vld [vmem:[%s1 + $0x3e0] sm:$0xf]
    %v281 = vld [vmem:[%s1 + $0x3e4] sm:$0xf]
    %v282 = vld [vmem:[%s1 + $0x3e8] sm:$0xf]
    %v283 = vld [vmem:[%s1 + $0x3ec] sm:$0xf]
    %v284 = vld [vmem:[%s1 + $0x3f0] sm:$0xf]
    %v285 = vld [vmem:[%s1 + $0x3f4] sm:$0xf]
    %v286 = vld [vmem:[%s1 + $0x3f8] sm:$0xf]
    %v287 = vld [vmem:[%s1 + $0x3fc] sm:$0xf]
    %v288 = vld [vmem:[%s1 + $0x400] sm:$0xf]
    %v289 = vld [vmem:[%s1 + $0x404] sm:$0xf]
    %v290 = vld [vmem:[%s1 + $0x408] sm:$0xf]
    %v291 = vld [vmem:[%s1 + $0x40c] sm:$0xf]
    %v292 = vld [vmem:[%s1 + $0x410] sm:$0xf]
    %v293 = vld [vmem:[%s1 + $0x414] sm:$0xf]
    %v294 = vld [vmem:[%s1 + $0x418] sm:$0xf]
    %v295 = vld [vmem:[%s1 + $0x41c] sm:$0xf]
    %v296 = vld [vmem:[%s1 + $0x420] sm:$0xf]
    %v297 = vld [vmem:[%s1 + $0x424] sm:$0xf]
    %v298 = vld [vmem:[%s1 + $0x428] sm:$0xf]
    %v299 = vld [vmem:[%s1 + $0x42c] sm:$0xf]
    %v300 = vld [vmem:[%s1 + $0x430] sm:$0xf]
    %v301 = vld [vmem:[%s1 + $0x434] sm:$0xf]
    %v302 = vld [vmem:[%s1 + $0x438] sm:$0xf]
    %v303 = vld [vmem:[%s1 + $0x43c] sm:$0xf]
    %v304 = vld [vmem:[%s1 + $0x440] sm:$0xf]
    %v305 = vld [vmem:[%s1 + $0x444] sm:$0xf]
    %v306 = vld [vmem:[%s1 + $0x448] sm:$0xf]
    %v307 = vld [vmem:[%s1 + $0x44c] sm:$0xf]
    %v308 = vld [vmem:[%s1 + $0x450] sm:$0xf]
    %v309 = vld [vmem:[%s1 + $0x454] sm:$0xf]
    %v310 = vld [vmem:[%s1 + $0x458] sm:$0xf]
    %v311 = vld [vmem:[%s1 + $0x45c] sm:$0xf]
    %v312 = vld [vmem:[%s1 + $0x460] sm:$0xf]
    %v313 = vld [vmem:[%s1 + $0x464] sm:$0xf]
    %v314 = vld [vmem:[%s1 + $0x468] sm:$0xf]
    %v315 = vld [vmem:[%s1 + $0x46c] sm:$0xf]
    %v316 = vld [vmem:[%s1 + $0x470] sm:$0xf]
    %v317 = vld [vmem:[%s1 + $0x474] sm:$0xf]
    %v318 = vld [vmem:[%s1 + $0x478] sm:$0xf]
    %v319 = vld [vmem:[%s1 + $0x47c] sm:$0xf]
    %v320 = vld [vmem:[%s1 + $0x480] sm:$0xf]
    %v321 = vld [vmem:[%s1 + $0x484] sm:$0xf]
    %v322 = vld [vmem:[%s1 + $0x488] sm:$0xf]
    %v323 = vld [vmem:[%s1 + $0x48c] sm:$0xf]
    %v324 = vld [vmem:[%s1 + $0x490] sm:$0xf]
    %v325 = vld [vmem:[%s1 + $0x494] sm:$0xf]
    %v326 = vld [vmem:[%s1 + $0x498] sm:$0xf]
    %v327 = vld [vmem:[%s1 + $0x49c] sm:$0xf]
    %v328 = vld [vmem:[%s1 + $0x4a0] sm:$0xf]
    %v329 = vld [vmem:[%s1 + $0x4a4] sm:$0xf]
    %v330 = vld [vmem:[%s1 + $0x4a8] sm:$0xf]
    %v331 = vld [vmem:[%s1 + $0x4ac] sm:$0xf]
    %v332 = vld [vmem:[%s1 + $0x4b0] sm:$0xf]
    %v333 = vld [vmem:[%s1 + $0x4b4] sm:$0xf]
    %v334 = vld [vmem:[%s1 + $0x4b8] sm:$0xf]
    %v335 = vld [vmem:[%s1 + $0x4bc] sm:$0xf]
    %v336 = vld [vmem:[%s1 + $0x4c0] sm:$0xf]
    %v337 = vld [vmem:[%s1 + $0x4c4] sm:$0xf]
    %v338 = vld [vmem:[%s1 + $0x4c8] sm:$0xf]
    %v339 = vld [vmem:[%s1 + $0x4cc] sm:$0xf]
    %v340 = vld [vmem:[%s1 + $0x4d0] sm:$0xf]
    %v341 = vld [vmem:[%s1 + $0x4d4] sm:$0xf]
    %v342 = vld [vmem:[%s1 + $0x4d8] sm:$0xf]
    %v343 = vld [vmem:[%s1 + $0x4dc] sm:$0xf]
    %v344 = vld [vmem:[%s1 + $0x4e0] sm:$0xf]
    %v345 = vld [vmem:[%s1 + $0x4e4] sm:$0xf]
    %v346 = vld [vmem:[%s1 + $0x4e8] sm:$0xf]
    %v347 = vld [vmem:[%s1 + $0x4ec] sm:$0xf]
    %v348 = vld [vmem:[%s1 + $0x4f0] sm:$0xf]
    %v349 = vld [vmem:[%s1 + $0x4f4] sm:$0xf]
    %v350 = vld [vmem:[%s1 + $0x4f8] sm:$0xf]
    %v351 = vld [vmem:[%s1 + $0x4fc] sm:$0xf]
    %v352 = vld [vmem:[%s1 + $0x500] sm:$0xf]
    %v353 = vld [vmem:[%s1 + $0x504] sm:$0xf]
    %v354 = vld [vmem:[%s1 + $0x508] sm:$0xf]
    %v355 = vld [vmem:[%s1 + $0x50c] sm:$0xf]
    %v356 = vld [vmem:[%s1 + $0x510] sm:$0xf]
    %v357 = vld [vmem:[%s1 + $0x514] sm:$0xf]
    %v358 = vld [vmem:[%s1 + $0x518] sm:$0xf]
    %v359 = vld [vmem:[%s1 + $0x51c] sm:$0xf]
    %v360 = vld [vmem:[%s1 + $0x520] sm:$0xf]
    %v361 = vld [vmem:[%s1 + $0x524] sm:$0xf]
    %v362 = vld [vmem:[%s1 + $0x528] sm:$0xf]
    %v363 = vld [vmem:[%s1 + $0x52c] sm:$0xf]
    %v364 = vld [vmem:[%s1 + $0x530] sm:$0xf]
    %v365 = vld [vmem:[%s1 + $0x534] sm:$0xf]
    %v366 = vld [vmem:[%s1 + $0x538] sm:$0xf]
    %v367 = vld [vmem:[%s1 + $0x53c] sm:$0xf]
    %v368 = vld [vmem:[%s1 + $0x540] sm:$0xf]
    %v369 = vld [vmem:[%s1 + $0x544] sm:$0xf]
    %v370 = vld [vmem:[%s1 + $0x548] sm:$0xf]
    %v371 = vld [vmem:[%s1 + $0x54c] sm:$0xf]
    %v372 = vld [vmem:[%s1 + $0x550] sm:$0xf]
    %v373 = vld [vmem:[%s1 + $0x554] sm:$0xf]
    %v374 = vld [vmem:[%s1 + $0x558] sm:$0xf]
    %v375 = vld [vmem:[%s1 + $0x55c] sm:$0xf]
    %v376 = vld [vmem:[%s1 + $0x560] sm:$0xf]
    %v377 = vld [vmem:[%s1 + $0x564] sm:$0xf]
    %v378 = vld [vmem:[%s1 + $0x568] sm:$0xf]
    %v379 = vld [vmem:[%s1 + $0x56c] sm:$0xf]
    %v380 = vld [vmem:[%s1 + $0x570] sm:$0xf]
    %v381 = vld [vmem:[%s1 + $0x574] sm:$0xf]
    %v382 = vld [vmem:[%s1 + $0x578] sm:$0xf]
    %v383 = vld [vmem:[%s1 + $0x57c] sm:$0xf]
    %v384 = vld [vmem:[%s1 + $0x580] sm:$0xf]
    %v385 = vld [vmem:[%s1 + $0x584] sm:$0xf]
    %v386 = vld [vmem:[%s1 + $0x588] sm:$0xf]
    %v387 = vld [vmem:[%s1 + $0x58c] sm:$0xf]
    %v388 = vld [vmem:[%s1 + $0x590] sm:$0xf]
    %v389 = vld [vmem:[%s1 + $0x594] sm:$0xf]
    %v390 = vld [vmem:[%s1 + $0x598] sm:$0xf]
    %v391 = vld [vmem:[%s1 + $0x59c] sm:$0xf]
    %v392 = vld [vmem:[%s1 + $0x5a0] sm:$0xf]
    %v393 = vld [vmem:[%s1 + $0x5a4] sm:$0xf]
    %v394 = vld [vmem:[%s1 + $0x5a8] sm:$0xf]
    %v395 = vld [vmem:[%s1 + $0x5ac] sm:$0xf]
    %v396 = vld [vmem:[%s1 + $0x5b0] sm:$0xf]
    %v397 = vld [vmem:[%s1 + $0x5b4] sm:$0xf]
    %v398 = vld [vmem:[%s1 + $0x5b8] sm:$0xf]
    %v399 = vld [vmem:[%s1 + $0x5bc] sm:$0xf]
    %v400 = vld [vmem:[%s1 + $0x5c0] sm:$0xf]
    %v401 = vld [vmem:[%s1 + $0x5c4] sm:$0xf]
    %v402 = vld [vmem:[%s1 + $0x5c8] sm:$0xf]
    %v403 = vld [vmem:[%s1 + $0x5cc] sm:$0xf]
    %v404 = vld [vmem:[%s1 + $0x5d0] sm:$0xf]
    %v405 = vld [vmem:[%s1 + $0x5d4] sm:$0xf]
    %v406 = vld [vmem:[%s1 + $0x5d8] sm:$0xf]
    %v407 = vld [vmem:[%s1 + $0x5dc] sm:$0xf]
    %v408 = vld [vmem:[%s1 + $0x5e0] sm:$0xf]
    %v409 = vld [vmem:[%s1 + $0x5e4] sm:$0xf]
    %v410 = vld [vmem:[%s1 + $0x5e8] sm:$0xf]
    %v411 = vld [vmem:[%s1 + $0x5ec] sm:$0xf]
    %v412 = vld [vmem:[%s1 + $0x5f0] sm:$0xf]
    %v413 = vld [vmem:[%s1 + $0x5f4] sm:$0xf]
    %v414 = vld [vmem:[%s1 + $0x5f8] sm:$0xf]
    %v415 = vld [vmem:[%s1 + $0x5fc] sm:$0xf]
    %v416 = vld [vmem:[%s1 + $0x600] sm:$0xf]
    %v417 = vld [vmem:[%s1 + $0x604] sm:$0xf]
    %v418 = vld [vmem:[%s1 + $0x608] sm:$0xf]
    %v419 = vld [vmem:[%s1 + $0x60c] sm:$0xf]
    %v420 = vld [vmem:[%s1 + $0x610] sm:$0xf]
    %v421 = vld [vmem:[%s1 + $0x614] sm:$0xf]
    %v422 = vld [vmem:[%s1 + $0x618] sm:$0xf]
    %v423 = vld [vmem:[%s1 + $0x61c] sm:$0xf]
    %v424 = vld [vmem:[%s1 + $0x620] sm:$0xf]
    %v425 = vld [vmem:[%s1 + $0x624] sm:$0xf]
    %v426 = vld [vmem:[%s1 + $0x628] sm:$0xf]
    %v427 = vld [vmem:[%s1 + $0x62c] sm:$0xf]
    %v428 = vld [vmem:[%s1 + $0x630] sm:$0xf]
    %v429 = vld [vmem:[%s1 + $0x634] sm:$0xf]
    %v430 = vld [vmem:[%s1 + $0x638] sm:$0xf]
    %v431 = vld [vmem:[%s1 + $0x63c] sm:$0xf]
    %v432 = vld [vmem:[%s2] sm:$0x1]
    %v434 = vlaneseq
    %v435 = vshrl.u32 %v434, 7
    %v436 = vsub.s32 0, %v435
    %v437 = vrot.slane %v432, %v436
    %v443 = vcombine.high %v28, %v28
    %v445 = vunpack.c.l.s4 1966171168
    %v446 = vunpack.c.0.s8 %v445
    %v447 = vlaneseq
    %v448 = vshrl.u32 %v447, 7
    %v449 = vsub.s32 %v446, %v448
    %v450 = vrot.slane %v28, %v449
    %v452 = vunpack.c.l.s4 1966171168
    %v453 = vunpack.c.0.s8 %v452
    %v454 = vlaneseq
    %v455 = vshrl.u32 %v454, 7
    %v456 = vsub.s32 %v453, %v455
    %v457 = vrot.slane %v443, %v456
    %v458 = vcombine.high %v450, %v450
    %v459 = vcombine.high %v457, %v457
    %v461 = vunpack.c.l.s4 1966171168
    %v462 = vunpack.c.0.s8 %v461
    %v463 = vlaneseq
    %v464 = vshrl.u32 %v463, 7
    %v465 = vsub.s32 %v462, %v464
    %v466 = vrot.slane %v450, %v465
    %v468 = vunpack.c.l.s4 1966171168
    %v469 = vunpack.c.0.s8 %v468
    %v470 = vlaneseq
    %v471 = vshrl.u32 %v470, 7
    %v472 = vsub.s32 %v469, %v471
    %v473 = vrot.slane %v457, %v472
    %v475 = vunpack.c.l.s4 1966171168
    %v476 = vunpack.c.0.s8 %v475
    %v477 = vlaneseq
    %v478 = vshrl.u32 %v477, 7
    %v479 = vsub.s32 %v476, %v478
    %v480 = vrot.slane %v458, %v479
    %v482 = vunpack.c.l.s4 1966171168
    %v483 = vunpack.c.0.s8 %v482
    %v484 = vlaneseq
    %v485 = vshrl.u32 %v484, 7
    %v486 = vsub.s32 %v483, %v485
    %v487 = vrot.slane %v459, %v486
    %v488 = vcombine.high %v466, %v466
    %v489 = vcombine.high %v473, %v473
    %v490 = vcombine.high %v480, %v480
    %v491 = vcombine.high %v487, %v487
    %v492 = vcombine.high %v29, %v29
    %v494 = vunpack.c.l.s4 1966171168
    %v495 = vunpack.c.0.s8 %v494
    %v496 = vlaneseq
    %v497 = vshrl.u32 %v496, 7
    %v498 = vsub.s32 %v495, %v497
    %v499 = vrot.slane %v29, %v498
    %v501 = vunpack.c.l.s4 1966171168
    %v502 = vunpack.c.0.s8 %v501
    %v503 = vlaneseq
    %v504 = vshrl.u32 %v503, 7
    %v505 = vsub.s32 %v502, %v504
    %v506 = vrot.slane %v492, %v505
    %v507 = vcombine.high %v499, %v499
    %v508 = vcombine.high %v506, %v506
    %v510 = vunpack.c.l.s4 1966171168
    %v511 = vunpack.c.0.s8 %v510
    %v512 = vlaneseq
    %v513 = vshrl.u32 %v512, 7
    %v514 = vsub.s32 %v511, %v513
    %v515 = vrot.slane %v499, %v514
    %v517 = vunpack.c.l.s4 1966171168
    %v518 = vunpack.c.0.s8 %v517
    %v519 = vlaneseq
    %v520 = vshrl.u32 %v519, 7
    %v521 = vsub.s32 %v518, %v520
    %v522 = vrot.slane %v506, %v521
    %v524 = vunpack.c.l.s4 1966171168
    %v525 = vunpack.c.0.s8 %v524
    %v526 = vlaneseq
    %v527 = vshrl.u32 %v526, 7
    %v528 = vsub.s32 %v525, %v527
    %v529 = vrot.slane %v507, %v528
    %v531 = vunpack.c.l.s4 1966171168
    %v532 = vunpack.c.0.s8 %v531
    %v533 = vlaneseq
    %v534 = vshrl.u32 %v533, 7
    %v535 = vsub.s32 %v532, %v534
    %v536 = vrot.slane %v508, %v535
    %v537 = vcombine.high %v515, %v515
    %v538 = vcombine.high %v522, %v522
    %v539 = vcombine.high %v529, %v529
    %v540 = vcombine.high %v536, %v536
    %v541 = vcombine.high %v30, %v30
    %v543 = vunpack.c.l.s4 1966171168
    %v544 = vunpack.c.0.s8 %v543
    %v545 = vlaneseq
    %v546 = vshrl.u32 %v545, 7
    %v547 = vsub.s32 %v544, %v546
    %v548 = vrot.slane %v30, %v547
    %v550 = vunpack.c.l.s4 1966171168
    %v551 = vunpack.c.0.s8 %v550
    %v552 = vlaneseq
    %v553 = vshrl.u32 %v552, 7
    %v554 = vsub.s32 %v551, %v553
    %v555 = vrot.slane %v541, %v554
    %v556 = vcombine.high %v548, %v548
    %v557 = vcombine.high %v555, %v555
    %v559 = vunpack.c.l.s4 1966171168
    %v560 = vunpack.c.0.s8 %v559
    %v561 = vlaneseq
    %v562 = vshrl.u32 %v561, 7
    %v563 = vsub.s32 %v560, %v562
    %v564 = vrot.slane %v548, %v563
    %v566 = vunpack.c.l.s4 1966171168
    %v567 = vunpack.c.0.s8 %v566
    %v568 = vlaneseq
    %v569 = vshrl.u32 %v568, 7
    %v570 = vsub.s32 %v567, %v569
    %v571 = vrot.slane %v555, %v570
    %v573 = vunpack.c.l.s4 1966171168
    %v574 = vunpack.c.0.s8 %v573
    %v575 = vlaneseq
    %v576 = vshrl.u32 %v575, 7
    %v577 = vsub.s32 %v574, %v576
    %v578 = vrot.slane %v556, %v577
    %v580 = vunpack.c.l.s4 1966171168
    %v581 = vunpack.c.0.s8 %v580
    %v582 = vlaneseq
    %v583 = vshrl.u32 %v582, 7
    %v584 = vsub.s32 %v581, %v583
    %v585 = vrot.slane %v557, %v584
    %v586 = vcombine.high %v564, %v564
    %v587 = vcombine.high %v571, %v571
    %v588 = vcombine.high %v578, %v578
    %v589 = vcombine.high %v585, %v585
    %v591 = vunpack.c.l.s4 1966171168
    %v592 = vunpack.c.0.s8 %v591
    %v593 = vlaneseq
    %v594 = vshrl.u32 %v593, 7
    %v595 = vsub.s32 %v592, %v594
    %v596 = vrot.slane %v31, %v595
    %v598 = vunpack.c.l.s4 1966171168
    %v599 = vunpack.c.0.s8 %v598
    %v600 = vlaneseq
    %v601 = vshrl.u32 %v600, 7
    %v602 = vsub.s32 %v599, %v601
    %v603 = vrot.slane %v596, %v602
    %v1029 = vunpack.c.l.b16 %v32
    %v1030 = vunpack.c.l.b16 %v33
    %v1031 = vunpack.c.l.b16 %v34
    %v1032 = vunpack.c.l.b16 %v35
    %v1033 = vunpack.c.l.b16 %v36
    %v1034 = vunpack.c.l.b16 %v37
    %v1035 = vunpack.c.l.b16 %v38
    %v1036 = vunpack.c.l.b16 %v39
    %v1037 = vunpack.c.l.b16 %v40
    %v1038 = vunpack.c.l.b16 %v41
    %v1039 = vunpack.c.l.b16 %v42
    %v1040 = vunpack.c.l.b16 %v43
    %v1041 = vunpack.c.l.b16 %v44
    %v1042 = vunpack.c.l.b16 %v45
    %v1043 = vunpack.c.l.b16 %v46
    %v1044 = vunpack.c.l.b16 %v47
    %v1045 = vunpack.c.l.b16 %v48
    %v1046 = vunpack.c.l.b16 %v49
    %v1047 = vunpack.c.l.b16 %v50
    %v1048 = vunpack.c.l.b16 %v51
    %v1049 = vunpack.c.l.b16 %v52
    %v1050 = vunpack.c.l.b16 %v53
    %v1051 = vunpack.c.l.b16 %v54
    %v1052 = vunpack.c.l.b16 %v55
    %v1053 = vunpack.c.l.b16 %v56
    %v1054 = vunpack.c.l.b16 %v57
    %v1055 = vunpack.c.l.b16 %v58
    %v1056 = vunpack.c.l.b16 %v59
    %v1057 = vunpack.c.l.b16 %v60
    %v1058 = vunpack.c.l.b16 %v61
    %v1059 = vunpack.c.l.b16 %v62
    %v1060 = vunpack.c.l.b16 %v63
    %v1061 = vunpack.c.l.b16 %v64
    %v1062 = vunpack.c.l.b16 %v65
    %v1063 = vunpack.c.l.b16 %v66
    %v1064 = vunpack.c.l.b16 %v67
    %v1065 = vunpack.c.l.b16 %v68
    %v1066 = vunpack.c.l.b16 %v69
    %v1067 = vunpack.c.l.b16 %v70
    %v1068 = vunpack.c.l.b16 %v71
    %v1069 = vunpack.c.l.b16 %v72
    %v1070 = vunpack.c.l.b16 %v73
    %v1071 = vunpack.c.l.b16 %v74
    %v1072 = vunpack.c.l.b16 %v75
    %v1073 = vunpack.c.l.b16 %v76
    %v1074 = vunpack.c.l.b16 %v77
    %v1075 = vunpack.c.l.b16 %v78
    %v1076 = vunpack.c.l.b16 %v79
    %v1077 = vunpack.c.l.b16 %v80
    %v1078 = vunpack.c.l.b16 %v81
    %v1079 = vunpack.c.l.b16 %v82
    %v1080 = vunpack.c.l.b16 %v83
    %v1081 = vunpack.c.l.b16 %v84
    %v1082 = vunpack.c.l.b16 %v85
    %v1083 = vunpack.c.l.b16 %v86
    %v1084 = vunpack.c.l.b16 %v87
    %v1085 = vunpack.c.l.b16 %v88
    %v1086 = vunpack.c.l.b16 %v89
    %v1087 = vunpack.c.l.b16 %v90
    %v1088 = vunpack.c.l.b16 %v91
    %v1089 = vunpack.c.l.b16 %v92
    %v1090 = vunpack.c.l.b16 %v93
    %v1091 = vunpack.c.l.b16 %v94
    %v1092 = vunpack.c.l.b16 %v95
    %v1093 = vunpack.c.l.b16 %v96
    %v1094 = vunpack.c.l.b16 %v97
    %v1095 = vunpack.c.l.b16 %v98
    %v1096 = vunpack.c.l.b16 %v99
    %v1097 = vunpack.c.l.b16 %v100
    %v1098 = vunpack.c.l.b16 %v101
    %v1099 = vunpack.c.l.b16 %v102
    %v1100 = vunpack.c.l.b16 %v103
    %v1101 = vunpack.c.l.b16 %v104
    %v1102 = vunpack.c.l.b16 %v105
    %v1103 = vunpack.c.l.b16 %v106
    %v1104 = vunpack.c.l.b16 %v107
    %v1105 = vunpack.c.l.b16 %v108
    %v1106 = vunpack.c.l.b16 %v109
    %v1107 = vunpack.c.l.b16 %v110
    %v1108 = vunpack.c.l.b16 %v111
    %v1109 = vunpack.c.l.b16 %v112
    %v1110 = vunpack.c.l.b16 %v113
    %v1111 = vunpack.c.l.b16 %v114
    %v1112 = vunpack.c.l.b16 %v115
    %v1113 = vunpack.c.l.b16 %v116
    %v1114 = vunpack.c.l.b16 %v117
    %v1115 = vunpack.c.l.b16 %v118
    %v1116 = vunpack.c.l.b16 %v119
    %v1117 = vunpack.c.l.b16 %v120
    %v1118 = vunpack.c.l.b16 %v121
    %v1119 = vunpack.c.l.b16 %v122
    %v1120 = vunpack.c.l.b16 %v123
    %v1121 = vunpack.c.l.b16 %v124
    %v1122 = vunpack.c.l.b16 %v125
    %v1123 = vunpack.c.l.b16 %v126
    %v1124 = vunpack.c.l.b16 %v127
    %v1125 = vunpack.c.l.b16 %v128
    %v1126 = vunpack.c.l.b16 %v129
    %v1127 = vunpack.c.l.b16 %v130
    %v1128 = vunpack.c.l.b16 %v131
    %v1129 = vunpack.c.l.b16 %v132
    %v1130 = vunpack.c.l.b16 %v133
    %v1131 = vunpack.c.l.b16 %v134
    %v1132 = vunpack.c.l.b16 %v135
    %v1133 = vunpack.c.l.b16 %v136
    %v1134 = vunpack.c.l.b16 %v137
    %v1135 = vunpack.c.l.b16 %v138
    %v1136 = vunpack.c.l.b16 %v139
    %v1137 = vunpack.c.l.b16 %v140
    %v1138 = vunpack.c.l.b16 %v141
    %v1139 = vunpack.c.l.b16 %v142
    %v1140 = vunpack.c.l.b16 %v143
    %v1141 = vunpack.c.l.b16 %v144
    %v1142 = vunpack.c.l.b16 %v145
    %v1143 = vunpack.c.l.b16 %v146
    %v1144 = vunpack.c.l.b16 %v147
    %v1145 = vunpack.c.l.b16 %v148
    %v1146 = vunpack.c.l.b16 %v149
    %v1147 = vunpack.c.l.b16 %v150
    %v1148 = vunpack.c.l.b16 %v151
    %v1149 = vunpack.c.l.b16 %v152
    %v1150 = vunpack.c.l.b16 %v153
    %v1151 = vunpack.c.l.b16 %v154
    %v1152 = vunpack.c.l.b16 %v155
    %v1153 = vunpack.c.l.b16 %v156
    %v1154 = vunpack.c.l.b16 %v157
    %v1155 = vunpack.c.l.b16 %v158
    %v1156 = vunpack.c.l.b16 %v159
    %v1157 = vunpack.c.l.b16 %v160
    %v1158 = vunpack.c.l.b16 %v161
    %v1159 = vunpack.c.l.b16 %v162
    %v1160 = vunpack.c.l.b16 %v163
    %v1161 = vunpack.c.l.b16 %v164
    %v1162 = vunpack.c.l.b16 %v165
    %v1163 = vunpack.c.l.b16 %v166
    %v1164 = vunpack.c.l.b16 %v167
    %v1165 = vunpack.c.l.b16 %v168
    %v1166 = vunpack.c.l.b16 %v169
    %v1167 = vunpack.c.l.b16 %v170
    %v1168 = vunpack.c.l.b16 %v171
    %v1169 = vunpack.c.l.b16 %v172
    %v1170 = vunpack.c.l.b16 %v173
    %v1171 = vunpack.c.l.b16 %v174
    %v1172 = vunpack.c.l.b16 %v175
    %v1173 = vunpack.c.l.b16 %v176
    %v1174 = vunpack.c.l.b16 %v177
    %v1175 = vunpack.c.l.b16 %v178
    %v1176 = vunpack.c.l.b16 %v179
    %v1177 = vunpack.c.l.b16 %v180
    %v1178 = vunpack.c.l.b16 %v181
    %v1179 = vunpack.c.l.b16 %v182
    %v1180 = vunpack.c.l.b16 %v183
    %v1181 = vunpack.c.l.b16 %v184
    %v1182 = vunpack.c.l.b16 %v185
    %v1183 = vunpack.c.l.b16 %v186
    %v1184 = vunpack.c.l.b16 %v187
    %v1185 = vunpack.c.l.b16 %v188
    %v1186 = vunpack.c.l.b16 %v189
    %v1187 = vunpack.c.l.b16 %v190
    %v1188 = vunpack.c.l.b16 %v191
    %v1189 = vunpack.c.l.b16 %v192
    %v1190 = vunpack.c.l.b16 %v193
    %v1191 = vunpack.c.l.b16 %v194
    %v1192 = vunpack.c.l.b16 %v195
    %v1193 = vunpack.c.l.b16 %v196
    %v1194 = vunpack.c.l.b16 %v197
    %v1195 = vunpack.c.l.b16 %v198
    %v1196 = vunpack.c.l.b16 %v199
    %v1197 = vunpack.c.l.b16 %v200
    %v1198 = vunpack.c.l.b16 %v201
    %v1199 = vunpack.c.l.b16 %v202
    %v1200 = vunpack.c.l.b16 %v203
    %v1201 = vunpack.c.l.b16 %v204
    %v1202 = vunpack.c.l.b16 %v205
    %v1203 = vunpack.c.l.b16 %v206
    %v1204 = vunpack.c.l.b16 %v207
    %v1205 = vunpack.c.l.b16 %v208
    %v1206 = vunpack.c.l.b16 %v209
    %v1207 = vunpack.c.l.b16 %v210
    %v1208 = vunpack.c.l.b16 %v211
    %v1209 = vunpack.c.l.b16 %v212
    %v1210 = vunpack.c.l.b16 %v213
    %v1211 = vunpack.c.l.b16 %v214
    %v1212 = vunpack.c.l.b16 %v215
    %v1213 = vunpack.c.l.b16 %v216
    %v1214 = vunpack.c.l.b16 %v217
    %v1215 = vunpack.c.l.b16 %v218
    %v1216 = vunpack.c.l.b16 %v219
    %v1217 = vunpack.c.l.b16 %v220
    %v1218 = vunpack.c.l.b16 %v221
    %v1219 = vunpack.c.l.b16 %v222
    %v1220 = vunpack.c.l.b16 %v223
    %v1221 = vunpack.c.l.b16 %v224
    %v1222 = vunpack.c.l.b16 %v225
    %v1223 = vunpack.c.l.b16 %v226
    %v1224 = vunpack.c.l.b16 %v227
    %v1225 = vunpack.c.l.b16 %v228
    %v1226 = vunpack.c.l.b16 %v229
    %v1227 = vunpack.c.l.b16 %v230
    %v1228 = vunpack.c.l.b16 %v231
    %v1229 = vunpack.c.l.b16 %v232
    %v1230 = vunpack.c.l.b16 %v233
    %v1231 = vunpack.c.l.b16 %v234
    %v1232 = vunpack.c.l.b16 %v235
    %v1233 = vunpack.c.l.b16 %v236
    %v1234 = vunpack.c.l.b16 %v237
    %v1235 = vunpack.c.l.b16 %v238
    %v1236 = vunpack.c.l.b16 %v239
    %v1237 = vunpack.c.l.b16 %v240
    %v1238 = vunpack.c.l.b16 %v241
    %v1239 = vunpack.c.l.b16 %v242
    %v1240 = vunpack.c.l.b16 %v243
    %v1241 = vunpack.c.l.b16 %v244
    %v1242 = vunpack.c.l.b16 %v245
    %v1243 = vunpack.c.l.b16 %v246
    %v1244 = vunpack.c.l.b16 %v247
    %v1245 = vunpack.c.l.b16 %v248
    %v1246 = vunpack.c.l.b16 %v249
    %v1247 = vunpack.c.l.b16 %v250
    %v1248 = vunpack.c.l.b16 %v251
    %v1249 = vunpack.c.l.b16 %v252
    %v1250 = vunpack.c.l.b16 %v253
    %v1251 = vunpack.c.l.b16 %v254
    %v1252 = vunpack.c.l.b16 %v255
    %v1253 = vunpack.c.l.b16 %v256
    %v1254 = vunpack.c.l.b16 %v257
    %v1255 = vunpack.c.l.b16 %v258
    %v1256 = vunpack.c.l.b16 %v259
    %v1257 = vunpack.c.l.b16 %v260
    %v1258 = vunpack.c.l.b16 %v261
    %v1259 = vunpack.c.l.b16 %v262
    %v1260 = vunpack.c.l.b16 %v263
    %v1261 = vunpack.c.l.b16 %v264
    %v1262 = vunpack.c.l.b16 %v265
    %v1263 = vunpack.c.l.b16 %v266
    %v1264 = vunpack.c.l.b16 %v267
    %v1265 = vunpack.c.l.b16 %v268
    %v1266 = vunpack.c.l.b16 %v269
    %v1267 = vunpack.c.l.b16 %v270
    %v1268 = vunpack.c.l.b16 %v271
    %v1269 = vunpack.c.l.b16 %v272
    %v1270 = vunpack.c.l.b16 %v273
    %v1271 = vunpack.c.l.b16 %v274
    %v1272 = vunpack.c.l.b16 %v275
    %v1273 = vunpack.c.l.b16 %v276
    %v1274 = vunpack.c.l.b16 %v277
    %v1275 = vunpack.c.l.b16 %v278
    %v1276 = vunpack.c.l.b16 %v279
    %v1277 = vunpack.c.l.b16 %v280
    %v1278 = vunpack.c.l.b16 %v281
    %v1279 = vunpack.c.l.b16 %v282
    %v1280 = vunpack.c.l.b16 %v283
    %v1281 = vunpack.c.l.b16 %v284
    %v1282 = vunpack.c.l.b16 %v285
    %v1283 = vunpack.c.l.b16 %v286
    %v1284 = vunpack.c.l.b16 %v287
    %v1285 = vunpack.c.l.b16 %v288
    %v1286 = vunpack.c.l.b16 %v289
    %v1287 = vunpack.c.l.b16 %v290
    %v1288 = vunpack.c.l.b16 %v291
    %v1289 = vunpack.c.l.b16 %v292
    %v1290 = vunpack.c.l.b16 %v293
    %v1291 = vunpack.c.l.b16 %v294
    %v1292 = vunpack.c.l.b16 %v295
    %v1293 = vunpack.c.l.b16 %v296
    %v1294 = vunpack.c.l.b16 %v297
    %v1295 = vunpack.c.l.b16 %v298
    %v1296 = vunpack.c.l.b16 %v299
    %v1297 = vunpack.c.l.b16 %v300
    %v1298 = vunpack.c.l.b16 %v301
    %v1299 = vunpack.c.l.b16 %v302
    %v1300 = vunpack.c.l.b16 %v303
    %v1301 = vunpack.c.l.b16 %v304
    %v1302 = vunpack.c.l.b16 %v305
    %v1303 = vunpack.c.l.b16 %v306
    %v1304 = vunpack.c.l.b16 %v307
    %v1305 = vunpack.c.l.b16 %v308
    %v1306 = vunpack.c.l.b16 %v309
    %v1307 = vunpack.c.l.b16 %v310
    %v1308 = vunpack.c.l.b16 %v311
    %v1309 = vunpack.c.l.b16 %v312
    %v1310 = vunpack.c.l.b16 %v313
    %v1311 = vunpack.c.l.b16 %v314
    %v1312 = vunpack.c.l.b16 %v315
    %v1313 = vunpack.c.l.b16 %v316
    %v1314 = vunpack.c.l.b16 %v317
    %v1315 = vunpack.c.l.b16 %v318
    %v1316 = vunpack.c.l.b16 %v319
    %v1317 = vunpack.c.l.b16 %v320
    %v1318 = vunpack.c.l.b16 %v321
    %v1319 = vunpack.c.l.b16 %v322
    %v1320 = vunpack.c.l.b16 %v323
    %v1321 = vunpack.c.l.b16 %v324
    %v1322 = vunpack.c.l.b16 %v325
    %v1323 = vunpack.c.l.b16 %v326
    %v1324 = vunpack.c.l.b16 %v327
    %v1325 = vunpack.c.l.b16 %v328
    %v1326 = vunpack.c.l.b16 %v329
    %v1327 = vunpack.c.l.b16 %v330
    %v1328 = vunpack.c.l.b16 %v331
    %v1329 = vunpack.c.l.b16 %v332
    %v1330 = vunpack.c.l.b16 %v333
    %v1331 = vunpack.c.l.b16 %v334
    %v1332 = vunpack.c.l.b16 %v335
    %v1333 = vunpack.c.l.b16 %v336
    %v1334 = vunpack.c.l.b16 %v337
    %v1335 = vunpack.c.l.b16 %v338
    %v1336 = vunpack.c.l.b16 %v339
    %v1337 = vunpack.c.l.b16 %v340
    %v1338 = vunpack.c.l.b16 %v341
    %v1339 = vunpack.c.l.b16 %v342
    %v1340 = vunpack.c.l.b16 %v343
    %v1341 = vunpack.c.l.b16 %v344
    %v1342 = vunpack.c.l.b16 %v345
    %v1343 = vunpack.c.l.b16 %v346
    %v1344 = vunpack.c.l.b16 %v347
    %v1345 = vunpack.c.l.b16 %v348
    %v1346 = vunpack.c.l.b16 %v349
    %v1347 = vunpack.c.l.b16 %v350
    %v1348 = vunpack.c.l.b16 %v351
    %v1349 = vunpack.c.l.b16 %v352
    %v1350 = vunpack.c.l.b16 %v353
    %v1351 = vunpack.c.l.b16 %v354
    %v1352 = vunpack.c.l.b16 %v355
    %v1353 = vunpack.c.l.b16 %v356
    %v1354 = vunpack.c.l.b16 %v357
    %v1355 = vunpack.c.l.b16 %v358
    %v1356 = vunpack.c.l.b16 %v359
    %v1357 = vunpack.c.l.b16 %v360
    %v1358 = vunpack.c.l.b16 %v361
    %v1359 = vunpack.c.l.b16 %v362
    %v1360 = vunpack.c.l.b16 %v363
    %v1361 = vunpack.c.l.b16 %v364
    %v1362 = vunpack.c.l.b16 %v365
    %v1363 = vunpack.c.l.b16 %v366
    %v1364 = vunpack.c.l.b16 %v367
    %v1365 = vunpack.c.l.b16 %v368
    %v1366 = vunpack.c.l.b16 %v369
    %v1367 = vunpack.c.l.b16 %v370
    %v1368 = vunpack.c.l.b16 %v371
    %v1369 = vunpack.c.l.b16 %v372
    %v1370 = vunpack.c.l.b16 %v373
    %v1371 = vunpack.c.l.b16 %v374
    %v1372 = vunpack.c.l.b16 %v375
    %v1373 = vunpack.c.l.b16 %v376
    %v1374 = vunpack.c.l.b16 %v377
    %v1375 = vunpack.c.l.b16 %v378
    %v1376 = vunpack.c.l.b16 %v379
    %v1377 = vunpack.c.l.b16 %v380
    %v1378 = vunpack.c.l.b16 %v381
    %v1379 = vunpack.c.l.b16 %v382
    %v1380 = vunpack.c.l.b16 %v383
    %v1381 = vunpack.c.l.b16 %v384
    %v1382 = vunpack.c.l.b16 %v385
    %v1383 = vunpack.c.l.b16 %v386
    %v1384 = vunpack.c.l.b16 %v387
    %v1385 = vunpack.c.l.b16 %v388
    %v1386 = vunpack.c.l.b16 %v389
    %v1387 = vunpack.c.l.b16 %v390
    %v1388 = vunpack.c.l.b16 %v391
    %v1389 = vunpack.c.l.b16 %v392
    %v1390 = vunpack.c.l.b16 %v393
    %v1391 = vunpack.c.l.b16 %v394
    %v1392 = vunpack.c.l.b16 %v395
    %v1393 = vunpack.c.l.b16 %v396
    %v1394 = vunpack.c.l.b16 %v397
    %v1395 = vunpack.c.l.b16 %v398
    %v1396 = vunpack.c.l.b16 %v399
    %v1397 = vunpack.c.l.b16 %v400
    %v1398 = vunpack.c.l.b16 %v401
    %v1399 = vunpack.c.l.b16 %v402
    %v1400 = vunpack.c.l.b16 %v403
    %v1401 = vunpack.c.l.b16 %v404
    %v1402 = vunpack.c.l.b16 %v405
    %v1403 = vunpack.c.l.b16 %v406
    %v1404 = vunpack.c.l.b16 %v407
    %v1405 = vunpack.c.l.b16 %v408
    %v1406 = vunpack.c.l.b16 %v409
    %v1407 = vunpack.c.l.b16 %v410
    %v1408 = vunpack.c.l.b16 %v411
    %v1409 = vunpack.c.l.b16 %v412
    %v1410 = vunpack.c.l.b16 %v413
    %v1411 = vunpack.c.l.b16 %v414
    %v1412 = vunpack.c.l.b16 %v415
    %v1413 = vunpack.c.l.b16 %v416
    %v1414 = vunpack.c.l.b16 %v417
    %v1415 = vunpack.c.l.b16 %v418
    %v1416 = vunpack.c.l.b16 %v419
    %v1417 = vunpack.c.l.b16 %v420
    %v1418 = vunpack.c.l.b16 %v421
    %v1419 = vunpack.c.l.b16 %v422
    %v1420 = vunpack.c.l.b16 %v423
    %v1421 = vunpack.c.l.b16 %v424
    %v1422 = vunpack.c.l.b16 %v425
    %v1423 = vunpack.c.l.b16 %v426
    %v1424 = vunpack.c.l.b16 %v427
    %v1425 = vunpack.c.l.b16 %v428
    %v1426 = vunpack.c.l.b16 %v429
    %v1427 = vunpack.c.l.b16 %v430
    %v1428 = vunpack.c.l.b16 %v431
    %v1429 = vpack.c.b16 %v1030, %v1029
    %v1430 = vpack.c.b16 %v1032, %v1031
    %v1431 = vpack.c.b16 %v1034, %v1033
    %v1432 = vpack.c.b16 %v1036, %v1035
    %v1433 = vpack.c.b16 %v1038, %v1037
    %v1434 = vpack.c.b16 %v1040, %v1039
    %v1435 = vpack.c.b16 %v1042, %v1041
    %v1436 = vpack.c.b16 %v1044, %v1043
    %v1437 = vpack.c.b16 %v1046, %v1045
    %v1438 = vpack.c.b16 %v1048, %v1047
    %v1439 = vpack.c.b16 %v1050, %v1049
    %v1440 = vpack.c.b16 %v1052, %v1051
    %v1441 = vpack.c.b16 %v1054, %v1053
    %v1442 = vpack.c.b16 %v1056, %v1055
    %v1443 = vpack.c.b16 %v1058, %v1057
    %v1444 = vpack.c.b16 %v1060, %v1059
    %v1445 = vpack.c.b16 %v1062, %v1061
    %v1446 = vpack.c.b16 %v1064, %v1063
    %v1447 = vpack.c.b16 %v1066, %v1065
    %v1448 = vpack.c.b16 %v1068, %v1067
    %v1449 = vpack.c.b16 %v1070, %v1069
    %v1450 = vpack.c.b16 %v1072, %v1071
    %v1451 = vpack.c.b16 %v1074, %v1073
    %v1452 = vpack.c.b16 %v1076, %v1075
    %v1453 = vpack.c.b16 %v1078, %v1077
    %v1454 = vpack.c.b16 %v1080, %v1079
    %v1455 = vpack.c.b16 %v1082, %v1081
    %v1456 = vpack.c.b16 %v1084, %v1083
    %v1457 = vpack.c.b16 %v1086, %v1085
    %v1458 = vpack.c.b16 %v1088, %v1087
    %v1459 = vpack.c.b16 %v1090, %v1089
    %v1460 = vpack.c.b16 %v1092, %v1091
    %v1461 = vpack.c.b16 %v1094, %v1093
    %v1462 = vpack.c.b16 %v1096, %v1095
    %v1463 = vpack.c.b16 %v1098, %v1097
    %v1464 = vpack.c.b16 %v1100, %v1099
    %v1465 = vpack.c.b16 %v1102, %v1101
    %v1466 = vpack.c.b16 %v1104, %v1103
    %v1467 = vpack.c.b16 %v1106, %v1105
    %v1468 = vpack.c.b16 %v1108, %v1107
    %v1469 = vpack.c.b16 %v1110, %v1109
    %v1470 = vpack.c.b16 %v1112, %v1111
    %v1471 = vpack.c.b16 %v1114, %v1113
    %v1472 = vpack.c.b16 %v1116, %v1115
    %v1473 = vpack.c.b16 %v1118, %v1117
    %v1474 = vpack.c.b16 %v1120, %v1119
    %v1475 = vpack.c.b16 %v1122, %v1121
    %v1476 = vpack.c.b16 %v1124, %v1123
    %v1477 = vpack.c.b16 %v1126, %v1125
    %v1478 = vpack.c.b16 %v1128, %v1127
    %v1479 = vpack.c.b16 %v1130, %v1129
    %v1480 = vpack.c.b16 %v1132, %v1131
    %v1481 = vpack.c.b16 %v1134, %v1133
    %v1482 = vpack.c.b16 %v1136, %v1135
    %v1483 = vpack.c.b16 %v1138, %v1137
    %v1484 = vpack.c.b16 %v1140, %v1139
    %v1485 = vpack.c.b16 %v1142, %v1141
    %v1486 = vpack.c.b16 %v1144, %v1143
    %v1487 = vpack.c.b16 %v1146, %v1145
    %v1488 = vpack.c.b16 %v1148, %v1147
    %v1489 = vpack.c.b16 %v1150, %v1149
    %v1490 = vpack.c.b16 %v1152, %v1151
    %v1491 = vpack.c.b16 %v1154, %v1153
    %v1492 = vpack.c.b16 %v1156, %v1155
    %v1493 = vpack.c.b16 %v1158, %v1157
    %v1494 = vpack.c.b16 %v1160, %v1159
    %v1495 = vpack.c.b16 %v1162, %v1161
    %v1496 = vpack.c.b16 %v1164, %v1163
    %v1497 = vpack.c.b16 %v1166, %v1165
    %v1498 = vpack.c.b16 %v1168, %v1167
    %v1499 = vpack.c.b16 %v1170, %v1169
    %v1500 = vpack.c.b16 %v1172, %v1171
    %v1501 = vpack.c.b16 %v1174, %v1173
    %v1502 = vpack.c.b16 %v1176, %v1175
    %v1503 = vpack.c.b16 %v1178, %v1177
    %v1504 = vpack.c.b16 %v1180, %v1179
    %v1505 = vpack.c.b16 %v1182, %v1181
    %v1506 = vpack.c.b16 %v1184, %v1183
    %v1507 = vpack.c.b16 %v1186, %v1185
    %v1508 = vpack.c.b16 %v1188, %v1187
    %v1509 = vpack.c.b16 %v1190, %v1189
    %v1510 = vpack.c.b16 %v1192, %v1191
    %v1511 = vpack.c.b16 %v1194, %v1193
    %v1512 = vpack.c.b16 %v1196, %v1195
    %v1513 = vpack.c.b16 %v1198, %v1197
    %v1514 = vpack.c.b16 %v1200, %v1199
    %v1515 = vpack.c.b16 %v1202, %v1201
    %v1516 = vpack.c.b16 %v1204, %v1203
    %v1517 = vpack.c.b16 %v1206, %v1205
    %v1518 = vpack.c.b16 %v1208, %v1207
    %v1519 = vpack.c.b16 %v1210, %v1209
    %v1520 = vpack.c.b16 %v1212, %v1211
    %v1521 = vpack.c.b16 %v1214, %v1213
    %v1522 = vpack.c.b16 %v1216, %v1215
    %v1523 = vpack.c.b16 %v1218, %v1217
    %v1524 = vpack.c.b16 %v1220, %v1219
    %v1525 = vpack.c.b16 %v1222, %v1221
    %v1526 = vpack.c.b16 %v1224, %v1223
    %v1527 = vpack.c.b16 %v1226, %v1225
    %v1528 = vpack.c.b16 %v1228, %v1227
    %v1529 = vpack.c.b16 %v1230, %v1229
    %v1530 = vpack.c.b16 %v1232, %v1231
    %v1531 = vpack.c.b16 %v1234, %v1233
    %v1532 = vpack.c.b16 %v1236, %v1235
    %v1533 = vpack.c.b16 %v1238, %v1237
    %v1534 = vpack.c.b16 %v1240, %v1239
    %v1535 = vpack.c.b16 %v1242, %v1241
    %v1536 = vpack.c.b16 %v1244, %v1243
    %v1537 = vpack.c.b16 %v1246, %v1245
    %v1538 = vpack.c.b16 %v1248, %v1247
    %v1539 = vpack.c.b16 %v1250, %v1249
    %v1540 = vpack.c.b16 %v1252, %v1251
    %v1541 = vpack.c.b16 %v1254, %v1253
    %v1542 = vpack.c.b16 %v1256, %v1255
    %v1543 = vpack.c.b16 %v1258, %v1257
    %v1544 = vpack.c.b16 %v1260, %v1259
    %v1545 = vpack.c.b16 %v1262, %v1261
    %v1546 = vpack.c.b16 %v1264, %v1263
    %v1547 = vpack.c.b16 %v1266, %v1265
    %v1548 = vpack.c.b16 %v1268, %v1267
    %v1549 = vpack.c.b16 %v1270, %v1269
    %v1550 = vpack.c.b16 %v1272, %v1271
    %v1551 = vpack.c.b16 %v1274, %v1273
    %v1552 = vpack.c.b16 %v1276, %v1275
    %v1553 = vpack.c.b16 %v1278, %v1277
    %v1554 = vpack.c.b16 %v1280, %v1279
    %v1555 = vpack.c.b16 %v1282, %v1281
    %v1556 = vpack.c.b16 %v1284, %v1283
    %v1557 = vpack.c.b16 %v1286, %v1285
    %v1558 = vpack.c.b16 %v1288, %v1287
    %v1559 = vpack.c.b16 %v1290, %v1289
    %v1560 = vpack.c.b16 %v1292, %v1291
    %v1561 = vpack.c.b16 %v1294, %v1293
    %v1562 = vpack.c.b16 %v1296, %v1295
    %v1563 = vpack.c.b16 %v1298, %v1297
    %v1564 = vpack.c.b16 %v1300, %v1299
    %v1565 = vpack.c.b16 %v1302, %v1301
    %v1566 = vpack.c.b16 %v1304, %v1303
    %v1567 = vpack.c.b16 %v1306, %v1305
    %v1568 = vpack.c.b16 %v1308, %v1307
    %v1569 = vpack.c.b16 %v1310, %v1309
    %v1570 = vpack.c.b16 %v1312, %v1311
    %v1571 = vpack.c.b16 %v1314, %v1313
    %v1572 = vpack.c.b16 %v1316, %v1315
    %v1573 = vpack.c.b16 %v1318, %v1317
    %v1574 = vpack.c.b16 %v1320, %v1319
    %v1575 = vpack.c.b16 %v1322, %v1321
    %v1576 = vpack.c.b16 %v1324, %v1323
    %v1577 = vpack.c.b16 %v1326, %v1325
    %v1578 = vpack.c.b16 %v1328, %v1327
    %v1579 = vpack.c.b16 %v1330, %v1329
    %v1580 = vpack.c.b16 %v1332, %v1331
    %v1581 = vpack.c.b16 %v1334, %v1333
    %v1582 = vpack.c.b16 %v1336, %v1335
    %v1583 = vpack.c.b16 %v1338, %v1337
    %v1584 = vpack.c.b16 %v1340, %v1339
    %v1585 = vpack.c.b16 %v1342, %v1341
    %v1586 = vpack.c.b16 %v1344, %v1343
    %v1587 = vpack.c.b16 %v1346, %v1345
    %v1588 = vpack.c.b16 %v1348, %v1347
    %v1589 = vpack.c.b16 %v1350, %v1349
    %v1590 = vpack.c.b16 %v1352, %v1351
    %v1591 = vpack.c.b16 %v1354, %v1353
    %v1592 = vpack.c.b16 %v1356, %v1355
    %v1593 = vpack.c.b16 %v1358, %v1357
    %v1594 = vpack.c.b16 %v1360, %v1359
    %v1595 = vpack.c.b16 %v1362, %v1361
    %v1596 = vpack.c.b16 %v1364, %v1363
    %v1597 = vpack.c.b16 %v1366, %v1365
    %v1598 = vpack.c.b16 %v1368, %v1367
    %v1599 = vpack.c.b16 %v1370, %v1369
    %v1600 = vpack.c.b16 %v1372, %v1371
    %v1601 = vpack.c.b16 %v1374, %v1373
    %v1602 = vpack.c.b16 %v1376, %v1375
    %v1603 = vpack.c.b16 %v1378, %v1377
    %v1604 = vpack.c.b16 %v1380, %v1379
    %v1605 = vpack.c.b16 %v1382, %v1381
    %v1606 = vpack.c.b16 %v1384, %v1383
    %v1607 = vpack.c.b16 %v1386, %v1385
    %v1608 = vpack.c.b16 %v1388, %v1387
    %v1609 = vpack.c.b16 %v1390, %v1389
    %v1610 = vpack.c.b16 %v1392, %v1391
    %v1611 = vpack.c.b16 %v1394, %v1393
    %v1612 = vpack.c.b16 %v1396, %v1395
    %v1613 = vpack.c.b16 %v1398, %v1397
    %v1614 = vpack.c.b16 %v1400, %v1399
    %v1615 = vpack.c.b16 %v1402, %v1401
    %v1616 = vpack.c.b16 %v1404, %v1403
    %v1617 = vpack.c.b16 %v1406, %v1405
    %v1618 = vpack.c.b16 %v1408, %v1407
    %v1619 = vpack.c.b16 %v1410, %v1409
    %v1620 = vpack.c.b16 %v1412, %v1411
    %v1621 = vpack.c.b16 %v1414, %v1413
    %v1622 = vpack.c.b16 %v1416, %v1415
    %v1623 = vpack.c.b16 %v1418, %v1417
    %v1624 = vpack.c.b16 %v1420, %v1419
    %v1625 = vpack.c.b16 %v1422, %v1421
    %v1626 = vpack.c.b16 %v1424, %v1423
    %v1627 = vpack.c.b16 %v1426, %v1425
    %v1628 = vpack.c.b16 %v1428, %v1427
    %1829 = vmatprep.subr.bf16.mxu0 0
    %1830 = vmatpush1.bf16.msra.mxu0 %v1429
    %1831 = vmatprep.subr.bf16.mxu0 0
    %1832 = vmatpush1.bf16.msra.mxu0 %v1430
    %1833 = vmatprep.subr.bf16.mxu0 0
    %1834 = vmatpush1.bf16.msra.mxu0 %v1431
    %1835 = vmatprep.subr.bf16.mxu0 0
    %1836 = vmatpush1.bf16.msra.mxu0 %v1432
    %1837 = vmatprep.subr.bf16.mxu0 0
    %1838 = vmatpush1.bf16.msra.mxu0 %v1433
    %1839 = vmatprep.subr.bf16.mxu0 0
    %1840 = vmatpush1.bf16.msra.mxu0 %v1434
    %1841 = vmatprep.subr.bf16.mxu0 0
    %1842 = vmatpush1.bf16.msra.mxu0 %v1435
    %1843 = vmatprep.subr.bf16.mxu0 0
    %1844 = vmatpush1.bf16.msra.mxu0 %v1436
    %1845 = vmatprep.subr.bf16.mxu0 0
    %1846 = vmatpush1.bf16.msra.mxu0 %v1437
    %1847 = vmatprep.subr.bf16.mxu0 0
    %1848 = vmatpush1.bf16.msra.mxu0 %v1438
    %1849 = vmatprep.subr.bf16.mxu0 0
    %1850 = vmatpush1.bf16.msra.mxu0 %v1439
    %1851 = vmatprep.subr.bf16.mxu0 0
    %1852 = vmatpush1.bf16.msra.mxu0 %v1440
    %1853 = vmatprep.subr.bf16.mxu0 0
    %1854 = vmatpush1.bf16.msra.mxu0 %v1441
    %1855 = vmatprep.subr.bf16.mxu0 0
    %1856 = vmatpush1.bf16.msra.mxu0 %v1442
    %1857 = vmatprep.subr.bf16.mxu0 0
    %1858 = vmatpush1.bf16.msra.mxu0 %v1443
    %1859 = vmatprep.subr.bf16.mxu0 0
    %1860 = vmatpush1.bf16.msra.mxu0 %v1444
    %1861 = vmatprep.mubr.bf16.mxu0 %v480
    %1862 = vmatmul.mubr.bf16.gmra.mrb[0].mxu0 %v466
    %v1863 = vpop.f32.mrb[0].mxu0
    %v1864 = vadd.f32 %v437, %v1863
    %v1865 = vpop.f32.mrb[0].mxu0
    %v1866 = vpop.f32.mrb[0].mxu0
    %v1867 = vpop.f32.mrb[0].mxu0
    %1868 = vdwg.mxu0
    %1869 = vmatprep.subr.bf16.mxu0 0
    %1870 = vmatpush1.bf16.msra.mxu0 %v1445
    %1871 = vmatprep.subr.bf16.mxu0 0
    %1872 = vmatpush1.bf16.msra.mxu0 %v1446
    %1873 = vmatprep.subr.bf16.mxu0 0
    %1874 = vmatpush1.bf16.msra.mxu0 %v1447
    %1875 = vmatprep.subr.bf16.mxu0 0
    %1876 = vmatpush1.bf16.msra.mxu0 %v1448
    %1877 = vmatprep.subr.bf16.mxu0 0
    %1878 = vmatpush1.bf16.msra.mxu0 %v1449
    %1879 = vmatprep.subr.bf16.mxu0 0
    %1880 = vmatpush1.bf16.msra.mxu0 %v1450
    %1881 = vmatprep.subr.bf16.mxu0 0
    %1882 = vmatpush1.bf16.msra.mxu0 %v1451
    %1883 = vmatprep.subr.bf16.mxu0 0
    %1884 = vmatpush1.bf16.msra.mxu0 %v1452
    %1885 = vmatprep.subr.bf16.mxu0 0
    %1886 = vmatpush1.bf16.msra.mxu0 %v1453
    %1887 = vmatprep.subr.bf16.mxu0 0
    %1888 = vmatpush1.bf16.msra.mxu0 %v1454
    %1889 = vmatprep.subr.bf16.mxu0 0
    %1890 = vmatpush1.bf16.msra.mxu0 %v1455
    %1891 = vmatprep.subr.bf16.mxu0 0
    %1892 = vmatpush1.bf16.msra.mxu0 %v1456
    %1893 = vmatprep.subr.bf16.mxu0 0
    %1894 = vmatpush1.bf16.msra.mxu0 %v1457
    %1895 = vmatprep.subr.bf16.mxu0 0
    %1896 = vmatpush1.bf16.msra.mxu0 %v1458
    %1897 = vmatprep.subr.bf16.mxu0 0
    %1898 = vmatpush1.bf16.msra.mxu0 %v1459
    %1899 = vmatprep.subr.bf16.mxu0 0
    %1900 = vmatpush1.bf16.msra.mxu0 %v1460
    %1901 = vmatprep.mubr.bf16.mxu0 %v490
    %1902 = vmatmul.mubr.bf16.gmra.mrb[0].mxu0 %v488
    %v1903 = vpop.f32.mrb[0].mxu0
    %v1904 = vadd.f32 %v1864, %v1903
    %v1905 = vpop.f32.mrb[0].mxu0
    %v1906 = vpop.f32.mrb[0].mxu0
    %v1907 = vpop.f32.mrb[0].mxu0
    %1908 = vdwg.mxu0
    %1909 = vmatprep.subr.bf16.mxu0 0
    %1910 = vmatpush1.bf16.msra.mxu0 %v1461
    %1911 = vmatprep.subr.bf16.mxu0 0
    %1912 = vmatpush1.bf16.msra.mxu0 %v1462
    %1913 = vmatprep.subr.bf16.mxu0 0
    %1914 = vmatpush1.bf16.msra.mxu0 %v1463
    %1915 = vmatprep.subr.bf16.mxu0 0
    %1916 = vmatpush1.bf16.msra.mxu0 %v1464
    %1917 = vmatprep.subr.bf16.mxu0 0
    %1918 = vmatpush1.bf16.msra.mxu0 %v1465
    %1919 = vmatprep.subr.bf16.mxu0 0
    %1920 = vmatpush1.bf16.msra.mxu0 %v1466
    %1921 = vmatprep.subr.bf16.mxu0 0
    %1922 = vmatpush1.bf16.msra.mxu0 %v1467
    %1923 = vmatprep.subr.bf16.mxu0 0
    %1924 = vmatpush1.bf16.msra.mxu0 %v1468
    %1925 = vmatprep.subr.bf16.mxu0 0
    %1926 = vmatpush1.bf16.msra.mxu0 %v1469
    %1927 = vmatprep.subr.bf16.mxu0 0
    %1928 = vmatpush1.bf16.msra.mxu0 %v1470
    %1929 = vmatprep.subr.bf16.mxu0 0
    %1930 = vmatpush1.bf16.msra.mxu0 %v1471
    %1931 = vmatprep.subr.bf16.mxu0 0
    %1932 = vmatpush1.bf16.msra.mxu0 %v1472
    %1933 = vmatprep.subr.bf16.mxu0 0
    %1934 = vmatpush1.bf16.msra.mxu0 %v1473
    %1935 = vmatprep.subr.bf16.mxu0 0
    %1936 = vmatpush1.bf16.msra.mxu0 %v1474
    %1937 = vmatprep.subr.bf16.mxu0 0
    %1938 = vmatpush1.bf16.msra.mxu0 %v1475
    %1939 = vmatprep.subr.bf16.mxu0 0
    %1940 = vmatpush1.bf16.msra.mxu0 %v1476
    %1941 = vmatprep.mubr.bf16.mxu0 %v487
    %1942 = vmatmul.mubr.bf16.gmra.mrb[0].mxu0 %v473
    %v1943 = vpop.f32.mrb[0].mxu0
    %v1944 = vadd.f32 %v1904, %v1943
    %v1945 = vpop.f32.mrb[0].mxu0
    %v1946 = vpop.f32.mrb[0].mxu0
    %v1947 = vpop.f32.mrb[0].mxu0
    %1948 = vdwg.mxu0
    %1949 = vmatprep.subr.bf16.mxu0 0
    %1950 = vmatpush1.bf16.msra.mxu0 %v1477
    %1951 = vmatprep.subr.bf16.mxu0 0
    %1952 = vmatpush1.bf16.msra.mxu0 %v1478
    %1953 = vmatprep.subr.bf16.mxu0 0
    %1954 = vmatpush1.bf16.msra.mxu0 %v1479
    %1955 = vmatprep.subr.bf16.mxu0 0
    %1956 = vmatpush1.bf16.msra.mxu0 %v1480
    %1957 = vmatprep.subr.bf16.mxu0 0
    %1958 = vmatpush1.bf16.msra.mxu0 %v1481
    %1959 = vmatprep.subr.bf16.mxu0 0
    %1960 = vmatpush1.bf16.msra.mxu0 %v1482
    %1961 = vmatprep.subr.bf16.mxu0 0
    %1962 = vmatpush1.bf16.msra.mxu0 %v1483
    %1963 = vmatprep.subr.bf16.mxu0 0
    %1964 = vmatpush1.bf16.msra.mxu0 %v1484
    %1965 = vmatprep.subr.bf16.mxu0 0
    %1966 = vmatpush1.bf16.msra.mxu0 %v1485
    %1967 = vmatprep.subr.bf16.mxu0 0
    %1968 = vmatpush1.bf16.msra.mxu0 %v1486
    %1969 = vmatprep.subr.bf16.mxu0 0
    %1970 = vmatpush1.bf16.msra.mxu0 %v1487
    %1971 = vmatprep.subr.bf16.mxu0 0
    %1972 = vmatpush1.bf16.msra.mxu0 %v1488
    %1973 = vmatprep.subr.bf16.mxu0 0
    %1974 = vmatpush1.bf16.msra.mxu0 %v1489
    %1975 = vmatprep.subr.bf16.mxu0 0
    %1976 = vmatpush1.bf16.msra.mxu0 %v1490
    %1977 = vmatprep.subr.bf16.mxu0 0
    %1978 = vmatpush1.bf16.msra.mxu0 %v1491
    %1979 = vmatprep.subr.bf16.mxu0 0
    %1980 = vmatpush1.bf16.msra.mxu0 %v1492
    %1981 = vmatprep.mubr.bf16.mxu0 %v491
    %1982 = vmatmul.mubr.bf16.gmra.mrb[0].mxu0 %v489
    %v1983 = vpop.f32.mrb[0].mxu0
    %v1984 = vadd.f32 %v1944, %v1983
    %v1985 = vpop.f32.mrb[0].mxu0
    %v1986 = vpop.f32.mrb[0].mxu0
    %v1987 = vpop.f32.mrb[0].mxu0
    %1988 = vdwg.mxu0
    %1989 = vmatprep.subr.bf16.mxu0 0
    %1990 = vmatpush1.bf16.msra.mxu0 %v1493
    %1991 = vmatprep.subr.bf16.mxu0 0
    %1992 = vmatpush1.bf16.msra.mxu0 %v1494
    %1993 = vmatprep.subr.bf16.mxu0 0
    %1994 = vmatpush1.bf16.msra.mxu0 %v1495
    %1995 = vmatprep.subr.bf16.mxu0 0
    %1996 = vmatpush1.bf16.msra.mxu0 %v1496
    %1997 = vmatprep.subr.bf16.mxu0 0
    %1998 = vmatpush1.bf16.msra.mxu0 %v1497
    %1999 = vmatprep.subr.bf16.mxu0 0
    %2000 = vmatpush1.bf16.msra.mxu0 %v1498
    %2001 = vmatprep.subr.bf16.mxu0 0
    %2002 = vmatpush1.bf16.msra.mxu0 %v1499
    %2003 = vmatprep.subr.bf16.mxu0 0
    %2004 = vmatpush1.bf16.msra.mxu0 %v1500
    %2005 = vmatprep.subr.bf16.mxu0 0
    %2006 = vmatpush1.bf16.msra.mxu0 %v1501
    %2007 = vmatprep.subr.bf16.mxu0 0
    %2008 = vmatpush1.bf16.msra.mxu0 %v1502
    %2009 = vmatprep.subr.bf16.mxu0 0
    %2010 = vmatpush1.bf16.msra.mxu0 %v1503
    %2011 = vmatprep.subr.bf16.mxu0 0
    %2012 = vmatpush1.bf16.msra.mxu0 %v1504
    %2013 = vmatprep.subr.bf16.mxu0 0
    %2014 = vmatpush1.bf16.msra.mxu0 %v1505
    %2015 = vmatprep.subr.bf16.mxu0 0
    %2016 = vmatpush1.bf16.msra.mxu0 %v1506
    %2017 = vmatprep.subr.bf16.mxu0 0
    %2018 = vmatpush1.bf16.msra.mxu0 %v1507
    %2019 = vmatprep.subr.bf16.mxu0 0
    %2020 = vmatpush1.bf16.msra.mxu0 %v1508
    %2021 = vmatprep.mubr.bf16.mxu0 %v529
    %2022 = vmatmul.mubr.bf16.gmra.mrb[0].mxu0 %v515
    %v2023 = vpop.f32.mrb[0].mxu0
    %v2024 = vadd.f32 %v1984, %v2023
    %v2025 = vpop.f32.mrb[0].mxu0
    %v2026 = vpop.f32.mrb[0].mxu0
    %v2027 = vpop.f32.mrb[0].mxu0
    %2028 = vdwg.mxu0
    %2029 = vmatprep.subr.bf16.mxu0 0
    %2030 = vmatpush1.bf16.msra.mxu0 %v1509
    %2031 = vmatprep.subr.bf16.mxu0 0
    %2032 = vmatpush1.bf16.msra.mxu0 %v1510
    %2033 = vmatprep.subr.bf16.mxu0 0
    %2034 = vmatpush1.bf16.msra.mxu0 %v1511
    %2035 = vmatprep.subr.bf16.mxu0 0
    %2036 = vmatpush1.bf16.msra.mxu0 %v1512
    %2037 = vmatprep.subr.bf16.mxu0 0
    %2038 = vmatpush1.bf16.msra.mxu0 %v1513
    %2039 = vmatprep.subr.bf16.mxu0 0
    %2040 = vmatpush1.bf16.msra.mxu0 %v1514
    %2041 = vmatprep.subr.bf16.mxu0 0
    %2042 = vmatpush1.bf16.msra.mxu0 %v1515
    %2043 = vmatprep.subr.bf16.mxu0 0
    %2044 = vmatpush1.bf16.msra.mxu0 %v1516
    %2045 = vmatprep.subr.bf16.mxu0 0
    %2046 = vmatpush1.bf16.msra.mxu0 %v1517
    %2047 = vmatprep.subr.bf16.mxu0 0
    %2048 = vmatpush1.bf16.msra.mxu0 %v1518
    %2049 = vmatprep.subr.bf16.mxu0 0
    %2050 = vmatpush1.bf16.msra.mxu0 %v1519
    %2051 = vmatprep.subr.bf16.mxu0 0
    %2052 = vmatpush1.bf16.msra.mxu0 %v1520
    %2053 = vmatprep.subr.bf16.mxu0 0
    %2054 = vmatpush1.bf16.msra.mxu0 %v1521
    %2055 = vmatprep.subr.bf16.mxu0 0
    %2056 = vmatpush1.bf16.msra.mxu0 %v1522
    %2057 = vmatprep.subr.bf16.mxu0 0
    %2058 = vmatpush1.bf16.msra.mxu0 %v1523
    %2059 = vmatprep.subr.bf16.mxu0 0
    %2060 = vmatpush1.bf16.msra.mxu0 %v1524
    %2061 = vmatprep.mubr.bf16.mxu0 %v539
    %2062 = vmatmul.mubr.bf16.gmra.mrb[0].mxu0 %v537
    %v2063 = vpop.f32.mrb[0].mxu0
    %v2064 = vadd.f32 %v2024, %v2063
    %v2065 = vpop.f32.mrb[0].mxu0
    %v2066 = vpop.f32.mrb[0].mxu0
    %v2067 = vpop.f32.mrb[0].mxu0
    %2068 = vdwg.mxu0
    %2069 = vmatprep.subr.bf16.mxu0 0
    %2070 = vmatpush1.bf16.msra.mxu0 %v1525
    %2071 = vmatprep.subr.bf16.mxu0 0
    %2072 = vmatpush1.bf16.msra.mxu0 %v1526
    %2073 = vmatprep.subr.bf16.mxu0 0
    %2074 = vmatpush1.bf16.msra.mxu0 %v1527
    %2075 = vmatprep.subr.bf16.mxu0 0
    %2076 = vmatpush1.bf16.msra.mxu0 %v1528
    %2077 = vmatprep.subr.bf16.mxu0 0
    %2078 = vmatpush1.bf16.msra.mxu0 %v1529
    %2079 = vmatprep.subr.bf16.mxu0 0
    %2080 = vmatpush1.bf16.msra.mxu0 %v1530
    %2081 = vmatprep.subr.bf16.mxu0 0
    %2082 = vmatpush1.bf16.msra.mxu0 %v1531
    %2083 = vmatprep.subr.bf16.mxu0 0
    %2084 = vmatpush1.bf16.msra.mxu0 %v1532
    %2085 = vmatprep.subr.bf16.mxu0 0
    %2086 = vmatpush1.bf16.msra.mxu0 %v1533
    %2087 = vmatprep.subr.bf16.mxu0 0
    %2088 = vmatpush1.bf16.msra.mxu0 %v1534
    %2089 = vmatprep.subr.bf16.mxu0 0
    %2090 = vmatpush1.bf16.msra.mxu0 %v1535
    %2091 = vmatprep.subr.bf16.mxu0 0
    %2092 = vmatpush1.bf16.msra.mxu0 %v1536
    %2093 = vmatprep.subr.bf16.mxu0 0
    %2094 = vmatpush1.bf16.msra.mxu0 %v1537
    %2095 = vmatprep.subr.bf16.mxu0 0
    %2096 = vmatpush1.bf16.msra.mxu0 %v1538
    %2097 = vmatprep.subr.bf16.mxu0 0
    %2098 = vmatpush1.bf16.msra.mxu0 %v1539
    %2099 = vmatprep.subr.bf16.mxu0 0
    %2100 = vmatpush1.bf16.msra.mxu0 %v1540
    %2101 = vmatprep.mubr.bf16.mxu0 %v536
    %2102 = vmatmul.mubr.bf16.gmra.mrb[0].mxu0 %v522
    %v2103 = vpop.f32.mrb[0].mxu0
    %v2104 = vadd.f32 %v2064, %v2103
    %v2105 = vpop.f32.mrb[0].mxu0
    %v2106 = vpop.f32.mrb[0].mxu0
    %v2107 = vpop.f32.mrb[0].mxu0
    %2108 = vdwg.mxu0
    %2109 = vmatprep.subr.bf16.mxu0 0
    %2110 = vmatpush1.bf16.msra.mxu0 %v1541
    %2111 = vmatprep.subr.bf16.mxu0 0
    %2112 = vmatpush1.bf16.msra.mxu0 %v1542
    %2113 = vmatprep.subr.bf16.mxu0 0
    %2114 = vmatpush1.bf16.msra.mxu0 %v1543
    %2115 = vmatprep.subr.bf16.mxu0 0
    %2116 = vmatpush1.bf16.msra.mxu0 %v1544
    %2117 = vmatprep.subr.bf16.mxu0 0
    %2118 = vmatpush1.bf16.msra.mxu0 %v1545
    %2119 = vmatprep.subr.bf16.mxu0 0
    %2120 = vmatpush1.bf16.msra.mxu0 %v1546
    %2121 = vmatprep.subr.bf16.mxu0 0
    %2122 = vmatpush1.bf16.msra.mxu0 %v1547
    %2123 = vmatprep.subr.bf16.mxu0 0
    %2124 = vmatpush1.bf16.msra.mxu0 %v1548
    %2125 = vmatprep.subr.bf16.mxu0 0
    %2126 = vmatpush1.bf16.msra.mxu0 %v1549
    %2127 = vmatprep.subr.bf16.mxu0 0
    %2128 = vmatpush1.bf16.msra.mxu0 %v1550
    %2129 = vmatprep.subr.bf16.mxu0 0
    %2130 = vmatpush1.bf16.msra.mxu0 %v1551
    %2131 = vmatprep.subr.bf16.mxu0 0
    %2132 = vmatpush1.bf16.msra.mxu0 %v1552
    %2133 = vmatprep.subr.bf16.mxu0 0
    %2134 = vmatpush1.bf16.msra.mxu0 %v1553
    %2135 = vmatprep.subr.bf16.mxu0 0
    %2136 = vmatpush1.bf16.msra.mxu0 %v1554
    %2137 = vmatprep.subr.bf16.mxu0 0
    %2138 = vmatpush1.bf16.msra.mxu0 %v1555
    %2139 = vmatprep.subr.bf16.mxu0 0
    %2140 = vmatpush1.bf16.msra.mxu0 %v1556
    %2141 = vmatprep.mubr.bf16.mxu0 %v540
    %2142 = vmatmul.mubr.bf16.gmra.mrb[0].mxu0 %v538
    %v2143 = vpop.f32.mrb[0].mxu0
    %v2144 = vadd.f32 %v2104, %v2143
    %v2145 = vpop.f32.mrb[0].mxu0
    %v2146 = vpop.f32.mrb[0].mxu0
    %v2147 = vpop.f32.mrb[0].mxu0
    %2148 = vdwg.mxu0
    %2149 = vmatprep.subr.bf16.mxu0 0
    %2150 = vmatpush1.bf16.msra.mxu0 %v1557
    %2151 = vmatprep.subr.bf16.mxu0 0
    %2152 = vmatpush1.bf16.msra.mxu0 %v1558
    %2153 = vmatprep.subr.bf16.mxu0 0
    %2154 = vmatpush1.bf16.msra.mxu0 %v1559
    %2155 = vmatprep.subr.bf16.mxu0 0
    %2156 = vmatpush1.bf16.msra.mxu0 %v1560
    %2157 = vmatprep.subr.bf16.mxu0 0
    %2158 = vmatpush1.bf16.msra.mxu0 %v1561
    %2159 = vmatprep.subr.bf16.mxu0 0
    %2160 = vmatpush1.bf16.msra.mxu0 %v1562
    %2161 = vmatprep.subr.bf16.mxu0 0
    %2162 = vmatpush1.bf16.msra.mxu0 %v1563
    %2163 = vmatprep.subr.bf16.mxu0 0
    %2164 = vmatpush1.bf16.msra.mxu0 %v1564
    %2165 = vmatprep.subr.bf16.mxu0 0
    %2166 = vmatpush1.bf16.msra.mxu0 %v1565
    %2167 = vmatprep.subr.bf16.mxu0 0
    %2168 = vmatpush1.bf16.msra.mxu0 %v1566
    %2169 = vmatprep.subr.bf16.mxu0 0
    %2170 = vmatpush1.bf16.msra.mxu0 %v1567
    %2171 = vmatprep.subr.bf16.mxu0 0
    %2172 = vmatpush1.bf16.msra.mxu0 %v1568
    %2173 = vmatprep.subr.bf16.mxu0 0
    %2174 = vmatpush1.bf16.msra.mxu0 %v1569
    %2175 = vmatprep.subr.bf16.mxu0 0
    %2176 = vmatpush1.bf16.msra.mxu0 %v1570
    %2177 = vmatprep.subr.bf16.mxu0 0
    %2178 = vmatpush1.bf16.msra.mxu0 %v1571
    %2179 = vmatprep.subr.bf16.mxu0 0
    %2180 = vmatpush1.bf16.msra.mxu0 %v1572
    %2181 = vmatprep.mubr.bf16.mxu0 %v578
    %2182 = vmatmul.mubr.bf16.gmra.mrb[0].mxu0 %v564
    %v2183 = vpop.f32.mrb[0].mxu0
    %v2184 = vadd.f32 %v2144, %v2183
    %v2185 = vpop.f32.mrb[0].mxu0
    %v2186 = vpop.f32.mrb[0].mxu0
    %v2187 = vpop.f32.mrb[0].mxu0
    %2188 = vdwg.mxu0
    %2189 = vmatprep.subr.bf16.mxu0 0
    %2190 = vmatpush1.bf16.msra.mxu0 %v1573
    %2191 = vmatprep.subr.bf16.mxu0 0
    %2192 = vmatpush1.bf16.msra.mxu0 %v1574
    %2193 = vmatprep.subr.bf16.mxu0 0
    %2194 = vmatpush1.bf16.msra.mxu0 %v1575
    %2195 = vmatprep.subr.bf16.mxu0 0
    %2196 = vmatpush1.bf16.msra.mxu0 %v1576
    %2197 = vmatprep.subr.bf16.mxu0 0
    %2198 = vmatpush1.bf16.msra.mxu0 %v1577
    %2199 = vmatprep.subr.bf16.mxu0 0
    %2200 = vmatpush1.bf16.msra.mxu0 %v1578
    %2201 = vmatprep.subr.bf16.mxu0 0
    %2202 = vmatpush1.bf16.msra.mxu0 %v1579
    %2203 = vmatprep.subr.bf16.mxu0 0
    %2204 = vmatpush1.bf16.msra.mxu0 %v1580
    %2205 = vmatprep.subr.bf16.mxu0 0
    %2206 = vmatpush1.bf16.msra.mxu0 %v1581
    %2207 = vmatprep.subr.bf16.mxu0 0
    %2208 = vmatpush1.bf16.msra.mxu0 %v1582
    %2209 = vmatprep.subr.bf16.mxu0 0
    %2210 = vmatpush1.bf16.msra.mxu0 %v1583
    %2211 = vmatprep.subr.bf16.mxu0 0
    %2212 = vmatpush1.bf16.msra.mxu0 %v1584
    %2213 = vmatprep.subr.bf16.mxu0 0
    %2214 = vmatpush1.bf16.msra.mxu0 %v1585
    %2215 = vmatprep.subr.bf16.mxu0 0
    %2216 = vmatpush1.bf16.msra.mxu0 %v1586
    %2217 = vmatprep.subr.bf16.mxu0 0
    %2218 = vmatpush1.bf16.msra.mxu0 %v1587
    %2219 = vmatprep.subr.bf16.mxu0 0
    %2220 = vmatpush1.bf16.msra.mxu0 %v1588
    %2221 = vmatprep.mubr.bf16.mxu0 %v588
    %2222 = vmatmul.mubr.bf16.gmra.mrb[0].mxu0 %v586
    %v2223 = vpop.f32.mrb[0].mxu0
    %v2224 = vadd.f32 %v2184, %v2223
    %v2225 = vpop.f32.mrb[0].mxu0
    %v2226 = vpop.f32.mrb[0].mxu0
    %v2227 = vpop.f32.mrb[0].mxu0
    %2228 = vdwg.mxu0
    %2229 = vmatprep.subr.bf16.mxu0 0
    %2230 = vmatpush1.bf16.msra.mxu0 %v1589
    %2231 = vmatprep.subr.bf16.mxu0 0
    %2232 = vmatpush1.bf16.msra.mxu0 %v1590
    %2233 = vmatprep.subr.bf16.mxu0 0
    %2234 = vmatpush1.bf16.msra.mxu0 %v1591
    %2235 = vmatprep.subr.bf16.mxu0 0
    %2236 = vmatpush1.bf16.msra.mxu0 %v1592
    %2237 = vmatprep.subr.bf16.mxu0 0
    %2238 = vmatpush1.bf16.msra.mxu0 %v1593
    %2239 = vmatprep.subr.bf16.mxu0 0
    %2240 = vmatpush1.bf16.msra.mxu0 %v1594
    %2241 = vmatprep.subr.bf16.mxu0 0
    %2242 = vmatpush1.bf16.msra.mxu0 %v1595
    %2243 = vmatprep.subr.bf16.mxu0 0
    %2244 = vmatpush1.bf16.msra.mxu0 %v1596
    %2245 = vmatprep.subr.bf16.mxu0 0
    %2246 = vmatpush1.bf16.msra.mxu0 %v1597
    %2247 = vmatprep.subr.bf16.mxu0 0
    %2248 = vmatpush1.bf16.msra.mxu0 %v1598
    %2249 = vmatprep.subr.bf16.mxu0 0
    %2250 = vmatpush1.bf16.msra.mxu0 %v1599
    %2251 = vmatprep.subr.bf16.mxu0 0
    %2252 = vmatpush1.bf16.msra.mxu0 %v1600
    %2253 = vmatprep.subr.bf16.mxu0 0
    %2254 = vmatpush1.bf16.msra.mxu0 %v1601
    %2255 = vmatprep.subr.bf16.mxu0 0
    %2256 = vmatpush1.bf16.msra.mxu0 %v1602
    %2257 = vmatprep.subr.bf16.mxu0 0
    %2258 = vmatpush1.bf16.msra.mxu0 %v1603
    %2259 = vmatprep.subr.bf16.mxu0 0
    %2260 = vmatpush1.bf16.msra.mxu0 %v1604
    %2261 = vmatprep.mubr.bf16.mxu0 %v585
    %2262 = vmatmul.mubr.bf16.gmra.mrb[0].mxu0 %v571
    %v2263 = vpop.f32.mrb[0].mxu0
    %v2264 = vadd.f32 %v2224, %v2263
    %v2265 = vpop.f32.mrb[0].mxu0
    %v2266 = vpop.f32.mrb[0].mxu0
    %v2267 = vpop.f32.mrb[0].mxu0
    %2268 = vdwg.mxu0
    %2269 = vmatprep.subr.bf16.mxu0 0
    %2270 = vmatpush1.bf16.msra.mxu0 %v1605
    %2271 = vmatprep.subr.bf16.mxu0 0
    %2272 = vmatpush1.bf16.msra.mxu0 %v1606
    %2273 = vmatprep.subr.bf16.mxu0 0
    %2274 = vmatpush1.bf16.msra.mxu0 %v1607
    %2275 = vmatprep.subr.bf16.mxu0 0
    %2276 = vmatpush1.bf16.msra.mxu0 %v1608
    %2277 = vmatprep.subr.bf16.mxu0 0
    %2278 = vmatpush1.bf16.msra.mxu0 %v1609
    %2279 = vmatprep.subr.bf16.mxu0 0
    %2280 = vmatpush1.bf16.msra.mxu0 %v1610
    %2281 = vmatprep.subr.bf16.mxu0 0
    %2282 = vmatpush1.bf16.msra.mxu0 %v1611
    %2283 = vmatprep.subr.bf16.mxu0 0
    %2284 = vmatpush1.bf16.msra.mxu0 %v1612
    %2285 = vmatprep.subr.bf16.mxu0 0
    %2286 = vmatpush1.bf16.msra.mxu0 %v1613
    %2287 = vmatprep.subr.bf16.mxu0 0
    %2288 = vmatpush1.bf16.msra.mxu0 %v1614
    %2289 = vmatprep.subr.bf16.mxu0 0
    %2290 = vmatpush1.bf16.msra.mxu0 %v1615
    %2291 = vmatprep.subr.bf16.mxu0 0
    %2292 = vmatpush1.bf16.msra.mxu0 %v1616
    %2293 = vmatprep.subr.bf16.mxu0 0
    %2294 = vmatpush1.bf16.msra.mxu0 %v1617
    %2295 = vmatprep.subr.bf16.mxu0 0
    %2296 = vmatpush1.bf16.msra.mxu0 %v1618
    %2297 = vmatprep.subr.bf16.mxu0 0
    %2298 = vmatpush1.bf16.msra.mxu0 %v1619
    %2299 = vmatprep.subr.bf16.mxu0 0
    %2300 = vmatpush1.bf16.msra.mxu0 %v1620
    %2301 = vmatprep.mubr.bf16.mxu0 %v589
    %2302 = vmatmul.mubr.bf16.gmra.mrb[0].mxu0 %v587
    %v2303 = vpop.f32.mrb[0].mxu0
    %v2304 = vadd.f32 %v2264, %v2303
    %v2305 = vpop.f32.mrb[0].mxu0
    %v2306 = vpop.f32.mrb[0].mxu0
    %v2307 = vpop.f32.mrb[0].mxu0
    %2308 = vdwg.mxu0
    %2309 = vmatprep.subr.bf16.mxu0 0
    %2310 = vmatpush1.bf16.msra.mxu0 %v1621
    %2311 = vmatprep.subr.bf16.mxu0 0
    %2312 = vmatpush1.bf16.msra.mxu0 %v1622
    %2313 = vmatprep.subr.bf16.mxu0 0
    %2314 = vmatpush1.bf16.msra.mxu0 %v1623
    %2315 = vmatprep.subr.bf16.mxu0 0
    %2316 = vmatpush1.bf16.msra.mxu0 %v1624
    %2317 = vmatprep.subr.bf16.mxu0 0
    %2318 = vmatpush1.bf16.msra.mxu0 %v1625
    %2319 = vmatprep.subr.bf16.mxu0 0
    %2320 = vmatpush1.bf16.msra.mxu0 %v1626
    %2321 = vmatprep.subr.bf16.mxu0 0
    %2322 = vmatpush1.bf16.msra.mxu0 %v1627
    %2323 = vmatprep.subr.bf16.mxu0 0
    %2324 = vmatpush1.bf16.msra.mxu0 %v1628
    %2325 = vmatprep.subr.bf16.mxu0 0
    %2326 = vmatpush1.bf16.msra.mxu0 0
    %2327 = vmatprep.subr.bf16.mxu0 0
    %2328 = vmatpush1.bf16.msra.mxu0 0
    %2329 = vmatprep.subr.bf16.mxu0 0
    %2330 = vmatpush1.bf16.msra.mxu0 0
    %2331 = vmatprep.subr.bf16.mxu0 0
    %2332 = vmatpush1.bf16.msra.mxu0 0
    %2333 = vmatprep.subr.bf16.mxu0 0
    %2334 = vmatpush1.bf16.msra.mxu0 0
    %2335 = vmatprep.subr.bf16.mxu0 0
    %2336 = vmatpush1.bf16.msra.mxu0 0
    %2337 = vmatprep.subr.bf16.mxu0 0
    %2338 = vmatpush1.bf16.msra.mxu0 0
    %2339 = vmatprep.subr.bf16.mxu0 0
    %2340 = vmatpush1.bf16.msra.mxu0 0
    %2341 = vmatprep.mubr.bf16.mxu0 0
    %2342 = vmatmul.mubr.bf16.gmra.mrb[0].mxu0 %v603
    %v2343 = vpop.f32.mrb[0].mxu0
    %v2344 = vadd.f32 %v2304, %v2343
    %v2345 = vpop.f32.mrb[0].mxu0
    %v2346 = vpop.f32.mrb[0].mxu0
    %v2347 = vpop.f32.mrb[0].mxu0
    %2348 = vdwg.mxu0
    %v2349 = vmax.f32 %v2344, 0.0
    %v2350 = vpack.c.bf16 %v2349, %v2349
    %v2351 = vld [vmem:[%s3] sm:$0xf]
    %v2352 = vld [vmem:[%s3 + $0x4] sm:$0xf]
    %v2353 = vld [vmem:[%s3 + $0x8] sm:$0xf]
    %v2354 = vld [vmem:[%s3 + $0xc] sm:$0xf]
    %v2355 = vld [vmem:[%s3 + $0x10] sm:$0xf]
    %v2356 = vld [vmem:[%s3 + $0x14] sm:$0xf]
    %v2357 = vld [vmem:[%s3 + $0x18] sm:$0xf]
    %v2358 = vld [vmem:[%s3 + $0x1c] sm:$0xf]
    %v2359 = vld [vmem:[%s3 + $0x20] sm:$0xf]
    %v2360 = vld [vmem:[%s3 + $0x24] sm:$0xf]
    %v2361 = vld [vmem:[%s3 + $0x28] sm:$0xf]
    %v2362 = vld [vmem:[%s3 + $0x2c] sm:$0xf]
    %v2363 = vld [vmem:[%s3 + $0x30] sm:$0xf]
    %v2364 = vld [vmem:[%s3 + $0x34] sm:$0xf]
    %v2365 = vld [vmem:[%s3 + $0x38] sm:$0xf]
    %v2366 = vld [vmem:[%s3 + $0x3c] sm:$0xf]
    %v2367 = vld [vmem:[%s4] sm:$0x1]
    %v2369 = vlaneseq
    %v2370 = vshrl.u32 %v2369, 7
    %v2371 = vsub.s32 0, %v2370
    %v2372 = vrot.slane %v2367, %v2371
    %v2390 = vunpack.c.l.b16 %v2351
    %v2391 = vunpack.c.l.b16 %v2352
    %v2392 = vunpack.c.l.b16 %v2353
    %v2393 = vunpack.c.l.b16 %v2354
    %v2394 = vunpack.c.l.b16 %v2355
    %v2395 = vunpack.c.l.b16 %v2356
    %v2396 = vunpack.c.l.b16 %v2357
    %v2397 = vunpack.c.l.b16 %v2358
    %v2398 = vunpack.c.l.b16 %v2359
    %v2399 = vunpack.c.l.b16 %v2360
    %v2400 = vunpack.c.l.b16 %v2361
    %v2401 = vunpack.c.l.b16 %v2362
    %v2402 = vunpack.c.l.b16 %v2363
    %v2403 = vunpack.c.l.b16 %v2364
    %v2404 = vunpack.c.l.b16 %v2365
    %v2405 = vunpack.c.l.b16 %v2366
    %v2406 = vpack.c.b16 %v2391, %v2390
    %v2407 = vpack.c.b16 %v2393, %v2392
    %v2408 = vpack.c.b16 %v2395, %v2394
    %v2409 = vpack.c.b16 %v2397, %v2396
    %v2410 = vpack.c.b16 %v2399, %v2398
    %v2411 = vpack.c.b16 %v2401, %v2400
    %v2412 = vpack.c.b16 %v2403, %v2402
    %v2413 = vpack.c.b16 %v2405, %v2404
    %2422 = vmatprep.subr.bf16.mxu0 0
    %2423 = vmatpush1.bf16.msra.mxu0 %v2406
    %2424 = vmatprep.subr.bf16.mxu0 0
    %2425 = vmatpush1.bf16.msra.mxu0 %v2407
    %2426 = vmatprep.subr.bf16.mxu0 0
    %2427 = vmatpush1.bf16.msra.mxu0 %v2408
    %2428 = vmatprep.subr.bf16.mxu0 0
    %2429 = vmatpush1.bf16.msra.mxu0 %v2409
    %2430 = vmatprep.subr.bf16.mxu0 0
    %2431 = vmatpush1.bf16.msra.mxu0 %v2410
    %2432 = vmatprep.subr.bf16.mxu0 0
    %2433 = vmatpush1.bf16.msra.mxu0 %v2411
    %2434 = vmatprep.subr.bf16.mxu0 0
    %2435 = vmatpush1.bf16.msra.mxu0 %v2412
    %2436 = vmatprep.subr.bf16.mxu0 0
    %2437 = vmatpush1.bf16.msra.mxu0 %v2413
    %2438 = vmatprep.subr.bf16.mxu0 0
    %2439 = vmatpush1.bf16.msra.mxu0 0
    %2440 = vmatprep.subr.bf16.mxu0 0
    %2441 = vmatpush1.bf16.msra.mxu0 0
    %2442 = vmatprep.subr.bf16.mxu0 0
    %2443 = vmatpush1.bf16.msra.mxu0 0
    %2444 = vmatprep.subr.bf16.mxu0 0
    %2445 = vmatpush1.bf16.msra.mxu0 0
    %2446 = vmatprep.subr.bf16.mxu0 0
    %2447 = vmatpush1.bf16.msra.mxu0 0
    %2448 = vmatprep.subr.bf16.mxu0 0
    %2449 = vmatpush1.bf16.msra.mxu0 0
    %2450 = vmatprep.subr.bf16.mxu0 0
    %2451 = vmatpush1.bf16.msra.mxu0 0
    %2452 = vmatprep.subr.bf16.mxu0 0
    %2453 = vmatpush1.bf16.msra.mxu0 0
    %2454 = vmatprep.mubr.bf16.mxu0 0
    %2455 = vmatmul.mubr.bf16.gmra.mrb[0].mxu0 %v2350
    %v2456 = vpop.f32.mrb[0].mxu0
    %v2457 = vadd.f32 %v2372, %v2456
    %v2458 = vpop.f32.mrb[0].mxu0
    %v2459 = vpop.f32.mrb[0].mxu0
    %v2460 = vpop.f32.mrb[0].mxu0
    %2461 = vdwg.mxu0
    %v2462 = vmax.f32 %v2457, 0.0
    %v2463 = vpack.c.bf16 %v2462, %v2462
    %v2464 = vld [vmem:[%s5] sm:$0xf]
    %v2465 = vld [vmem:[%s5 + $0x4] sm:$0xf]
    %v2466 = vld [vmem:[%s5 + $0x8] sm:$0xf]
    %v2467 = vld [vmem:[%s5 + $0xc] sm:$0xf]
    %v2468 = vld [vmem:[%s5 + $0x10] sm:$0xf]
    %v2469 = vld [vmem:[%s5 + $0x14] sm:$0xf]
    %v2470 = vld [vmem:[%s5 + $0x18] sm:$0xf]
    %v2471 = vld [vmem:[%s5 + $0x1c] sm:$0xf]
    %v2472 = vld [vmem:[%s5 + $0x20] sm:$0xf]
    %v2473 = vld [vmem:[%s5 + $0x24] sm:$0xf]
    %v2474 = vld [vmem:[%s5 + $0x28] sm:$0xf]
    %v2475 = vld [vmem:[%s5 + $0x2c] sm:$0xf]
    %v2476 = vld [vmem:[%s5 + $0x30] sm:$0xf]
    %v2477 = vld [vmem:[%s5 + $0x34] sm:$0xf]
    %v2478 = vld [vmem:[%s5 + $0x38] sm:$0xf]
    %v2479 = vld [vmem:[%s5 + $0x3c] sm:$0xf]
    %v2480 = vld [vmem:[%s6] sm:$0x1]
    %v2482 = vlaneseq
    %v2483 = vshrl.u32 %v2482, 7
    %v2484 = vsub.s32 0, %v2483
    %v2485 = vrot.slane %v2480, %v2484
    %v2503 = vunpack.c.l.b16 %v2464
    %v2504 = vunpack.c.l.b16 %v2465
    %v2505 = vunpack.c.l.b16 %v2466
    %v2506 = vunpack.c.l.b16 %v2467
    %v2507 = vunpack.c.l.b16 %v2468
    %v2508 = vunpack.c.l.b16 %v2469
    %v2509 = vunpack.c.l.b16 %v2470
    %v2510 = vunpack.c.l.b16 %v2471
    %v2511 = vunpack.c.l.b16 %v2472
    %v2512 = vunpack.c.l.b16 %v2473
    %v2513 = vunpack.c.l.b16 %v2474
    %v2514 = vunpack.c.l.b16 %v2475
    %v2515 = vunpack.c.l.b16 %v2476
    %v2516 = vunpack.c.l.b16 %v2477
    %v2517 = vunpack.c.l.b16 %v2478
    %v2518 = vunpack.c.l.b16 %v2479
    %v2519 = vpack.c.b16 %v2504, %v2503
    %v2520 = vpack.c.b16 %v2506, %v2505
    %v2521 = vpack.c.b16 %v2508, %v2507
    %v2522 = vpack.c.b16 %v2510, %v2509
    %v2523 = vpack.c.b16 %v2512, %v2511
    %v2524 = vpack.c.b16 %v2514, %v2513
    %v2525 = vpack.c.b16 %v2516, %v2515
    %v2526 = vpack.c.b16 %v2518, %v2517
    %2535 = vmatprep.subr.bf16.mxu0 0
    %2536 = vmatpush1.bf16.msra.mxu0 %v2519
    %2537 = vmatprep.subr.bf16.mxu0 0
    %2538 = vmatpush1.bf16.msra.mxu0 %v2520
    %2539 = vmatprep.subr.bf16.mxu0 0
    %2540 = vmatpush1.bf16.msra.mxu0 %v2521
    %2541 = vmatprep.subr.bf16.mxu0 0
    %2542 = vmatpush1.bf16.msra.mxu0 %v2522
    %2543 = vmatprep.subr.bf16.mxu0 0
    %2544 = vmatpush1.bf16.msra.mxu0 %v2523
    %2545 = vmatprep.subr.bf16.mxu0 0
    %2546 = vmatpush1.bf16.msra.mxu0 %v2524
    %2547 = vmatprep.subr.bf16.mxu0 0
    %2548 = vmatpush1.bf16.msra.mxu0 %v2525
    %2549 = vmatprep.subr.bf16.mxu0 0
    %2550 = vmatpush1.bf16.msra.mxu0 %v2526
    %2551 = vmatprep.subr.bf16.mxu0 0
    %2552 = vmatpush1.bf16.msra.mxu0 0
    %2553 = vmatprep.subr.bf16.mxu0 0
    %2554 = vmatpush1.bf16.msra.mxu0 0
    %2555 = vmatprep.subr.bf16.mxu0 0
    %2556 = vmatpush1.bf16.msra.mxu0 0
    %2557 = vmatprep.subr.bf16.mxu0 0
    %2558 = vmatpush1.bf16.msra.mxu0 0
    %2559 = vmatprep.subr.bf16.mxu0 0
    %2560 = vmatpush1.bf16.msra.mxu0 0
    %2561 = vmatprep.subr.bf16.mxu0 0
    %2562 = vmatpush1.bf16.msra.mxu0 0
    %2563 = vmatprep.subr.bf16.mxu0 0
    %2564 = vmatpush1.bf16.msra.mxu0 0
    %2565 = vmatprep.subr.bf16.mxu0 0
    %2566 = vmatpush1.bf16.msra.mxu0 0
    %2567 = vmatprep.mubr.bf16.mxu0 0
    %2568 = vmatmul.mubr.bf16.gmra.mrb[0].mxu0 %v2463
    %v2569 = vpop.f32.mrb[0].mxu0
    %v2570 = vadd.f32 %v2485, %v2569
    %v2571 = vpop.f32.mrb[0].mxu0
    %v2572 = vpop.f32.mrb[0].mxu0
    %v2573 = vpop.f32.mrb[0].mxu0
    %2574 = vdwg.mxu0
    %2575 = vst [vmem:[#allocation2] sm:$0x3] %v2570
    // Predicated region
    $region30: #{lenet_forward.5} parent=1 // pred_check
      _
    $region31: #{lenet_forward.5} parent=1 // pred_check_branch
      %2577 = sbr.rel (0) target = $region33
    $region32: #{lenet_forward.5} parent=1 // pred_region
      %s2579 = ssub.s32 32, 32
      %2580 = vsyncadd [#allocation3], %s2579
      %s2582 = sshll.u32 [#allocation2], 4
      %s2583 = int_to_ptr.vmem [resolvable:$true] %s2582
      %2585 = dma.vmem_to_hbm [thread:$0]  %s2583, 32, %s7, [#allocation3]
    $region33: #{lenet_forward.5} parent=1 // pred_fallthru
      _
    // Predicated region
    $region34: #{lenet_forward.5} parent=1 // pred_check
      _
    $region35: #{lenet_forward.5} parent=1 // pred_check_branch
      %2587 = sbr.rel (0) target = $region37
    $region36: #{lenet_forward.5} parent=1 // pred_region
      %2588 = dma.done [#allocation3], 32
    $region37: #{lenet_forward.5} parent=1 // pred_fallthru
      _
    %2589 = vsyncpa [#allocation3], 1

// kernel: lenet_forward.4
$region0: #{lenet_forward.4}
  #allocation0 [shape = 'u32[]', space=smem, size = 0x4, offset = 0x4, fixed_abs, tag = 'smem constant byte address 0x4 - core index']
  #allocation1 [shape = 'u32[144,128]{1,0:T(1,128)}', space=vmem, size = 0x12000, scoped, tag = 'internal scratch']
  %s0 = inlined_call_operand.vmem [shape: bf16[4,50,3200], index: 0, kind: input, shape index: {}]
  %s1 = inlined_call_operand.vmem [shape: bf16[3200,128], index: 1, kind: input, shape index: {}]
  %s2 = inlined_call_operand.vmem [shape: f32[1,128], index: 2, kind: input, shape index: {}]
  %s3 = inlined_call_operand.vmem [shape: bf16[50,128], index: 3, kind: output, shape index: {}]
  %s4 = sld [smem:[#allocation0]]
  $region22: #{lenet_forward.4} parent=0
    _
  %s6 = ssub.s32 1, %s4
  %s7 = scalar_select 0, %s6, %s4
  // Predicated region
  $region2: #{lenet_forward.4} parent=0 // pred_check
    _
  $region3: #{lenet_forward.4} parent=0 // pred_check_branch
    %9 = sbr.rel (0) target = $region5
  $region4: #{lenet_forward.4} parent=0 // pred_region
    _
  $region5: #{lenet_forward.4} parent=0 // pred_fallthru
    _
  // Predicated region
  $region6: #{lenet_forward.4} parent=0 // pred_check
    _
  $region7: #{lenet_forward.4} parent=0 // pred_check_branch
    %11 = sbr.rel (0) target = $region9
  $region8: #{lenet_forward.4} parent=0 // pred_region
    _
  $region9: #{lenet_forward.4} parent=0 // pred_fallthru
    _
  // Predicated region
  $region10: #{lenet_forward.4} parent=0 // pred_check
    _
  $region11: #{lenet_forward.4} parent=0 // pred_check_branch
    %13 = sbr.rel (0) target = $region13
  $region12: #{lenet_forward.4} parent=0 // pred_region
    _
  $region13: #{lenet_forward.4} parent=0 // pred_fallthru
    _
  %v15 = vld [vmem:[%s1] sm:$0xf]
  %v16 = vld [vmem:[%s1 + $0x4] sm:$0xf]
  %v17 = vld [vmem:[%s1 + $0x8] sm:$0xf]
  %v18 = vld [vmem:[%s1 + $0xc] sm:$0xf]
  %v19 = vld [vmem:[%s1 + $0x10] sm:$0xf]
  %v20 = vld [vmem:[%s1 + $0x14] sm:$0xf]
  %v21 = vld [vmem:[%s1 + $0x18] sm:$0xf]
  %v22 = vld [vmem:[%s1 + $0x1c] sm:$0xf]
  %v23 = vld [vmem:[%s1 + $0x20] sm:$0xf]
  %v24 = vld [vmem:[%s1 + $0x24] sm:$0xf]
  %v25 = vld [vmem:[%s1 + $0x28] sm:$0xf]
  %v26 = vld [vmem:[%s1 + $0x2c] sm:$0xf]
  %v27 = vld [vmem:[%s1 + $0x30] sm:$0xf]
  %v28 = vld [vmem:[%s1 + $0x34] sm:$0xf]
  %v29 = vld [vmem:[%s1 + $0x38] sm:$0xf]
  %v30 = vld [vmem:[%s1 + $0x3c] sm:$0xf]
  %v31 = vld [vmem:[%s1 + $0x40] sm:$0xf]
  %v32 = vld [vmem:[%s1 + $0x44] sm:$0xf]
  %v33 = vld [vmem:[%s1 + $0x48] sm:$0xf]
  %v34 = vld [vmem:[%s1 + $0x4c] sm:$0xf]
  %v35 = vld [vmem:[%s1 + $0x50] sm:$0xf]
  %v36 = vld [vmem:[%s1 + $0x54] sm:$0xf]
  %v37 = vld [vmem:[%s1 + $0x58] sm:$0xf]
  %v38 = vld [vmem:[%s1 + $0x5c] sm:$0xf]
  %v39 = vld [vmem:[%s1 + $0x60] sm:$0xf]
  %v40 = vld [vmem:[%s1 + $0x64] sm:$0xf]
  %v41 = vld [vmem:[%s1 + $0x68] sm:$0xf]
  %v42 = vld [vmem:[%s1 + $0x6c] sm:$0xf]
  %v43 = vld [vmem:[%s1 + $0x70] sm:$0xf]
  %v44 = vld [vmem:[%s1 + $0x74] sm:$0xf]
  %v45 = vld [vmem:[%s1 + $0x78] sm:$0xf]
  %v46 = vld [vmem:[%s1 + $0x7c] sm:$0xf]
  %v47 = vld [vmem:[%s1 + $0x80] sm:$0xf]
  %v48 = vld [vmem:[%s1 + $0x84] sm:$0xf]
  %v49 = vld [vmem:[%s1 + $0x88] sm:$0xf]
  %v50 = vld [vmem:[%s1 + $0x8c] sm:$0xf]
  %v51 = vld [vmem:[%s1 + $0x90] sm:$0xf]
  %v52 = vld [vmem:[%s1 + $0x94] sm:$0xf]
  %v53 = vld [vmem:[%s1 + $0x98] sm:$0xf]
  %v54 = vld [vmem:[%s1 + $0x9c] sm:$0xf]
  %v55 = vld [vmem:[%s1 + $0xa0] sm:$0xf]
  %v56 = vld [vmem:[%s1 + $0xa4] sm:$0xf]
  %v57 = vld [vmem:[%s1 + $0xa8] sm:$0xf]
  %v58 = vld [vmem:[%s1 + $0xac] sm:$0xf]
  %v59 = vld [vmem:[%s1 + $0xb0] sm:$0xf]
  %v60 = vld [vmem:[%s1 + $0xb4] sm:$0xf]
  %v61 = vld [vmem:[%s1 + $0xb8] sm:$0xf]
  %v62 = vld [vmem:[%s1 + $0xbc] sm:$0xf]
  %v63 = vld [vmem:[%s1 + $0xc0] sm:$0xf]
  %v64 = vld [vmem:[%s1 + $0xc4] sm:$0xf]
  %v65 = vld [vmem:[%s1 + $0xc8] sm:$0xf]
  %v66 = vld [vmem:[%s1 + $0xcc] sm:$0xf]
  %v67 = vld [vmem:[%s1 + $0xd0] sm:$0xf]
  %v68 = vld [vmem:[%s1 + $0xd4] sm:$0xf]
  %v69 = vld [vmem:[%s1 + $0xd8] sm:$0xf]
  %v70 = vld [vmem:[%s1 + $0xdc] sm:$0xf]
  %v71 = vld [vmem:[%s1 + $0xe0] sm:$0xf]
  %v72 = vld [vmem:[%s1 + $0xe4] sm:$0xf]
  %v73 = vld [vmem:[%s1 + $0xe8] sm:$0xf]
  %v74 = vld [vmem:[%s1 + $0xec] sm:$0xf]
  %v75 = vld [vmem:[%s1 + $0xf0] sm:$0xf]
  %v76 = vld [vmem:[%s1 + $0xf4] sm:$0xf]
  %v77 = vld [vmem:[%s1 + $0xf8] sm:$0xf]
  %v78 = vld [vmem:[%s1 + $0xfc] sm:$0xf]
  %v79 = vld [vmem:[%s1 + $0x100] sm:$0xf]
  %v80 = vld [vmem:[%s1 + $0x104] sm:$0xf]
  %v81 = vld [vmem:[%s1 + $0x108] sm:$0xf]
  %v82 = vld [vmem:[%s1 + $0x10c] sm:$0xf]
  %v83 = vld [vmem:[%s1 + $0x110] sm:$0xf]
  %v84 = vld [vmem:[%s1 + $0x114] sm:$0xf]
  %v85 = vld [vmem:[%s1 + $0x118] sm:$0xf]
  %v86 = vld [vmem:[%s1 + $0x11c] sm:$0xf]
  %v87 = vld [vmem:[%s1 + $0x120] sm:$0xf]
  %v88 = vld [vmem:[%s1 + $0x124] sm:$0xf]
  %v89 = vld [vmem:[%s1 + $0x128] sm:$0xf]
  %v90 = vld [vmem:[%s1 + $0x12c] sm:$0xf]
  %v91 = vld [vmem:[%s1 + $0x130] sm:$0xf]
  %v92 = vld [vmem:[%s1 + $0x134] sm:$0xf]
  %v93 = vld [vmem:[%s1 + $0x138] sm:$0xf]
  %v94 = vld [vmem:[%s1 + $0x13c] sm:$0xf]
  %v95 = vld [vmem:[%s1 + $0x140] sm:$0xf]
  %v96 = vld [vmem:[%s1 + $0x144] sm:$0xf]
  %v97 = vld [vmem:[%s1 + $0x148] sm:$0xf]
  %v98 = vld [vmem:[%s1 + $0x14c] sm:$0xf]
  %v99 = vld [vmem:[%s1 + $0x150] sm:$0xf]
  %v100 = vld [vmem:[%s1 + $0x154] sm:$0xf]
  %v101 = vld [vmem:[%s1 + $0x158] sm:$0xf]
  %v102 = vld [vmem:[%s1 + $0x15c] sm:$0xf]
  %v103 = vld [vmem:[%s1 + $0x160] sm:$0xf]
  %v104 = vld [vmem:[%s1 + $0x164] sm:$0xf]
  %v105 = vld [vmem:[%s1 + $0x168] sm:$0xf]
  %v106 = vld [vmem:[%s1 + $0x16c] sm:$0xf]
  %v107 = vld [vmem:[%s1 + $0x170] sm:$0xf]
  %v108 = vld [vmem:[%s1 + $0x174] sm:$0xf]
  %v109 = vld [vmem:[%s1 + $0x178] sm:$0xf]
  %v110 = vld [vmem:[%s1 + $0x17c] sm:$0xf]
  %v111 = vld [vmem:[%s1 + $0x180] sm:$0xf]
  %v112 = vld [vmem:[%s1 + $0x184] sm:$0xf]
  %v113 = vld [vmem:[%s1 + $0x188] sm:$0xf]
  %v114 = vld [vmem:[%s1 + $0x18c] sm:$0xf]
  %v115 = vld [vmem:[%s1 + $0x190] sm:$0xf]
  %v116 = vld [vmem:[%s1 + $0x194] sm:$0xf]
  %v117 = vld [vmem:[%s1 + $0x198] sm:$0xf]
  %v118 = vld [vmem:[%s1 + $0x19c] sm:$0xf]
  %v119 = vld [vmem:[%s1 + $0x1a0] sm:$0xf]
  %v120 = vld [vmem:[%s1 + $0x1a4] sm:$0xf]
  %v121 = vld [vmem:[%s1 + $0x1a8] sm:$0xf]
  %v122 = vld [vmem:[%s1 + $0x1ac] sm:$0xf]
  %v123 = vld [vmem:[%s1 + $0x1b0] sm:$0xf]
  %v124 = vld [vmem:[%s1 + $0x1b4] sm:$0xf]
  %v125 = vld [vmem:[%s1 + $0x1b8] sm:$0xf]
  %v126 = vld [vmem:[%s1 + $0x1bc] sm:$0xf]
  %v127 = vld [vmem:[%s1 + $0x1c0] sm:$0xf]
  %v128 = vld [vmem:[%s1 + $0x1c4] sm:$0xf]
  %v129 = vld [vmem:[%s1 + $0x1c8] sm:$0xf]
  %v130 = vld [vmem:[%s1 + $0x1cc] sm:$0xf]
  %v131 = vld [vmem:[%s1 + $0x1d0] sm:$0xf]
  %v132 = vld [vmem:[%s1 + $0x1d4] sm:$0xf]
  %v133 = vld [vmem:[%s1 + $0x1d8] sm:$0xf]
  %v134 = vld [vmem:[%s1 + $0x1dc] sm:$0xf]
  %v135 = vld [vmem:[%s1 + $0x1e0] sm:$0xf]
  %v136 = vld [vmem:[%s1 + $0x1e4] sm:$0xf]
  %v137 = vld [vmem:[%s1 + $0x1e8] sm:$0xf]
  %v138 = vld [vmem:[%s1 + $0x1ec] sm:$0xf]
  %v139 = vld [vmem:[%s1 + $0x1f0] sm:$0xf]
  %v140 = vld [vmem:[%s1 + $0x1f4] sm:$0xf]
  %v141 = vld [vmem:[%s1 + $0x1f8] sm:$0xf]
  %v142 = vld [vmem:[%s1 + $0x1fc] sm:$0xf]
  %v143 = vld [vmem:[%s1 + $0x200] sm:$0xf]
  %v144 = vld [vmem:[%s1 + $0x204] sm:$0xf]
  %v145 = vld [vmem:[%s1 + $0x208] sm:$0xf]
  %v146 = vld [vmem:[%s1 + $0x20c] sm:$0xf]
  %v147 = vld [vmem:[%s1 + $0x210] sm:$0xf]
  %v148 = vld [vmem:[%s1 + $0x214] sm:$0xf]
  %v149 = vld [vmem:[%s1 + $0x218] sm:$0xf]
  %v150 = vld [vmem:[%s1 + $0x21c] sm:$0xf]
  %v151 = vld [vmem:[%s1 + $0x220] sm:$0xf]
  %v152 = vld [vmem:[%s1 + $0x224] sm:$0xf]
  %v153 = vld [vmem:[%s1 + $0x228] sm:$0xf]
  %v154 = vld [vmem:[%s1 + $0x22c] sm:$0xf]
  %v155 = vld [vmem:[%s1 + $0x230] sm:$0xf]
  %v156 = vld [vmem:[%s1 + $0x234] sm:$0xf]
  %v157 = vld [vmem:[%s1 + $0x238] sm:$0xf]
  %v158 = vld [vmem:[%s1 + $0x23c] sm:$0xf]
  %v159 = vld [vmem:[%s1 + $0x240] sm:$0xf]
  %v160 = vld [vmem:[%s1 + $0x244] sm:$0xf]
  %v161 = vld [vmem:[%s1 + $0x248] sm:$0xf]
  %v162 = vld [vmem:[%s1 + $0x24c] sm:$0xf]
  %v163 = vld [vmem:[%s1 + $0x250] sm:$0xf]
  %v164 = vld [vmem:[%s1 + $0x254] sm:$0xf]
  %v165 = vld [vmem:[%s1 + $0x258] sm:$0xf]
  %v166 = vld [vmem:[%s1 + $0x25c] sm:$0xf]
  %v167 = vld [vmem:[%s1 + $0x260] sm:$0xf]
  %v168 = vld [vmem:[%s1 + $0x264] sm:$0xf]
  %v169 = vld [vmem:[%s1 + $0x268] sm:$0xf]
  %v170 = vld [vmem:[%s1 + $0x26c] sm:$0xf]
  %v171 = vld [vmem:[%s1 + $0x270] sm:$0xf]
  %v172 = vld [vmem:[%s1 + $0x274] sm:$0xf]
  %v173 = vld [vmem:[%s1 + $0x278] sm:$0xf]
  %v174 = vld [vmem:[%s1 + $0x27c] sm:$0xf]
  %v175 = vld [vmem:[%s1 + $0x280] sm:$0xf]
  %v176 = vld [vmem:[%s1 + $0x284] sm:$0xf]
  %v177 = vld [vmem:[%s1 + $0x288] sm:$0xf]
  %v178 = vld [vmem:[%s1 + $0x28c] sm:$0xf]
  %v179 = vld [vmem:[%s1 + $0x290] sm:$0xf]
  %v180 = vld [vmem:[%s1 + $0x294] sm:$0xf]
  %v181 = vld [vmem:[%s1 + $0x298] sm:$0xf]
  %v182 = vld [vmem:[%s1 + $0x29c] sm:$0xf]
  %v183 = vld [vmem:[%s1 + $0x2a0] sm:$0xf]
  %v184 = vld [vmem:[%s1 + $0x2a4] sm:$0xf]
  %v185 = vld [vmem:[%s1 + $0x2a8] sm:$0xf]
  %v186 = vld [vmem:[%s1 + $0x2ac] sm:$0xf]
  %v187 = vld [vmem:[%s1 + $0x2b0] sm:$0xf]
  %v188 = vld [vmem:[%s1 + $0x2b4] sm:$0xf]
  %v189 = vld [vmem:[%s1 + $0x2b8] sm:$0xf]
  %v190 = vld [vmem:[%s1 + $0x2bc] sm:$0xf]
  %v191 = vld [vmem:[%s1 + $0x2c0] sm:$0xf]
  %v192 = vld [vmem:[%s1 + $0x2c4] sm:$0xf]
  %v193 = vld [vmem:[%s1 + $0x2c8] sm:$0xf]
  %v194 = vld [vmem:[%s1 + $0x2cc] sm:$0xf]
  %v195 = vld [vmem:[%s1 + $0x2d0] sm:$0xf]
  %v196 = vld [vmem:[%s1 + $0x2d4] sm:$0xf]
  %v197 = vld [vmem:[%s1 + $0x2d8] sm:$0xf]
  %v198 = vld [vmem:[%s1 + $0x2dc] sm:$0xf]
  %v199 = vld [vmem:[%s1 + $0x2e0] sm:$0xf]
  %v200 = vld [vmem:[%s1 + $0x2e4] sm:$0xf]
  %v201 = vld [vmem:[%s1 + $0x2e8] sm:$0xf]
  %v202 = vld [vmem:[%s1 + $0x2ec] sm:$0xf]
  %v203 = vld [vmem:[%s1 + $0x2f0] sm:$0xf]
  %v204 = vld [vmem:[%s1 + $0x2f4] sm:$0xf]
  %v205 = vld [vmem:[%s1 + $0x2f8] sm:$0xf]
  %v206 = vld [vmem:[%s1 + $0x2fc] sm:$0xf]
  %v207 = vld [vmem:[%s1 + $0x300] sm:$0xf]
  %v208 = vld [vmem:[%s1 + $0x304] sm:$0xf]
  %v209 = vld [vmem:[%s1 + $0x308] sm:$0xf]
  %v210 = vld [vmem:[%s1 + $0x30c] sm:$0xf]
  %v211 = vld [vmem:[%s1 + $0x310] sm:$0xf]
  %v212 = vld [vmem:[%s1 + $0x314] sm:$0xf]
  %v213 = vld [vmem:[%s1 + $0x318] sm:$0xf]
  %v214 = vld [vmem:[%s1 + $0x31c] sm:$0xf]
  %v215 = vld [vmem:[%s1 + $0x320] sm:$0xf]
  %v216 = vld [vmem:[%s1 + $0x324] sm:$0xf]
  %v217 = vld [vmem:[%s1 + $0x328] sm:$0xf]
  %v218 = vld [vmem:[%s1 + $0x32c] sm:$0xf]
  %v219 = vld [vmem:[%s1 + $0x330] sm:$0xf]
  %v220 = vld [vmem:[%s1 + $0x334] sm:$0xf]
  %v221 = vld [vmem:[%s1 + $0x338] sm:$0xf]
  %v222 = vld [vmem:[%s1 + $0x33c] sm:$0xf]
  %v223 = vld [vmem:[%s1 + $0x340] sm:$0xf]
  %v224 = vld [vmem:[%s1 + $0x344] sm:$0xf]
  %v225 = vld [vmem:[%s1 + $0x348] sm:$0xf]
  %v226 = vld [vmem:[%s1 + $0x34c] sm:$0xf]
  %v227 = vld [vmem:[%s1 + $0x350] sm:$0xf]
  %v228 = vld [vmem:[%s1 + $0x354] sm:$0xf]
  %v229 = vld [vmem:[%s1 + $0x358] sm:$0xf]
  %v230 = vld [vmem:[%s1 + $0x35c] sm:$0xf]
  %v231 = vld [vmem:[%s1 + $0x360] sm:$0xf]
  %v232 = vld [vmem:[%s1 + $0x364] sm:$0xf]
  %v233 = vld [vmem:[%s1 + $0x368] sm:$0xf]
  %v234 = vld [vmem:[%s1 + $0x36c] sm:$0xf]
  %v235 = vld [vmem:[%s1 + $0x370] sm:$0xf]
  %v236 = vld [vmem:[%s1 + $0x374] sm:$0xf]
  %v237 = vld [vmem:[%s1 + $0x378] sm:$0xf]
  %v238 = vld [vmem:[%s1 + $0x37c] sm:$0xf]
  %v239 = vld [vmem:[%s1 + $0x380] sm:$0xf]
  %v240 = vld [vmem:[%s1 + $0x384] sm:$0xf]
  %v241 = vld [vmem:[%s1 + $0x388] sm:$0xf]
  %v242 = vld [vmem:[%s1 + $0x38c] sm:$0xf]
  %v243 = vld [vmem:[%s1 + $0x390] sm:$0xf]
  %v244 = vld [vmem:[%s1 + $0x394] sm:$0xf]
  %v245 = vld [vmem:[%s1 + $0x398] sm:$0xf]
  %v246 = vld [vmem:[%s1 + $0x39c] sm:$0xf]
  %v247 = vld [vmem:[%s1 + $0x3a0] sm:$0xf]
  %v248 = vld [vmem:[%s1 + $0x3a4] sm:$0xf]
  %v249 = vld [vmem:[%s1 + $0x3a8] sm:$0xf]
  %v250 = vld [vmem:[%s1 + $0x3ac] sm:$0xf]
  %v251 = vld [vmem:[%s1 + $0x3b0] sm:$0xf]
  %v252 = vld [vmem:[%s1 + $0x3b4] sm:$0xf]
  %v253 = vld [vmem:[%s1 + $0x3b8] sm:$0xf]
  %v254 = vld [vmem:[%s1 + $0x3bc] sm:$0xf]
  %v255 = vld [vmem:[%s1 + $0x3c0] sm:$0xf]
  %v256 = vld [vmem:[%s1 + $0x3c4] sm:$0xf]
  %v257 = vld [vmem:[%s1 + $0x3c8] sm:$0xf]
  %v258 = vld [vmem:[%s1 + $0x3cc] sm:$0xf]
  %v259 = vld [vmem:[%s1 + $0x3d0] sm:$0xf]
  %v260 = vld [vmem:[%s1 + $0x3d4] sm:$0xf]
  %v261 = vld [vmem:[%s1 + $0x3d8] sm:$0xf]
  %v262 = vld [vmem:[%s1 + $0x3dc] sm:$0xf]
  %v263 = vld [vmem:[%s1 + $0x3e0] sm:$0xf]
  %v264 = vld [vmem:[%s1 + $0x3e4] sm:$0xf]
  %v265 = vld [vmem:[%s1 + $0x3e8] sm:$0xf]
  %v266 = vld [vmem:[%s1 + $0x3ec] sm:$0xf]
  %v267 = vld [vmem:[%s1 + $0x3f0] sm:$0xf]
  %v268 = vld [vmem:[%s1 + $0x3f4] sm:$0xf]
  %v269 = vld [vmem:[%s1 + $0x3f8] sm:$0xf]
  %v270 = vld [vmem:[%s1 + $0x3fc] sm:$0xf]
  %v271 = vld [vmem:[%s1 + $0x400] sm:$0xf]
  %v272 = vld [vmem:[%s1 + $0x404] sm:$0xf]
  %v273 = vld [vmem:[%s1 + $0x408] sm:$0xf]
  %v274 = vld [vmem:[%s1 + $0x40c] sm:$0xf]
  %v275 = vld [vmem:[%s1 + $0x410] sm:$0xf]
  %v276 = vld [vmem:[%s1 + $0x414] sm:$0xf]
  %v277 = vld [vmem:[%s1 + $0x418] sm:$0xf]
  %v278 = vld [vmem:[%s1 + $0x41c] sm:$0xf]
  %v279 = vld [vmem:[%s1 + $0x420] sm:$0xf]
  %v280 = vld [vmem:[%s1 + $0x424] sm:$0xf]
  %v281 = vld [vmem:[%s1 + $0x428] sm:$0xf]
  %v282 = vld [vmem:[%s1 + $0x42c] sm:$0xf]
  %v283 = vld [vmem:[%s1 + $0x430] sm:$0xf]
  %v284 = vld [vmem:[%s1 + $0x434] sm:$0xf]
  %v285 = vld [vmem:[%s1 + $0x438] sm:$0xf]
  %v286 = vld [vmem:[%s1 + $0x43c] sm:$0xf]
  %v287 = vld [vmem:[%s1 + $0x440] sm:$0xf]
  %v288 = vld [vmem:[%s1 + $0x444] sm:$0xf]
  %v289 = vld [vmem:[%s1 + $0x448] sm:$0xf]
  %v290 = vld [vmem:[%s1 + $0x44c] sm:$0xf]
  %v291 = vld [vmem:[%s1 + $0x450] sm:$0xf]
  %v292 = vld [vmem:[%s1 + $0x454] sm:$0xf]
  %v293 = vld [vmem:[%s1 + $0x458] sm:$0xf]
  %v294 = vld [vmem:[%s1 + $0x45c] sm:$0xf]
  %v295 = vld [vmem:[%s1 + $0x460] sm:$0xf]
  %v296 = vld [vmem:[%s1 + $0x464] sm:$0xf]
  %v297 = vld [vmem:[%s1 + $0x468] sm:$0xf]
  %v298 = vld [vmem:[%s1 + $0x46c] sm:$0xf]
  %v299 = vld [vmem:[%s1 + $0x470] sm:$0xf]
  %v300 = vld [vmem:[%s1 + $0x474] sm:$0xf]
  %v301 = vld [vmem:[%s1 + $0x478] sm:$0xf]
  %v302 = vld [vmem:[%s1 + $0x47c] sm:$0xf]
  %v303 = vld [vmem:[%s1 + $0x480] sm:$0xf]
  %v304 = vld [vmem:[%s1 + $0x484] sm:$0xf]
  %v305 = vld [vmem:[%s1 + $0x488] sm:$0xf]
  %v306 = vld [vmem:[%s1 + $0x48c] sm:$0xf]
  %v307 = vld [vmem:[%s1 + $0x490] sm:$0xf]
  %v308 = vld [vmem:[%s1 + $0x494] sm:$0xf]
  %v309 = vld [vmem:[%s1 + $0x498] sm:$0xf]
  %v310 = vld [vmem:[%s1 + $0x49c] sm:$0xf]
  %v311 = vld [vmem:[%s1 + $0x4a0] sm:$0xf]
  %v312 = vld [vmem:[%s1 + $0x4a4] sm:$0xf]
  %v313 = vld [vmem:[%s1 + $0x4a8] sm:$0xf]
  %v314 = vld [vmem:[%s1 + $0x4ac] sm:$0xf]
  %v315 = vld [vmem:[%s1 + $0x4b0] sm:$0xf]
  %v316 = vld [vmem:[%s1 + $0x4b4] sm:$0xf]
  %v317 = vld [vmem:[%s1 + $0x4b8] sm:$0xf]
  %v318 = vld [vmem:[%s1 + $0x4bc] sm:$0xf]
  %v319 = vld [vmem:[%s1 + $0x4c0] sm:$0xf]
  %v320 = vld [vmem:[%s1 + $0x4c4] sm:$0xf]
  %v321 = vld [vmem:[%s1 + $0x4c8] sm:$0xf]
  %v322 = vld [vmem:[%s1 + $0x4cc] sm:$0xf]
  %v323 = vld [vmem:[%s1 + $0x4d0] sm:$0xf]
  %v324 = vld [vmem:[%s1 + $0x4d4] sm:$0xf]
  %v325 = vld [vmem:[%s1 + $0x4d8] sm:$0xf]
  %v326 = vld [vmem:[%s1 + $0x4dc] sm:$0xf]
  %v327 = vld [vmem:[%s1 + $0x4e0] sm:$0xf]
  %v328 = vld [vmem:[%s1 + $0x4e4] sm:$0xf]
  %v329 = vld [vmem:[%s1 + $0x4e8] sm:$0xf]
  %v330 = vld [vmem:[%s1 + $0x4ec] sm:$0xf]
  %v331 = vld [vmem:[%s1 + $0x4f0] sm:$0xf]
  %v332 = vld [vmem:[%s1 + $0x4f4] sm:$0xf]
  %v333 = vld [vmem:[%s1 + $0x4f8] sm:$0xf]
  %v334 = vld [vmem:[%s1 + $0x4fc] sm:$0xf]
  %v335 = vld [vmem:[%s1 + $0x500] sm:$0xf]
  %v336 = vld [vmem:[%s1 + $0x504] sm:$0xf]
  %v337 = vld [vmem:[%s1 + $0x508] sm:$0xf]
  %v338 = vld [vmem:[%s1 + $0x50c] sm:$0xf]
  %v339 = vld [vmem:[%s1 + $0x510] sm:$0xf]
  %v340 = vld [vmem:[%s1 + $0x514] sm:$0xf]
  %v341 = vld [vmem:[%s1 + $0x518] sm:$0xf]
  %v342 = vld [vmem:[%s1 + $0x51c] sm:$0xf]
  %v343 = vld [vmem:[%s1 + $0x520] sm:$0xf]
  %v344 = vld [vmem:[%s1 + $0x524] sm:$0xf]
  %v345 = vld [vmem:[%s1 + $0x528] sm:$0xf]
  %v346 = vld [vmem:[%s1 + $0x52c] sm:$0xf]
  %v347 = vld [vmem:[%s1 + $0x530] sm:$0xf]
  %v348 = vld [vmem:[%s1 + $0x534] sm:$0xf]
  %v349 = vld [vmem:[%s1 + $0x538] sm:$0xf]
  %v350 = vld [vmem:[%s1 + $0x53c] sm:$0xf]
  %v351 = vld [vmem:[%s1 + $0x540] sm:$0xf]
  %v352 = vld [vmem:[%s1 + $0x544] sm:$0xf]
  %v353 = vld [vmem:[%s1 + $0x548] sm:$0xf]
  %v354 = vld [vmem:[%s1 + $0x54c] sm:$0xf]
  %v355 = vld [vmem:[%s1 + $0x550] sm:$0xf]
  %v356 = vld [vmem:[%s1 + $0x554] sm:$0xf]
  %v357 = vld [vmem:[%s1 + $0x558] sm:$0xf]
  %v358 = vld [vmem:[%s1 + $0x55c] sm:$0xf]
  %v359 = vld [vmem:[%s1 + $0x560] sm:$0xf]
  %v360 = vld [vmem:[%s1 + $0x564] sm:$0xf]
  %v361 = vld [vmem:[%s1 + $0x568] sm:$0xf]
  %v362 = vld [vmem:[%s1 + $0x56c] sm:$0xf]
  %v363 = vld [vmem:[%s1 + $0x570] sm:$0xf]
  %v364 = vld [vmem:[%s1 + $0x574] sm:$0xf]
  %v365 = vld [vmem:[%s1 + $0x578] sm:$0xf]
  %v366 = vld [vmem:[%s1 + $0x57c] sm:$0xf]
  %v367 = vld [vmem:[%s1 + $0x580] sm:$0xf]
  %v368 = vld [vmem:[%s1 + $0x584] sm:$0xf]
  %v369 = vld [vmem:[%s1 + $0x588] sm:$0xf]
  %v370 = vld [vmem:[%s1 + $0x58c] sm:$0xf]
  %v371 = vld [vmem:[%s1 + $0x590] sm:$0xf]
  %v372 = vld [vmem:[%s1 + $0x594] sm:$0xf]
  %v373 = vld [vmem:[%s1 + $0x598] sm:$0xf]
  %v374 = vld [vmem:[%s1 + $0x59c] sm:$0xf]
  %v375 = vld [vmem:[%s1 + $0x5a0] sm:$0xf]
  %v376 = vld [vmem:[%s1 + $0x5a4] sm:$0xf]
  %v377 = vld [vmem:[%s1 + $0x5a8] sm:$0xf]
  %v378 = vld [vmem:[%s1 + $0x5ac] sm:$0xf]
  %v379 = vld [vmem:[%s1 + $0x5b0] sm:$0xf]
  %v380 = vld [vmem:[%s1 + $0x5b4] sm:$0xf]
  %v381 = vld [vmem:[%s1 + $0x5b8] sm:$0xf]
  %v382 = vld [vmem:[%s1 + $0x5bc] sm:$0xf]
  %v383 = vld [vmem:[%s1 + $0x5c0] sm:$0xf]
  %v384 = vld [vmem:[%s1 + $0x5c4] sm:$0xf]
  %v385 = vld [vmem:[%s1 + $0x5c8] sm:$0xf]
  %v386 = vld [vmem:[%s1 + $0x5cc] sm:$0xf]
  %v387 = vld [vmem:[%s1 + $0x5d0] sm:$0xf]
  %v388 = vld [vmem:[%s1 + $0x5d4] sm:$0xf]
  %v389 = vld [vmem:[%s1 + $0x5d8] sm:$0xf]
  %v390 = vld [vmem:[%s1 + $0x5dc] sm:$0xf]
  %v391 = vld [vmem:[%s1 + $0x5e0] sm:$0xf]
  %v392 = vld [vmem:[%s1 + $0x5e4] sm:$0xf]
  %v393 = vld [vmem:[%s1 + $0x5e8] sm:$0xf]
  %v394 = vld [vmem:[%s1 + $0x5ec] sm:$0xf]
  %v395 = vld [vmem:[%s1 + $0x5f0] sm:$0xf]
  %v396 = vld [vmem:[%s1 + $0x5f4] sm:$0xf]
  %v397 = vld [vmem:[%s1 + $0x5f8] sm:$0xf]
  %v398 = vld [vmem:[%s1 + $0x5fc] sm:$0xf]
  %v399 = vld [vmem:[%s1 + $0x600] sm:$0xf]
  %v400 = vld [vmem:[%s1 + $0x604] sm:$0xf]
  %v401 = vld [vmem:[%s1 + $0x608] sm:$0xf]
  %v402 = vld [vmem:[%s1 + $0x60c] sm:$0xf]
  %v403 = vld [vmem:[%s1 + $0x610] sm:$0xf]
  %v404 = vld [vmem:[%s1 + $0x614] sm:$0xf]
  %v405 = vld [vmem:[%s1 + $0x618] sm:$0xf]
  %v406 = vld [vmem:[%s1 + $0x61c] sm:$0xf]
  %v407 = vld [vmem:[%s1 + $0x620] sm:$0xf]
  %v408 = vld [vmem:[%s1 + $0x624] sm:$0xf]
  %v409 = vld [vmem:[%s1 + $0x628] sm:$0xf]
  %v410 = vld [vmem:[%s1 + $0x62c] sm:$0xf]
  %v411 = vld [vmem:[%s1 + $0x630] sm:$0xf]
  %v412 = vld [vmem:[%s1 + $0x634] sm:$0xf]
  %v413 = vld [vmem:[%s1 + $0x638] sm:$0xf]
  %v414 = vld [vmem:[%s1 + $0x63c] sm:$0xf]
  %v415 = vld [vmem:[%s0] sm:$0xff]
  %v416 = vld [vmem:[%s0 + $0x8] sm:$0xff]
  %v417 = vld [vmem:[%s0 + $0x10] sm:$0xff]
  %v418 = vld [vmem:[%s0 + $0x18] sm:$0xff]
  %v419 = vld [vmem:[%s0 + $0x20] sm:$0xff]
  %v420 = vld [vmem:[%s0 + $0x28] sm:$0xff]
  %v421 = vld [vmem:[%s0 + $0x30] sm:$0xff]
  %v422 = vld [vmem:[%s0 + $0x38] sm:$0xff]
  %v423 = vld [vmem:[%s0 + $0x40] sm:$0xff]
  %v424 = vld [vmem:[%s0 + $0x48] sm:$0xff]
  %v425 = vld [vmem:[%s0 + $0x50] sm:$0xff]
  %v426 = vld [vmem:[%s0 + $0x58] sm:$0xff]
  %v427 = vld [vmem:[%s0 + $0x60] sm:$0xf]
  %v428 = vld [vmem:[%s0 + $0x64] sm:$0xff]
  %v429 = vld [vmem:[%s0 + $0x6c] sm:$0xff]
  %v430 = vld [vmem:[%s0 + $0x74] sm:$0xff]
  %v431 = vld [vmem:[%s0 + $0x7c] sm:$0xff]
  %v432 = vld [vmem:[%s0 + $0x84] sm:$0xff]
  %v433 = vld [vmem:[%s0 + $0x8c] sm:$0xff]
  %v434 = vld [vmem:[%s0 + $0x94] sm:$0xff]
  %v435 = vld [vmem:[%s0 + $0x9c] sm:$0xff]
  %v436 = vld [vmem:[%s0 + $0xa4] sm:$0xff]
  %v437 = vld [vmem:[%s0 + $0xac] sm:$0xff]
  %v438 = vld [vmem:[%s0 + $0xb4] sm:$0xff]
  %v439 = vld [vmem:[%s0 + $0xbc] sm:$0xff]
  %v440 = vld [vmem:[%s0 + $0xc4] sm:$0xf]
  %v441 = vld [vmem:[%s0 + $0xc8] sm:$0xff]
  %v442 = vld [vmem:[%s0 + $0xd0] sm:$0xff]
  %v443 = vld [vmem:[%s0 + $0xd8] sm:$0xff]
  %v444 = vld [vmem:[%s0 + $0xe0] sm:$0xff]
  %v445 = vld [vmem:[%s0 + $0xe8] sm:$0xff]
  %v446 = vld [vmem:[%s0 + $0xf0] sm:$0xff]
  %v447 = vld [vmem:[%s0 + $0xf8] sm:$0xff]
  %v448 = vld [vmem:[%s0 + $0x100] sm:$0xff]
  %v449 = vld [vmem:[%s0 + $0x108] sm:$0xff]
  %v450 = vld [vmem:[%s0 + $0x110] sm:$0xff]
  %v451 = vld [vmem:[%s0 + $0x118] sm:$0xff]
  %v452 = vld [vmem:[%s0 + $0x120] sm:$0xff]
  %v453 = vld [vmem:[%s0 + $0x128] sm:$0xf]
  %v454 = vld [vmem:[%s0 + $0x12c] sm:$0xff]
  %v455 = vld [vmem:[%s0 + $0x134] sm:$0xff]
  %v456 = vld [vmem:[%s0 + $0x13c] sm:$0xff]
  %v457 = vld [vmem:[%s0 + $0x144] sm:$0xff]
  %v458 = vld [vmem:[%s0 + $0x14c] sm:$0xff]
  %v459 = vld [vmem:[%s0 + $0x154] sm:$0xff]
  %v460 = vld [vmem:[%s0 + $0x15c] sm:$0xff]
  %v461 = vld [vmem:[%s0 + $0x164] sm:$0xff]
  %v462 = vld [vmem:[%s0 + $0x16c] sm:$0xff]
  %v463 = vld [vmem:[%s0 + $0x174] sm:$0xff]
  %v464 = vld [vmem:[%s0 + $0x17c] sm:$0xff]
  %v465 = vld [vmem:[%s0 + $0x184] sm:$0xff]
  %v466 = vld [vmem:[%s0 + $0x18c] sm:$0xf]
  %v467 = vld [vmem:[%s0 + $0x190] sm:$0xff]
  %v468 = vld [vmem:[%s0 + $0x198] sm:$0xff]
  %v469 = vld [vmem:[%s0 + $0x1a0] sm:$0xff]
  %v470 = vld [vmem:[%s0 + $0x1a8] sm:$0xff]
  %v471 = vld [vmem:[%s0 + $0x1b0] sm:$0xff]
  %v472 = vld [vmem:[%s0 + $0x1b8] sm:$0xff]
  %v473 = vld [vmem:[%s0 + $0x1c0] sm:$0xff]
  %v474 = vld [vmem:[%s0 + $0x1c8] sm:$0xff]
  %v475 = vld [vmem:[%s0 + $0x1d0] sm:$0xff]
  %v476 = vld [vmem:[%s0 + $0x1d8] sm:$0xff]
  %v477 = vld [vmem:[%s0 + $0x1e0] sm:$0xff]
  %v478 = vld [vmem:[%s0 + $0x1e8] sm:$0xff]
  %v479 = vld [vmem:[%s0 + $0x1f0] sm:$0xf]
  %v480 = vld [vmem:[%s0 + $0x1f4] sm:$0xff]
  %v481 = vld [vmem:[%s0 + $0x1fc] sm:$0xff]
  %v482 = vld [vmem:[%s0 + $0x204] sm:$0xff]
  %v483 = vld [vmem:[%s0 + $0x20c] sm:$0xff]
  %v484 = vld [vmem:[%s0 + $0x214] sm:$0xff]
  %v485 = vld [vmem:[%s0 + $0x21c] sm:$0xff]
  %v486 = vld [vmem:[%s0 + $0x224] sm:$0xff]
  %v487 = vld [vmem:[%s0 + $0x22c] sm:$0xff]
  %v488 = vld [vmem:[%s0 + $0x234] sm:$0xff]
  %v489 = vld [vmem:[%s0 + $0x23c] sm:$0xff]
  %v490 = vld [vmem:[%s0 + $0x244] sm:$0xff]
  %v491 = vld [vmem:[%s0 + $0x24c] sm:$0xff]
  %v492 = vld [vmem:[%s0 + $0x254] sm:$0xf]
  %v493 = vld [vmem:[%s0 + $0x258] sm:$0x11]
  %v494 = vld [vmem:[%s0 + $0x260] sm:$0x11]
  %v495 = vld [vmem:[%s0 + $0x268] sm:$0x11]
  %v496 = vld [vmem:[%s0 + $0x270] sm:$0x11]
  %v497 = vld [vmem:[%s0 + $0x278] sm:$0x11]
  %v498 = vld [vmem:[%s0 + $0x280] sm:$0x11]
  %v499 = vld [vmem:[%s0 + $0x288] sm:$0x11]
  %v500 = vld [vmem:[%s0 + $0x290] sm:$0x11]
  %v501 = vld [vmem:[%s0 + $0x298] sm:$0x11]
  %v502 = vld [vmem:[%s0 + $0x2a0] sm:$0x11]
  %v503 = vld [vmem:[%s0 + $0x2a8] sm:$0x11]
  %v504 = vld [vmem:[%s0 + $0x2b0] sm:$0x11]
  %v505 = vld [vmem:[%s0 + $0x2b8] sm:$0x1]
  %v597 = vunpack.c.l.b16 %v415
  %v598 = vunpack.c.h.b16 %v415
  %v599 = vunpack.c.l.b16 %v416
  %v600 = vunpack.c.h.b16 %v416
  %v601 = vunpack.c.l.b16 %v417
  %v602 = vunpack.c.h.b16 %v417
  %v603 = vunpack.c.l.b16 %v418
  %v604 = vunpack.c.h.b16 %v418
  %v605 = vunpack.c.l.b16 %v419
  %v606 = vunpack.c.h.b16 %v419
  %v607 = vunpack.c.l.b16 %v420
  %v608 = vunpack.c.h.b16 %v420
  %v609 = vunpack.c.l.b16 %v421
  %v610 = vunpack.c.h.b16 %v421
  %v611 = vunpack.c.l.b16 %v422
  %v612 = vunpack.c.h.b16 %v422
  %v613 = vunpack.c.l.b16 %v423
  %v614 = vunpack.c.h.b16 %v423
  %v615 = vunpack.c.l.b16 %v424
  %v616 = vunpack.c.h.b16 %v424
  %v617 = vunpack.c.l.b16 %v425
  %v618 = vunpack.c.h.b16 %v425
  %v619 = vunpack.c.l.b16 %v426
  %v620 = vunpack.c.h.b16 %v426
  %v621 = vunpack.c.l.b16 %v427
  %v622 = vunpack.c.l.b16 %v428
  %v623 = vunpack.c.h.b16 %v428
  %v624 = vunpack.c.l.b16 %v429
  %v625 = vunpack.c.h.b16 %v429
  %v626 = vunpack.c.l.b16 %v430
  %v627 = vunpack.c.h.b16 %v430
  %v628 = vunpack.c.l.b16 %v431
  %v629 = vunpack.c.h.b16 %v431
  %v630 = vunpack.c.l.b16 %v432
  %v631 = vunpack.c.h.b16 %v432
  %v632 = vunpack.c.l.b16 %v433
  %v633 = vunpack.c.h.b16 %v433
  %v634 = vunpack.c.l.b16 %v434
  %v635 = vunpack.c.h.b16 %v434
  %v636 = vunpack.c.l.b16 %v435
  %v637 = vunpack.c.h.b16 %v435
  %v638 = vunpack.c.l.b16 %v436
  %v639 = vunpack.c.h.b16 %v436
  %v640 = vunpack.c.l.b16 %v437
  %v641 = vunpack.c.h.b16 %v437
  %v642 = vunpack.c.l.b16 %v438
  %v643 = vunpack.c.h.b16 %v438
  %v644 = vunpack.c.l.b16 %v439
  %v645 = vunpack.c.h.b16 %v439
  %v646 = vunpack.c.l.b16 %v440
  %v647 = vunpack.c.l.b16 %v441
  %v648 = vunpack.c.h.b16 %v441
  %v649 = vunpack.c.l.b16 %v442
  %v650 = vunpack.c.h.b16 %v442
  %v651 = vunpack.c.l.b16 %v443
  %v652 = vunpack.c.h.b16 %v443
  %v653 = vunpack.c.l.b16 %v444
  %v654 = vunpack.c.h.b16 %v444
  %v655 = vunpack.c.l.b16 %v445
  %v656 = vunpack.c.h.b16 %v445
  %v657 = vunpack.c.l.b16 %v446
  %v658 = vunpack.c.h.b16 %v446
  %v659 = vunpack.c.l.b16 %v447
  %v660 = vunpack.c.h.b16 %v447
  %v661 = vunpack.c.l.b16 %v448
  %v662 = vunpack.c.h.b16 %v448
  %v663 = vunpack.c.l.b16 %v449
  %v664 = vunpack.c.h.b16 %v449
  %v665 = vunpack.c.l.b16 %v450
  %v666 = vunpack.c.h.b16 %v450
  %v667 = vunpack.c.l.b16 %v451
  %v668 = vunpack.c.h.b16 %v451
  %v669 = vunpack.c.l.b16 %v452
  %v670 = vunpack.c.h.b16 %v452
  %v671 = vunpack.c.l.b16 %v453
  %v672 = vunpack.c.l.b16 %v454
  %v673 = vunpack.c.h.b16 %v454
  %v674 = vunpack.c.l.b16 %v455
  %v675 = vunpack.c.h.b16 %v455
  %v676 = vunpack.c.l.b16 %v456
  %v677 = vunpack.c.h.b16 %v456
  %v678 = vunpack.c.l.b16 %v457
  %v679 = vunpack.c.h.b16 %v457
  %v680 = vunpack.c.l.b16 %v458
  %v681 = vunpack.c.h.b16 %v458
  %v682 = vunpack.c.l.b16 %v459
  %v683 = vunpack.c.h.b16 %v459
  %v684 = vunpack.c.l.b16 %v460
  %v685 = vunpack.c.h.b16 %v460
  %v686 = vunpack.c.l.b16 %v461
  %v687 = vunpack.c.h.b16 %v461
  %v688 = vunpack.c.l.b16 %v462
  %v689 = vunpack.c.h.b16 %v462
  %v690 = vunpack.c.l.b16 %v463
  %v691 = vunpack.c.h.b16 %v463
  %v692 = vunpack.c.l.b16 %v464
  %v693 = vunpack.c.h.b16 %v464
  %v694 = vunpack.c.l.b16 %v465
  %v695 = vunpack.c.h.b16 %v465
  %v696 = vunpack.c.l.b16 %v466
  %v697 = vunpack.c.l.b16 %v467
  %v698 = vunpack.c.h.b16 %v467
  %v699 = vunpack.c.l.b16 %v468
  %v700 = vunpack.c.h.b16 %v468
  %v701 = vunpack.c.l.b16 %v469
  %v702 = vunpack.c.h.b16 %v469
  %v703 = vunpack.c.l.b16 %v470
  %v704 = vunpack.c.h.b16 %v470
  %v705 = vunpack.c.l.b16 %v471
  %v706 = vunpack.c.h.b16 %v471
  %v707 = vunpack.c.l.b16 %v472
  %v708 = vunpack.c.h.b16 %v472
  %v709 = vunpack.c.l.b16 %v473
  %v710 = vunpack.c.h.b16 %v473
  %v711 = vunpack.c.l.b16 %v474
  %v712 = vunpack.c.h.b16 %v474
  %v713 = vunpack.c.l.b16 %v475
  %v714 = vunpack.c.h.b16 %v475
  %v715 = vunpack.c.l.b16 %v476
  %v716 = vunpack.c.h.b16 %v476
  %v717 = vunpack.c.l.b16 %v477
  %v718 = vunpack.c.h.b16 %v477
  %v719 = vunpack.c.l.b16 %v478
  %v720 = vunpack.c.h.b16 %v478
  %v721 = vunpack.c.l.b16 %v479
  %v722 = vunpack.c.l.b16 %v480
  %v723 = vunpack.c.h.b16 %v480
  %v724 = vunpack.c.l.b16 %v481
  %v725 = vunpack.c.h.b16 %v481
  %v726 = vunpack.c.l.b16 %v482
  %v727 = vunpack.c.h.b16 %v482
  %v728 = vunpack.c.l.b16 %v483
  %v729 = vunpack.c.h.b16 %v483
  %v730 = vunpack.c.l.b16 %v484
  %v731 = vunpack.c.h.b16 %v484
  %v732 = vunpack.c.l.b16 %v485
  %v733 = vunpack.c.h.b16 %v485
  %v734 = vunpack.c.l.b16 %v486
  %v735 = vunpack.c.h.b16 %v486
  %v736 = vunpack.c.l.b16 %v487
  %v737 = vunpack.c.h.b16 %v487
  %v738 = vunpack.c.l.b16 %v488
  %v739 = vunpack.c.h.b16 %v488
  %v740 = vunpack.c.l.b16 %v489
  %v741 = vunpack.c.h.b16 %v489
  %v742 = vunpack.c.l.b16 %v490
  %v743 = vunpack.c.h.b16 %v490
  %v744 = vunpack.c.l.b16 %v491
  %v745 = vunpack.c.h.b16 %v491
  %v746 = vunpack.c.l.b16 %v492
  %v747 = vunpack.c.l.b16 %v493
  %v748 = vunpack.c.h.b16 %v493
  %v749 = vunpack.c.l.b16 %v494
  %v750 = vunpack.c.h.b16 %v494
  %v751 = vunpack.c.l.b16 %v495
  %v752 = vunpack.c.h.b16 %v495
  %v753 = vunpack.c.l.b16 %v496
  %v754 = vunpack.c.h.b16 %v496
  %v755 = vunpack.c.l.b16 %v497
  %v756 = vunpack.c.h.b16 %v497
  %v757 = vunpack.c.l.b16 %v498
  %v758 = vunpack.c.h.b16 %v498
  %v759 = vunpack.c.l.b16 %v499
  %v760 = vunpack.c.h.b16 %v499
  %v761 = vunpack.c.l.b16 %v500
  %v762 = vunpack.c.h.b16 %v500
  %v763 = vunpack.c.l.b16 %v501
  %v764 = vunpack.c.h.b16 %v501
  %v765 = vunpack.c.l.b16 %v502
  %v766 = vunpack.c.h.b16 %v502
  %v767 = vunpack.c.l.b16 %v503
  %v768 = vunpack.c.h.b16 %v503
  %v769 = vunpack.c.l.b16 %v504
  %v770 = vunpack.c.h.b16 %v504
  %v771 = vunpack.c.l.b16 %v505
  %v772 = vpack.c.b16 %v622, %v597
  %v773 = vpack.c.b16 %v623, %v598
  %v774 = vpack.c.b16 %v624, %v599
  %v775 = vpack.c.b16 %v625, %v600
  %v776 = vpack.c.b16 %v626, %v601
  %v777 = vpack.c.b16 %v627, %v602
  %v778 = vpack.c.b16 %v628, %v603
  %v779 = vpack.c.b16 %v629, %v604
  %v780 = vpack.c.b16 %v630, %v605
  %v781 = vpack.c.b16 %v631, %v606
  %v782 = vpack.c.b16 %v632, %v607
  %v783 = vpack.c.b16 %v633, %v608
  %v784 = vpack.c.b16 %v634, %v609
  %v785 = vpack.c.b16 %v635, %v610
  %v786 = vpack.c.b16 %v636, %v611
  %v787 = vpack.c.b16 %v637, %v612
  %v788 = vpack.c.b16 %v638, %v613
  %v789 = vpack.c.b16 %v639, %v614
  %v790 = vpack.c.b16 %v640, %v615
  %v791 = vpack.c.b16 %v641, %v616
  %v792 = vpack.c.b16 %v642, %v617
  %v793 = vpack.c.b16 %v643, %v618
  %v794 = vpack.c.b16 %v644, %v619
  %v795 = vpack.c.b16 %v645, %v620
  %v796 = vpack.c.b16 %v646, %v621
  %v797 = vpack.c.b16 %v672, %v647
  %v798 = vpack.c.b16 %v673, %v648
  %v799 = vpack.c.b16 %v674, %v649
  %v800 = vpack.c.b16 %v675, %v650
  %v801 = vpack.c.b16 %v676, %v651
  %v802 = vpack.c.b16 %v677, %v652
  %v803 = vpack.c.b16 %v678, %v653
  %v804 = vpack.c.b16 %v679, %v654
  %v805 = vpack.c.b16 %v680, %v655
  %v806 = vpack.c.b16 %v681, %v656
  %v807 = vpack.c.b16 %v682, %v657
  %v808 = vpack.c.b16 %v683, %v658
  %v809 = vpack.c.b16 %v684, %v659
  %v810 = vpack.c.b16 %v685, %v660
  %v811 = vpack.c.b16 %v686, %v661
  %v812 = vpack.c.b16 %v687, %v662
  %v813 = vpack.c.b16 %v688, %v663
  %v814 = vpack.c.b16 %v689, %v664
  %v815 = vpack.c.b16 %v690, %v665
  %v816 = vpack.c.b16 %v691, %v666
  %v817 = vpack.c.b16 %v692, %v667
  %v818 = vpack.c.b16 %v693, %v668
  %v819 = vpack.c.b16 %v694, %v669
  %v820 = vpack.c.b16 %v695, %v670
  %v821 = vpack.c.b16 %v696, %v671
  %v822 = vpack.c.b16 %v722, %v697
  %v823 = vpack.c.b16 %v723, %v698
  %v824 = vpack.c.b16 %v724, %v699
  %v825 = vpack.c.b16 %v725, %v700
  %v826 = vpack.c.b16 %v726, %v701
  %v827 = vpack.c.b16 %v727, %v702
  %v828 = vpack.c.b16 %v728, %v703
  %v829 = vpack.c.b16 %v729, %v704
  %v830 = vpack.c.b16 %v730, %v705
  %v831 = vpack.c.b16 %v731, %v706
  %v832 = vpack.c.b16 %v732, %v707
  %v833 = vpack.c.b16 %v733, %v708
  %v834 = vpack.c.b16 %v734, %v709
  %v835 = vpack.c.b16 %v735, %v710
  %v836 = vpack.c.b16 %v736, %v711
  %v837 = vpack.c.b16 %v737, %v712
  %v838 = vpack.c.b16 %v738, %v713
  %v839 = vpack.c.b16 %v739, %v714
  %v840 = vpack.c.b16 %v740, %v715
  %v841 = vpack.c.b16 %v741, %v716
  %v842 = vpack.c.b16 %v742, %v717
  %v843 = vpack.c.b16 %v743, %v718
  %v844 = vpack.c.b16 %v744, %v719
  %v845 = vpack.c.b16 %v745, %v720
  %v846 = vpack.c.b16 %v746, %v721
  %v847 = vpack.c.b16 %v747, %v747
  %v848 = vpack.c.b16 %v748, %v748
  %v849 = vpack.c.b16 %v749, %v749
  %v850 = vpack.c.b16 %v750, %v750
  %v851 = vpack.c.b16 %v751, %v751
  %v852 = vpack.c.b16 %v752, %v752
  %v853 = vpack.c.b16 %v753, %v753
  %v854 = vpack.c.b16 %v754, %v754
  %v855 = vpack.c.b16 %v755, %v755
  %v856 = vpack.c.b16 %v756, %v756
  %v857 = vpack.c.b16 %v757, %v757
  %v858 = vpack.c.b16 %v758, %v758
  %v859 = vpack.c.b16 %v759, %v759
  %v860 = vpack.c.b16 %v760, %v760
  %v861 = vpack.c.b16 %v761, %v761
  %v862 = vpack.c.b16 %v762, %v762
  %v863 = vpack.c.b16 %v763, %v763
  %v864 = vpack.c.b16 %v764, %v764
  %v865 = vpack.c.b16 %v765, %v765
  %v866 = vpack.c.b16 %v766, %v766
  %v867 = vpack.c.b16 %v767, %v767
  %v868 = vpack.c.b16 %v768, %v768
  %v869 = vpack.c.b16 %v769, %v769
  %v870 = vpack.c.b16 %v770, %v770
  %v871 = vpack.c.b16 %v771, %v771
  %v1372 = vunpack.c.l.b16 %v15
  %v1373 = vunpack.c.l.b16 %v16
  %v1374 = vunpack.c.l.b16 %v17
  %v1375 = vunpack.c.l.b16 %v18
  %v1376 = vunpack.c.l.b16 %v19
  %v1377 = vunpack.c.l.b16 %v20
  %v1378 = vunpack.c.l.b16 %v21
  %v1379 = vunpack.c.l.b16 %v22
  %v1380 = vunpack.c.l.b16 %v23
  %v1381 = vunpack.c.l.b16 %v24
  %v1382 = vunpack.c.l.b16 %v25
  %v1383 = vunpack.c.l.b16 %v26
  %v1384 = vunpack.c.l.b16 %v27
  %v1385 = vunpack.c.l.b16 %v28
  %v1386 = vunpack.c.l.b16 %v29
  %v1387 = vunpack.c.l.b16 %v30
  %v1388 = vunpack.c.l.b16 %v31
  %v1389 = vunpack.c.l.b16 %v32
  %v1390 = vunpack.c.l.b16 %v33
  %v1391 = vunpack.c.l.b16 %v34
  %v1392 = vunpack.c.l.b16 %v35
  %v1393 = vunpack.c.l.b16 %v36
  %v1394 = vunpack.c.l.b16 %v37
  %v1395 = vunpack.c.l.b16 %v38
  %v1396 = vunpack.c.l.b16 %v39
  %v1397 = vunpack.c.l.b16 %v40
  %v1398 = vunpack.c.l.b16 %v41
  %v1399 = vunpack.c.l.b16 %v42
  %v1400 = vunpack.c.l.b16 %v43
  %v1401 = vunpack.c.l.b16 %v44
  %v1402 = vunpack.c.l.b16 %v45
  %v1403 = vunpack.c.l.b16 %v46
  %v1404 = vunpack.c.l.b16 %v47
  %v1405 = vunpack.c.l.b16 %v48
  %v1406 = vunpack.c.l.b16 %v49
  %v1407 = vunpack.c.l.b16 %v50
  %v1408 = vunpack.c.l.b16 %v51
  %v1409 = vunpack.c.l.b16 %v52
  %v1410 = vunpack.c.l.b16 %v53
  %v1411 = vunpack.c.l.b16 %v54
  %v1412 = vunpack.c.l.b16 %v55
  %v1413 = vunpack.c.l.b16 %v56
  %v1414 = vunpack.c.l.b16 %v57
  %v1415 = vunpack.c.l.b16 %v58
  %v1416 = vunpack.c.l.b16 %v59
  %v1417 = vunpack.c.l.b16 %v60
  %v1418 = vunpack.c.l.b16 %v61
  %v1419 = vunpack.c.l.b16 %v62
  %v1420 = vunpack.c.l.b16 %v63
  %v1421 = vunpack.c.l.b16 %v64
  %v1422 = vunpack.c.l.b16 %v65
  %v1423 = vunpack.c.l.b16 %v66
  %v1424 = vunpack.c.l.b16 %v67
  %v1425 = vunpack.c.l.b16 %v68
  %v1426 = vunpack.c.l.b16 %v69
  %v1427 = vunpack.c.l.b16 %v70
  %v1428 = vunpack.c.l.b16 %v71
  %v1429 = vunpack.c.l.b16 %v72
  %v1430 = vunpack.c.l.b16 %v73
  %v1431 = vunpack.c.l.b16 %v74
  %v1432 = vunpack.c.l.b16 %v75
  %v1433 = vunpack.c.l.b16 %v76
  %v1434 = vunpack.c.l.b16 %v77
  %v1435 = vunpack.c.l.b16 %v78
  %v1436 = vunpack.c.l.b16 %v79
  %v1437 = vunpack.c.l.b16 %v80
  %v1438 = vunpack.c.l.b16 %v81
  %v1439 = vunpack.c.l.b16 %v82
  %v1440 = vunpack.c.l.b16 %v83
  %v1441 = vunpack.c.l.b16 %v84
  %v1442 = vunpack.c.l.b16 %v85
  %v1443 = vunpack.c.l.b16 %v86
  %v1444 = vunpack.c.l.b16 %v87
  %v1445 = vunpack.c.l.b16 %v88
  %v1446 = vunpack.c.l.b16 %v89
  %v1447 = vunpack.c.l.b16 %v90
  %v1448 = vunpack.c.l.b16 %v91
  %v1449 = vunpack.c.l.b16 %v92
  %v1450 = vunpack.c.l.b16 %v93
  %v1451 = vunpack.c.l.b16 %v94
  %v1452 = vunpack.c.l.b16 %v95
  %v1453 = vunpack.c.l.b16 %v96
  %v1454 = vunpack.c.l.b16 %v97
  %v1455 = vunpack.c.l.b16 %v98
  %v1456 = vunpack.c.l.b16 %v99
  %v1457 = vunpack.c.l.b16 %v100
  %v1458 = vunpack.c.l.b16 %v101
  %v1459 = vunpack.c.l.b16 %v102
  %v1460 = vunpack.c.l.b16 %v103
  %v1461 = vunpack.c.l.b16 %v104
  %v1462 = vunpack.c.l.b16 %v105
  %v1463 = vunpack.c.l.b16 %v106
  %v1464 = vunpack.c.l.b16 %v107
  %v1465 = vunpack.c.l.b16 %v108
  %v1466 = vunpack.c.l.b16 %v109
  %v1467 = vunpack.c.l.b16 %v110
  %v1468 = vunpack.c.l.b16 %v111
  %v1469 = vunpack.c.l.b16 %v112
  %v1470 = vunpack.c.l.b16 %v113
  %v1471 = vunpack.c.l.b16 %v114
  %v1472 = vunpack.c.l.b16 %v115
  %v1473 = vunpack.c.l.b16 %v116
  %v1474 = vunpack.c.l.b16 %v117
  %v1475 = vunpack.c.l.b16 %v118
  %v1476 = vunpack.c.l.b16 %v119
  %v1477 = vunpack.c.l.b16 %v120
  %v1478 = vunpack.c.l.b16 %v121
  %v1479 = vunpack.c.l.b16 %v122
  %v1480 = vunpack.c.l.b16 %v123
  %v1481 = vunpack.c.l.b16 %v124
  %v1482 = vunpack.c.l.b16 %v125
  %v1483 = vunpack.c.l.b16 %v126
  %v1484 = vunpack.c.l.b16 %v127
  %v1485 = vunpack.c.l.b16 %v128
  %v1486 = vunpack.c.l.b16 %v129
  %v1487 = vunpack.c.l.b16 %v130
  %v1488 = vunpack.c.l.b16 %v131
  %v1489 = vunpack.c.l.b16 %v132
  %v1490 = vunpack.c.l.b16 %v133
  %v1491 = vunpack.c.l.b16 %v134
  %v1492 = vunpack.c.l.b16 %v135
  %v1493 = vunpack.c.l.b16 %v136
  %v1494 = vunpack.c.l.b16 %v137
  %v1495 = vunpack.c.l.b16 %v138
  %v1496 = vunpack.c.l.b16 %v139
  %v1497 = vunpack.c.l.b16 %v140
  %v1498 = vunpack.c.l.b16 %v141
  %v1499 = vunpack.c.l.b16 %v142
  %v1500 = vunpack.c.l.b16 %v143
  %v1501 = vunpack.c.l.b16 %v144
  %v1502 = vunpack.c.l.b16 %v145
  %v1503 = vunpack.c.l.b16 %v146
  %v1504 = vunpack.c.l.b16 %v147
  %v1505 = vunpack.c.l.b16 %v148
  %v1506 = vunpack.c.l.b16 %v149
  %v1507 = vunpack.c.l.b16 %v150
  %v1508 = vunpack.c.l.b16 %v151
  %v1509 = vunpack.c.l.b16 %v152
  %v1510 = vunpack.c.l.b16 %v153
  %v1511 = vunpack.c.l.b16 %v154
  %v1512 = vunpack.c.l.b16 %v155
  %v1513 = vunpack.c.l.b16 %v156
  %v1514 = vunpack.c.l.b16 %v157
  %v1515 = vunpack.c.l.b16 %v158
  %v1516 = vunpack.c.l.b16 %v159
  %v1517 = vunpack.c.l.b16 %v160
  %v1518 = vunpack.c.l.b16 %v161
  %v1519 = vunpack.c.l.b16 %v162
  %v1520 = vunpack.c.l.b16 %v163
  %v1521 = vunpack.c.l.b16 %v164
  %v1522 = vunpack.c.l.b16 %v165
  %v1523 = vunpack.c.l.b16 %v166
  %v1524 = vunpack.c.l.b16 %v167
  %v1525 = vunpack.c.l.b16 %v168
  %v1526 = vunpack.c.l.b16 %v169
  %v1527 = vunpack.c.l.b16 %v170
  %v1528 = vunpack.c.l.b16 %v171
  %v1529 = vunpack.c.l.b16 %v172
  %v1530 = vunpack.c.l.b16 %v173
  %v1531 = vunpack.c.l.b16 %v174
  %v1532 = vunpack.c.l.b16 %v175
  %v1533 = vunpack.c.l.b16 %v176
  %v1534 = vunpack.c.l.b16 %v177
  %v1535 = vunpack.c.l.b16 %v178
  %v1536 = vunpack.c.l.b16 %v179
  %v1537 = vunpack.c.l.b16 %v180
  %v1538 = vunpack.c.l.b16 %v181
  %v1539 = vunpack.c.l.b16 %v182
  %v1540 = vunpack.c.l.b16 %v183
  %v1541 = vunpack.c.l.b16 %v184
  %v1542 = vunpack.c.l.b16 %v185
  %v1543 = vunpack.c.l.b16 %v186
  %v1544 = vunpack.c.l.b16 %v187
  %v1545 = vunpack.c.l.b16 %v188
  %v1546 = vunpack.c.l.b16 %v189
  %v1547 = vunpack.c.l.b16 %v190
  %v1548 = vunpack.c.l.b16 %v191
  %v1549 = vunpack.c.l.b16 %v192
  %v1550 = vunpack.c.l.b16 %v193
  %v1551 = vunpack.c.l.b16 %v194
  %v1552 = vunpack.c.l.b16 %v195
  %v1553 = vunpack.c.l.b16 %v196
  %v1554 = vunpack.c.l.b16 %v197
  %v1555 = vunpack.c.l.b16 %v198
  %v1556 = vunpack.c.l.b16 %v199
  %v1557 = vunpack.c.l.b16 %v200
  %v1558 = vunpack.c.l.b16 %v201
  %v1559 = vunpack.c.l.b16 %v202
  %v1560 = vunpack.c.l.b16 %v203
  %v1561 = vunpack.c.l.b16 %v204
  %v1562 = vunpack.c.l.b16 %v205
  %v1563 = vunpack.c.l.b16 %v206
  %v1564 = vunpack.c.l.b16 %v207
  %v1565 = vunpack.c.l.b16 %v208
  %v1566 = vunpack.c.l.b16 %v209
  %v1567 = vunpack.c.l.b16 %v210
  %v1568 = vunpack.c.l.b16 %v211
  %v1569 = vunpack.c.l.b16 %v212
  %v1570 = vunpack.c.l.b16 %v213
  %v1571 = vunpack.c.l.b16 %v214
  %v1572 = vunpack.c.l.b16 %v215
  %v1573 = vunpack.c.l.b16 %v216
  %v1574 = vunpack.c.l.b16 %v217
  %v1575 = vunpack.c.l.b16 %v218
  %v1576 = vunpack.c.l.b16 %v219
  %v1577 = vunpack.c.l.b16 %v220
  %v1578 = vunpack.c.l.b16 %v221
  %v1579 = vunpack.c.l.b16 %v222
  %v1580 = vunpack.c.l.b16 %v223
  %v1581 = vunpack.c.l.b16 %v224
  %v1582 = vunpack.c.l.b16 %v225
  %v1583 = vunpack.c.l.b16 %v226
  %v1584 = vunpack.c.l.b16 %v227
  %v1585 = vunpack.c.l.b16 %v228
  %v1586 = vunpack.c.l.b16 %v229
  %v1587 = vunpack.c.l.b16 %v230
  %v1588 = vunpack.c.l.b16 %v231
  %v1589 = vunpack.c.l.b16 %v232
  %v1590 = vunpack.c.l.b16 %v233
  %v1591 = vunpack.c.l.b16 %v234
  %v1592 = vunpack.c.l.b16 %v235
  %v1593 = vunpack.c.l.b16 %v236
  %v1594 = vunpack.c.l.b16 %v237
  %v1595 = vunpack.c.l.b16 %v238
  %v1596 = vunpack.c.l.b16 %v239
  %v1597 = vunpack.c.l.b16 %v240
  %v1598 = vunpack.c.l.b16 %v241
  %v1599 = vunpack.c.l.b16 %v242
  %v1600 = vunpack.c.l.b16 %v243
  %v1601 = vunpack.c.l.b16 %v244
  %v1602 = vunpack.c.l.b16 %v245
  %v1603 = vunpack.c.l.b16 %v246
  %v1604 = vunpack.c.l.b16 %v247
  %v1605 = vunpack.c.l.b16 %v248
  %v1606 = vunpack.c.l.b16 %v249
  %v1607 = vunpack.c.l.b16 %v250
  %v1608 = vunpack.c.l.b16 %v251
  %v1609 = vunpack.c.l.b16 %v252
  %v1610 = vunpack.c.l.b16 %v253
  %v1611 = vunpack.c.l.b16 %v254
  %v1612 = vunpack.c.l.b16 %v255
  %v1613 = vunpack.c.l.b16 %v256
  %v1614 = vunpack.c.l.b16 %v257
  %v1615 = vunpack.c.l.b16 %v258
  %v1616 = vunpack.c.l.b16 %v259
  %v1617 = vunpack.c.l.b16 %v260
  %v1618 = vunpack.c.l.b16 %v261
  %v1619 = vunpack.c.l.b16 %v262
  %v1620 = vunpack.c.l.b16 %v263
  %v1621 = vunpack.c.l.b16 %v264
  %v1622 = vunpack.c.l.b16 %v265
  %v1623 = vunpack.c.l.b16 %v266
  %v1624 = vunpack.c.l.b16 %v267
  %v1625 = vunpack.c.l.b16 %v268
  %v1626 = vunpack.c.l.b16 %v269
  %v1627 = vunpack.c.l.b16 %v270
  %v1628 = vunpack.c.l.b16 %v271
  %v1629 = vunpack.c.l.b16 %v272
  %v1630 = vunpack.c.l.b16 %v273
  %v1631 = vunpack.c.l.b16 %v274
  %v1632 = vunpack.c.l.b16 %v275
  %v1633 = vunpack.c.l.b16 %v276
  %v1634 = vunpack.c.l.b16 %v277
  %v1635 = vunpack.c.l.b16 %v278
  %v1636 = vunpack.c.l.b16 %v279
  %v1637 = vunpack.c.l.b16 %v280
  %v1638 = vunpack.c.l.b16 %v281
  %v1639 = vunpack.c.l.b16 %v282
  %v1640 = vunpack.c.l.b16 %v283
  %v1641 = vunpack.c.l.b16 %v284
  %v1642 = vunpack.c.l.b16 %v285
  %v1643 = vunpack.c.l.b16 %v286
  %v1644 = vunpack.c.l.b16 %v287
  %v1645 = vunpack.c.l.b16 %v288
  %v1646 = vunpack.c.l.b16 %v289
  %v1647 = vunpack.c.l.b16 %v290
  %v1648 = vunpack.c.l.b16 %v291
  %v1649 = vunpack.c.l.b16 %v292
  %v1650 = vunpack.c.l.b16 %v293
  %v1651 = vunpack.c.l.b16 %v294
  %v1652 = vunpack.c.l.b16 %v295
  %v1653 = vunpack.c.l.b16 %v296
  %v1654 = vunpack.c.l.b16 %v297
  %v1655 = vunpack.c.l.b16 %v298
  %v1656 = vunpack.c.l.b16 %v299
  %v1657 = vunpack.c.l.b16 %v300
  %v1658 = vunpack.c.l.b16 %v301
  %v1659 = vunpack.c.l.b16 %v302
  %v1660 = vunpack.c.l.b16 %v303
  %v1661 = vunpack.c.l.b16 %v304
  %v1662 = vunpack.c.l.b16 %v305
  %v1663 = vunpack.c.l.b16 %v306
  %v1664 = vunpack.c.l.b16 %v307
  %v1665 = vunpack.c.l.b16 %v308
  %v1666 = vunpack.c.l.b16 %v309
  %v1667 = vunpack.c.l.b16 %v310
  %v1668 = vunpack.c.l.b16 %v311
  %v1669 = vunpack.c.l.b16 %v312
  %v1670 = vunpack.c.l.b16 %v313
  %v1671 = vunpack.c.l.b16 %v314
  %v1672 = vunpack.c.l.b16 %v315
  %v1673 = vunpack.c.l.b16 %v316
  %v1674 = vunpack.c.l.b16 %v317
  %v1675 = vunpack.c.l.b16 %v318
  %v1676 = vunpack.c.l.b16 %v319
  %v1677 = vunpack.c.l.b16 %v320
  %v1678 = vunpack.c.l.b16 %v321
  %v1679 = vunpack.c.l.b16 %v322
  %v1680 = vunpack.c.l.b16 %v323
  %v1681 = vunpack.c.l.b16 %v324
  %v1682 = vunpack.c.l.b16 %v325
  %v1683 = vunpack.c.l.b16 %v326
  %v1684 = vunpack.c.l.b16 %v327
  %v1685 = vunpack.c.l.b16 %v328
  %v1686 = vunpack.c.l.b16 %v329
  %v1687 = vunpack.c.l.b16 %v330
  %v1688 = vunpack.c.l.b16 %v331
  %v1689 = vunpack.c.l.b16 %v332
  %v1690 = vunpack.c.l.b16 %v333
  %v1691 = vunpack.c.l.b16 %v334
  %v1692 = vunpack.c.l.b16 %v335
  %v1693 = vunpack.c.l.b16 %v336
  %v1694 = vunpack.c.l.b16 %v337
  %v1695 = vunpack.c.l.b16 %v338
  %v1696 = vunpack.c.l.b16 %v339
  %v1697 = vunpack.c.l.b16 %v340
  %v1698 = vunpack.c.l.b16 %v341
  %v1699 = vunpack.c.l.b16 %v342
  %v1700 = vunpack.c.l.b16 %v343
  %v1701 = vunpack.c.l.b16 %v344
  %v1702 = vunpack.c.l.b16 %v345
  %v1703 = vunpack.c.l.b16 %v346
  %v1704 = vunpack.c.l.b16 %v347
  %v1705 = vunpack.c.l.b16 %v348
  %v1706 = vunpack.c.l.b16 %v349
  %v1707 = vunpack.c.l.b16 %v350
  %v1708 = vunpack.c.l.b16 %v351
  %v1709 = vunpack.c.l.b16 %v352
  %v1710 = vunpack.c.l.b16 %v353
  %v1711 = vunpack.c.l.b16 %v354
  %v1712 = vunpack.c.l.b16 %v355
  %v1713 = vunpack.c.l.b16 %v356
  %v1714 = vunpack.c.l.b16 %v357
  %v1715 = vunpack.c.l.b16 %v358
  %v1716 = vunpack.c.l.b16 %v359
  %v1717 = vunpack.c.l.b16 %v360
  %v1718 = vunpack.c.l.b16 %v361
  %v1719 = vunpack.c.l.b16 %v362
  %v1720 = vunpack.c.l.b16 %v363
  %v1721 = vunpack.c.l.b16 %v364
  %v1722 = vunpack.c.l.b16 %v365
  %v1723 = vunpack.c.l.b16 %v366
  %v1724 = vunpack.c.l.b16 %v367
  %v1725 = vunpack.c.l.b16 %v368
  %v1726 = vunpack.c.l.b16 %v369
  %v1727 = vunpack.c.l.b16 %v370
  %v1728 = vunpack.c.l.b16 %v371
  %v1729 = vunpack.c.l.b16 %v372
  %v1730 = vunpack.c.l.b16 %v373
  %v1731 = vunpack.c.l.b16 %v374
  %v1732 = vunpack.c.l.b16 %v375
  %v1733 = vunpack.c.l.b16 %v376
  %v1734 = vunpack.c.l.b16 %v377
  %v1735 = vunpack.c.l.b16 %v378
  %v1736 = vunpack.c.l.b16 %v379
  %v1737 = vunpack.c.l.b16 %v380
  %v1738 = vunpack.c.l.b16 %v381
  %v1739 = vunpack.c.l.b16 %v382
  %v1740 = vunpack.c.l.b16 %v383
  %v1741 = vunpack.c.l.b16 %v384
  %v1742 = vunpack.c.l.b16 %v385
  %v1743 = vunpack.c.l.b16 %v386
  %v1744 = vunpack.c.l.b16 %v387
  %v1745 = vunpack.c.l.b16 %v388
  %v1746 = vunpack.c.l.b16 %v389
  %v1747 = vunpack.c.l.b16 %v390
  %v1748 = vunpack.c.l.b16 %v391
  %v1749 = vunpack.c.l.b16 %v392
  %v1750 = vunpack.c.l.b16 %v393
  %v1751 = vunpack.c.l.b16 %v394
  %v1752 = vunpack.c.l.b16 %v395
  %v1753 = vunpack.c.l.b16 %v396
  %v1754 = vunpack.c.l.b16 %v397
  %v1755 = vunpack.c.l.b16 %v398
  %v1756 = vunpack.c.l.b16 %v399
  %v1757 = vunpack.c.l.b16 %v400
  %v1758 = vunpack.c.l.b16 %v401
  %v1759 = vunpack.c.l.b16 %v402
  %v1760 = vunpack.c.l.b16 %v403
  %v1761 = vunpack.c.l.b16 %v404
  %v1762 = vunpack.c.l.b16 %v405
  %v1763 = vunpack.c.l.b16 %v406
  %v1764 = vunpack.c.l.b16 %v407
  %v1765 = vunpack.c.l.b16 %v408
  %v1766 = vunpack.c.l.b16 %v409
  %v1767 = vunpack.c.l.b16 %v410
  %v1768 = vunpack.c.l.b16 %v411
  %v1769 = vunpack.c.l.b16 %v412
  %v1770 = vunpack.c.l.b16 %v413
  %v1771 = vunpack.c.l.b16 %v414
  %v1772 = vpack.c.b16 %v1373, %v1372
  %v1773 = vpack.c.b16 %v1375, %v1374
  %v1774 = vpack.c.b16 %v1377, %v1376
  %v1775 = vpack.c.b16 %v1379, %v1378
  %v1776 = vpack.c.b16 %v1381, %v1380
  %v1777 = vpack.c.b16 %v1383, %v1382
  %v1778 = vpack.c.b16 %v1385, %v1384
  %v1779 = vpack.c.b16 %v1387, %v1386
  %v1780 = vpack.c.b16 %v1389, %v1388
  %v1781 = vpack.c.b16 %v1391, %v1390
  %v1782 = vpack.c.b16 %v1393, %v1392
  %v1783 = vpack.c.b16 %v1395, %v1394
  %v1784 = vpack.c.b16 %v1397, %v1396
  %v1785 = vpack.c.b16 %v1399, %v1398
  %v1786 = vpack.c.b16 %v1401, %v1400
  %v1787 = vpack.c.b16 %v1403, %v1402
  %v1788 = vpack.c.b16 %v1405, %v1404
  %v1789 = vpack.c.b16 %v1407, %v1406
  %v1790 = vpack.c.b16 %v1409, %v1408
  %v1791 = vpack.c.b16 %v1411, %v1410
  %v1792 = vpack.c.b16 %v1413, %v1412
  %v1793 = vpack.c.b16 %v1415, %v1414
  %v1794 = vpack.c.b16 %v1417, %v1416
  %v1795 = vpack.c.b16 %v1419, %v1418
  %v1796 = vpack.c.b16 %v1421, %v1420
  %v1797 = vpack.c.b16 %v1423, %v1422
  %v1798 = vpack.c.b16 %v1425, %v1424
  %v1799 = vpack.c.b16 %v1427, %v1426
  %v1800 = vpack.c.b16 %v1429, %v1428
  %v1801 = vpack.c.b16 %v1431, %v1430
  %v1802 = vpack.c.b16 %v1433, %v1432
  %v1803 = vpack.c.b16 %v1435, %v1434
  %v1804 = vpack.c.b16 %v1437, %v1436
  %v1805 = vpack.c.b16 %v1439, %v1438
  %v1806 = vpack.c.b16 %v1441, %v1440
  %v1807 = vpack.c.b16 %v1443, %v1442
  %v1808 = vpack.c.b16 %v1445, %v1444
  %v1809 = vpack.c.b16 %v1447, %v1446
  %v1810 = vpack.c.b16 %v1449, %v1448
  %v1811 = vpack.c.b16 %v1451, %v1450
  %v1812 = vpack.c.b16 %v1453, %v1452
  %v1813 = vpack.c.b16 %v1455, %v1454
  %v1814 = vpack.c.b16 %v1457, %v1456
  %v1815 = vpack.c.b16 %v1459, %v1458
  %v1816 = vpack.c.b16 %v1461, %v1460
  %v1817 = vpack.c.b16 %v1463, %v1462
  %v1818 = vpack.c.b16 %v1465, %v1464
  %v1819 = vpack.c.b16 %v1467, %v1466
  %v1820 = vpack.c.b16 %v1469, %v1468
  %v1821 = vpack.c.b16 %v1471, %v1470
  %v1822 = vpack.c.b16 %v1473, %v1472
  %v1823 = vpack.c.b16 %v1475, %v1474
  %v1824 = vpack.c.b16 %v1477, %v1476
  %v1825 = vpack.c.b16 %v1479, %v1478
  %v1826 = vpack.c.b16 %v1481, %v1480
  %v1827 = vpack.c.b16 %v1483, %v1482
  %v1828 = vpack.c.b16 %v1485, %v1484
  %v1829 = vpack.c.b16 %v1487, %v1486
  %v1830 = vpack.c.b16 %v1489, %v1488
  %v1831 = vpack.c.b16 %v1491, %v1490
  %v1832 = vpack.c.b16 %v1493, %v1492
  %v1833 = vpack.c.b16 %v1495, %v1494
  %v1834 = vpack.c.b16 %v1497, %v1496
  %v1835 = vpack.c.b16 %v1499, %v1498
  %v1836 = vpack.c.b16 %v1501, %v1500
  %v1837 = vpack.c.b16 %v1503, %v1502
  %v1838 = vpack.c.b16 %v1505, %v1504
  %v1839 = vpack.c.b16 %v1507, %v1506
  %v1840 = vpack.c.b16 %v1509, %v1508
  %v1841 = vpack.c.b16 %v1511, %v1510
  %v1842 = vpack.c.b16 %v1513, %v1512
  %v1843 = vpack.c.b16 %v1515, %v1514
  %v1844 = vpack.c.b16 %v1517, %v1516
  %v1845 = vpack.c.b16 %v1519, %v1518
  %v1846 = vpack.c.b16 %v1521, %v1520
  %v1847 = vpack.c.b16 %v1523, %v1522
  %v1848 = vpack.c.b16 %v1525, %v1524
  %v1849 = vpack.c.b16 %v1527, %v1526
  %v1850 = vpack.c.b16 %v1529, %v1528
  %v1851 = vpack.c.b16 %v1531, %v1530
  %v1852 = vpack.c.b16 %v1533, %v1532
  %v1853 = vpack.c.b16 %v1535, %v1534
  %v1854 = vpack.c.b16 %v1537, %v1536
  %v1855 = vpack.c.b16 %v1539, %v1538
  %v1856 = vpack.c.b16 %v1541, %v1540
  %v1857 = vpack.c.b16 %v1543, %v1542
  %v1858 = vpack.c.b16 %v1545, %v1544
  %v1859 = vpack.c.b16 %v1547, %v1546
  %v1860 = vpack.c.b16 %v1549, %v1548
  %v1861 = vpack.c.b16 %v1551, %v1550
  %v1862 = vpack.c.b16 %v1553, %v1552
  %v1863 = vpack.c.b16 %v1555, %v1554
  %v1864 = vpack.c.b16 %v1557, %v1556
  %v1865 = vpack.c.b16 %v1559, %v1558
  %v1866 = vpack.c.b16 %v1561, %v1560
  %v1867 = vpack.c.b16 %v1563, %v1562
  %v1868 = vpack.c.b16 %v1565, %v1564
  %v1869 = vpack.c.b16 %v1567, %v1566
  %v1870 = vpack.c.b16 %v1569, %v1568
  %v1871 = vpack.c.b16 %v1571, %v1570
  %v1872 = vpack.c.b16 %v1573, %v1572
  %v1873 = vpack.c.b16 %v1575, %v1574
  %v1874 = vpack.c.b16 %v1577, %v1576
  %v1875 = vpack.c.b16 %v1579, %v1578
  %v1876 = vpack.c.b16 %v1581, %v1580
  %v1877 = vpack.c.b16 %v1583, %v1582
  %v1878 = vpack.c.b16 %v1585, %v1584
  %v1879 = vpack.c.b16 %v1587, %v1586
  %v1880 = vpack.c.b16 %v1589, %v1588
  %v1881 = vpack.c.b16 %v1591, %v1590
  %v1882 = vpack.c.b16 %v1593, %v1592
  %v1883 = vpack.c.b16 %v1595, %v1594
  %v1884 = vpack.c.b16 %v1597, %v1596
  %v1885 = vpack.c.b16 %v1599, %v1598
  %v1886 = vpack.c.b16 %v1601, %v1600
  %v1887 = vpack.c.b16 %v1603, %v1602
  %v1888 = vpack.c.b16 %v1605, %v1604
  %v1889 = vpack.c.b16 %v1607, %v1606
  %v1890 = vpack.c.b16 %v1609, %v1608
  %v1891 = vpack.c.b16 %v1611, %v1610
  %v1892 = vpack.c.b16 %v1613, %v1612
  %v1893 = vpack.c.b16 %v1615, %v1614
  %v1894 = vpack.c.b16 %v1617, %v1616
  %v1895 = vpack.c.b16 %v1619, %v1618
  %v1896 = vpack.c.b16 %v1621, %v1620
  %v1897 = vpack.c.b16 %v1623, %v1622
  %v1898 = vpack.c.b16 %v1625, %v1624
  %v1899 = vpack.c.b16 %v1627, %v1626
  %v1900 = vpack.c.b16 %v1629, %v1628
  %v1901 = vpack.c.b16 %v1631, %v1630
  %v1902 = vpack.c.b16 %v1633, %v1632
  %v1903 = vpack.c.b16 %v1635, %v1634
  %v1904 = vpack.c.b16 %v1637, %v1636
  %v1905 = vpack.c.b16 %v1639, %v1638
  %v1906 = vpack.c.b16 %v1641, %v1640
  %v1907 = vpack.c.b16 %v1643, %v1642
  %v1908 = vpack.c.b16 %v1645, %v1644
  %v1909 = vpack.c.b16 %v1647, %v1646
  %v1910 = vpack.c.b16 %v1649, %v1648
  %v1911 = vpack.c.b16 %v1651, %v1650
  %v1912 = vpack.c.b16 %v1653, %v1652
  %v1913 = vpack.c.b16 %v1655, %v1654
  %v1914 = vpack.c.b16 %v1657, %v1656
  %v1915 = vpack.c.b16 %v1659, %v1658
  %v1916 = vpack.c.b16 %v1661, %v1660
  %v1917 = vpack.c.b16 %v1663, %v1662
  %v1918 = vpack.c.b16 %v1665, %v1664
  %v1919 = vpack.c.b16 %v1667, %v1666
  %v1920 = vpack.c.b16 %v1669, %v1668
  %v1921 = vpack.c.b16 %v1671, %v1670
  %v1922 = vpack.c.b16 %v1673, %v1672
  %v1923 = vpack.c.b16 %v1675, %v1674
  %v1924 = vpack.c.b16 %v1677, %v1676
  %v1925 = vpack.c.b16 %v1679, %v1678
  %v1926 = vpack.c.b16 %v1681, %v1680
  %v1927 = vpack.c.b16 %v1683, %v1682
  %v1928 = vpack.c.b16 %v1685, %v1684
  %v1929 = vpack.c.b16 %v1687, %v1686
  %v1930 = vpack.c.b16 %v1689, %v1688
  %v1931 = vpack.c.b16 %v1691, %v1690
  %v1932 = vpack.c.b16 %v1693, %v1692
  %v1933 = vpack.c.b16 %v1695, %v1694
  %v1934 = vpack.c.b16 %v1697, %v1696
  %v1935 = vpack.c.b16 %v1699, %v1698
  %v1936 = vpack.c.b16 %v1701, %v1700
  %v1937 = vpack.c.b16 %v1703, %v1702
  %v1938 = vpack.c.b16 %v1705, %v1704
  %v1939 = vpack.c.b16 %v1707, %v1706
  %v1940 = vpack.c.b16 %v1709, %v1708
  %v1941 = vpack.c.b16 %v1711, %v1710
  %v1942 = vpack.c.b16 %v1713, %v1712
  %v1943 = vpack.c.b16 %v1715, %v1714
  %v1944 = vpack.c.b16 %v1717, %v1716
  %v1945 = vpack.c.b16 %v1719, %v1718
  %v1946 = vpack.c.b16 %v1721, %v1720
  %v1947 = vpack.c.b16 %v1723, %v1722
  %v1948 = vpack.c.b16 %v1725, %v1724
  %v1949 = vpack.c.b16 %v1727, %v1726
  %v1950 = vpack.c.b16 %v1729, %v1728
  %v1951 = vpack.c.b16 %v1731, %v1730
  %v1952 = vpack.c.b16 %v1733, %v1732
  %v1953 = vpack.c.b16 %v1735, %v1734
  %v1954 = vpack.c.b16 %v1737, %v1736
  %v1955 = vpack.c.b16 %v1739, %v1738
  %v1956 = vpack.c.b16 %v1741, %v1740
  %v1957 = vpack.c.b16 %v1743, %v1742
  %v1958 = vpack.c.b16 %v1745, %v1744
  %v1959 = vpack.c.b16 %v1747, %v1746
  %v1960 = vpack.c.b16 %v1749, %v1748
  %v1961 = vpack.c.b16 %v1751, %v1750
  %v1962 = vpack.c.b16 %v1753, %v1752
  %v1963 = vpack.c.b16 %v1755, %v1754
  %v1964 = vpack.c.b16 %v1757, %v1756
  %v1965 = vpack.c.b16 %v1759, %v1758
  %v1966 = vpack.c.b16 %v1761, %v1760
  %v1967 = vpack.c.b16 %v1763, %v1762
  %v1968 = vpack.c.b16 %v1765, %v1764
  %v1969 = vpack.c.b16 %v1767, %v1766
  %v1970 = vpack.c.b16 %v1769, %v1768
  %v1971 = vpack.c.b16 %v1771, %v1770
  %2172 = vmatprep.subr.bf16.mxu0 0
  %2173 = vmatpush1.bf16.msra.mxu0 %v1772
  %2174 = vmatprep.subr.bf16.mxu0 0
  %2175 = vmatpush1.bf16.msra.mxu0 %v1773
  %2176 = vmatprep.subr.bf16.mxu0 0
  %2177 = vmatpush1.bf16.msra.mxu0 %v1774
  %2178 = vmatprep.subr.bf16.mxu0 0
  %2179 = vmatpush1.bf16.msra.mxu0 %v1775
  %2180 = vmatprep.subr.bf16.mxu0 0
  %2181 = vmatpush1.bf16.msra.mxu0 %v1776
  %2182 = vmatprep.subr.bf16.mxu0 0
  %2183 = vmatpush1.bf16.msra.mxu0 %v1777
  %2184 = vmatprep.subr.bf16.mxu0 0
  %2185 = vmatpush1.bf16.msra.mxu0 %v1778
  %2186 = vmatprep.subr.bf16.mxu0 0
  %2187 = vmatpush1.bf16.msra.mxu0 %v1779
  %2188 = vmatprep.subr.bf16.mxu0 0
  %2189 = vmatpush1.bf16.msra.mxu0 %v1780
  %2190 = vmatprep.subr.bf16.mxu0 0
  %2191 = vmatpush1.bf16.msra.mxu0 %v1781
  %2192 = vmatprep.subr.bf16.mxu0 0
  %2193 = vmatpush1.bf16.msra.mxu0 %v1782
  %2194 = vmatprep.subr.bf16.mxu0 0
  %2195 = vmatpush1.bf16.msra.mxu0 %v1783
  %2196 = vmatprep.subr.bf16.mxu0 0
  %2197 = vmatpush1.bf16.msra.mxu0 %v1784
  %2198 = vmatprep.subr.bf16.mxu0 0
  %2199 = vmatpush1.bf16.msra.mxu0 %v1785
  %2200 = vmatprep.subr.bf16.mxu0 0
  %2201 = vmatpush1.bf16.msra.mxu0 %v1786
  %2202 = vmatprep.subr.bf16.mxu0 0
  %2203 = vmatpush1.bf16.msra.mxu0 %v1787
  %2204 = vmatprep.mubr.bf16.mxu0 %v773
  %2205 = vmatmul.mubr.bf16.gmra.mrb[0].mxu0 %v772
  %v2206 = vpop.f32.mrb[0].mxu0
  %v2207 = vadd.f32 0.0, %v2206
  %v2208 = vpop.f32.mrb[0].mxu0
  %v2209 = vpop.f32.mrb[0].mxu0
  %v2210 = vadd.f32 0.0, %v2209
  %v2211 = vpop.f32.mrb[0].mxu0
  %2212 = vmatprep.mubr.bf16.mxu0 %v798
  %2213 = vmatmul.mubr.bf16.gmra.mrb[0].mxu0 %v797
  %v2214 = vpop.f32.mrb[0].mxu0
  %v2215 = vadd.f32 0.0, %v2214
  %v2216 = vpop.f32.mrb[0].mxu0
  %v2217 = vpop.f32.mrb[0].mxu0
  %v2218 = vadd.f32 0.0, %v2217
  %v2219 = vpop.f32.mrb[0].mxu0
  %2220 = vmatprep.mubr.bf16.mxu0 %v823
  %2221 = vmatmul.mubr.bf16.gmra.mrb[0].mxu0 %v822
  %v2222 = vpop.f32.mrb[0].mxu0
  %v2223 = vadd.f32 0.0, %v2222
  %v2224 = vpop.f32.mrb[0].mxu0
  %v2225 = vpop.f32.mrb[0].mxu0
  %v2226 = vadd.f32 0.0, %v2225
  %v2227 = vpop.f32.mrb[0].mxu0
  %2228 = vmatprep.mubr.bf16.mxu0 %v848
  %2229 = vmatmul.mubr.bf16.gmra.mrb[0].mxu0 %v847
  %v2230 = vpop.f32.mrb[0].mxu0
  %v2231 = vadd.f32 0.0, %v2230
  %v2232 = vpop.f32.mrb[0].mxu0
  %v2233 = vpop.f32.mrb[0].mxu0
  %v2234 = vpop.f32.mrb[0].mxu0
  %2235 = vdwg.mxu0
  %2236 = vmatprep.subr.bf16.mxu0 0
  %2237 = vmatpush1.bf16.msra.mxu0 %v1788
  %2238 = vmatprep.subr.bf16.mxu0 0
  %2239 = vmatpush1.bf16.msra.mxu0 %v1789
  %2240 = vmatprep.subr.bf16.mxu0 0
  %2241 = vmatpush1.bf16.msra.mxu0 %v1790
  %2242 = vmatprep.subr.bf16.mxu0 0
  %2243 = vmatpush1.bf16.msra.mxu0 %v1791
  %2244 = vmatprep.subr.bf16.mxu0 0
  %2245 = vmatpush1.bf16.msra.mxu0 %v1792
  %2246 = vmatprep.subr.bf16.mxu0 0
  %2247 = vmatpush1.bf16.msra.mxu0 %v1793
  %2248 = vmatprep.subr.bf16.mxu0 0
  %2249 = vmatpush1.bf16.msra.mxu0 %v1794
  %2250 = vmatprep.subr.bf16.mxu0 0
  %2251 = vmatpush1.bf16.msra.mxu0 %v1795
  %2252 = vmatprep.subr.bf16.mxu0 0
  %2253 = vmatpush1.bf16.msra.mxu0 %v1796
  %2254 = vmatprep.subr.bf16.mxu0 0
  %2255 = vmatpush1.bf16.msra.mxu0 %v1797
  %2256 = vmatprep.subr.bf16.mxu0 0
  %2257 = vmatpush1.bf16.msra.mxu0 %v1798
  %2258 = vmatprep.subr.bf16.mxu0 0
  %2259 = vmatpush1.bf16.msra.mxu0 %v1799
  %2260 = vmatprep.subr.bf16.mxu0 0
  %2261 = vmatpush1.bf16.msra.mxu0 %v1800
  %2262 = vmatprep.subr.bf16.mxu0 0
  %2263 = vmatpush1.bf16.msra.mxu0 %v1801
  %2264 = vmatprep.subr.bf16.mxu0 0
  %2265 = vmatpush1.bf16.msra.mxu0 %v1802
  %2266 = vmatprep.subr.bf16.mxu0 0
  %2267 = vmatpush1.bf16.msra.mxu0 %v1803
  %2268 = vmatprep.mubr.bf16.mxu0 %v775
  %2269 = vmatmul.mubr.bf16.gmra.mrb[0].mxu0 %v774
  %v2270 = vpop.f32.mrb[0].mxu0
  %v2271 = vadd.f32 %v2207, %v2270
  %v2272 = vpop.f32.mrb[0].mxu0
  %v2273 = vpop.f32.mrb[0].mxu0
  %v2274 = vadd.f32 %v2210, %v2273
  %v2275 = vpop.f32.mrb[0].mxu0
  %2276 = vmatprep.mubr.bf16.mxu0 %v800
  %2277 = vmatmul.mubr.bf16.gmra.mrb[0].mxu0 %v799
  %v2278 = vpop.f32.mrb[0].mxu0
  %v2279 = vadd.f32 %v2215, %v2278
  %v2280 = vpop.f32.mrb[0].mxu0
  %v2281 = vpop.f32.mrb[0].mxu0
  %v2282 = vadd.f32 %v2218, %v2281
  %v2283 = vpop.f32.mrb[0].mxu0
  %2284 = vmatprep.mubr.bf16.mxu0 %v825
  %2285 = vmatmul.mubr.bf16.gmra.mrb[0].mxu0 %v824
  %v2286 = vpop.f32.mrb[0].mxu0
  %v2287 = vadd.f32 %v2223, %v2286
  %v2288 = vpop.f32.mrb[0].mxu0
  %v2289 = vpop.f32.mrb[0].mxu0
  %v2290 = vadd.f32 %v2226, %v2289
  %v2291 = vpop.f32.mrb[0].mxu0
  %2292 = vmatprep.mubr.bf16.mxu0 %v850
  %2293 = vmatmul.mubr.bf16.gmra.mrb[0].mxu0 %v849
  %v2294 = vpop.f32.mrb[0].mxu0
  %v2295 = vadd.f32 %v2231, %v2294
  %v2296 = vpop.f32.mrb[0].mxu0
  %v2297 = vpop.f32.mrb[0].mxu0
  %v2298 = vpop.f32.mrb[0].mxu0
  %2299 = vdwg.mxu0
  %2300 = vmatprep.subr.bf16.mxu0 0
  %2301 = vmatpush1.bf16.msra.mxu0 %v1804
  %2302 = vmatprep.subr.bf16.mxu0 0
  %2303 = vmatpush1.bf16.msra.mxu0 %v1805
  %2304 = vmatprep.subr.bf16.mxu0 0
  %2305 = vmatpush1.bf16.msra.mxu0 %v1806
  %2306 = vmatprep.subr.bf16.mxu0 0
  %2307 = vmatpush1.bf16.msra.mxu0 %v1807
  %2308 = vmatprep.subr.bf16.mxu0 0
  %2309 = vmatpush1.bf16.msra.mxu0 %v1808
  %2310 = vmatprep.subr.bf16.mxu0 0
  %2311 = vmatpush1.bf16.msra.mxu0 %v1809
  %2312 = vmatprep.subr.bf16.mxu0 0
  %2313 = vmatpush1.bf16.msra.mxu0 %v1810
  %2314 = vmatprep.subr.bf16.mxu0 0
  %2315 = vmatpush1.bf16.msra.mxu0 %v1811
  %2316 = vmatprep.subr.bf16.mxu0 0
  %2317 = vmatpush1.bf16.msra.mxu0 %v1812
  %2318 = vmatprep.subr.bf16.mxu0 0
  %2319 = vmatpush1.bf16.msra.mxu0 %v1813
  %2320 = vmatprep.subr.bf16.mxu0 0
  %2321 = vmatpush1.bf16.msra.mxu0 %v1814
  %2322 = vmatprep.subr.bf16.mxu0 0
  %2323 = vmatpush1.bf16.msra.mxu0 %v1815
  %2324 = vmatprep.subr.bf16.mxu0 0
  %2325 = vmatpush1.bf16.msra.mxu0 %v1816
  %2326 = vmatprep.subr.bf16.mxu0 0
  %2327 = vmatpush1.bf16.msra.mxu0 %v1817
  %2328 = vmatprep.subr.bf16.mxu0 0
  %2329 = vmatpush1.bf16.msra.mxu0 %v1818
  %2330 = vmatprep.subr.bf16.mxu0 0
  %2331 = vmatpush1.bf16.msra.mxu0 %v1819
  %2332 = vmatprep.mubr.bf16.mxu0 %v777
  %2333 = vmatmul.mubr.bf16.gmra.mrb[0].mxu0 %v776
  %v2334 = vpop.f32.mrb[0].mxu0
  %v2335 = vadd.f32 %v2271, %v2334
  %v2336 = vpop.f32.mrb[0].mxu0
  %v2337 = vpop.f32.mrb[0].mxu0
  %v2338 = vadd.f32 %v2274, %v2337
  %v2339 = vpop.f32.mrb[0].mxu0
  %2340 = vmatprep.mubr.bf16.mxu0 %v802
  %2341 = vmatmul.mubr.bf16.gmra.mrb[0].mxu0 %v801
  %v2342 = vpop.f32.mrb[0].mxu0
  %v2343 = vadd.f32 %v2279, %v2342
  %v2344 = vpop.f32.mrb[0].mxu0
  %v2345 = vpop.f32.mrb[0].mxu0
  %v2346 = vadd.f32 %v2282, %v2345
  %v2347 = vpop.f32.mrb[0].mxu0
  %2348 = vmatprep.mubr.bf16.mxu0 %v827
  %2349 = vmatmul.mubr.bf16.gmra.mrb[0].mxu0 %v826
  %v2350 = vpop.f32.mrb[0].mxu0
  %v2351 = vadd.f32 %v2287, %v2350
  %v2352 = vpop.f32.mrb[0].mxu0
  %v2353 = vpop.f32.mrb[0].mxu0
  %v2354 = vadd.f32 %v2290, %v2353
  %v2355 = vpop.f32.mrb[0].mxu0
  %2356 = vmatprep.mubr.bf16.mxu0 %v852
  %2357 = vmatmul.mubr.bf16.gmra.mrb[0].mxu0 %v851
  %v2358 = vpop.f32.mrb[0].mxu0
  %v2359 = vadd.f32 %v2295, %v2358
  %v2360 = vpop.f32.mrb[0].mxu0
  %v2361 = vpop.f32.mrb[0].mxu0
  %v2362 = vpop.f32.mrb[0].mxu0
  %2363 = vdwg.mxu0
  %2364 = vmatprep.subr.bf16.mxu0 0
  %2365 = vmatpush1.bf16.msra.mxu0 %v1820
  %2366 = vmatprep.subr.bf16.mxu0 0
  %2367 = vmatpush1.bf16.msra.mxu0 %v1821
  %2368 = vmatprep.subr.bf16.mxu0 0
  %2369 = vmatpush1.bf16.msra.mxu0 %v1822
  %2370 = vmatprep.subr.bf16.mxu0 0
  %2371 = vmatpush1.bf16.msra.mxu0 %v1823
  %2372 = vmatprep.subr.bf16.mxu0 0
  %2373 = vmatpush1.bf16.msra.mxu0 %v1824
  %2374 = vmatprep.subr.bf16.mxu0 0
  %2375 = vmatpush1.bf16.msra.mxu0 %v1825
  %2376 = vmatprep.subr.bf16.mxu0 0
  %2377 = vmatpush1.bf16.msra.mxu0 %v1826
  %2378 = vmatprep.subr.bf16.mxu0 0
  %2379 = vmatpush1.bf16.msra.mxu0 %v1827
  %2380 = vmatprep.subr.bf16.mxu0 0
  %2381 = vmatpush1.bf16.msra.mxu0 %v1828
  %2382 = vmatprep.subr.bf16.mxu0 0
  %2383 = vmatpush1.bf16.msra.mxu0 %v1829
  %2384 = vmatprep.subr.bf16.mxu0 0
  %2385 = vmatpush1.bf16.msra.mxu0 %v1830
  %2386 = vmatprep.subr.bf16.mxu0 0
  %2387 = vmatpush1.bf16.msra.mxu0 %v1831
  %2388 = vmatprep.subr.bf16.mxu0 0
  %2389 = vmatpush1.bf16.msra.mxu0 %v1832
  %2390 = vmatprep.subr.bf16.mxu0 0
  %2391 = vmatpush1.bf16.msra.mxu0 %v1833
  %2392 = vmatprep.subr.bf16.mxu0 0
  %2393 = vmatpush1.bf16.msra.mxu0 %v1834
  %2394 = vmatprep.subr.bf16.mxu0 0
  %2395 = vmatpush1.bf16.msra.mxu0 %v1835
  %2396 = vmatprep.mubr.bf16.mxu0 %v779
  %2397 = vmatmul.mubr.bf16.gmra.mrb[0].mxu0 %v778
  %v2398 = vpop.f32.mrb[0].mxu0
  %v2399 = vadd.f32 %v2335, %v2398
  %v2400 = vpop.f32.mrb[0].mxu0
  %v2401 = vpop.f32.mrb[0].mxu0
  %v2402 = vadd.f32 %v2338, %v2401
  %v2403 = vpop.f32.mrb[0].mxu0
  %2404 = vmatprep.mubr.bf16.mxu0 %v804
  %2405 = vmatmul.mubr.bf16.gmra.mrb[0].mxu0 %v803
  %v2406 = vpop.f32.mrb[0].mxu0
  %v2407 = vadd.f32 %v2343, %v2406
  %v2408 = vpop.f32.mrb[0].mxu0
  %v2409 = vpop.f32.mrb[0].mxu0
  %v2410 = vadd.f32 %v2346, %v2409
  %v2411 = vpop.f32.mrb[0].mxu0
  %2412 = vmatprep.mubr.bf16.mxu0 %v829
  %2413 = vmatmul.mubr.bf16.gmra.mrb[0].mxu0 %v828
  %v2414 = vpop.f32.mrb[0].mxu0
  %v2415 = vadd.f32 %v2351, %v2414
  %v2416 = vpop.f32.mrb[0].mxu0
  %v2417 = vpop.f32.mrb[0].mxu0
  %v2418 = vadd.f32 %v2354, %v2417
  %v2419 = vpop.f32.mrb[0].mxu0
  %2420 = vmatprep.mubr.bf16.mxu0 %v854
  %2421 = vmatmul.mubr.bf16.gmra.mrb[0].mxu0 %v853
  %v2422 = vpop.f32.mrb[0].mxu0
  %v2423 = vadd.f32 %v2359, %v2422
  %v2424 = vpop.f32.mrb[0].mxu0
  %v2425 = vpop.f32.mrb[0].mxu0
  %v2426 = vpop.f32.mrb[0].mxu0
  %2427 = vdwg.mxu0
  %2428 = vmatprep.subr.bf16.mxu0 0
  %2429 = vmatpush1.bf16.msra.mxu0 %v1836
  %2430 = vmatprep.subr.bf16.mxu0 0
  %2431 = vmatpush1.bf16.msra.mxu0 %v1837
  %2432 = vmatprep.subr.bf16.mxu0 0
  %2433 = vmatpush1.bf16.msra.mxu0 %v1838
  %2434 = vmatprep.subr.bf16.mxu0 0
  %2435 = vmatpush1.bf16.msra.mxu0 %v1839
  %2436 = vmatprep.subr.bf16.mxu0 0
  %2437 = vmatpush1.bf16.msra.mxu0 %v1840
  %2438 = vmatprep.subr.bf16.mxu0 0
  %2439 = vmatpush1.bf16.msra.mxu0 %v1841
  %2440 = vmatprep.subr.bf16.mxu0 0
  %2441 = vmatpush1.bf16.msra.mxu0 %v1842
  %2442 = vmatprep.subr.bf16.mxu0 0
  %2443 = vmatpush1.bf16.msra.mxu0 %v1843
  %2444 = vmatprep.subr.bf16.mxu0 0
  %2445 = vmatpush1.bf16.msra.mxu0 %v1844
  %2446 = vmatprep.subr.bf16.mxu0 0
  %2447 = vmatpush1.bf16.msra.mxu0 %v1845
  %2448 = vmatprep.subr.bf16.mxu0 0
  %2449 = vmatpush1.bf16.msra.mxu0 %v1846
  %2450 = vmatprep.subr.bf16.mxu0 0
  %2451 = vmatpush1.bf16.msra.mxu0 %v1847
  %2452 = vmatprep.subr.bf16.mxu0 0
  %2453 = vmatpush1.bf16.msra.mxu0 %v1848
  %2454 = vmatprep.subr.bf16.mxu0 0
  %2455 = vmatpush1.bf16.msra.mxu0 %v1849
  %2456 = vmatprep.subr.bf16.mxu0 0
  %2457 = vmatpush1.bf16.msra.mxu0 %v1850
  %2458 = vmatprep.subr.bf16.mxu0 0
  %2459 = vmatpush1.bf16.msra.mxu0 %v1851
  %2460 = vmatprep.mubr.bf16.mxu0 %v781
  %2461 = vmatmul.mubr.bf16.gmra.mrb[0].mxu0 %v780
  %v2462 = vpop.f32.mrb[0].mxu0
  %v2463 = vadd.f32 %v2399, %v2462
  %v2464 = vpop.f32.mrb[0].mxu0
  %v2465 = vpop.f32.mrb[0].mxu0
  %v2466 = vadd.f32 %v2402, %v2465
  %v2467 = vpop.f32.mrb[0].mxu0
  %2468 = vmatprep.mubr.bf16.mxu0 %v806
  %2469 = vmatmul.mubr.bf16.gmra.mrb[0].mxu0 %v805
  %v2470 = vpop.f32.mrb[0].mxu0
  %v2471 = vadd.f32 %v2407, %v2470
  %v2472 = vpop.f32.mrb[0].mxu0
  %v2473 = vpop.f32.mrb[0].mxu0
  %v2474 = vadd.f32 %v2410, %v2473
  %v2475 = vpop.f32.mrb[0].mxu0
  %2476 = vmatprep.mubr.bf16.mxu0 %v831
  %2477 = vmatmul.mubr.bf16.gmra.mrb[0].mxu0 %v830
  %v2478 = vpop.f32.mrb[0].mxu0
  %v2479 = vadd.f32 %v2415, %v2478
  %v2480 = vpop.f32.mrb[0].mxu0
  %v2481 = vpop.f32.mrb[0].mxu0
  %v2482 = vadd.f32 %v2418, %v2481
  %v2483 = vpop.f32.mrb[0].mxu0
  %2484 = vmatprep.mubr.bf16.mxu0 %v856
  %2485 = vmatmul.mubr.bf16.gmra.mrb[0].mxu0 %v855
  %v2486 = vpop.f32.mrb[0].mxu0
  %v2487 = vadd.f32 %v2423, %v2486
  %v2488 = vpop.f32.mrb[0].mxu0
  %v2489 = vpop.f32.mrb[0].mxu0
  %v2490 = vpop.f32.mrb[0].mxu0
  %2491 = vdwg.mxu0
  %2492 = vmatprep.subr.bf16.mxu0 0
  %2493 = vmatpush1.bf16.msra.mxu0 %v1852
  %2494 = vmatprep.subr.bf16.mxu0 0
  %2495 = vmatpush1.bf16.msra.mxu0 %v1853
  %2496 = vmatprep.subr.bf16.mxu0 0
  %2497 = vmatpush1.bf16.msra.mxu0 %v1854
  %2498 = vmatprep.subr.bf16.mxu0 0
  %2499 = vmatpush1.bf16.msra.mxu0 %v1855
  %2500 = vmatprep.subr.bf16.mxu0 0
  %2501 = vmatpush1.bf16.msra.mxu0 %v1856
  %2502 = vmatprep.subr.bf16.mxu0 0
  %2503 = vmatpush1.bf16.msra.mxu0 %v1857
  %2504 = vmatprep.subr.bf16.mxu0 0
  %2505 = vmatpush1.bf16.msra.mxu0 %v1858
  %2506 = vmatprep.subr.bf16.mxu0 0
  %2507 = vmatpush1.bf16.msra.mxu0 %v1859
  %2508 = vmatprep.subr.bf16.mxu0 0
  %2509 = vmatpush1.bf16.msra.mxu0 %v1860
  %2510 = vmatprep.subr.bf16.mxu0 0
  %2511 = vmatpush1.bf16.msra.mxu0 %v1861
  %2512 = vmatprep.subr.bf16.mxu0 0
  %2513 = vmatpush1.bf16.msra.mxu0 %v1862
  %2514 = vmatprep.subr.bf16.mxu0 0
  %2515 = vmatpush1.bf16.msra.mxu0 %v1863
  %2516 = vmatprep.subr.bf16.mxu0 0
  %2517 = vmatpush1.bf16.msra.mxu0 %v1864
  %2518 = vmatprep.subr.bf16.mxu0 0
  %2519 = vmatpush1.bf16.msra.mxu0 %v1865
  %2520 = vmatprep.subr.bf16.mxu0 0
  %2521 = vmatpush1.bf16.msra.mxu0 %v1866
  %2522 = vmatprep.subr.bf16.mxu0 0
  %2523 = vmatpush1.bf16.msra.mxu0 %v1867
  %2524 = vmatprep.mubr.bf16.mxu0 %v783
  %2525 = vmatmul.mubr.bf16.gmra.mrb[0].mxu0 %v782
  %v2526 = vpop.f32.mrb[0].mxu0
  %v2527 = vadd.f32 %v2463, %v2526
  %v2528 = vpop.f32.mrb[0].mxu0
  %v2529 = vpop.f32.mrb[0].mxu0
  %v2530 = vadd.f32 %v2466, %v2529
  %v2531 = vpop.f32.mrb[0].mxu0
  %2532 = vmatprep.mubr.bf16.mxu0 %v808
  %2533 = vmatmul.mubr.bf16.gmra.mrb[0].mxu0 %v807
  %v2534 = vpop.f32.mrb[0].mxu0
  %v2535 = vadd.f32 %v2471, %v2534
  %v2536 = vpop.f32.mrb[0].mxu0
  %v2537 = vpop.f32.mrb[0].mxu0
  %v2538 = vadd.f32 %v2474, %v2537
  %v2539 = vpop.f32.mrb[0].mxu0
  %2540 = vmatprep.mubr.bf16.mxu0 %v833
  %2541 = vmatmul.mubr.bf16.gmra.mrb[0].mxu0 %v832
  %v2542 = vpop.f32.mrb[0].mxu0
  %v2543 = vadd.f32 %v2479, %v2542
  %v2544 = vpop.f32.mrb[0].mxu0
  %v2545 = vpop.f32.mrb[0].mxu0
  %v2546 = vadd.f32 %v2482, %v2545
  %v2547 = vpop.f32.mrb[0].mxu0
  %2548 = vmatprep.mubr.bf16.mxu0 %v858
  %2549 = vmatmul.mubr.bf16.gmra.mrb[0].mxu0 %v857
  %v2550 = vpop.f32.mrb[0].mxu0
  %v2551 = vadd.f32 %v2487, %v2550
  %v2552 = vpop.f32.mrb[0].mxu0
  %v2553 = vpop.f32.mrb[0].mxu0
  %v2554 = vpop.f32.mrb[0].mxu0
  %2555 = vdwg.mxu0
  %2556 = vmatprep.subr.bf16.mxu0 0
  %2557 = vmatpush1.bf16.msra.mxu0 %v1868
  %2558 = vmatprep.subr.bf16.mxu0 0
  %2559 = vmatpush1.bf16.msra.mxu0 %v1869
  %2560 = vmatprep.subr.bf16.mxu0 0
  %2561 = vmatpush1.bf16.msra.mxu0 %v1870
  %2562 = vmatprep.subr.bf16.mxu0 0
  %2563 = vmatpush1.bf16.msra.mxu0 %v1871
  %2564 = vmatprep.subr.bf16.mxu0 0
  %2565 = vmatpush1.bf16.msra.mxu0 %v1872
  %2566 = vmatprep.subr.bf16.mxu0 0
  %2567 = vmatpush1.bf16.msra.mxu0 %v1873
  %2568 = vmatprep.subr.bf16.mxu0 0
  %2569 = vmatpush1.bf16.msra.mxu0 %v1874
  %2570 = vmatprep.subr.bf16.mxu0 0
  %2571 = vmatpush1.bf16.msra.mxu0 %v1875
  %2572 = vmatprep.subr.bf16.mxu0 0
  %2573 = vmatpush1.bf16.msra.mxu0 %v1876
  %2574 = vmatprep.subr.bf16.mxu0 0
  %2575 = vmatpush1.bf16.msra.mxu0 %v1877
  %2576 = vmatprep.subr.bf16.mxu0 0
  %2577 = vmatpush1.bf16.msra.mxu0 %v1878
  %2578 = vmatprep.subr.bf16.mxu0 0
  %2579 = vmatpush1.bf16.msra.mxu0 %v1879
  %2580 = vmatprep.subr.bf16.mxu0 0
  %2581 = vmatpush1.bf16.msra.mxu0 %v1880
  %2582 = vmatprep.subr.bf16.mxu0 0
  %2583 = vmatpush1.bf16.msra.mxu0 %v1881
  %2584 = vmatprep.subr.bf16.mxu0 0
  %2585 = vmatpush1.bf16.msra.mxu0 %v1882
  %2586 = vmatprep.subr.bf16.mxu0 0
  %2587 = vmatpush1.bf16.msra.mxu0 %v1883
  %2588 = vmatprep.mubr.bf16.mxu0 %v785
  %2589 = vmatmul.mubr.bf16.gmra.mrb[0].mxu0 %v784
  %v2590 = vpop.f32.mrb[0].mxu0
  %v2591 = vadd.f32 %v2527, %v2590
  %v2592 = vpop.f32.mrb[0].mxu0
  %v2593 = vpop.f32.mrb[0].mxu0
  %v2594 = vadd.f32 %v2530, %v2593
  %v2595 = vpop.f32.mrb[0].mxu0
  %2596 = vmatprep.mubr.bf16.mxu0 %v810
  %2597 = vmatmul.mubr.bf16.gmra.mrb[0].mxu0 %v809
  %v2598 = vpop.f32.mrb[0].mxu0
  %v2599 = vadd.f32 %v2535, %v2598
  %v2600 = vpop.f32.mrb[0].mxu0
  %v2601 = vpop.f32.mrb[0].mxu0
  %v2602 = vadd.f32 %v2538, %v2601
  %v2603 = vpop.f32.mrb[0].mxu0
  %2604 = vmatprep.mubr.bf16.mxu0 %v835
  %2605 = vmatmul.mubr.bf16.gmra.mrb[0].mxu0 %v834
  %v2606 = vpop.f32.mrb[0].mxu0
  %v2607 = vadd.f32 %v2543, %v2606
  %v2608 = vpop.f32.mrb[0].mxu0
  %v2609 = vpop.f32.mrb[0].mxu0
  %v2610 = vadd.f32 %v2546, %v2609
  %v2611 = vpop.f32.mrb[0].mxu0
  %2612 = vmatprep.mubr.bf16.mxu0 %v860
  %2613 = vmatmul.mubr.bf16.gmra.mrb[0].mxu0 %v859
  %v2614 = vpop.f32.mrb[0].mxu0
  %v2615 = vadd.f32 %v2551, %v2614
  %v2616 = vpop.f32.mrb[0].mxu0
  %v2617 = vpop.f32.mrb[0].mxu0
  %v2618 = vpop.f32.mrb[0].mxu0
  %2619 = vdwg.mxu0
  %2620 = vmatprep.subr.bf16.mxu0 0
  %2621 = vmatpush1.bf16.msra.mxu0 %v1884
  %2622 = vmatprep.subr.bf16.mxu0 0
  %2623 = vmatpush1.bf16.msra.mxu0 %v1885
  %2624 = vmatprep.subr.bf16.mxu0 0
  %2625 = vmatpush1.bf16.msra.mxu0 %v1886
  %2626 = vmatprep.subr.bf16.mxu0 0
  %2627 = vmatpush1.bf16.msra.mxu0 %v1887
  %2628 = vmatprep.subr.bf16.mxu0 0
  %2629 = vmatpush1.bf16.msra.mxu0 %v1888
  %2630 = vmatprep.subr.bf16.mxu0 0
  %2631 = vmatpush1.bf16.msra.mxu0 %v1889
  %2632 = vmatprep.subr.bf16.mxu0 0
  %2633 = vmatpush1.bf16.msra.mxu0 %v1890
  %2634 = vmatprep.subr.bf16.mxu0 0
  %2635 = vmatpush1.bf16.msra.mxu0 %v1891
  %2636 = vmatprep.subr.bf16.mxu0 0
  %2637 = vmatpush1.bf16.msra.mxu0 %v1892
  %2638 = vmatprep.subr.bf16.mxu0 0
  %2639 = vmatpush1.bf16.msra.mxu0 %v1893
  %2640 = vmatprep.subr.bf16.mxu0 0
  %2641 = vmatpush1.bf16.msra.mxu0 %v1894
  %2642 = vmatprep.subr.bf16.mxu0 0
  %2643 = vmatpush1.bf16.msra.mxu0 %v1895
  %2644 = vmatprep.subr.bf16.mxu0 0
  %2645 = vmatpush1.bf16.msra.mxu0 %v1896
  %2646 = vmatprep.subr.bf16.mxu0 0
  %2647 = vmatpush1.bf16.msra.mxu0 %v1897
  %2648 = vmatprep.subr.bf16.mxu0 0
  %2649 = vmatpush1.bf16.msra.mxu0 %v1898
  %2650 = vmatprep.subr.bf16.mxu0 0
  %2651 = vmatpush1.bf16.msra.mxu0 %v1899
  %2652 = vmatprep.mubr.bf16.mxu0 %v787
  %2653 = vmatmul.mubr.bf16.gmra.mrb[0].mxu0 %v786
  %v2654 = vpop.f32.mrb[0].mxu0
  %v2655 = vadd.f32 %v2591, %v2654
  %v2656 = vpop.f32.mrb[0].mxu0
  %v2657 = vpop.f32.mrb[0].mxu0
  %v2658 = vadd.f32 %v2594, %v2657
  %v2659 = vpop.f32.mrb[0].mxu0
  %2660 = vmatprep.mubr.bf16.mxu0 %v812
  %2661 = vmatmul.mubr.bf16.gmra.mrb[0].mxu0 %v811
  %v2662 = vpop.f32.mrb[0].mxu0
  %v2663 = vadd.f32 %v2599, %v2662
  %v2664 = vpop.f32.mrb[0].mxu0
  %v2665 = vpop.f32.mrb[0].mxu0
  %v2666 = vadd.f32 %v2602, %v2665
  %v2667 = vpop.f32.mrb[0].mxu0
  %2668 = vmatprep.mubr.bf16.mxu0 %v837
  %2669 = vmatmul.mubr.bf16.gmra.mrb[0].mxu0 %v836
  %v2670 = vpop.f32.mrb[0].mxu0
  %v2671 = vadd.f32 %v2607, %v2670
  %v2672 = vpop.f32.mrb[0].mxu0
  %v2673 = vpop.f32.mrb[0].mxu0
  %v2674 = vadd.f32 %v2610, %v2673
  %v2675 = vpop.f32.mrb[0].mxu0
  %2676 = vmatprep.mubr.bf16.mxu0 %v862
  %2677 = vmatmul.mubr.bf16.gmra.mrb[0].mxu0 %v861
  %v2678 = vpop.f32.mrb[0].mxu0
  %v2679 = vadd.f32 %v2615, %v2678
  %v2680 = vpop.f32.mrb[0].mxu0
  %v2681 = vpop.f32.mrb[0].mxu0
  %v2682 = vpop.f32.mrb[0].mxu0
  %2683 = vdwg.mxu0
  %2684 = vmatprep.subr.bf16.mxu0 0
  %2685 = vmatpush1.bf16.msra.mxu0 %v1900
  %2686 = vmatprep.subr.bf16.mxu0 0
  %2687 = vmatpush1.bf16.msra.mxu0 %v1901
  %2688 = vmatprep.subr.bf16.mxu0 0
  %2689 = vmatpush1.bf16.msra.mxu0 %v1902
  %2690 = vmatprep.subr.bf16.mxu0 0
  %2691 = vmatpush1.bf16.msra.mxu0 %v1903
  %2692 = vmatprep.subr.bf16.mxu0 0
  %2693 = vmatpush1.bf16.msra.mxu0 %v1904
  %2694 = vmatprep.subr.bf16.mxu0 0
  %2695 = vmatpush1.bf16.msra.mxu0 %v1905
  %2696 = vmatprep.subr.bf16.mxu0 0
  %2697 = vmatpush1.bf16.msra.mxu0 %v1906
  %2698 = vmatprep.subr.bf16.mxu0 0
  %2699 = vmatpush1.bf16.msra.mxu0 %v1907
  %2700 = vmatprep.subr.bf16.mxu0 0
  %2701 = vmatpush1.bf16.msra.mxu0 %v1908
  %2702 = vmatprep.subr.bf16.mxu0 0
  %2703 = vmatpush1.bf16.msra.mxu0 %v1909
  %2704 = vmatprep.subr.bf16.mxu0 0
  %2705 = vmatpush1.bf16.msra.mxu0 %v1910
  %2706 = vmatprep.subr.bf16.mxu0 0
  %2707 = vmatpush1.bf16.msra.mxu0 %v1911
  %2708 = vmatprep.subr.bf16.mxu0 0
  %2709 = vmatpush1.bf16.msra.mxu0 %v1912
  %2710 = vmatprep.subr.bf16.mxu0 0
  %2711 = vmatpush1.bf16.msra.mxu0 %v1913
  %2712 = vmatprep.subr.bf16.mxu0 0
  %2713 = vmatpush1.bf16.msra.mxu0 %v1914
  %2714 = vmatprep.subr.bf16.mxu0 0
  %2715 = vmatpush1.bf16.msra.mxu0 %v1915
  %2716 = vmatprep.mubr.bf16.mxu0 %v789
  %2717 = vmatmul.mubr.bf16.gmra.mrb[0].mxu0 %v788
  %v2718 = vpop.f32.mrb[0].mxu0
  %v2719 = vadd.f32 %v2655, %v2718
  %v2720 = vpop.f32.mrb[0].mxu0
  %v2721 = vpop.f32.mrb[0].mxu0
  %v2722 = vadd.f32 %v2658, %v2721
  %v2723 = vpop.f32.mrb[0].mxu0
  %2724 = vmatprep.mubr.bf16.mxu0 %v814
  %2725 = vmatmul.mubr.bf16.gmra.mrb[0].mxu0 %v813
  %v2726 = vpop.f32.mrb[0].mxu0
  %v2727 = vadd.f32 %v2663, %v2726
  %v2728 = vpop.f32.mrb[0].mxu0
  %v2729 = vpop.f32.mrb[0].mxu0
  %v2730 = vadd.f32 %v2666, %v2729
  %v2731 = vpop.f32.mrb[0].mxu0
  %2732 = vmatprep.mubr.bf16.mxu0 %v839
  %2733 = vmatmul.mubr.bf16.gmra.mrb[0].mxu0 %v838
  %v2734 = vpop.f32.mrb[0].mxu0
  %v2735 = vadd.f32 %v2671, %v2734
  %v2736 = vpop.f32.mrb[0].mxu0
  %v2737 = vpop.f32.mrb[0].mxu0
  %v2738 = vadd.f32 %v2674, %v2737
  %v2739 = vpop.f32.mrb[0].mxu0
  %2740 = vmatprep.mubr.bf16.mxu0 %v864
  %2741 = vmatmul.mubr.bf16.gmra.mrb[0].mxu0 %v863
  %v2742 = vpop.f32.mrb[0].mxu0
  %v2743 = vadd.f32 %v2679, %v2742
  %v2744 = vpop.f32.mrb[0].mxu0
  %v2745 = vpop.f32.mrb[0].mxu0
  %v2746 = vpop.f32.mrb[0].mxu0
  %2747 = vdwg.mxu0
  %2748 = vmatprep.subr.bf16.mxu0 0
  %2749 = vmatpush1.bf16.msra.mxu0 %v1916
  %2750 = vmatprep.subr.bf16.mxu0 0
  %2751 = vmatpush1.bf16.msra.mxu0 %v1917
  %2752 = vmatprep.subr.bf16.mxu0 0
  %2753 = vmatpush1.bf16.msra.mxu0 %v1918
  %2754 = vmatprep.subr.bf16.mxu0 0
  %2755 = vmatpush1.bf16.msra.mxu0 %v1919
  %2756 = vmatprep.subr.bf16.mxu0 0
  %2757 = vmatpush1.bf16.msra.mxu0 %v1920
  %2758 = vmatprep.subr.bf16.mxu0 0
  %2759 = vmatpush1.bf16.msra.mxu0 %v1921
  %2760 = vmatprep.subr.bf16.mxu0 0
  %2761 = vmatpush1.bf16.msra.mxu0 %v1922
  %2762 = vmatprep.subr.bf16.mxu0 0
  %2763 = vmatpush1.bf16.msra.mxu0 %v1923
  %2764 = vmatprep.subr.bf16.mxu0 0
  %2765 = vmatpush1.bf16.msra.mxu0 %v1924
  %2766 = vmatprep.subr.bf16.mxu0 0
  %2767 = vmatpush1.bf16.msra.mxu0 %v1925
  %2768 = vmatprep.subr.bf16.mxu0 0
  %2769 = vmatpush1.bf16.msra.mxu0 %v1926
  %2770 = vmatprep.subr.bf16.mxu0 0
  %2771 = vmatpush1.bf16.msra.mxu0 %v1927
  %2772 = vmatprep.subr.bf16.mxu0 0
  %2773 = vmatpush1.bf16.msra.mxu0 %v1928
  %2774 = vmatprep.subr.bf16.mxu0 0
  %2775 = vmatpush1.bf16.msra.mxu0 %v1929
  %2776 = vmatprep.subr.bf16.mxu0 0
  %2777 = vmatpush1.bf16.msra.mxu0 %v1930
  %2778 = vmatprep.subr.bf16.mxu0 0
  %2779 = vmatpush1.bf16.msra.mxu0 %v1931
  %2780 = vmatprep.mubr.bf16.mxu0 %v791
  %2781 = vmatmul.mubr.bf16.gmra.mrb[0].mxu0 %v790
  %v2782 = vpop.f32.mrb[0].mxu0
  %v2783 = vadd.f32 %v2719, %v2782
  %v2784 = vpop.f32.mrb[0].mxu0
  %v2785 = vpop.f32.mrb[0].mxu0
  %v2786 = vadd.f32 %v2722, %v2785
  %v2787 = vpop.f32.mrb[0].mxu0
  %2788 = vmatprep.mubr.bf16.mxu0 %v816
  %2789 = vmatmul.mubr.bf16.gmra.mrb[0].mxu0 %v815
  %v2790 = vpop.f32.mrb[0].mxu0
  %v2791 = vadd.f32 %v2727, %v2790
  %v2792 = vpop.f32.mrb[0].mxu0
  %v2793 = vpop.f32.mrb[0].mxu0
  %v2794 = vadd.f32 %v2730, %v2793
  %v2795 = vpop.f32.mrb[0].mxu0
  %2796 = vmatprep.mubr.bf16.mxu0 %v841
  %2797 = vmatmul.mubr.bf16.gmra.mrb[0].mxu0 %v840
  %v2798 = vpop.f32.mrb[0].mxu0
  %v2799 = vadd.f32 %v2735, %v2798
  %v2800 = vpop.f32.mrb[0].mxu0
  %v2801 = vpop.f32.mrb[0].mxu0
  %v2802 = vadd.f32 %v2738, %v2801
  %v2803 = vpop.f32.mrb[0].mxu0
  %2804 = vmatprep.mubr.bf16.mxu0 %v866
  %2805 = vmatmul.mubr.bf16.gmra.mrb[0].mxu0 %v865
  %v2806 = vpop.f32.mrb[0].mxu0
  %v2807 = vadd.f32 %v2743, %v2806
  %v2808 = vpop.f32.mrb[0].mxu0
  %v2809 = vpop.f32.mrb[0].mxu0
  %v2810 = vpop.f32.mrb[0].mxu0
  %2811 = vdwg.mxu0
  %2812 = vmatprep.subr.bf16.mxu0 0
  %2813 = vmatpush1.bf16.msra.mxu0 %v1932
  %2814 = vmatprep.subr.bf16.mxu0 0
  %2815 = vmatpush1.bf16.msra.mxu0 %v1933
  %2816 = vmatprep.subr.bf16.mxu0 0
  %2817 = vmatpush1.bf16.msra.mxu0 %v1934
  %2818 = vmatprep.subr.bf16.mxu0 0
  %2819 = vmatpush1.bf16.msra.mxu0 %v1935
  %2820 = vmatprep.subr.bf16.mxu0 0
  %2821 = vmatpush1.bf16.msra.mxu0 %v1936
  %2822 = vmatprep.subr.bf16.mxu0 0
  %2823 = vmatpush1.bf16.msra.mxu0 %v1937
  %2824 = vmatprep.subr.bf16.mxu0 0
  %2825 = vmatpush1.bf16.msra.mxu0 %v1938
  %2826 = vmatprep.subr.bf16.mxu0 0
  %2827 = vmatpush1.bf16.msra.mxu0 %v1939
  %2828 = vmatprep.subr.bf16.mxu0 0
  %2829 = vmatpush1.bf16.msra.mxu0 %v1940
  %2830 = vmatprep.subr.bf16.mxu0 0
  %2831 = vmatpush1.bf16.msra.mxu0 %v1941
  %2832 = vmatprep.subr.bf16.mxu0 0
  %2833 = vmatpush1.bf16.msra.mxu0 %v1942
  %2834 = vmatprep.subr.bf16.mxu0 0
  %2835 = vmatpush1.bf16.msra.mxu0 %v1943
  %2836 = vmatprep.subr.bf16.mxu0 0
  %2837 = vmatpush1.bf16.msra.mxu0 %v1944
  %2838 = vmatprep.subr.bf16.mxu0 0
  %2839 = vmatpush1.bf16.msra.mxu0 %v1945
  %2840 = vmatprep.subr.bf16.mxu0 0
  %2841 = vmatpush1.bf16.msra.mxu0 %v1946
  %2842 = vmatprep.subr.bf16.mxu0 0
  %2843 = vmatpush1.bf16.msra.mxu0 %v1947
  %2844 = vmatprep.mubr.bf16.mxu0 %v793
  %2845 = vmatmul.mubr.bf16.gmra.mrb[0].mxu0 %v792
  %v2846 = vpop.f32.mrb[0].mxu0
  %v2847 = vadd.f32 %v2783, %v2846
  %v2848 = vpop.f32.mrb[0].mxu0
  %v2849 = vpop.f32.mrb[0].mxu0
  %v2850 = vadd.f32 %v2786, %v2849
  %v2851 = vpop.f32.mrb[0].mxu0
  %2852 = vmatprep.mubr.bf16.mxu0 %v818
  %2853 = vmatmul.mubr.bf16.gmra.mrb[0].mxu0 %v817
  %v2854 = vpop.f32.mrb[0].mxu0
  %v2855 = vadd.f32 %v2791, %v2854
  %v2856 = vpop.f32.mrb[0].mxu0
  %v2857 = vpop.f32.mrb[0].mxu0
  %v2858 = vadd.f32 %v2794, %v2857
  %v2859 = vpop.f32.mrb[0].mxu0
  %2860 = vmatprep.mubr.bf16.mxu0 %v843
  %2861 = vmatmul.mubr.bf16.gmra.mrb[0].mxu0 %v842
  %v2862 = vpop.f32.mrb[0].mxu0
  %v2863 = vadd.f32 %v2799, %v2862
  %v2864 = vpop.f32.mrb[0].mxu0
  %v2865 = vpop.f32.mrb[0].mxu0
  %v2866 = vadd.f32 %v2802, %v2865
  %v2867 = vpop.f32.mrb[0].mxu0
  %2868 = vmatprep.mubr.bf16.mxu0 %v868
  %2869 = vmatmul.mubr.bf16.gmra.mrb[0].mxu0 %v867
  %v2870 = vpop.f32.mrb[0].mxu0
  %v2871 = vadd.f32 %v2807, %v2870
  %v2872 = vpop.f32.mrb[0].mxu0
  %v2873 = vpop.f32.mrb[0].mxu0
  %v2874 = vpop.f32.mrb[0].mxu0
  %2875 = vdwg.mxu0
  %2876 = vmatprep.subr.bf16.mxu0 0
  %2877 = vmatpush1.bf16.msra.mxu0 %v1948
  %2878 = vmatprep.subr.bf16.mxu0 0
  %2879 = vmatpush1.bf16.msra.mxu0 %v1949
  %2880 = vmatprep.subr.bf16.mxu0 0
  %2881 = vmatpush1.bf16.msra.mxu0 %v1950
  %2882 = vmatprep.subr.bf16.mxu0 0
  %2883 = vmatpush1.bf16.msra.mxu0 %v1951
  %2884 = vmatprep.subr.bf16.mxu0 0
  %2885 = vmatpush1.bf16.msra.mxu0 %v1952
  %2886 = vmatprep.subr.bf16.mxu0 0
  %2887 = vmatpush1.bf16.msra.mxu0 %v1953
  %2888 = vmatprep.subr.bf16.mxu0 0
  %2889 = vmatpush1.bf16.msra.mxu0 %v1954
  %2890 = vmatprep.subr.bf16.mxu0 0
  %2891 = vmatpush1.bf16.msra.mxu0 %v1955
  %2892 = vmatprep.subr.bf16.mxu0 0
  %2893 = vmatpush1.bf16.msra.mxu0 %v1956
  %2894 = vmatprep.subr.bf16.mxu0 0
  %2895 = vmatpush1.bf16.msra.mxu0 %v1957
  %2896 = vmatprep.subr.bf16.mxu0 0
  %2897 = vmatpush1.bf16.msra.mxu0 %v1958
  %2898 = vmatprep.subr.bf16.mxu0 0
  %2899 = vmatpush1.bf16.msra.mxu0 %v1959
  %2900 = vmatprep.subr.bf16.mxu0 0
  %2901 = vmatpush1.bf16.msra.mxu0 %v1960
  %2902 = vmatprep.subr.bf16.mxu0 0
  %2903 = vmatpush1.bf16.msra.mxu0 %v1961
  %2904 = vmatprep.subr.bf16.mxu0 0
  %2905 = vmatpush1.bf16.msra.mxu0 %v1962
  %2906 = vmatprep.subr.bf16.mxu0 0
  %2907 = vmatpush1.bf16.msra.mxu0 %v1963
  %2908 = vmatprep.mubr.bf16.mxu0 %v795
  %2909 = vmatmul.mubr.bf16.gmra.mrb[0].mxu0 %v794
  %v2910 = vpop.f32.mrb[0].mxu0
  %v2911 = vadd.f32 %v2847, %v2910
  %v2912 = vpop.f32.mrb[0].mxu0
  %v2913 = vpop.f32.mrb[0].mxu0
  %v2914 = vadd.f32 %v2850, %v2913
  %v2915 = vpop.f32.mrb[0].mxu0
  %2916 = vmatprep.mubr.bf16.mxu0 %v820
  %2917 = vmatmul.mubr.bf16.gmra.mrb[0].mxu0 %v819
  %v2918 = vpop.f32.mrb[0].mxu0
  %v2919 = vadd.f32 %v2855, %v2918
  %v2920 = vpop.f32.mrb[0].mxu0
  %v2921 = vpop.f32.mrb[0].mxu0
  %v2922 = vadd.f32 %v2858, %v2921
  %v2923 = vpop.f32.mrb[0].mxu0
  %2924 = vmatprep.mubr.bf16.mxu0 %v845
  %2925 = vmatmul.mubr.bf16.gmra.mrb[0].mxu0 %v844
  %v2926 = vpop.f32.mrb[0].mxu0
  %v2927 = vadd.f32 %v2863, %v2926
  %v2928 = vpop.f32.mrb[0].mxu0
  %v2929 = vpop.f32.mrb[0].mxu0
  %v2930 = vadd.f32 %v2866, %v2929
  %v2931 = vpop.f32.mrb[0].mxu0
  %2932 = vmatprep.mubr.bf16.mxu0 %v870
  %2933 = vmatmul.mubr.bf16.gmra.mrb[0].mxu0 %v869
  %v2934 = vpop.f32.mrb[0].mxu0
  %v2935 = vadd.f32 %v2871, %v2934
  %v2936 = vpop.f32.mrb[0].mxu0
  %v2937 = vpop.f32.mrb[0].mxu0
  %v2938 = vpop.f32.mrb[0].mxu0
  %2939 = vdwg.mxu0
  %2940 = vmatprep.subr.bf16.mxu0 0
  %2941 = vmatpush1.bf16.msra.mxu0 %v1964
  %2942 = vmatprep.subr.bf16.mxu0 0
  %2943 = vmatpush1.bf16.msra.mxu0 %v1965
  %2944 = vmatprep.subr.bf16.mxu0 0
  %2945 = vmatpush1.bf16.msra.mxu0 %v1966
  %2946 = vmatprep.subr.bf16.mxu0 0
  %2947 = vmatpush1.bf16.msra.mxu0 %v1967
  %2948 = vmatprep.subr.bf16.mxu0 0
  %2949 = vmatpush1.bf16.msra.mxu0 %v1968
  %2950 = vmatprep.subr.bf16.mxu0 0
  %2951 = vmatpush1.bf16.msra.mxu0 %v1969
  %2952 = vmatprep.subr.bf16.mxu0 0
  %2953 = vmatpush1.bf16.msra.mxu0 %v1970
  %2954 = vmatprep.subr.bf16.mxu0 0
  %2955 = vmatpush1.bf16.msra.mxu0 %v1971
  %2956 = vmatprep.subr.bf16.mxu0 0
  %2957 = vmatpush1.bf16.msra.mxu0 0
  %2958 = vmatprep.subr.bf16.mxu0 0
  %2959 = vmatpush1.bf16.msra.mxu0 0
  %2960 = vmatprep.subr.bf16.mxu0 0
  %2961 = vmatpush1.bf16.msra.mxu0 0
  %2962 = vmatprep.subr.bf16.mxu0 0
  %2963 = vmatpush1.bf16.msra.mxu0 0
  %2964 = vmatprep.subr.bf16.mxu0 0
  %2965 = vmatpush1.bf16.msra.mxu0 0
  %2966 = vmatprep.subr.bf16.mxu0 0
  %2967 = vmatpush1.bf16.msra.mxu0 0
  %2968 = vmatprep.subr.bf16.mxu0 0
  %2969 = vmatpush1.bf16.msra.mxu0 0
  %2970 = vmatprep.subr.bf16.mxu0 0
  %2971 = vmatpush1.bf16.msra.mxu0 0
  %2972 = vmatprep.mubr.bf16.mxu0 0
  %2973 = vmatmul.mubr.bf16.gmra.mrb[0].mxu0 %v796
  %v2974 = vpop.f32.mrb[0].mxu0
  %v2975 = vadd.f32 %v2911, %v2974
  %v2976 = vpop.f32.mrb[0].mxu0
  %v2977 = vpop.f32.mrb[0].mxu0
  %v2978 = vadd.f32 %v2914, %v2977
  %v2979 = vpop.f32.mrb[0].mxu0
  %2980 = vmatprep.mubr.bf16.mxu0 0
  %2981 = vmatmul.mubr.bf16.gmra.mrb[0].mxu0 %v821
  %v2982 = vpop.f32.mrb[0].mxu0
  %v2983 = vadd.f32 %v2919, %v2982
  %v2984 = vpop.f32.mrb[0].mxu0
  %v2985 = vpop.f32.mrb[0].mxu0
  %v2986 = vadd.f32 %v2922, %v2985
  %v2987 = vpop.f32.mrb[0].mxu0
  %2988 = vmatprep.mubr.bf16.mxu0 0
  %2989 = vmatmul.mubr.bf16.gmra.mrb[0].mxu0 %v846
  %v2990 = vpop.f32.mrb[0].mxu0
  %v2991 = vadd.f32 %v2927, %v2990
  %v2992 = vpop.f32.mrb[0].mxu0
  %v2993 = vpop.f32.mrb[0].mxu0
  %v2994 = vadd.f32 %v2930, %v2993
  %v2995 = vpop.f32.mrb[0].mxu0
  %2996 = vmatprep.mubr.bf16.mxu0 0
  %2997 = vmatmul.mubr.bf16.gmra.mrb[0].mxu0 %v871
  %v2998 = vpop.f32.mrb[0].mxu0
  %v2999 = vadd.f32 %v2935, %v2998
  %v3000 = vpop.f32.mrb[0].mxu0
  %v3001 = vpop.f32.mrb[0].mxu0
  %v3002 = vpop.f32.mrb[0].mxu0
  %3003 = vdwg.mxu0
  %s3004 = scalar_lea.vmem %s0, 700
  %v3005 = vld [vmem:[%s3004] sm:$0xff]
  %v3006 = vld [vmem:[%s3004 + $0x8] sm:$0xff]
  %v3007 = vld [vmem:[%s3004 + $0x10] sm:$0xff]
  %v3008 = vld [vmem:[%s3004 + $0x18] sm:$0xff]
  %v3009 = vld [vmem:[%s3004 + $0x20] sm:$0xff]
  %v3010 = vld [vmem:[%s3004 + $0x28] sm:$0xff]
  %v3011 = vld [vmem:[%s3004 + $0x30] sm:$0xff]
  %v3012 = vld [vmem:[%s3004 + $0x38] sm:$0xff]
  %v3013 = vld [vmem:[%s3004 + $0x40] sm:$0xff]
  %v3014 = vld [vmem:[%s3004 + $0x48] sm:$0xff]
  %v3015 = vld [vmem:[%s3004 + $0x50] sm:$0xff]
  %v3016 = vld [vmem:[%s3004 + $0x58] sm:$0xff]
  %v3017 = vld [vmem:[%s3004 + $0x60] sm:$0xf]
  %v3018 = vld [vmem:[%s3004 + $0x64] sm:$0xff]
  %v3019 = vld [vmem:[%s3004 + $0x6c] sm:$0xff]
  %v3020 = vld [vmem:[%s3004 + $0x74] sm:$0xff]
  %v3021 = vld [vmem:[%s3004 + $0x7c] sm:$0xff]
  %v3022 = vld [vmem:[%s3004 + $0x84] sm:$0xff]
  %v3023 = vld [vmem:[%s3004 + $0x8c] sm:$0xff]
  %v3024 = vld [vmem:[%s3004 + $0x94] sm:$0xff]
  %v3025 = vld [vmem:[%s3004 + $0x9c] sm:$0xff]
  %v3026 = vld [vmem:[%s3004 + $0xa4] sm:$0xff]
  %v3027 = vld [vmem:[%s3004 + $0xac] sm:$0xff]
  %v3028 = vld [vmem:[%s3004 + $0xb4] sm:$0xff]
  %v3029 = vld [vmem:[%s3004 + $0xbc] sm:$0xff]
  %v3030 = vld [vmem:[%s3004 + $0xc4] sm:$0xf]
  %v3031 = vld [vmem:[%s3004 + $0xc8] sm:$0xff]
  %v3032 = vld [vmem:[%s3004 + $0xd0] sm:$0xff]
  %v3033 = vld [vmem:[%s3004 + $0xd8] sm:$0xff]
  %v3034 = vld [vmem:[%s3004 + $0xe0] sm:$0xff]
  %v3035 = vld [vmem:[%s3004 + $0xe8] sm:$0xff]
  %v3036 = vld [vmem:[%s3004 + $0xf0] sm:$0xff]
  %v3037 = vld [vmem:[%s3004 + $0xf8] sm:$0xff]
  %v3038 = vld [vmem:[%s3004 + $0x100] sm:$0xff]
  %v3039 = vld [vmem:[%s3004 + $0x108] sm:$0xff]
  %v3040 = vld [vmem:[%s3004 + $0x110] sm:$0xff]
  %v3041 = vld [vmem:[%s3004 + $0x118] sm:$0xff]
  %v3042 = vld [vmem:[%s3004 + $0x120] sm:$0xff]
  %v3043 = vld [vmem:[%s3004 + $0x128] sm:$0xf]
  %v3044 = vld [vmem:[%s3004 + $0x12c] sm:$0xff]
  %v3045 = vld [vmem:[%s3004 + $0x134] sm:$0xff]
  %v3046 = vld [vmem:[%s3004 + $0x13c] sm:$0xff]
  %v3047 = vld [vmem:[%s3004 + $0x144] sm:$0xff]
  %v3048 = vld [vmem:[%s3004 + $0x14c] sm:$0xff]
  %v3049 = vld [vmem:[%s3004 + $0x154] sm:$0xff]
  %v3050 = vld [vmem:[%s3004 + $0x15c] sm:$0xff]
  %v3051 = vld [vmem:[%s3004 + $0x164] sm:$0xff]
  %v3052 = vld [vmem:[%s3004 + $0x16c] sm:$0xff]
  %v3053 = vld [vmem:[%s3004 + $0x174] sm:$0xff]
  %v3054 = vld [vmem:[%s3004 + $0x17c] sm:$0xff]
  %v3055 = vld [vmem:[%s3004 + $0x184] sm:$0xff]
  %v3056 = vld [vmem:[%s3004 + $0x18c] sm:$0xf]
  %v3057 = vld [vmem:[%s3004 + $0x190] sm:$0xff]
  %v3058 = vld [vmem:[%s3004 + $0x198] sm:$0xff]
  %v3059 = vld [vmem:[%s3004 + $0x1a0] sm:$0xff]
  %v3060 = vld [vmem:[%s3004 + $0x1a8] sm:$0xff]
  %v3061 = vld [vmem:[%s3004 + $0x1b0] sm:$0xff]
  %v3062 = vld [vmem:[%s3004 + $0x1b8] sm:$0xff]
  %v3063 = vld [vmem:[%s3004 + $0x1c0] sm:$0xff]
  %v3064 = vld [vmem:[%s3004 + $0x1c8] sm:$0xff]
  %v3065 = vld [vmem:[%s3004 + $0x1d0] sm:$0xff]
  %v3066 = vld [vmem:[%s3004 + $0x1d8] sm:$0xff]
  %v3067 = vld [vmem:[%s3004 + $0x1e0] sm:$0xff]
  %v3068 = vld [vmem:[%s3004 + $0x1e8] sm:$0xff]
  %v3069 = vld [vmem:[%s3004 + $0x1f0] sm:$0xf]
  %v3070 = vld [vmem:[%s3004 + $0x1f4] sm:$0xff]
  %v3071 = vld [vmem:[%s3004 + $0x1fc] sm:$0xff]
  %v3072 = vld [vmem:[%s3004 + $0x204] sm:$0xff]
  %v3073 = vld [vmem:[%s3004 + $0x20c] sm:$0xff]
  %v3074 = vld [vmem:[%s3004 + $0x214] sm:$0xff]
  %v3075 = vld [vmem:[%s3004 + $0x21c] sm:$0xff]
  %v3076 = vld [vmem:[%s3004 + $0x224] sm:$0xff]
  %v3077 = vld [vmem:[%s3004 + $0x22c] sm:$0xff]
  %v3078 = vld [vmem:[%s3004 + $0x234] sm:$0xff]
  %v3079 = vld [vmem:[%s3004 + $0x23c] sm:$0xff]
  %v3080 = vld [vmem:[%s3004 + $0x244] sm:$0xff]
  %v3081 = vld [vmem:[%s3004 + $0x24c] sm:$0xff]
  %v3082 = vld [vmem:[%s3004 + $0x254] sm:$0xf]
  %v3083 = vld [vmem:[%s3004 + $0x258] sm:$0x11]
  %v3084 = vld [vmem:[%s3004 + $0x260] sm:$0x11]
  %v3085 = vld [vmem:[%s3004 + $0x268] sm:$0x11]
  %v3086 = vld [vmem:[%s3004 + $0x270] sm:$0x11]
  %v3087 = vld [vmem:[%s3004 + $0x278] sm:$0x11]
  %v3088 = vld [vmem:[%s3004 + $0x280] sm:$0x11]
  %v3089 = vld [vmem:[%s3004 + $0x288] sm:$0x11]
  %v3090 = vld [vmem:[%s3004 + $0x290] sm:$0x11]
  %v3091 = vld [vmem:[%s3004 + $0x298] sm:$0x11]
  %v3092 = vld [vmem:[%s3004 + $0x2a0] sm:$0x11]
  %v3093 = vld [vmem:[%s3004 + $0x2a8] sm:$0x11]
  %v3094 = vld [vmem:[%s3004 + $0x2b0] sm:$0x11]
  %v3095 = vld [vmem:[%s3004 + $0x2b8] sm:$0x1]
  %v3187 = vunpack.c.l.b16 %v3005
  %v3188 = vunpack.c.h.b16 %v3005
  %v3189 = vunpack.c.l.b16 %v3006
  %v3190 = vunpack.c.h.b16 %v3006
  %v3191 = vunpack.c.l.b16 %v3007
  %v3192 = vunpack.c.h.b16 %v3007
  %v3193 = vunpack.c.l.b16 %v3008
  %v3194 = vunpack.c.h.b16 %v3008
  %v3195 = vunpack.c.l.b16 %v3009
  %v3196 = vunpack.c.h.b16 %v3009
  %v3197 = vunpack.c.l.b16 %v3010
  %v3198 = vunpack.c.h.b16 %v3010
  %v3199 = vunpack.c.l.b16 %v3011
  %v3200 = vunpack.c.h.b16 %v3011
  %v3201 = vunpack.c.l.b16 %v3012
  %v3202 = vunpack.c.h.b16 %v3012
  %v3203 = vunpack.c.l.b16 %v3013
  %v3204 = vunpack.c.h.b16 %v3013
  %v3205 = vunpack.c.l.b16 %v3014
  %v3206 = vunpack.c.h.b16 %v3014
  %v3207 = vunpack.c.l.b16 %v3015
  %v3208 = vunpack.c.h.b16 %v3015
  %v3209 = vunpack.c.l.b16 %v3016
  %v3210 = vunpack.c.h.b16 %v3016
  %v3211 = vunpack.c.l.b16 %v3017
  %v3212 = vunpack.c.l.b16 %v3018
  %v3213 = vunpack.c.h.b16 %v3018
  %v3214 = vunpack.c.l.b16 %v3019
  %v3215 = vunpack.c.h.b16 %v3019
  %v3216 = vunpack.c.l.b16 %v3020
  %v3217 = vunpack.c.h.b16 %v3020
  %v3218 = vunpack.c.l.b16 %v3021
  %v3219 = vunpack.c.h.b16 %v3021
  %v3220 = vunpack.c.l.b16 %v3022
  %v3221 = vunpack.c.h.b16 %v3022
  %v3222 = vunpack.c.l.b16 %v3023
  %v3223 = vunpack.c.h.b16 %v3023
  %v3224 = vunpack.c.l.b16 %v3024
  %v3225 = vunpack.c.h.b16 %v3024
  %v3226 = vunpack.c.l.b16 %v3025
  %v3227 = vunpack.c.h.b16 %v3025
  %v3228 = vunpack.c.l.b16 %v3026
  %v3229 = vunpack.c.h.b16 %v3026
  %v3230 = vunpack.c.l.b16 %v3027
  %v3231 = vunpack.c.h.b16 %v3027
  %v3232 = vunpack.c.l.b16 %v3028
  %v3233 = vunpack.c.h.b16 %v3028
  %v3234 = vunpack.c.l.b16 %v3029
  %v3235 = vunpack.c.h.b16 %v3029
  %v3236 = vunpack.c.l.b16 %v3030
  %v3237 = vunpack.c.l.b16 %v3031
  %v3238 = vunpack.c.h.b16 %v3031
  %v3239 = vunpack.c.l.b16 %v3032
  %v3240 = vunpack.c.h.b16 %v3032
  %v3241 = vunpack.c.l.b16 %v3033
  %v3242 = vunpack.c.h.b16 %v3033
  %v3243 = vunpack.c.l.b16 %v3034
  %v3244 = vunpack.c.h.b16 %v3034
  %v3245 = vunpack.c.l.b16 %v3035
  %v3246 = vunpack.c.h.b16 %v3035
  %v3247 = vunpack.c.l.b16 %v3036
  %v3248 = vunpack.c.h.b16 %v3036
  %v3249 = vunpack.c.l.b16 %v3037
  %v3250 = vunpack.c.h.b16 %v3037
  %v3251 = vunpack.c.l.b16 %v3038
  %v3252 = vunpack.c.h.b16 %v3038
  %v3253 = vunpack.c.l.b16 %v3039
  %v3254 = vunpack.c.h.b16 %v3039
  %v3255 = vunpack.c.l.b16 %v3040
  %v3256 = vunpack.c.h.b16 %v3040
  %v3257 = vunpack.c.l.b16 %v3041
  %v3258 = vunpack.c.h.b16 %v3041
  %v3259 = vunpack.c.l.b16 %v3042
  %v3260 = vunpack.c.h.b16 %v3042
  %v3261 = vunpack.c.l.b16 %v3043
  %v3262 = vunpack.c.l.b16 %v3044
  %v3263 = vunpack.c.h.b16 %v3044
  %v3264 = vunpack.c.l.b16 %v3045
  %v3265 = vunpack.c.h.b16 %v3045
  %v3266 = vunpack.c.l.b16 %v3046
  %v3267 = vunpack.c.h.b16 %v3046
  %v3268 = vunpack.c.l.b16 %v3047
  %v3269 = vunpack.c.h.b16 %v3047
  %v3270 = vunpack.c.l.b16 %v3048
  %v3271 = vunpack.c.h.b16 %v3048
  %v3272 = vunpack.c.l.b16 %v3049
  %v3273 = vunpack.c.h.b16 %v3049
  %v3274 = vunpack.c.l.b16 %v3050
  %v3275 = vunpack.c.h.b16 %v3050
  %v3276 = vunpack.c.l.b16 %v3051
  %v3277 = vunpack.c.h.b16 %v3051
  %v3278 = vunpack.c.l.b16 %v3052
  %v3279 = vunpack.c.h.b16 %v3052
  %v3280 = vunpack.c.l.b16 %v3053
  %v3281 = vunpack.c.h.b16 %v3053
  %v3282 = vunpack.c.l.b16 %v3054
  %v3283 = vunpack.c.h.b16 %v3054
  %v3284 = vunpack.c.l.b16 %v3055
  %v3285 = vunpack.c.h.b16 %v3055
  %v3286 = vunpack.c.l.b16 %v3056
  %v3287 = vunpack.c.l.b16 %v3057
  %v3288 = vunpack.c.h.b16 %v3057
  %v3289 = vunpack.c.l.b16 %v3058
  %v3290 = vunpack.c.h.b16 %v3058
  %v3291 = vunpack.c.l.b16 %v3059
  %v3292 = vunpack.c.h.b16 %v3059
  %v3293 = vunpack.c.l.b16 %v3060
  %v3294 = vunpack.c.h.b16 %v3060
  %v3295 = vunpack.c.l.b16 %v3061
  %v3296 = vunpack.c.h.b16 %v3061
  %v3297 = vunpack.c.l.b16 %v3062
  %v3298 = vunpack.c.h.b16 %v3062
  %v3299 = vunpack.c.l.b16 %v3063
  %v3300 = vunpack.c.h.b16 %v3063
  %v3301 = vunpack.c.l.b16 %v3064
  %v3302 = vunpack.c.h.b16 %v3064
  %v3303 = vunpack.c.l.b16 %v3065
  %v3304 = vunpack.c.h.b16 %v3065
  %v3305 = vunpack.c.l.b16 %v3066
  %v3306 = vunpack.c.h.b16 %v3066
  %v3307 = vunpack.c.l.b16 %v3067
  %v3308 = vunpack.c.h.b16 %v3067
  %v3309 = vunpack.c.l.b16 %v3068
  %v3310 = vunpack.c.h.b16 %v3068
  %v3311 = vunpack.c.l.b16 %v3069
  %v3312 = vunpack.c.l.b16 %v3070
  %v3313 = vunpack.c.h.b16 %v3070
  %v3314 = vunpack.c.l.b16 %v3071
  %v3315 = vunpack.c.h.b16 %v3071
  %v3316 = vunpack.c.l.b16 %v3072
  %v3317 = vunpack.c.h.b16 %v3072
  %v3318 = vunpack.c.l.b16 %v3073
  %v3319 = vunpack.c.h.b16 %v3073
  %v3320 = vunpack.c.l.b16 %v3074
  %v3321 = vunpack.c.h.b16 %v3074
  %v3322 = vunpack.c.l.b16 %v3075
  %v3323 = vunpack.c.h.b16 %v3075
  %v3324 = vunpack.c.l.b16 %v3076
  %v3325 = vunpack.c.h.b16 %v3076
  %v3326 = vunpack.c.l.b16 %v3077
  %v3327 = vunpack.c.h.b16 %v3077
  %v3328 = vunpack.c.l.b16 %v3078
  %v3329 = vunpack.c.h.b16 %v3078
  %v3330 = vunpack.c.l.b16 %v3079
  %v3331 = vunpack.c.h.b16 %v3079
  %v3332 = vunpack.c.l.b16 %v3080
  %v3333 = vunpack.c.h.b16 %v3080
  %v3334 = vunpack.c.l.b16 %v3081
  %v3335 = vunpack.c.h.b16 %v3081
  %v3336 = vunpack.c.l.b16 %v3082
  %v3337 = vunpack.c.l.b16 %v3083
  %v3338 = vunpack.c.h.b16 %v3083
  %v3339 = vunpack.c.l.b16 %v3084
  %v3340 = vunpack.c.h.b16 %v3084
  %v3341 = vunpack.c.l.b16 %v3085
  %v3342 = vunpack.c.h.b16 %v3085
  %v3343 = vunpack.c.l.b16 %v3086
  %v3344 = vunpack.c.h.b16 %v3086
  %v3345 = vunpack.c.l.b16 %v3087
  %v3346 = vunpack.c.h.b16 %v3087
  %v3347 = vunpack.c.l.b16 %v3088
  %v3348 = vunpack.c.h.b16 %v3088
  %v3349 = vunpack.c.l.b16 %v3089
  %v3350 = vunpack.c.h.b16 %v3089
  %v3351 = vunpack.c.l.b16 %v3090
  %v3352 = vunpack.c.h.b16 %v3090
  %v3353 = vunpack.c.l.b16 %v3091
  %v3354 = vunpack.c.h.b16 %v3091
  %v3355 = vunpack.c.l.b16 %v3092
  %v3356 = vunpack.c.h.b16 %v3092
  %v3357 = vunpack.c.l.b16 %v3093
  %v3358 = vunpack.c.h.b16 %v3093
  %v3359 = vunpack.c.l.b16 %v3094
  %v3360 = vunpack.c.h.b16 %v3094
  %v3361 = vunpack.c.l.b16 %v3095
  %v3362 = vpack.c.b16 %v3212, %v3187
  %v3363 = vpack.c.b16 %v3213, %v3188
  %v3364 = vpack.c.b16 %v3214, %v3189
  %v3365 = vpack.c.b16 %v3215, %v3190
  %v3366 = vpack.c.b16 %v3216, %v3191
  %v3367 = vpack.c.b16 %v3217, %v3192
  %v3368 = vpack.c.b16 %v3218, %v3193
  %v3369 = vpack.c.b16 %v3219, %v3194
  %v3370 = vpack.c.b16 %v3220, %v3195
  %v3371 = vpack.c.b16 %v3221, %v3196
  %v3372 = vpack.c.b16 %v3222, %v3197
  %v3373 = vpack.c.b16 %v3223, %v3198
  %v3374 = vpack.c.b16 %v3224, %v3199
  %v3375 = vpack.c.b16 %v3225, %v3200
  %v3376 = vpack.c.b16 %v3226, %v3201
  %v3377 = vpack.c.b16 %v3227, %v3202
  %v3378 = vpack.c.b16 %v3228, %v3203
  %v3379 = vpack.c.b16 %v3229, %v3204
  %v3380 = vpack.c.b16 %v3230, %v3205
  %v3381 = vpack.c.b16 %v3231, %v3206
  %v3382 = vpack.c.b16 %v3232, %v3207
  %v3383 = vpack.c.b16 %v3233, %v3208
  %v3384 = vpack.c.b16 %v3234, %v3209
  %v3385 = vpack.c.b16 %v3235, %v3210
  %v3386 = vpack.c.b16 %v3236, %v3211
  %v3387 = vpack.c.b16 %v3262, %v3237
  %v3388 = vpack.c.b16 %v3263, %v3238
  %v3389 = vpack.c.b16 %v3264, %v3239
  %v3390 = vpack.c.b16 %v3265, %v3240
  %v3391 = vpack.c.b16 %v3266, %v3241
  %v3392 = vpack.c.b16 %v3267, %v3242
  %v3393 = vpack.c.b16 %v3268, %v3243
  %v3394 = vpack.c.b16 %v3269, %v3244
  %v3395 = vpack.c.b16 %v3270, %v3245
  %v3396 = vpack.c.b16 %v3271, %v3246
  %v3397 = vpack.c.b16 %v3272, %v3247
  %v3398 = vpack.c.b16 %v3273, %v3248
  %v3399 = vpack.c.b16 %v3274, %v3249
  %v3400 = vpack.c.b16 %v3275, %v3250
  %v3401 = vpack.c.b16 %v3276, %v3251
  %v3402 = vpack.c.b16 %v3277, %v3252
  %v3403 = vpack.c.b16 %v3278, %v3253
  %v3404 = vpack.c.b16 %v3279, %v3254
  %v3405 = vpack.c.b16 %v3280, %v3255
  %v3406 = vpack.c.b16 %v3281, %v3256
  %v3407 = vpack.c.b16 %v3282, %v3257
  %v3408 = vpack.c.b16 %v3283, %v3258
  %v3409 = vpack.c.b16 %v3284, %v3259
  %v3410 = vpack.c.b16 %v3285, %v3260
  %v3411 = vpack.c.b16 %v3286, %v3261
  %v3412 = vpack.c.b16 %v3312, %v3287
  %v3413 = vpack.c.b16 %v3313, %v3288
  %v3414 = vpack.c.b16 %v3314, %v3289
  %v3415 = vpack.c.b16 %v3315, %v3290
  %v3416 = vpack.c.b16 %v3316, %v3291
  %v3417 = vpack.c.b16 %v3317, %v3292
  %v3418 = vpack.c.b16 %v3318, %v3293
  %v3419 = vpack.c.b16 %v3319, %v3294
  %v3420 = vpack.c.b16 %v3320, %v3295
  %v3421 = vpack.c.b16 %v3321, %v3296
  %v3422 = vpack.c.b16 %v3322, %v3297
  %v3423 = vpack.c.b16 %v3323, %v3298
  %v3424 = vpack.c.b16 %v3324, %v3299
  %v3425 = vpack.c.b16 %v3325, %v3300
  %v3426 = vpack.c.b16 %v3326, %v3301
  %v3427 = vpack.c.b16 %v3327, %v3302
  %v3428 = vpack.c.b16 %v3328, %v3303
  %v3429 = vpack.c.b16 %v3329, %v3304
  %v3430 = vpack.c.b16 %v3330, %v3305
  %v3431 = vpack.c.b16 %v3331, %v3306
  %v3432 = vpack.c.b16 %v3332, %v3307
  %v3433 = vpack.c.b16 %v3333, %v3308
  %v3434 = vpack.c.b16 %v3334, %v3309
  %v3435 = vpack.c.b16 %v3335, %v3310
  %v3436 = vpack.c.b16 %v3336, %v3311
  %v3437 = vpack.c.b16 %v3337, %v3337
  %v3438 = vpack.c.b16 %v3338, %v3338
  %v3439 = vpack.c.b16 %v3339, %v3339
  %v3440 = vpack.c.b16 %v3340, %v3340
  %v3441 = vpack.c.b16 %v3341, %v3341
  %v3442 = vpack.c.b16 %v3342, %v3342
  %v3443 = vpack.c.b16 %v3343, %v3343
  %v3444 = vpack.c.b16 %v3344, %v3344
  %v3445 = vpack.c.b16 %v3345, %v3345
  %v3446 = vpack.c.b16 %v3346, %v3346
  %v3447 = vpack.c.b16 %v3347, %v3347
  %v3448 = vpack.c.b16 %v3348, %v3348
  %v3449 = vpack.c.b16 %v3349, %v3349
  %v3450 = vpack.c.b16 %v3350, %v3350
  %v3451 = vpack.c.b16 %v3351, %v3351
  %v3452 = vpack.c.b16 %v3352, %v3352
  %v3453 = vpack.c.b16 %v3353, %v3353
  %v3454 = vpack.c.b16 %v3354, %v3354
  %v3455 = vpack.c.b16 %v3355, %v3355
  %v3456 = vpack.c.b16 %v3356, %v3356
  %v3457 = vpack.c.b16 %v3357, %v3357
  %v3458 = vpack.c.b16 %v3358, %v3358
  %v3459 = vpack.c.b16 %v3359, %v3359
  %v3460 = vpack.c.b16 %v3360, %v3360
  %v3461 = vpack.c.b16 %v3361, %v3361
  %3562 = vmatprep.subr.bf16.mxu0 0
  %3563 = vmatpush1.bf16.msra.mxu0 %v1772
  %3564 = vmatprep.subr.bf16.mxu0 0
  %3565 = vmatpush1.bf16.msra.mxu0 %v1773
  %3566 = vmatprep.subr.bf16.mxu0 0
  %3567 = vmatpush1.bf16.msra.mxu0 %v1774
  %3568 = vmatprep.subr.bf16.mxu0 0
  %3569 = vmatpush1.bf16.msra.mxu0 %v1775
  %3570 = vmatprep.subr.bf16.mxu0 0
  %3571 = vmatpush1.bf16.msra.mxu0 %v1776
  %3572 = vmatprep.subr.bf16.mxu0 0
  %3573 = vmatpush1.bf16.msra.mxu0 %v1777
  %3574 = vmatprep.subr.bf16.mxu0 0
  %3575 = vmatpush1.bf16.msra.mxu0 %v1778
  %3576 = vmatprep.subr.bf16.mxu0 0
  %3577 = vmatpush1.bf16.msra.mxu0 %v1779
  %3578 = vmatprep.subr.bf16.mxu0 0
  %3579 = vmatpush1.bf16.msra.mxu0 %v1780
  %3580 = vmatprep.subr.bf16.mxu0 0
  %3581 = vmatpush1.bf16.msra.mxu0 %v1781
  %3582 = vmatprep.subr.bf16.mxu0 0
  %3583 = vmatpush1.bf16.msra.mxu0 %v1782
  %3584 = vmatprep.subr.bf16.mxu0 0
  %3585 = vmatpush1.bf16.msra.mxu0 %v1783
  %3586 = vmatprep.subr.bf16.mxu0 0
  %3587 = vmatpush1.bf16.msra.mxu0 %v1784
  %3588 = vmatprep.subr.bf16.mxu0 0
  %3589 = vmatpush1.bf16.msra.mxu0 %v1785
  %3590 = vmatprep.subr.bf16.mxu0 0
  %3591 = vmatpush1.bf16.msra.mxu0 %v1786
  %3592 = vmatprep.subr.bf16.mxu0 0
  %3593 = vmatpush1.bf16.msra.mxu0 %v1787
  %3594 = vmatprep.mubr.bf16.mxu0 %v3363
  %3595 = vmatmul.mubr.bf16.gmra.mrb[0].mxu0 %v3362
  %v3596 = vpop.f32.mrb[0].mxu0
  %v3597 = vadd.f32 0.0, %v3596
  %v3598 = vpop.f32.mrb[0].mxu0
  %v3599 = vpop.f32.mrb[0].mxu0
  %v3600 = vadd.f32 0.0, %v3599
  %v3601 = vpop.f32.mrb[0].mxu0
  %3602 = vmatprep.mubr.bf16.mxu0 %v3388
  %3603 = vmatmul.mubr.bf16.gmra.mrb[0].mxu0 %v3387
  %v3604 = vpop.f32.mrb[0].mxu0
  %v3605 = vadd.f32 0.0, %v3604
  %v3606 = vpop.f32.mrb[0].mxu0
  %v3607 = vpop.f32.mrb[0].mxu0
  %v3608 = vadd.f32 0.0, %v3607
  %v3609 = vpop.f32.mrb[0].mxu0
  %3610 = vmatprep.mubr.bf16.mxu0 %v3413
  %3611 = vmatmul.mubr.bf16.gmra.mrb[0].mxu0 %v3412
  %v3612 = vpop.f32.mrb[0].mxu0
  %v3613 = vadd.f32 0.0, %v3612
  %v3614 = vpop.f32.mrb[0].mxu0
  %v3615 = vpop.f32.mrb[0].mxu0
  %v3616 = vadd.f32 0.0, %v3615
  %v3617 = vpop.f32.mrb[0].mxu0
  %3618 = vmatprep.mubr.bf16.mxu0 %v3438
  %3619 = vmatmul.mubr.bf16.gmra.mrb[0].mxu0 %v3437
  %v3620 = vpop.f32.mrb[0].mxu0
  %v3621 = vadd.f32 0.0, %v3620
  %v3622 = vpop.f32.mrb[0].mxu0
  %v3623 = vpop.f32.mrb[0].mxu0
  %v3624 = vpop.f32.mrb[0].mxu0
  %3625 = vdwg.mxu0
  %3626 = vmatprep.subr.bf16.mxu0 0
  %3627 = vmatpush1.bf16.msra.mxu0 %v1788
  %3628 = vmatprep.subr.bf16.mxu0 0
  %3629 = vmatpush1.bf16.msra.mxu0 %v1789
  %3630 = vmatprep.subr.bf16.mxu0 0
  %3631 = vmatpush1.bf16.msra.mxu0 %v1790
  %3632 = vmatprep.subr.bf16.mxu0 0
  %3633 = vmatpush1.bf16.msra.mxu0 %v1791
  %3634 = vmatprep.subr.bf16.mxu0 0
  %3635 = vmatpush1.bf16.msra.mxu0 %v1792
  %3636 = vmatprep.subr.bf16.mxu0 0
  %3637 = vmatpush1.bf16.msra.mxu0 %v1793
  %3638 = vmatprep.subr.bf16.mxu0 0
  %3639 = vmatpush1.bf16.msra.mxu0 %v1794
  %3640 = vmatprep.subr.bf16.mxu0 0
  %3641 = vmatpush1.bf16.msra.mxu0 %v1795
  %3642 = vmatprep.subr.bf16.mxu0 0
  %3643 = vmatpush1.bf16.msra.mxu0 %v1796
  %3644 = vmatprep.subr.bf16.mxu0 0
  %3645 = vmatpush1.bf16.msra.mxu0 %v1797
  %3646 = vmatprep.subr.bf16.mxu0 0
  %3647 = vmatpush1.bf16.msra.mxu0 %v1798
  %3648 = vmatprep.subr.bf16.mxu0 0
  %3649 = vmatpush1.bf16.msra.mxu0 %v1799
  %3650 = vmatprep.subr.bf16.mxu0 0
  %3651 = vmatpush1.bf16.msra.mxu0 %v1800
  %3652 = vmatprep.subr.bf16.mxu0 0
  %3653 = vmatpush1.bf16.msra.mxu0 %v1801
  %3654 = vmatprep.subr.bf16.mxu0 0
  %3655 = vmatpush1.bf16.msra.mxu0 %v1802
  %3656 = vmatprep.subr.bf16.mxu0 0
  %3657 = vmatpush1.bf16.msra.mxu0 %v1803
  %3658 = vmatprep.mubr.bf16.mxu0 %v3365
  %3659 = vmatmul.mubr.bf16.gmra.mrb[0].mxu0 %v3364
  %v3660 = vpop.f32.mrb[0].mxu0
  %v3661 = vadd.f32 %v3597, %v3660
  %v3662 = vpop.f32.mrb[0].mxu0
  %v3663 = vpop.f32.mrb[0].mxu0
  %v3664 = vadd.f32 %v3600, %v3663
  %v3665 = vpop.f32.mrb[0].mxu0
  %3666 = vmatprep.mubr.bf16.mxu0 %v3390
  %3667 = vmatmul.mubr.bf16.gmra.mrb[0].mxu0 %v3389
  %v3668 = vpop.f32.mrb[0].mxu0
  %v3669 = vadd.f32 %v3605, %v3668
  %v3670 = vpop.f32.mrb[0].mxu0
  %v3671 = vpop.f32.mrb[0].mxu0
  %v3672 = vadd.f32 %v3608, %v3671
  %v3673 = vpop.f32.mrb[0].mxu0
  %3674 = vmatprep.mubr.bf16.mxu0 %v3415
  %3675 = vmatmul.mubr.bf16.gmra.mrb[0].mxu0 %v3414
  %v3676 = vpop.f32.mrb[0].mxu0
  %v3677 = vadd.f32 %v3613, %v3676
  %v3678 = vpop.f32.mrb[0].mxu0
  %v3679 = vpop.f32.mrb[0].mxu0
  %v3680 = vadd.f32 %v3616, %v3679
  %v3681 = vpop.f32.mrb[0].mxu0
  %3682 = vmatprep.mubr.bf16.mxu0 %v3440
  %3683 = vmatmul.mubr.bf16.gmra.mrb[0].mxu0 %v3439
  %v3684 = vpop.f32.mrb[0].mxu0
  %v3685 = vadd.f32 %v3621, %v3684
  %v3686 = vpop.f32.mrb[0].mxu0
  %v3687 = vpop.f32.mrb[0].mxu0
  %v3688 = vpop.f32.mrb[0].mxu0
  %3689 = vdwg.mxu0
  %3690 = vmatprep.subr.bf16.mxu0 0
  %3691 = vmatpush1.bf16.msra.mxu0 %v1804
  %3692 = vmatprep.subr.bf16.mxu0 0
  %3693 = vmatpush1.bf16.msra.mxu0 %v1805
  %3694 = vmatprep.subr.bf16.mxu0 0
  %3695 = vmatpush1.bf16.msra.mxu0 %v1806
  %3696 = vmatprep.subr.bf16.mxu0 0
  %3697 = vmatpush1.bf16.msra.mxu0 %v1807
  %3698 = vmatprep.subr.bf16.mxu0 0
  %3699 = vmatpush1.bf16.msra.mxu0 %v1808
  %3700 = vmatprep.subr.bf16.mxu0 0
  %3701 = vmatpush1.bf16.msra.mxu0 %v1809
  %3702 = vmatprep.subr.bf16.mxu0 0
  %3703 = vmatpush1.bf16.msra.mxu0 %v1810
  %3704 = vmatprep.subr.bf16.mxu0 0
  %3705 = vmatpush1.bf16.msra.mxu0 %v1811
  %3706 = vmatprep.subr.bf16.mxu0 0
  %3707 = vmatpush1.bf16.msra.mxu0 %v1812
  %3708 = vmatprep.subr.bf16.mxu0 0
  %3709 = vmatpush1.bf16.msra.mxu0 %v1813
  %3710 = vmatprep.subr.bf16.mxu0 0
  %3711 = vmatpush1.bf16.msra.mxu0 %v1814
  %3712 = vmatprep.subr.bf16.mxu0 0
  %3713 = vmatpush1.bf16.msra.mxu0 %v1815
  %3714 = vmatprep.subr.bf16.mxu0 0
  %3715 = vmatpush1.bf16.msra.mxu0 %v1816
  %3716 = vmatprep.subr.bf16.mxu0 0
  %3717 = vmatpush1.bf16.msra.mxu0 %v1817
  %3718 = vmatprep.subr.bf16.mxu0 0
  %3719 = vmatpush1.bf16.msra.mxu0 %v1818
  %3720 = vmatprep.subr.bf16.mxu0 0
  %3721 = vmatpush1.bf16.msra.mxu0 %v1819
  %3722 = vmatprep.mubr.bf16.mxu0 %v3367
  %3723 = vmatmul.mubr.bf16.gmra.mrb[0].mxu0 %v3366
  %v3724 = vpop.f32.mrb[0].mxu0
  %v3725 = vadd.f32 %v3661, %v3724
  %v3726 = vpop.f32.mrb[0].mxu0
  %v3727 = vpop.f32.mrb[0].mxu0
  %v3728 = vadd.f32 %v3664, %v3727
  %v3729 = vpop.f32.mrb[0].mxu0
  %3730 = vmatprep.mubr.bf16.mxu0 %v3392
  %3731 = vmatmul.mubr.bf16.gmra.mrb[0].mxu0 %v3391
  %v3732 = vpop.f32.mrb[0].mxu0
  %v3733 = vadd.f32 %v3669, %v3732
  %v3734 = vpop.f32.mrb[0].mxu0
  %v3735 = vpop.f32.mrb[0].mxu0
  %v3736 = vadd.f32 %v3672, %v3735
  %v3737 = vpop.f32.mrb[0].mxu0
  %3738 = vmatprep.mubr.bf16.mxu0 %v3417
  %3739 = vmatmul.mubr.bf16.gmra.mrb[0].mxu0 %v3416
  %v3740 = vpop.f32.mrb[0].mxu0
  %v3741 = vadd.f32 %v3677, %v3740
  %v3742 = vpop.f32.mrb[0].mxu0
  %v3743 = vpop.f32.mrb[0].mxu0
  %v3744 = vadd.f32 %v3680, %v3743
  %v3745 = vpop.f32.mrb[0].mxu0
  %3746 = vmatprep.mubr.bf16.mxu0 %v3442
  %3747 = vmatmul.mubr.bf16.gmra.mrb[0].mxu0 %v3441
  %v3748 = vpop.f32.mrb[0].mxu0
  %v3749 = vadd.f32 %v3685, %v3748
  %v3750 = vpop.f32.mrb[0].mxu0
  %v3751 = vpop.f32.mrb[0].mxu0
  %v3752 = vpop.f32.mrb[0].mxu0
  %3753 = vdwg.mxu0
  %3754 = vmatprep.subr.bf16.mxu0 0
  %3755 = vmatpush1.bf16.msra.mxu0 %v1820
  %3756 = vmatprep.subr.bf16.mxu0 0
  %3757 = vmatpush1.bf16.msra.mxu0 %v1821
  %3758 = vmatprep.subr.bf16.mxu0 0
  %3759 = vmatpush1.bf16.msra.mxu0 %v1822
  %3760 = vmatprep.subr.bf16.mxu0 0
  %3761 = vmatpush1.bf16.msra.mxu0 %v1823
  %3762 = vmatprep.subr.bf16.mxu0 0
  %3763 = vmatpush1.bf16.msra.mxu0 %v1824
  %3764 = vmatprep.subr.bf16.mxu0 0
  %3765 = vmatpush1.bf16.msra.mxu0 %v1825
  %3766 = vmatprep.subr.bf16.mxu0 0
  %3767 = vmatpush1.bf16.msra.mxu0 %v1826
  %3768 = vmatprep.subr.bf16.mxu0 0
  %3769 = vmatpush1.bf16.msra.mxu0 %v1827
  %3770 = vmatprep.subr.bf16.mxu0 0
  %3771 = vmatpush1.bf16.msra.mxu0 %v1828
  %3772 = vmatprep.subr.bf16.mxu0 0
  %3773 = vmatpush1.bf16.msra.mxu0 %v1829
  %3774 = vmatprep.subr.bf16.mxu0 0
  %3775 = vmatpush1.bf16.msra.mxu0 %v1830
  %3776 = vmatprep.subr.bf16.mxu0 0
  %3777 = vmatpush1.bf16.msra.mxu0 %v1831
  %3778 = vmatprep.subr.bf16.mxu0 0
  %3779 = vmatpush1.bf16.msra.mxu0 %v1832
  %3780 = vmatprep.subr.bf16.mxu0 0
  %3781 = vmatpush1.bf16.msra.mxu0 %v1833
  %3782 = vmatprep.subr.bf16.mxu0 0
  %3783 = vmatpush1.bf16.msra.mxu0 %v1834
  %3784 = vmatprep.subr.bf16.mxu0 0
  %3785 = vmatpush1.bf16.msra.mxu0 %v1835
  %3786 = vmatprep.mubr.bf16.mxu0 %v3369
  %3787 = vmatmul.mubr.bf16.gmra.mrb[0].mxu0 %v3368
  %v3788 = vpop.f32.mrb[0].mxu0
  %v3789 = vadd.f32 %v3725, %v3788
  %v3790 = vpop.f32.mrb[0].mxu0
  %v3791 = vpop.f32.mrb[0].mxu0
  %v3792 = vadd.f32 %v3728, %v3791
  %v3793 = vpop.f32.mrb[0].mxu0
  %3794 = vmatprep.mubr.bf16.mxu0 %v3394
  %3795 = vmatmul.mubr.bf16.gmra.mrb[0].mxu0 %v3393
  %v3796 = vpop.f32.mrb[0].mxu0
  %v3797 = vadd.f32 %v3733, %v3796
  %v3798 = vpop.f32.mrb[0].mxu0
  %v3799 = vpop.f32.mrb[0].mxu0
  %v3800 = vadd.f32 %v3736, %v3799
  %v3801 = vpop.f32.mrb[0].mxu0
  %3802 = vmatprep.mubr.bf16.mxu0 %v3419
  %3803 = vmatmul.mubr.bf16.gmra.mrb[0].mxu0 %v3418
  %v3804 = vpop.f32.mrb[0].mxu0
  %v3805 = vadd.f32 %v3741, %v3804
  %v3806 = vpop.f32.mrb[0].mxu0
  %v3807 = vpop.f32.mrb[0].mxu0
  %v3808 = vadd.f32 %v3744, %v3807
  %v3809 = vpop.f32.mrb[0].mxu0
  %3810 = vmatprep.mubr.bf16.mxu0 %v3444
  %3811 = vmatmul.mubr.bf16.gmra.mrb[0].mxu0 %v3443
  %v3812 = vpop.f32.mrb[0].mxu0
  %v3813 = vadd.f32 %v3749, %v3812
  %v3814 = vpop.f32.mrb[0].mxu0
  %v3815 = vpop.f32.mrb[0].mxu0
  %v3816 = vpop.f32.mrb[0].mxu0
  %3817 = vdwg.mxu0
  %3818 = vmatprep.subr.bf16.mxu0 0
  %3819 = vmatpush1.bf16.msra.mxu0 %v1836
  %3820 = vmatprep.subr.bf16.mxu0 0
  %3821 = vmatpush1.bf16.msra.mxu0 %v1837
  %3822 = vmatprep.subr.bf16.mxu0 0
  %3823 = vmatpush1.bf16.msra.mxu0 %v1838
  %3824 = vmatprep.subr.bf16.mxu0 0
  %3825 = vmatpush1.bf16.msra.mxu0 %v1839
  %3826 = vmatprep.subr.bf16.mxu0 0
  %3827 = vmatpush1.bf16.msra.mxu0 %v1840
  %3828 = vmatprep.subr.bf16.mxu0 0
  %3829 = vmatpush1.bf16.msra.mxu0 %v1841
  %3830 = vmatprep.subr.bf16.mxu0 0
  %3831 = vmatpush1.bf16.msra.mxu0 %v1842
  %3832 = vmatprep.subr.bf16.mxu0 0
  %3833 = vmatpush1.bf16.msra.mxu0 %v1843
  %3834 = vmatprep.subr.bf16.mxu0 0
  %3835 = vmatpush1.bf16.msra.mxu0 %v1844
  %3836 = vmatprep.subr.bf16.mxu0 0
  %3837 = vmatpush1.bf16.msra.mxu0 %v1845
  %3838 = vmatprep.subr.bf16.mxu0 0
  %3839 = vmatpush1.bf16.msra.mxu0 %v1846
  %3840 = vmatprep.subr.bf16.mxu0 0
  %3841 = vmatpush1.bf16.msra.mxu0 %v1847
  %3842 = vmatprep.subr.bf16.mxu0 0
  %3843 = vmatpush1.bf16.msra.mxu0 %v1848
  %3844 = vmatprep.subr.bf16.mxu0 0
  %3845 = vmatpush1.bf16.msra.mxu0 %v1849
  %3846 = vmatprep.subr.bf16.mxu0 0
  %3847 = vmatpush1.bf16.msra.mxu0 %v1850
  %3848 = vmatprep.subr.bf16.mxu0 0
  %3849 = vmatpush1.bf16.msra.mxu0 %v1851
  %3850 = vmatprep.mubr.bf16.mxu0 %v3371
  %3851 = vmatmul.mubr.bf16.gmra.mrb[0].mxu0 %v3370
  %v3852 = vpop.f32.mrb[0].mxu0
  %v3853 = vadd.f32 %v3789, %v3852
  %v3854 = vpop.f32.mrb[0].mxu0
  %v3855 = vpop.f32.mrb[0].mxu0
  %v3856 = vadd.f32 %v3792, %v3855
  %v3857 = vpop.f32.mrb[0].mxu0
  %3858 = vmatprep.mubr.bf16.mxu0 %v3396
  %3859 = vmatmul.mubr.bf16.gmra.mrb[0].mxu0 %v3395
  %v3860 = vpop.f32.mrb[0].mxu0
  %v3861 = vadd.f32 %v3797, %v3860
  %v3862 = vpop.f32.mrb[0].mxu0
  %v3863 = vpop.f32.mrb[0].mxu0
  %v3864 = vadd.f32 %v3800, %v3863
  %v3865 = vpop.f32.mrb[0].mxu0
  %3866 = vmatprep.mubr.bf16.mxu0 %v3421
  %3867 = vmatmul.mubr.bf16.gmra.mrb[0].mxu0 %v3420
  %v3868 = vpop.f32.mrb[0].mxu0
  %v3869 = vadd.f32 %v3805, %v3868
  %v3870 = vpop.f32.mrb[0].mxu0
  %v3871 = vpop.f32.mrb[0].mxu0
  %v3872 = vadd.f32 %v3808, %v3871
  %v3873 = vpop.f32.mrb[0].mxu0
  %3874 = vmatprep.mubr.bf16.mxu0 %v3446
  %3875 = vmatmul.mubr.bf16.gmra.mrb[0].mxu0 %v3445
  %v3876 = vpop.f32.mrb[0].mxu0
  %v3877 = vadd.f32 %v3813, %v3876
  %v3878 = vpop.f32.mrb[0].mxu0
  %v3879 = vpop.f32.mrb[0].mxu0
  %v3880 = vpop.f32.mrb[0].mxu0
  %3881 = vdwg.mxu0
  %3882 = vmatprep.subr.bf16.mxu0 0
  %3883 = vmatpush1.bf16.msra.mxu0 %v1852
  %3884 = vmatprep.subr.bf16.mxu0 0
  %3885 = vmatpush1.bf16.msra.mxu0 %v1853
  %3886 = vmatprep.subr.bf16.mxu0 0
  %3887 = vmatpush1.bf16.msra.mxu0 %v1854
  %3888 = vmatprep.subr.bf16.mxu0 0
  %3889 = vmatpush1.bf16.msra.mxu0 %v1855
  %3890 = vmatprep.subr.bf16.mxu0 0
  %3891 = vmatpush1.bf16.msra.mxu0 %v1856
  %3892 = vmatprep.subr.bf16.mxu0 0
  %3893 = vmatpush1.bf16.msra.mxu0 %v1857
  %3894 = vmatprep.subr.bf16.mxu0 0
  %3895 = vmatpush1.bf16.msra.mxu0 %v1858
  %3896 = vmatprep.subr.bf16.mxu0 0
  %3897 = vmatpush1.bf16.msra.mxu0 %v1859
  %3898 = vmatprep.subr.bf16.mxu0 0
  %3899 = vmatpush1.bf16.msra.mxu0 %v1860
  %3900 = vmatprep.subr.bf16.mxu0 0
  %3901 = vmatpush1.bf16.msra.mxu0 %v1861
  %3902 = vmatprep.subr.bf16.mxu0 0
  %3903 = vmatpush1.bf16.msra.mxu0 %v1862
  %3904 = vmatprep.subr.bf16.mxu0 0
  %3905 = vmatpush1.bf16.msra.mxu0 %v1863
  %3906 = vmatprep.subr.bf16.mxu0 0
  %3907 = vmatpush1.bf16.msra.mxu0 %v1864
  %3908 = vmatprep.subr.bf16.mxu0 0
  %3909 = vmatpush1.bf16.msra.mxu0 %v1865
  %3910 = vmatprep.subr.bf16.mxu0 0
  %3911 = vmatpush1.bf16.msra.mxu0 %v1866
  %3912 = vmatprep.subr.bf16.mxu0 0
  %3913 = vmatpush1.bf16.msra.mxu0 %v1867
  %3914 = vmatprep.mubr.bf16.mxu0 %v3373
  %3915 = vmatmul.mubr.bf16.gmra.mrb[0].mxu0 %v3372
  %v3916 = vpop.f32.mrb[0].mxu0
  %v3917 = vadd.f32 %v3853, %v3916
  %v3918 = vpop.f32.mrb[0].mxu0
  %v3919 = vpop.f32.mrb[0].mxu0
  %v3920 = vadd.f32 %v3856, %v3919
  %v3921 = vpop.f32.mrb[0].mxu0
  %3922 = vmatprep.mubr.bf16.mxu0 %v3398
  %3923 = vmatmul.mubr.bf16.gmra.mrb[0].mxu0 %v3397
  %v3924 = vpop.f32.mrb[0].mxu0
  %v3925 = vadd.f32 %v3861, %v3924
  %v3926 = vpop.f32.mrb[0].mxu0
  %v3927 = vpop.f32.mrb[0].mxu0
  %v3928 = vadd.f32 %v3864, %v3927
  %v3929 = vpop.f32.mrb[0].mxu0
  %3930 = vmatprep.mubr.bf16.mxu0 %v3423
  %3931 = vmatmul.mubr.bf16.gmra.mrb[0].mxu0 %v3422
  %v3932 = vpop.f32.mrb[0].mxu0
  %v3933 = vadd.f32 %v3869, %v3932
  %v3934 = vpop.f32.mrb[0].mxu0
  %v3935 = vpop.f32.mrb[0].mxu0
  %v3936 = vadd.f32 %v3872, %v3935
  %v3937 = vpop.f32.mrb[0].mxu0
  %3938 = vmatprep.mubr.bf16.mxu0 %v3448
  %3939 = vmatmul.mubr.bf16.gmra.mrb[0].mxu0 %v3447
  %v3940 = vpop.f32.mrb[0].mxu0
  %v3941 = vadd.f32 %v3877, %v3940
  %v3942 = vpop.f32.mrb[0].mxu0
  %v3943 = vpop.f32.mrb[0].mxu0
  %v3944 = vpop.f32.mrb[0].mxu0
  %3945 = vdwg.mxu0
  %3946 = vmatprep.subr.bf16.mxu0 0
  %3947 = vmatpush1.bf16.msra.mxu0 %v1868
  %3948 = vmatprep.subr.bf16.mxu0 0
  %3949 = vmatpush1.bf16.msra.mxu0 %v1869
  %3950 = vmatprep.subr.bf16.mxu0 0
  %3951 = vmatpush1.bf16.msra.mxu0 %v1870
  %3952 = vmatprep.subr.bf16.mxu0 0
  %3953 = vmatpush1.bf16.msra.mxu0 %v1871
  %3954 = vmatprep.subr.bf16.mxu0 0
  %3955 = vmatpush1.bf16.msra.mxu0 %v1872
  %3956 = vmatprep.subr.bf16.mxu0 0
  %3957 = vmatpush1.bf16.msra.mxu0 %v1873
  %3958 = vmatprep.subr.bf16.mxu0 0
  %3959 = vmatpush1.bf16.msra.mxu0 %v1874
  %3960 = vmatprep.subr.bf16.mxu0 0
  %3961 = vmatpush1.bf16.msra.mxu0 %v1875
  %3962 = vmatprep.subr.bf16.mxu0 0
  %3963 = vmatpush1.bf16.msra.mxu0 %v1876
  %3964 = vmatprep.subr.bf16.mxu0 0
  %3965 = vmatpush1.bf16.msra.mxu0 %v1877
  %3966 = vmatprep.subr.bf16.mxu0 0
  %3967 = vmatpush1.bf16.msra.mxu0 %v1878
  %3968 = vmatprep.subr.bf16.mxu0 0
  %3969 = vmatpush1.bf16.msra.mxu0 %v1879
  %3970 = vmatprep.subr.bf16.mxu0 0
  %3971 = vmatpush1.bf16.msra.mxu0 %v1880
  %3972 = vmatprep.subr.bf16.mxu0 0
  %3973 = vmatpush1.bf16.msra.mxu0 %v1881
  %3974 = vmatprep.subr.bf16.mxu0 0
  %3975 = vmatpush1.bf16.msra.mxu0 %v1882
  %3976 = vmatprep.subr.bf16.mxu0 0
  %3977 = vmatpush1.bf16.msra.mxu0 %v1883
  %3978 = vmatprep.mubr.bf16.mxu0 %v3375
  %3979 = vmatmul.mubr.bf16.gmra.mrb[0].mxu0 %v3374
  %v3980 = vpop.f32.mrb[0].mxu0
  %v3981 = vadd.f32 %v3917, %v3980
  %v3982 = vpop.f32.mrb[0].mxu0
  %v3983 = vpop.f32.mrb[0].mxu0
  %v3984 = vadd.f32 %v3920, %v3983
  %v3985 = vpop.f32.mrb[0].mxu0
  %3986 = vmatprep.mubr.bf16.mxu0 %v3400
  %3987 = vmatmul.mubr.bf16.gmra.mrb[0].mxu0 %v3399
  %v3988 = vpop.f32.mrb[0].mxu0
  %v3989 = vadd.f32 %v3925, %v3988
  %v3990 = vpop.f32.mrb[0].mxu0
  %v3991 = vpop.f32.mrb[0].mxu0
  %v3992 = vadd.f32 %v3928, %v3991
  %v3993 = vpop.f32.mrb[0].mxu0
  %3994 = vmatprep.mubr.bf16.mxu0 %v3425
  %3995 = vmatmul.mubr.bf16.gmra.mrb[0].mxu0 %v3424
  %v3996 = vpop.f32.mrb[0].mxu0
  %v3997 = vadd.f32 %v3933, %v3996
  %v3998 = vpop.f32.mrb[0].mxu0
  %v3999 = vpop.f32.mrb[0].mxu0
  %v4000 = vadd.f32 %v3936, %v3999
  %v4001 = vpop.f32.mrb[0].mxu0
  %4002 = vmatprep.mubr.bf16.mxu0 %v3450
  %4003 = vmatmul.mubr.bf16.gmra.mrb[0].mxu0 %v3449
  %v4004 = vpop.f32.mrb[0].mxu0
  %v4005 = vadd.f32 %v3941, %v4004
  %v4006 = vpop.f32.mrb[0].mxu0
  %v4007 = vpop.f32.mrb[0].mxu0
  %v4008 = vpop.f32.mrb[0].mxu0
  %4009 = vdwg.mxu0
  %4010 = vmatprep.subr.bf16.mxu0 0
  %4011 = vmatpush1.bf16.msra.mxu0 %v1884
  %4012 = vmatprep.subr.bf16.mxu0 0
  %4013 = vmatpush1.bf16.msra.mxu0 %v1885
  %4014 = vmatprep.subr.bf16.mxu0 0
  %4015 = vmatpush1.bf16.msra.mxu0 %v1886
  %4016 = vmatprep.subr.bf16.mxu0 0
  %4017 = vmatpush1.bf16.msra.mxu0 %v1887
  %4018 = vmatprep.subr.bf16.mxu0 0
  %4019 = vmatpush1.bf16.msra.mxu0 %v1888
  %4020 = vmatprep.subr.bf16.mxu0 0
  %4021 = vmatpush1.bf16.msra.mxu0 %v1889
  %4022 = vmatprep.subr.bf16.mxu0 0
  %4023 = vmatpush1.bf16.msra.mxu0 %v1890
  %4024 = vmatprep.subr.bf16.mxu0 0
  %4025 = vmatpush1.bf16.msra.mxu0 %v1891
  %4026 = vmatprep.subr.bf16.mxu0 0
  %4027 = vmatpush1.bf16.msra.mxu0 %v1892
  %4028 = vmatprep.subr.bf16.mxu0 0
  %4029 = vmatpush1.bf16.msra.mxu0 %v1893
  %4030 = vmatprep.subr.bf16.mxu0 0
  %4031 = vmatpush1.bf16.msra.mxu0 %v1894
  %4032 = vmatprep.subr.bf16.mxu0 0
  %4033 = vmatpush1.bf16.msra.mxu0 %v1895
  %4034 = vmatprep.subr.bf16.mxu0 0
  %4035 = vmatpush1.bf16.msra.mxu0 %v1896
  %4036 = vmatprep.subr.bf16.mxu0 0
  %4037 = vmatpush1.bf16.msra.mxu0 %v1897
  %4038 = vmatprep.subr.bf16.mxu0 0
  %4039 = vmatpush1.bf16.msra.mxu0 %v1898
  %4040 = vmatprep.subr.bf16.mxu0 0
  %4041 = vmatpush1.bf16.msra.mxu0 %v1899
  %4042 = vmatprep.mubr.bf16.mxu0 %v3377
  %4043 = vmatmul.mubr.bf16.gmra.mrb[0].mxu0 %v3376
  %v4044 = vpop.f32.mrb[0].mxu0
  %v4045 = vadd.f32 %v3981, %v4044
  %v4046 = vpop.f32.mrb[0].mxu0
  %v4047 = vpop.f32.mrb[0].mxu0
  %v4048 = vadd.f32 %v3984, %v4047
  %v4049 = vpop.f32.mrb[0].mxu0
  %4050 = vmatprep.mubr.bf16.mxu0 %v3402
  %4051 = vmatmul.mubr.bf16.gmra.mrb[0].mxu0 %v3401
  %v4052 = vpop.f32.mrb[0].mxu0
  %v4053 = vadd.f32 %v3989, %v4052
  %v4054 = vpop.f32.mrb[0].mxu0
  %v4055 = vpop.f32.mrb[0].mxu0
  %v4056 = vadd.f32 %v3992, %v4055
  %v4057 = vpop.f32.mrb[0].mxu0
  %4058 = vmatprep.mubr.bf16.mxu0 %v3427
  %4059 = vmatmul.mubr.bf16.gmra.mrb[0].mxu0 %v3426
  %v4060 = vpop.f32.mrb[0].mxu0
  %v4061 = vadd.f32 %v3997, %v4060
  %v4062 = vpop.f32.mrb[0].mxu0
  %v4063 = vpop.f32.mrb[0].mxu0
  %v4064 = vadd.f32 %v4000, %v4063
  %v4065 = vpop.f32.mrb[0].mxu0
  %4066 = vmatprep.mubr.bf16.mxu0 %v3452
  %4067 = vmatmul.mubr.bf16.gmra.mrb[0].mxu0 %v3451
  %v4068 = vpop.f32.mrb[0].mxu0
  %v4069 = vadd.f32 %v4005, %v4068
  %v4070 = vpop.f32.mrb[0].mxu0
  %v4071 = vpop.f32.mrb[0].mxu0
  %v4072 = vpop.f32.mrb[0].mxu0
  %4073 = vdwg.mxu0
  %4074 = vmatprep.subr.bf16.mxu0 0
  %4075 = vmatpush1.bf16.msra.mxu0 %v1900
  %4076 = vmatprep.subr.bf16.mxu0 0
  %4077 = vmatpush1.bf16.msra.mxu0 %v1901
  %4078 = vmatprep.subr.bf16.mxu0 0
  %4079 = vmatpush1.bf16.msra.mxu0 %v1902
  %4080 = vmatprep.subr.bf16.mxu0 0
  %4081 = vmatpush1.bf16.msra.mxu0 %v1903
  %4082 = vmatprep.subr.bf16.mxu0 0
  %4083 = vmatpush1.bf16.msra.mxu0 %v1904
  %4084 = vmatprep.subr.bf16.mxu0 0
  %4085 = vmatpush1.bf16.msra.mxu0 %v1905
  %4086 = vmatprep.subr.bf16.mxu0 0
  %4087 = vmatpush1.bf16.msra.mxu0 %v1906
  %4088 = vmatprep.subr.bf16.mxu0 0
  %4089 = vmatpush1.bf16.msra.mxu0 %v1907
  %4090 = vmatprep.subr.bf16.mxu0 0
  %4091 = vmatpush1.bf16.msra.mxu0 %v1908
  %4092 = vmatprep.subr.bf16.mxu0 0
  %4093 = vmatpush1.bf16.msra.mxu0 %v1909
  %4094 = vmatprep.subr.bf16.mxu0 0
  %4095 = vmatpush1.bf16.msra.mxu0 %v1910
  %4096 = vmatprep.subr.bf16.mxu0 0
  %4097 = vmatpush1.bf16.msra.mxu0 %v1911
  %4098 = vmatprep.subr.bf16.mxu0 0
  %4099 = vmatpush1.bf16.msra.mxu0 %v1912
  %4100 = vmatprep.subr.bf16.mxu0 0
  %4101 = vmatpush1.bf16.msra.mxu0 %v1913
  %4102 = vmatprep.subr.bf16.mxu0 0
  %4103 = vmatpush1.bf16.msra.mxu0 %v1914
  %4104 = vmatprep.subr.bf16.mxu0 0
  %4105 = vmatpush1.bf16.msra.mxu0 %v1915
  %4106 = vmatprep.mubr.bf16.mxu0 %v3379
  %4107 = vmatmul.mubr.bf16.gmra.mrb[0].mxu0 %v3378
  %v4108 = vpop.f32.mrb[0].mxu0
  %v4109 = vadd.f32 %v4045, %v4108
  %v4110 = vpop.f32.mrb[0].mxu0
  %v4111 = vpop.f32.mrb[0].mxu0
  %v4112 = vadd.f32 %v4048, %v4111
  %v4113 = vpop.f32.mrb[0].mxu0
  %4114 = vmatprep.mubr.bf16.mxu0 %v3404
  %4115 = vmatmul.mubr.bf16.gmra.mrb[0].mxu0 %v3403
  %v4116 = vpop.f32.mrb[0].mxu0
  %v4117 = vadd.f32 %v4053, %v4116
  %v4118 = vpop.f32.mrb[0].mxu0
  %v4119 = vpop.f32.mrb[0].mxu0
  %v4120 = vadd.f32 %v4056, %v4119
  %v4121 = vpop.f32.mrb[0].mxu0
  %4122 = vmatprep.mubr.bf16.mxu0 %v3429
  %4123 = vmatmul.mubr.bf16.gmra.mrb[0].mxu0 %v3428
  %v4124 = vpop.f32.mrb[0].mxu0
  %v4125 = vadd.f32 %v4061, %v4124
  %v4126 = vpop.f32.mrb[0].mxu0
  %v4127 = vpop.f32.mrb[0].mxu0
  %v4128 = vadd.f32 %v4064, %v4127
  %v4129 = vpop.f32.mrb[0].mxu0
  %4130 = vmatprep.mubr.bf16.mxu0 %v3454
  %4131 = vmatmul.mubr.bf16.gmra.mrb[0].mxu0 %v3453
  %v4132 = vpop.f32.mrb[0].mxu0
  %v4133 = vadd.f32 %v4069, %v4132
  %v4134 = vpop.f32.mrb[0].mxu0
  %v4135 = vpop.f32.mrb[0].mxu0
  %v4136 = vpop.f32.mrb[0].mxu0
  %4137 = vdwg.mxu0
  %4138 = vmatprep.subr.bf16.mxu0 0
  %4139 = vmatpush1.bf16.msra.mxu0 %v1916
  %4140 = vmatprep.subr.bf16.mxu0 0
  %4141 = vmatpush1.bf16.msra.mxu0 %v1917
  %4142 = vmatprep.subr.bf16.mxu0 0
  %4143 = vmatpush1.bf16.msra.mxu0 %v1918
  %4144 = vmatprep.subr.bf16.mxu0 0
  %4145 = vmatpush1.bf16.msra.mxu0 %v1919
  %4146 = vmatprep.subr.bf16.mxu0 0
  %4147 = vmatpush1.bf16.msra.mxu0 %v1920
  %4148 = vmatprep.subr.bf16.mxu0 0
  %4149 = vmatpush1.bf16.msra.mxu0 %v1921
  %4150 = vmatprep.subr.bf16.mxu0 0
  %4151 = vmatpush1.bf16.msra.mxu0 %v1922
  %4152 = vmatprep.subr.bf16.mxu0 0
  %4153 = vmatpush1.bf16.msra.mxu0 %v1923
  %4154 = vmatprep.subr.bf16.mxu0 0
  %4155 = vmatpush1.bf16.msra.mxu0 %v1924
  %4156 = vmatprep.subr.bf16.mxu0 0
  %4157 = vmatpush1.bf16.msra.mxu0 %v1925
  %4158 = vmatprep.subr.bf16.mxu0 0
  %4159 = vmatpush1.bf16.msra.mxu0 %v1926
  %4160 = vmatprep.subr.bf16.mxu0 0
  %4161 = vmatpush1.bf16.msra.mxu0 %v1927
  %4162 = vmatprep.subr.bf16.mxu0 0
  %4163 = vmatpush1.bf16.msra.mxu0 %v1928
  %4164 = vmatprep.subr.bf16.mxu0 0
  %4165 = vmatpush1.bf16.msra.mxu0 %v1929
  %4166 = vmatprep.subr.bf16.mxu0 0
  %4167 = vmatpush1.bf16.msra.mxu0 %v1930
  %4168 = vmatprep.subr.bf16.mxu0 0
  %4169 = vmatpush1.bf16.msra.mxu0 %v1931
  %4170 = vmatprep.mubr.bf16.mxu0 %v3381
  %4171 = vmatmul.mubr.bf16.gmra.mrb[0].mxu0 %v3380
  %v4172 = vpop.f32.mrb[0].mxu0
  %v4173 = vadd.f32 %v4109, %v4172
  %v4174 = vpop.f32.mrb[0].mxu0
  %v4175 = vpop.f32.mrb[0].mxu0
  %v4176 = vadd.f32 %v4112, %v4175
  %v4177 = vpop.f32.mrb[0].mxu0
  %4178 = vmatprep.mubr.bf16.mxu0 %v3406
  %4179 = vmatmul.mubr.bf16.gmra.mrb[0].mxu0 %v3405
  %v4180 = vpop.f32.mrb[0].mxu0
  %v4181 = vadd.f32 %v4117, %v4180
  %v4182 = vpop.f32.mrb[0].mxu0
  %v4183 = vpop.f32.mrb[0].mxu0
  %v4184 = vadd.f32 %v4120, %v4183
  %v4185 = vpop.f32.mrb[0].mxu0
  %4186 = vmatprep.mubr.bf16.mxu0 %v3431
  %4187 = vmatmul.mubr.bf16.gmra.mrb[0].mxu0 %v3430
  %v4188 = vpop.f32.mrb[0].mxu0
  %v4189 = vadd.f32 %v4125, %v4188
  %v4190 = vpop.f32.mrb[0].mxu0
  %v4191 = vpop.f32.mrb[0].mxu0
  %v4192 = vadd.f32 %v4128, %v4191
  %v4193 = vpop.f32.mrb[0].mxu0
  %4194 = vmatprep.mubr.bf16.mxu0 %v3456
  %4195 = vmatmul.mubr.bf16.gmra.mrb[0].mxu0 %v3455
  %v4196 = vpop.f32.mrb[0].mxu0
  %v4197 = vadd.f32 %v4133, %v4196
  %v4198 = vpop.f32.mrb[0].mxu0
  %v4199 = vpop.f32.mrb[0].mxu0
  %v4200 = vpop.f32.mrb[0].mxu0
  %4201 = vdwg.mxu0
  %4202 = vmatprep.subr.bf16.mxu0 0
  %4203 = vmatpush1.bf16.msra.mxu0 %v1932
  %4204 = vmatprep.subr.bf16.mxu0 0
  %4205 = vmatpush1.bf16.msra.mxu0 %v1933
  %4206 = vmatprep.subr.bf16.mxu0 0
  %4207 = vmatpush1.bf16.msra.mxu0 %v1934
  %4208 = vmatprep.subr.bf16.mxu0 0
  %4209 = vmatpush1.bf16.msra.mxu0 %v1935
  %4210 = vmatprep.subr.bf16.mxu0 0
  %4211 = vmatpush1.bf16.msra.mxu0 %v1936
  %4212 = vmatprep.subr.bf16.mxu0 0
  %4213 = vmatpush1.bf16.msra.mxu0 %v1937
  %4214 = vmatprep.subr.bf16.mxu0 0
  %4215 = vmatpush1.bf16.msra.mxu0 %v1938
  %4216 = vmatprep.subr.bf16.mxu0 0
  %4217 = vmatpush1.bf16.msra.mxu0 %v1939
  %4218 = vmatprep.subr.bf16.mxu0 0
  %4219 = vmatpush1.bf16.msra.mxu0 %v1940
  %4220 = vmatprep.subr.bf16.mxu0 0
  %4221 = vmatpush1.bf16.msra.mxu0 %v1941
  %4222 = vmatprep.subr.bf16.mxu0 0
  %4223 = vmatpush1.bf16.msra.mxu0 %v1942
  %4224 = vmatprep.subr.bf16.mxu0 0
  %4225 = vmatpush1.bf16.msra.mxu0 %v1943
  %4226 = vmatprep.subr.bf16.mxu0 0
  %4227 = vmatpush1.bf16.msra.mxu0 %v1944
  %4228 = vmatprep.subr.bf16.mxu0 0
  %4229 = vmatpush1.bf16.msra.mxu0 %v1945
  %4230 = vmatprep.subr.bf16.mxu0 0
  %4231 = vmatpush1.bf16.msra.mxu0 %v1946
  %4232 = vmatprep.subr.bf16.mxu0 0
  %4233 = vmatpush1.bf16.msra.mxu0 %v1947
  %4234 = vmatprep.mubr.bf16.mxu0 %v3383
  %4235 = vmatmul.mubr.bf16.gmra.mrb[0].mxu0 %v3382
  %v4236 = vpop.f32.mrb[0].mxu0
  %v4237 = vadd.f32 %v4173, %v4236
  %v4238 = vpop.f32.mrb[0].mxu0
  %v4239 = vpop.f32.mrb[0].mxu0
  %v4240 = vadd.f32 %v4176, %v4239
  %v4241 = vpop.f32.mrb[0].mxu0
  %4242 = vmatprep.mubr.bf16.mxu0 %v3408
  %4243 = vmatmul.mubr.bf16.gmra.mrb[0].mxu0 %v3407
  %v4244 = vpop.f32.mrb[0].mxu0
  %v4245 = vadd.f32 %v4181, %v4244
  %v4246 = vpop.f32.mrb[0].mxu0
  %v4247 = vpop.f32.mrb[0].mxu0
  %v4248 = vadd.f32 %v4184, %v4247
  %v4249 = vpop.f32.mrb[0].mxu0
  %4250 = vmatprep.mubr.bf16.mxu0 %v3433
  %4251 = vmatmul.mubr.bf16.gmra.mrb[0].mxu0 %v3432
  %v4252 = vpop.f32.mrb[0].mxu0
  %v4253 = vadd.f32 %v4189, %v4252
  %v4254 = vpop.f32.mrb[0].mxu0
  %v4255 = vpop.f32.mrb[0].mxu0
  %v4256 = vadd.f32 %v4192, %v4255
  %v4257 = vpop.f32.mrb[0].mxu0
  %4258 = vmatprep.mubr.bf16.mxu0 %v3458
  %4259 = vmatmul.mubr.bf16.gmra.mrb[0].mxu0 %v3457
  %v4260 = vpop.f32.mrb[0].mxu0
  %v4261 = vadd.f32 %v4197, %v4260
  %v4262 = vpop.f32.mrb[0].mxu0
  %v4263 = vpop.f32.mrb[0].mxu0
  %v4264 = vpop.f32.mrb[0].mxu0
  %4265 = vdwg.mxu0
  %4266 = vmatprep.subr.bf16.mxu0 0
  %4267 = vmatpush1.bf16.msra.mxu0 %v1948
  %4268 = vmatprep.subr.bf16.mxu0 0
  %4269 = vmatpush1.bf16.msra.mxu0 %v1949
  %4270 = vmatprep.subr.bf16.mxu0 0
  %4271 = vmatpush1.bf16.msra.mxu0 %v1950
  %4272 = vmatprep.subr.bf16.mxu0 0
  %4273 = vmatpush1.bf16.msra.mxu0 %v1951
  %4274 = vmatprep.subr.bf16.mxu0 0
  %4275 = vmatpush1.bf16.msra.mxu0 %v1952
  %4276 = vmatprep.subr.bf16.mxu0 0
  %4277 = vmatpush1.bf16.msra.mxu0 %v1953
  %4278 = vmatprep.subr.bf16.mxu0 0
  %4279 = vmatpush1.bf16.msra.mxu0 %v1954
  %4280 = vmatprep.subr.bf16.mxu0 0
  %4281 = vmatpush1.bf16.msra.mxu0 %v1955
  %4282 = vmatprep.subr.bf16.mxu0 0
  %4283 = vmatpush1.bf16.msra.mxu0 %v1956
  %4284 = vmatprep.subr.bf16.mxu0 0
  %4285 = vmatpush1.bf16.msra.mxu0 %v1957
  %4286 = vmatprep.subr.bf16.mxu0 0
  %4287 = vmatpush1.bf16.msra.mxu0 %v1958
  %4288 = vmatprep.subr.bf16.mxu0 0
  %4289 = vmatpush1.bf16.msra.mxu0 %v1959
  %4290 = vmatprep.subr.bf16.mxu0 0
  %4291 = vmatpush1.bf16.msra.mxu0 %v1960
  %4292 = vmatprep.subr.bf16.mxu0 0
  %4293 = vmatpush1.bf16.msra.mxu0 %v1961
  %4294 = vmatprep.subr.bf16.mxu0 0
  %4295 = vmatpush1.bf16.msra.mxu0 %v1962
  %4296 = vmatprep.subr.bf16.mxu0 0
  %4297 = vmatpush1.bf16.msra.mxu0 %v1963
  %4298 = vmatprep.mubr.bf16.mxu0 %v3385
  %4299 = vmatmul.mubr.bf16.gmra.mrb[0].mxu0 %v3384
  %v4300 = vpop.f32.mrb[0].mxu0
  %v4301 = vadd.f32 %v4237, %v4300
  %v4302 = vpop.f32.mrb[0].mxu0
  %v4303 = vpop.f32.mrb[0].mxu0
  %v4304 = vadd.f32 %v4240, %v4303
  %v4305 = vpop.f32.mrb[0].mxu0
  %4306 = vmatprep.mubr.bf16.mxu0 %v3410
  %4307 = vmatmul.mubr.bf16.gmra.mrb[0].mxu0 %v3409
  %v4308 = vpop.f32.mrb[0].mxu0
  %v4309 = vadd.f32 %v4245, %v4308
  %v4310 = vpop.f32.mrb[0].mxu0
  %v4311 = vpop.f32.mrb[0].mxu0
  %v4312 = vadd.f32 %v4248, %v4311
  %v4313 = vpop.f32.mrb[0].mxu0
  %4314 = vmatprep.mubr.bf16.mxu0 %v3435
  %4315 = vmatmul.mubr.bf16.gmra.mrb[0].mxu0 %v3434
  %v4316 = vpop.f32.mrb[0].mxu0
  %v4317 = vadd.f32 %v4253, %v4316
  %v4318 = vpop.f32.mrb[0].mxu0
  %v4319 = vpop.f32.mrb[0].mxu0
  %v4320 = vadd.f32 %v4256, %v4319
  %v4321 = vpop.f32.mrb[0].mxu0
  %4322 = vmatprep.mubr.bf16.mxu0 %v3460
  %4323 = vmatmul.mubr.bf16.gmra.mrb[0].mxu0 %v3459
  %v4324 = vpop.f32.mrb[0].mxu0
  %v4325 = vadd.f32 %v4261, %v4324
  %v4326 = vpop.f32.mrb[0].mxu0
  %v4327 = vpop.f32.mrb[0].mxu0
  %v4328 = vpop.f32.mrb[0].mxu0
  %4329 = vdwg.mxu0
  %4330 = vmatprep.subr.bf16.mxu0 0
  %4331 = vmatpush1.bf16.msra.mxu0 %v1964
  %4332 = vmatprep.subr.bf16.mxu0 0
  %4333 = vmatpush1.bf16.msra.mxu0 %v1965
  %4334 = vmatprep.subr.bf16.mxu0 0
  %4335 = vmatpush1.bf16.msra.mxu0 %v1966
  %4336 = vmatprep.subr.bf16.mxu0 0
  %4337 = vmatpush1.bf16.msra.mxu0 %v1967
  %4338 = vmatprep.subr.bf16.mxu0 0
  %4339 = vmatpush1.bf16.msra.mxu0 %v1968
  %4340 = vmatprep.subr.bf16.mxu0 0
  %4341 = vmatpush1.bf16.msra.mxu0 %v1969
  %4342 = vmatprep.subr.bf16.mxu0 0
  %4343 = vmatpush1.bf16.msra.mxu0 %v1970
  %4344 = vmatprep.subr.bf16.mxu0 0
  %4345 = vmatpush1.bf16.msra.mxu0 %v1971
  %4346 = vmatprep.subr.bf16.mxu0 0
  %4347 = vmatpush1.bf16.msra.mxu0 0
  %4348 = vmatprep.subr.bf16.mxu0 0
  %4349 = vmatpush1.bf16.msra.mxu0 0
  %4350 = vmatprep.subr.bf16.mxu0 0
  %4351 = vmatpush1.bf16.msra.mxu0 0
  %4352 = vmatprep.subr.bf16.mxu0 0
  %4353 = vmatpush1.bf16.msra.mxu0 0
  %4354 = vmatprep.subr.bf16.mxu0 0
  %4355 = vmatpush1.bf16.msra.mxu0 0
  %4356 = vmatprep.subr.bf16.mxu0 0
  %4357 = vmatpush1.bf16.msra.mxu0 0
  %4358 = vmatprep.subr.bf16.mxu0 0
  %4359 = vmatpush1.bf16.msra.mxu0 0
  %4360 = vmatprep.subr.bf16.mxu0 0
  %4361 = vmatpush1.bf16.msra.mxu0 0
  %4362 = vmatprep.mubr.bf16.mxu0 0
  %4363 = vmatmul.mubr.bf16.gmra.mrb[0].mxu0 %v3386
  %v4364 = vpop.f32.mrb[0].mxu0
  %v4365 = vadd.f32 %v4301, %v4364
  %v4366 = vpop.f32.mrb[0].mxu0
  %v4367 = vpop.f32.mrb[0].mxu0
  %v4368 = vadd.f32 %v4304, %v4367
  %v4369 = vpop.f32.mrb[0].mxu0
  %4370 = vmatprep.mubr.bf16.mxu0 0
  %4371 = vmatmul.mubr.bf16.gmra.mrb[0].mxu0 %v3411
  %v4372 = vpop.f32.mrb[0].mxu0
  %v4373 = vadd.f32 %v4309, %v4372
  %v4374 = vpop.f32.mrb[0].mxu0
  %v4375 = vpop.f32.mrb[0].mxu0
  %v4376 = vadd.f32 %v4312, %v4375
  %v4377 = vpop.f32.mrb[0].mxu0
  %4378 = vmatprep.mubr.bf16.mxu0 0
  %4379 = vmatmul.mubr.bf16.gmra.mrb[0].mxu0 %v3436
  %v4380 = vpop.f32.mrb[0].mxu0
  %v4381 = vadd.f32 %v4317, %v4380
  %v4382 = vpop.f32.mrb[0].mxu0
  %v4383 = vpop.f32.mrb[0].mxu0
  %v4384 = vadd.f32 %v4320, %v4383
  %v4385 = vpop.f32.mrb[0].mxu0
  %4386 = vmatprep.mubr.bf16.mxu0 0
  %4387 = vmatmul.mubr.bf16.gmra.mrb[0].mxu0 %v3461
  %v4388 = vpop.f32.mrb[0].mxu0
  %v4389 = vadd.f32 %v4325, %v4388
  %v4390 = vpop.f32.mrb[0].mxu0
  %v4391 = vpop.f32.mrb[0].mxu0
  %v4392 = vpop.f32.mrb[0].mxu0
  %4393 = vdwg.mxu0
  %s4394 = scalar_lea.vmem %s0, 1400
  %v4395 = vld [vmem:[%s4394] sm:$0xff]
  %v4396 = vld [vmem:[%s4394 + $0x8] sm:$0xff]
  %v4397 = vld [vmem:[%s4394 + $0x10] sm:$0xff]
  %v4398 = vld [vmem:[%s4394 + $0x18] sm:$0xff]
  %v4399 = vld [vmem:[%s4394 + $0x20] sm:$0xff]
  %v4400 = vld [vmem:[%s4394 + $0x28] sm:$0xff]
  %v4401 = vld [vmem:[%s4394 + $0x30] sm:$0xff]
  %v4402 = vld [vmem:[%s4394 + $0x38] sm:$0xff]
  %v4403 = vld [vmem:[%s4394 + $0x40] sm:$0xff]
  %v4404 = vld [vmem:[%s4394 + $0x48] sm:$0xff]
  %v4405 = vld [vmem:[%s4394 + $0x50] sm:$0xff]
  %v4406 = vld [vmem:[%s4394 + $0x58] sm:$0xff]
  %v4407 = vld [vmem:[%s4394 + $0x60] sm:$0xf]
  %v4408 = vld [vmem:[%s4394 + $0x64] sm:$0xff]
  %v4409 = vld [vmem:[%s4394 + $0x6c] sm:$0xff]
  %v4410 = vld [vmem:[%s4394 + $0x74] sm:$0xff]
  %v4411 = vld [vmem:[%s4394 + $0x7c] sm:$0xff]
  %v4412 = vld [vmem:[%s4394 + $0x84] sm:$0xff]
  %v4413 = vld [vmem:[%s4394 + $0x8c] sm:$0xff]
  %v4414 = vld [vmem:[%s4394 + $0x94] sm:$0xff]
  %v4415 = vld [vmem:[%s4394 + $0x9c] sm:$0xff]
  %v4416 = vld [vmem:[%s4394 + $0xa4] sm:$0xff]
  %v4417 = vld [vmem:[%s4394 + $0xac] sm:$0xff]
  %v4418 = vld [vmem:[%s4394 + $0xb4] sm:$0xff]
  %v4419 = vld [vmem:[%s4394 + $0xbc] sm:$0xff]
  %v4420 = vld [vmem:[%s4394 + $0xc4] sm:$0xf]
  %v4421 = vld [vmem:[%s4394 + $0xc8] sm:$0xff]
  %v4422 = vld [vmem:[%s4394 + $0xd0] sm:$0xff]
  %v4423 = vld [vmem:[%s4394 + $0xd8] sm:$0xff]
  %v4424 = vld [vmem:[%s4394 + $0xe0] sm:$0xff]
  %v4425 = vld [vmem:[%s4394 + $0xe8] sm:$0xff]
  %v4426 = vld [vmem:[%s4394 + $0xf0] sm:$0xff]
  %v4427 = vld [vmem:[%s4394 + $0xf8] sm:$0xff]
  %v4428 = vld [vmem:[%s4394 + $0x100] sm:$0xff]
  %v4429 = vld [vmem:[%s4394 + $0x108] sm:$0xff]
  %v4430 = vld [vmem:[%s4394 + $0x110] sm:$0xff]
  %v4431 = vld [vmem:[%s4394 + $0x118] sm:$0xff]
  %v4432 = vld [vmem:[%s4394 + $0x120] sm:$0xff]
  %v4433 = vld [vmem:[%s4394 + $0x128] sm:$0xf]
  %v4434 = vld [vmem:[%s4394 + $0x12c] sm:$0xff]
  %v4435 = vld [vmem:[%s4394 + $0x134] sm:$0xff]
  %v4436 = vld [vmem:[%s4394 + $0x13c] sm:$0xff]
  %v4437 = vld [vmem:[%s4394 + $0x144] sm:$0xff]
  %v4438 = vld [vmem:[%s4394 + $0x14c] sm:$0xff]
  %v4439 = vld [vmem:[%s4394 + $0x154] sm:$0xff]
  %v4440 = vld [vmem:[%s4394 + $0x15c] sm:$0xff]
  %v4441 = vld [vmem:[%s4394 + $0x164] sm:$0xff]
  %v4442 = vld [vmem:[%s4394 + $0x16c] sm:$0xff]
  %v4443 = vld [vmem:[%s4394 + $0x174] sm:$0xff]
  %v4444 = vld [vmem:[%s4394 + $0x17c] sm:$0xff]
  %v4445 = vld [vmem:[%s4394 + $0x184] sm:$0xff]
  %v4446 = vld [vmem:[%s4394 + $0x18c] sm:$0xf]
  %v4447 = vld [vmem:[%s4394 + $0x190] sm:$0xff]
  %v4448 = vld [vmem:[%s4394 + $0x198] sm:$0xff]
  %v4449 = vld [vmem:[%s4394 + $0x1a0] sm:$0xff]
  %v4450 = vld [vmem:[%s4394 + $0x1a8] sm:$0xff]
  %v4451 = vld [vmem:[%s4394 + $0x1b0] sm:$0xff]
  %v4452 = vld [vmem:[%s4394 + $0x1b8] sm:$0xff]
  %v4453 = vld [vmem:[%s4394 + $0x1c0] sm:$0xff]
  %v4454 = vld [vmem:[%s4394 + $0x1c8] sm:$0xff]
  %v4455 = vld [vmem:[%s4394 + $0x1d0] sm:$0xff]
  %v4456 = vld [vmem:[%s4394 + $0x1d8] sm:$0xff]
  %v4457 = vld [vmem:[%s4394 + $0x1e0] sm:$0xff]
  %v4458 = vld [vmem:[%s4394 + $0x1e8] sm:$0xff]
  %v4459 = vld [vmem:[%s4394 + $0x1f0] sm:$0xf]
  %v4460 = vld [vmem:[%s4394 + $0x1f4] sm:$0xff]
  %v4461 = vld [vmem:[%s4394 + $0x1fc] sm:$0xff]
  %v4462 = vld [vmem:[%s4394 + $0x204] sm:$0xff]
  %v4463 = vld [vmem:[%s4394 + $0x20c] sm:$0xff]
  %v4464 = vld [vmem:[%s4394 + $0x214] sm:$0xff]
  %v4465 = vld [vmem:[%s4394 + $0x21c] sm:$0xff]
  %v4466 = vld [vmem:[%s4394 + $0x224] sm:$0xff]
  %v4467 = vld [vmem:[%s4394 + $0x22c] sm:$0xff]
  %v4468 = vld [vmem:[%s4394 + $0x234] sm:$0xff]
  %v4469 = vld [vmem:[%s4394 + $0x23c] sm:$0xff]
  %v4470 = vld [vmem:[%s4394 + $0x244] sm:$0xff]
  %v4471 = vld [vmem:[%s4394 + $0x24c] sm:$0xff]
  %v4472 = vld [vmem:[%s4394 + $0x254] sm:$0xf]
  %v4473 = vld [vmem:[%s4394 + $0x258] sm:$0x11]
  %v4474 = vld [vmem:[%s4394 + $0x260] sm:$0x11]
  %v4475 = vld [vmem:[%s4394 + $0x268] sm:$0x11]
  %v4476 = vld [vmem:[%s4394 + $0x270] sm:$0x11]
  %v4477 = vld [vmem:[%s4394 + $0x278] sm:$0x11]
  %v4478 = vld [vmem:[%s4394 + $0x280] sm:$0x11]
  %v4479 = vld [vmem:[%s4394 + $0x288] sm:$0x11]
  %v4480 = vld [vmem:[%s4394 + $0x290] sm:$0x11]
  %v4481 = vld [vmem:[%s4394 + $0x298] sm:$0x11]
  %v4482 = vld [vmem:[%s4394 + $0x2a0] sm:$0x11]
  %v4483 = vld [vmem:[%s4394 + $0x2a8] sm:$0x11]
  %v4484 = vld [vmem:[%s4394 + $0x2b0] sm:$0x11]
  %v4485 = vld [vmem:[%s4394 + $0x2b8] sm:$0x1]
  %v4577 = vunpack.c.l.b16 %v4395
  %v4578 = vunpack.c.h.b16 %v4395
  %v4579 = vunpack.c.l.b16 %v4396
  %v4580 = vunpack.c.h.b16 %v4396
  %v4581 = vunpack.c.l.b16 %v4397
  %v4582 = vunpack.c.h.b16 %v4397
  %v4583 = vunpack.c.l.b16 %v4398
  %v4584 = vunpack.c.h.b16 %v4398
  %v4585 = vunpack.c.l.b16 %v4399
  %v4586 = vunpack.c.h.b16 %v4399
  %v4587 = vunpack.c.l.b16 %v4400
  %v4588 = vunpack.c.h.b16 %v4400
  %v4589 = vunpack.c.l.b16 %v4401
  %v4590 = vunpack.c.h.b16 %v4401
  %v4591 = vunpack.c.l.b16 %v4402
  %v4592 = vunpack.c.h.b16 %v4402
  %v4593 = vunpack.c.l.b16 %v4403
  %v4594 = vunpack.c.h.b16 %v4403
  %v4595 = vunpack.c.l.b16 %v4404
  %v4596 = vunpack.c.h.b16 %v4404
  %v4597 = vunpack.c.l.b16 %v4405
  %v4598 = vunpack.c.h.b16 %v4405
  %v4599 = vunpack.c.l.b16 %v4406
  %v4600 = vunpack.c.h.b16 %v4406
  %v4601 = vunpack.c.l.b16 %v4407
  %v4602 = vunpack.c.l.b16 %v4408
  %v4603 = vunpack.c.h.b16 %v4408
  %v4604 = vunpack.c.l.b16 %v4409
  %v4605 = vunpack.c.h.b16 %v4409
  %v4606 = vunpack.c.l.b16 %v4410
  %v4607 = vunpack.c.h.b16 %v4410
  %v4608 = vunpack.c.l.b16 %v4411
  %v4609 = vunpack.c.h.b16 %v4411
  %v4610 = vunpack.c.l.b16 %v4412
  %v4611 = vunpack.c.h.b16 %v4412
  %v4612 = vunpack.c.l.b16 %v4413
  %v4613 = vunpack.c.h.b16 %v4413
  %v4614 = vunpack.c.l.b16 %v4414
  %v4615 = vunpack.c.h.b16 %v4414
  %v4616 = vunpack.c.l.b16 %v4415
  %v4617 = vunpack.c.h.b16 %v4415
  %v4618 = vunpack.c.l.b16 %v4416
  %v4619 = vunpack.c.h.b16 %v4416
  %v4620 = vunpack.c.l.b16 %v4417
  %v4621 = vunpack.c.h.b16 %v4417
  %v4622 = vunpack.c.l.b16 %v4418
  %v4623 = vunpack.c.h.b16 %v4418
  %v4624 = vunpack.c.l.b16 %v4419
  %v4625 = vunpack.c.h.b16 %v4419
  %v4626 = vunpack.c.l.b16 %v4420
  %v4627 = vunpack.c.l.b16 %v4421
  %v4628 = vunpack.c.h.b16 %v4421
  %v4629 = vunpack.c.l.b16 %v4422
  %v4630 = vunpack.c.h.b16 %v4422
  %v4631 = vunpack.c.l.b16 %v4423
  %v4632 = vunpack.c.h.b16 %v4423
  %v4633 = vunpack.c.l.b16 %v4424
  %v4634 = vunpack.c.h.b16 %v4424
  %v4635 = vunpack.c.l.b16 %v4425
  %v4636 = vunpack.c.h.b16 %v4425
  %v4637 = vunpack.c.l.b16 %v4426
  %v4638 = vunpack.c.h.b16 %v4426
  %v4639 = vunpack.c.l.b16 %v4427
  %v4640 = vunpack.c.h.b16 %v4427
  %v4641 = vunpack.c.l.b16 %v4428
  %v4642 = vunpack.c.h.b16 %v4428
  %v4643 = vunpack.c.l.b16 %v4429
  %v4644 = vunpack.c.h.b16 %v4429
  %v4645 = vunpack.c.l.b16 %v4430
  %v4646 = vunpack.c.h.b16 %v4430
  %v4647 = vunpack.c.l.b16 %v4431
  %v4648 = vunpack.c.h.b16 %v4431
  %v4649 = vunpack.c.l.b16 %v4432
  %v4650 = vunpack.c.h.b16 %v4432
  %v4651 = vunpack.c.l.b16 %v4433
  %v4652 = vunpack.c.l.b16 %v4434
  %v4653 = vunpack.c.h.b16 %v4434
  %v4654 = vunpack.c.l.b16 %v4435
  %v4655 = vunpack.c.h.b16 %v4435
  %v4656 = vunpack.c.l.b16 %v4436
  %v4657 = vunpack.c.h.b16 %v4436
  %v4658 = vunpack.c.l.b16 %v4437
  %v4659 = vunpack.c.h.b16 %v4437
  %v4660 = vunpack.c.l.b16 %v4438
  %v4661 = vunpack.c.h.b16 %v4438
  %v4662 = vunpack.c.l.b16 %v4439
  %v4663 = vunpack.c.h.b16 %v4439
  %v4664 = vunpack.c.l.b16 %v4440
  %v4665 = vunpack.c.h.b16 %v4440
  %v4666 = vunpack.c.l.b16 %v4441
  %v4667 = vunpack.c.h.b16 %v4441
  %v4668 = vunpack.c.l.b16 %v4442
  %v4669 = vunpack.c.h.b16 %v4442
  %v4670 = vunpack.c.l.b16 %v4443
  %v4671 = vunpack.c.h.b16 %v4443
  %v4672 = vunpack.c.l.b16 %v4444
  %v4673 = vunpack.c.h.b16 %v4444
  %v4674 = vunpack.c.l.b16 %v4445
  %v4675 = vunpack.c.h.b16 %v4445
  %v4676 = vunpack.c.l.b16 %v4446
  %v4677 = vunpack.c.l.b16 %v4447
  %v4678 = vunpack.c.h.b16 %v4447
  %v4679 = vunpack.c.l.b16 %v4448
  %v4680 = vunpack.c.h.b16 %v4448
  %v4681 = vunpack.c.l.b16 %v4449
  %v4682 = vunpack.c.h.b16 %v4449
  %v4683 = vunpack.c.l.b16 %v4450
  %v4684 = vunpack.c.h.b16 %v4450
  %v4685 = vunpack.c.l.b16 %v4451
  %v4686 = vunpack.c.h.b16 %v4451
  %v4687 = vunpack.c.l.b16 %v4452
  %v4688 = vunpack.c.h.b16 %v4452
  %v4689 = vunpack.c.l.b16 %v4453
  %v4690 = vunpack.c.h.b16 %v4453
  %v4691 = vunpack.c.l.b16 %v4454
  %v4692 = vunpack.c.h.b16 %v4454
  %v4693 = vunpack.c.l.b16 %v4455
  %v4694 = vunpack.c.h.b16 %v4455
  %v4695 = vunpack.c.l.b16 %v4456
  %v4696 = vunpack.c.h.b16 %v4456
  %v4697 = vunpack.c.l.b16 %v4457
  %v4698 = vunpack.c.h.b16 %v4457
  %v4699 = vunpack.c.l.b16 %v4458
  %v4700 = vunpack.c.h.b16 %v4458
  %v4701 = vunpack.c.l.b16 %v4459
  %v4702 = vunpack.c.l.b16 %v4460
  %v4703 = vunpack.c.h.b16 %v4460
  %v4704 = vunpack.c.l.b16 %v4461
  %v4705 = vunpack.c.h.b16 %v4461
  %v4706 = vunpack.c.l.b16 %v4462
  %v4707 = vunpack.c.h.b16 %v4462
  %v4708 = vunpack.c.l.b16 %v4463
  %v4709 = vunpack.c.h.b16 %v4463
  %v4710 = vunpack.c.l.b16 %v4464
  %v4711 = vunpack.c.h.b16 %v4464
  %v4712 = vunpack.c.l.b16 %v4465
  %v4713 = vunpack.c.h.b16 %v4465
  %v4714 = vunpack.c.l.b16 %v4466
  %v4715 = vunpack.c.h.b16 %v4466
  %v4716 = vunpack.c.l.b16 %v4467
  %v4717 = vunpack.c.h.b16 %v4467
  %v4718 = vunpack.c.l.b16 %v4468
  %v4719 = vunpack.c.h.b16 %v4468
  %v4720 = vunpack.c.l.b16 %v4469
  %v4721 = vunpack.c.h.b16 %v4469
  %v4722 = vunpack.c.l.b16 %v4470
  %v4723 = vunpack.c.h.b16 %v4470
  %v4724 = vunpack.c.l.b16 %v4471
  %v4725 = vunpack.c.h.b16 %v4471
  %v4726 = vunpack.c.l.b16 %v4472
  %v4727 = vunpack.c.l.b16 %v4473
  %v4728 = vunpack.c.h.b16 %v4473
  %v4729 = vunpack.c.l.b16 %v4474
  %v4730 = vunpack.c.h.b16 %v4474
  %v4731 = vunpack.c.l.b16 %v4475
  %v4732 = vunpack.c.h.b16 %v4475
  %v4733 = vunpack.c.l.b16 %v4476
  %v4734 = vunpack.c.h.b16 %v4476
  %v4735 = vunpack.c.l.b16 %v4477
  %v4736 = vunpack.c.h.b16 %v4477
  %v4737 = vunpack.c.l.b16 %v4478
  %v4738 = vunpack.c.h.b16 %v4478
  %v4739 = vunpack.c.l.b16 %v4479
  %v4740 = vunpack.c.h.b16 %v4479
  %v4741 = vunpack.c.l.b16 %v4480
  %v4742 = vunpack.c.h.b16 %v4480
  %v4743 = vunpack.c.l.b16 %v4481
  %v4744 = vunpack.c.h.b16 %v4481
  %v4745 = vunpack.c.l.b16 %v4482
  %v4746 = vunpack.c.h.b16 %v4482
  %v4747 = vunpack.c.l.b16 %v4483
  %v4748 = vunpack.c.h.b16 %v4483
  %v4749 = vunpack.c.l.b16 %v4484
  %v4750 = vunpack.c.h.b16 %v4484
  %v4751 = vunpack.c.l.b16 %v4485
  %v4752 = vpack.c.b16 %v4602, %v4577
  %v4753 = vpack.c.b16 %v4603, %v4578
  %v4754 = vpack.c.b16 %v4604, %v4579
  %v4755 = vpack.c.b16 %v4605, %v4580
  %v4756 = vpack.c.b16 %v4606, %v4581
  %v4757 = vpack.c.b16 %v4607, %v4582
  %v4758 = vpack.c.b16 %v4608, %v4583
  %v4759 = vpack.c.b16 %v4609, %v4584
  %v4760 = vpack.c.b16 %v4610, %v4585
  %v4761 = vpack.c.b16 %v4611, %v4586
  %v4762 = vpack.c.b16 %v4612, %v4587
  %v4763 = vpack.c.b16 %v4613, %v4588
  %v4764 = vpack.c.b16 %v4614, %v4589
  %v4765 = vpack.c.b16 %v4615, %v4590
  %v4766 = vpack.c.b16 %v4616, %v4591
  %v4767 = vpack.c.b16 %v4617, %v4592
  %v4768 = vpack.c.b16 %v4618, %v4593
  %v4769 = vpack.c.b16 %v4619, %v4594
  %v4770 = vpack.c.b16 %v4620, %v4595
  %v4771 = vpack.c.b16 %v4621, %v4596
  %v4772 = vpack.c.b16 %v4622, %v4597
  %v4773 = vpack.c.b16 %v4623, %v4598
  %v4774 = vpack.c.b16 %v4624, %v4599
  %v4775 = vpack.c.b16 %v4625, %v4600
  %v4776 = vpack.c.b16 %v4626, %v4601
  %v4777 = vpack.c.b16 %v4652, %v4627
  %v4778 = vpack.c.b16 %v4653, %v4628
  %v4779 = vpack.c.b16 %v4654, %v4629
  %v4780 = vpack.c.b16 %v4655, %v4630
  %v4781 = vpack.c.b16 %v4656, %v4631
  %v4782 = vpack.c.b16 %v4657, %v4632
  %v4783 = vpack.c.b16 %v4658, %v4633
  %v4784 = vpack.c.b16 %v4659, %v4634
  %v4785 = vpack.c.b16 %v4660, %v4635
  %v4786 = vpack.c.b16 %v4661, %v4636
  %v4787 = vpack.c.b16 %v4662, %v4637
  %v4788 = vpack.c.b16 %v4663, %v4638
  %v4789 = vpack.c.b16 %v4664, %v4639
  %v4790 = vpack.c.b16 %v4665, %v4640
  %v4791 = vpack.c.b16 %v4666, %v4641
  %v4792 = vpack.c.b16 %v4667, %v4642
  %v4793 = vpack.c.b16 %v4668, %v4643
  %v4794 = vpack.c.b16 %v4669, %v4644
  %v4795 = vpack.c.b16 %v4670, %v4645
  %v4796 = vpack.c.b16 %v4671, %v4646
  %v4797 = vpack.c.b16 %v4672, %v4647
  %v4798 = vpack.c.b16 %v4673, %v4648
  %v4799 = vpack.c.b16 %v4674, %v4649
  %v4800 = vpack.c.b16 %v4675, %v4650
  %v4801 = vpack.c.b16 %v4676, %v4651
  %v4802 = vpack.c.b16 %v4702, %v4677
  %v4803 = vpack.c.b16 %v4703, %v4678
  %v4804 = vpack.c.b16 %v4704, %v4679
  %v4805 = vpack.c.b16 %v4705, %v4680
  %v4806 = vpack.c.b16 %v4706, %v4681
  %v4807 = vpack.c.b16 %v4707, %v4682
  %v4808 = vpack.c.b16 %v4708, %v4683
  %v4809 = vpack.c.b16 %v4709, %v4684
  %v4810 = vpack.c.b16 %v4710, %v4685
  %v4811 = vpack.c.b16 %v4711, %v4686
  %v4812 = vpack.c.b16 %v4712, %v4687
  %v4813 = vpack.c.b16 %v4713, %v4688
  %v4814 = vpack.c.b16 %v4714, %v4689
  %v4815 = vpack.c.b16 %v4715, %v4690
  %v4816 = vpack.c.b16 %v4716, %v4691
  %v4817 = vpack.c.b16 %v4717, %v4692
  %v4818 = vpack.c.b16 %v4718, %v4693
  %v4819 = vpack.c.b16 %v4719, %v4694
  %v4820 = vpack.c.b16 %v4720, %v4695
  %v4821 = vpack.c.b16 %v4721, %v4696
  %v4822 = vpack.c.b16 %v4722, %v4697
  %v4823 = vpack.c.b16 %v4723, %v4698
  %v4824 = vpack.c.b16 %v4724, %v4699
  %v4825 = vpack.c.b16 %v4725, %v4700
  %v4826 = vpack.c.b16 %v4726, %v4701
  %v4827 = vpack.c.b16 %v4727, %v4727
  %v4828 = vpack.c.b16 %v4728, %v4728
  %v4829 = vpack.c.b16 %v4729, %v4729
  %v4830 = vpack.c.b16 %v4730, %v4730
  %v4831 = vpack.c.b16 %v4731, %v4731
  %v4832 = vpack.c.b16 %v4732, %v4732
  %v4833 = vpack.c.b16 %v4733, %v4733
  %v4834 = vpack.c.b16 %v4734, %v4734
  %v4835 = vpack.c.b16 %v4735, %v4735
  %v4836 = vpack.c.b16 %v4736, %v4736
  %v4837 = vpack.c.b16 %v4737, %v4737
  %v4838 = vpack.c.b16 %v4738, %v4738
  %v4839 = vpack.c.b16 %v4739, %v4739
  %v4840 = vpack.c.b16 %v4740, %v4740
  %v4841 = vpack.c.b16 %v4741, %v4741
  %v4842 = vpack.c.b16 %v4742, %v4742
  %v4843 = vpack.c.b16 %v4743, %v4743
  %v4844 = vpack.c.b16 %v4744, %v4744
  %v4845 = vpack.c.b16 %v4745, %v4745
  %v4846 = vpack.c.b16 %v4746, %v4746
  %v4847 = vpack.c.b16 %v4747, %v4747
  %v4848 = vpack.c.b16 %v4748, %v4748
  %v4849 = vpack.c.b16 %v4749, %v4749
  %v4850 = vpack.c.b16 %v4750, %v4750
  %v4851 = vpack.c.b16 %v4751, %v4751
  %4952 = vmatprep.subr.bf16.mxu0 0
  %4953 = vmatpush1.bf16.msra.mxu0 %v1772
  %4954 = vmatprep.subr.bf16.mxu0 0
  %4955 = vmatpush1.bf16.msra.mxu0 %v1773
  %4956 = vmatprep.subr.bf16.mxu0 0
  %4957 = vmatpush1.bf16.msra.mxu0 %v1774
  %4958 = vmatprep.subr.bf16.mxu0 0
  %4959 = vmatpush1.bf16.msra.mxu0 %v1775
  %4960 = vmatprep.subr.bf16.mxu0 0
  %4961 = vmatpush1.bf16.msra.mxu0 %v1776
  %4962 = vmatprep.subr.bf16.mxu0 0
  %4963 = vmatpush1.bf16.msra.mxu0 %v1777
  %4964 = vmatprep.subr.bf16.mxu0 0
  %4965 = vmatpush1.bf16.msra.mxu0 %v1778
  %4966 = vmatprep.subr.bf16.mxu0 0
  %4967 = vmatpush1.bf16.msra.mxu0 %v1779
  %4968 = vmatprep.subr.bf16.mxu0 0
  %4969 = vmatpush1.bf16.msra.mxu0 %v1780
  %4970 = vmatprep.subr.bf16.mxu0 0
  %4971 = vmatpush1.bf16.msra.mxu0 %v1781
  %4972 = vmatprep.subr.bf16.mxu0 0
  %4973 = vmatpush1.bf16.msra.mxu0 %v1782
  %4974 = vmatprep.subr.bf16.mxu0 0
  %4975 = vmatpush1.bf16.msra.mxu0 %v1783
  %4976 = vmatprep.subr.bf16.mxu0 0
  %4977 = vmatpush1.bf16.msra.mxu0 %v1784
  %4978 = vmatprep.subr.bf16.mxu0 0
  %4979 = vmatpush1.bf16.msra.mxu0 %v1785
  %4980 = vmatprep.subr.bf16.mxu0 0
  %4981 = vmatpush1.bf16.msra.mxu0 %v1786
  %4982 = vmatprep.subr.bf16.mxu0 0
  %4983 = vmatpush1.bf16.msra.mxu0 %v1787
  %4984 = vmatprep.mubr.bf16.mxu0 %v4753
  %4985 = vmatmul.mubr.bf16.gmra.mrb[0].mxu0 %v4752
  %v4986 = vpop.f32.mrb[0].mxu0
  %v4987 = vadd.f32 0.0, %v4986
  %v4988 = vpop.f32.mrb[0].mxu0
  %v4989 = vpop.f32.mrb[0].mxu0
  %v4990 = vadd.f32 0.0, %v4989
  %v4991 = vpop.f32.mrb[0].mxu0
  %4992 = vmatprep.mubr.bf16.mxu0 %v4778
  %4993 = vmatmul.mubr.bf16.gmra.mrb[0].mxu0 %v4777
  %v4994 = vpop.f32.mrb[0].mxu0
  %v4995 = vadd.f32 0.0, %v4994
  %v4996 = vpop.f32.mrb[0].mxu0
  %v4997 = vpop.f32.mrb[0].mxu0
  %v4998 = vadd.f32 0.0, %v4997
  %v4999 = vpop.f32.mrb[0].mxu0
  %5000 = vmatprep.mubr.bf16.mxu0 %v4803
  %5001 = vmatmul.mubr.bf16.gmra.mrb[0].mxu0 %v4802
  %v5002 = vpop.f32.mrb[0].mxu0
  %v5003 = vadd.f32 0.0, %v5002
  %v5004 = vpop.f32.mrb[0].mxu0
  %v5005 = vpop.f32.mrb[0].mxu0
  %v5006 = vadd.f32 0.0, %v5005
  %v5007 = vpop.f32.mrb[0].mxu0
  %5008 = vmatprep.mubr.bf16.mxu0 %v4828
  %5009 = vmatmul.mubr.bf16.gmra.mrb[0].mxu0 %v4827
  %v5010 = vpop.f32.mrb[0].mxu0
  %v5011 = vadd.f32 0.0, %v5010
  %v5012 = vpop.f32.mrb[0].mxu0
  %v5013 = vpop.f32.mrb[0].mxu0
  %v5014 = vpop.f32.mrb[0].mxu0
  %5015 = vdwg.mxu0
  %5016 = vmatprep.subr.bf16.mxu0 0
  %5017 = vmatpush1.bf16.msra.mxu0 %v1788
  %5018 = vmatprep.subr.bf16.mxu0 0
  %5019 = vmatpush1.bf16.msra.mxu0 %v1789
  %5020 = vmatprep.subr.bf16.mxu0 0
  %5021 = vmatpush1.bf16.msra.mxu0 %v1790
  %5022 = vmatprep.subr.bf16.mxu0 0
  %5023 = vmatpush1.bf16.msra.mxu0 %v1791
  %5024 = vmatprep.subr.bf16.mxu0 0
  %5025 = vmatpush1.bf16.msra.mxu0 %v1792
  %5026 = vmatprep.subr.bf16.mxu0 0
  %5027 = vmatpush1.bf16.msra.mxu0 %v1793
  %5028 = vmatprep.subr.bf16.mxu0 0
  %5029 = vmatpush1.bf16.msra.mxu0 %v1794
  %5030 = vmatprep.subr.bf16.mxu0 0
  %5031 = vmatpush1.bf16.msra.mxu0 %v1795
  %5032 = vmatprep.subr.bf16.mxu0 0
  %5033 = vmatpush1.bf16.msra.mxu0 %v1796
  %5034 = vmatprep.subr.bf16.mxu0 0
  %5035 = vmatpush1.bf16.msra.mxu0 %v1797
  %5036 = vmatprep.subr.bf16.mxu0 0
  %5037 = vmatpush1.bf16.msra.mxu0 %v1798
  %5038 = vmatprep.subr.bf16.mxu0 0
  %5039 = vmatpush1.bf16.msra.mxu0 %v1799
  %5040 = vmatprep.subr.bf16.mxu0 0
  %5041 = vmatpush1.bf16.msra.mxu0 %v1800
  %5042 = vmatprep.subr.bf16.mxu0 0
  %5043 = vmatpush1.bf16.msra.mxu0 %v1801
  %5044 = vmatprep.subr.bf16.mxu0 0
  %5045 = vmatpush1.bf16.msra.mxu0 %v1802
  %5046 = vmatprep.subr.bf16.mxu0 0
  %5047 = vmatpush1.bf16.msra.mxu0 %v1803
  %5048 = vmatprep.mubr.bf16.mxu0 %v4755
  %5049 = vmatmul.mubr.bf16.gmra.mrb[0].mxu0 %v4754
  %v5050 = vpop.f32.mrb[0].mxu0
  %v5051 = vadd.f32 %v4987, %v5050
  %v5052 = vpop.f32.mrb[0].mxu0
  %v5053 = vpop.f32.mrb[0].mxu0
  %v5054 = vadd.f32 %v4990, %v5053
  %v5055 = vpop.f32.mrb[0].mxu0
  %5056 = vmatprep.mubr.bf16.mxu0 %v4780
  %5057 = vmatmul.mubr.bf16.gmra.mrb[0].mxu0 %v4779
  %v5058 = vpop.f32.mrb[0].mxu0
  %v5059 = vadd.f32 %v4995, %v5058
  %v5060 = vpop.f32.mrb[0].mxu0
  %v5061 = vpop.f32.mrb[0].mxu0
  %v5062 = vadd.f32 %v4998, %v5061
  %v5063 = vpop.f32.mrb[0].mxu0
  %5064 = vmatprep.mubr.bf16.mxu0 %v4805
  %5065 = vmatmul.mubr.bf16.gmra.mrb[0].mxu0 %v4804
  %v5066 = vpop.f32.mrb[0].mxu0
  %v5067 = vadd.f32 %v5003, %v5066
  %v5068 = vpop.f32.mrb[0].mxu0
  %v5069 = vpop.f32.mrb[0].mxu0
  %v5070 = vadd.f32 %v5006, %v5069
  %v5071 = vpop.f32.mrb[0].mxu0
  %5072 = vmatprep.mubr.bf16.mxu0 %v4830
  %5073 = vmatmul.mubr.bf16.gmra.mrb[0].mxu0 %v4829
  %v5074 = vpop.f32.mrb[0].mxu0
  %v5075 = vadd.f32 %v5011, %v5074
  %v5076 = vpop.f32.mrb[0].mxu0
  %v5077 = vpop.f32.mrb[0].mxu0
  %v5078 = vpop.f32.mrb[0].mxu0
  %5079 = vdwg.mxu0
  %5080 = vmatprep.subr.bf16.mxu0 0
  %5081 = vmatpush1.bf16.msra.mxu0 %v1804
  %5082 = vmatprep.subr.bf16.mxu0 0
  %5083 = vmatpush1.bf16.msra.mxu0 %v1805
  %5084 = vmatprep.subr.bf16.mxu0 0
  %5085 = vmatpush1.bf16.msra.mxu0 %v1806
  %5086 = vmatprep.subr.bf16.mxu0 0
  %5087 = vmatpush1.bf16.msra.mxu0 %v1807
  %5088 = vmatprep.subr.bf16.mxu0 0
  %5089 = vmatpush1.bf16.msra.mxu0 %v1808
  %5090 = vmatprep.subr.bf16.mxu0 0
  %5091 = vmatpush1.bf16.msra.mxu0 %v1809
  %5092 = vmatprep.subr.bf16.mxu0 0
  %5093 = vmatpush1.bf16.msra.mxu0 %v1810
  %5094 = vmatprep.subr.bf16.mxu0 0
  %5095 = vmatpush1.bf16.msra.mxu0 %v1811
  %5096 = vmatprep.subr.bf16.mxu0 0
  %5097 = vmatpush1.bf16.msra.mxu0 %v1812
  %5098 = vmatprep.subr.bf16.mxu0 0
  %5099 = vmatpush1.bf16.msra.mxu0 %v1813
  %5100 = vmatprep.subr.bf16.mxu0 0
  %5101 = vmatpush1.bf16.msra.mxu0 %v1814
  %5102 = vmatprep.subr.bf16.mxu0 0
  %5103 = vmatpush1.bf16.msra.mxu0 %v1815
  %5104 = vmatprep.subr.bf16.mxu0 0
  %5105 = vmatpush1.bf16.msra.mxu0 %v1816
  %5106 = vmatprep.subr.bf16.mxu0 0
  %5107 = vmatpush1.bf16.msra.mxu0 %v1817
  %5108 = vmatprep.subr.bf16.mxu0 0
  %5109 = vmatpush1.bf16.msra.mxu0 %v1818
  %5110 = vmatprep.subr.bf16.mxu0 0
  %5111 = vmatpush1.bf16.msra.mxu0 %v1819
  %5112 = vmatprep.mubr.bf16.mxu0 %v4757
  %5113 = vmatmul.mubr.bf16.gmra.mrb[0].mxu0 %v4756
  %v5114 = vpop.f32.mrb[0].mxu0
  %v5115 = vadd.f32 %v5051, %v5114
  %v5116 = vpop.f32.mrb[0].mxu0
  %v5117 = vpop.f32.mrb[0].mxu0
  %v5118 = vadd.f32 %v5054, %v5117
  %v5119 = vpop.f32.mrb[0].mxu0
  %5120 = vmatprep.mubr.bf16.mxu0 %v4782
  %5121 = vmatmul.mubr.bf16.gmra.mrb[0].mxu0 %v4781
  %v5122 = vpop.f32.mrb[0].mxu0
  %v5123 = vadd.f32 %v5059, %v5122
  %v5124 = vpop.f32.mrb[0].mxu0
  %v5125 = vpop.f32.mrb[0].mxu0
  %v5126 = vadd.f32 %v5062, %v5125
  %v5127 = vpop.f32.mrb[0].mxu0
  %5128 = vmatprep.mubr.bf16.mxu0 %v4807
  %5129 = vmatmul.mubr.bf16.gmra.mrb[0].mxu0 %v4806
  %v5130 = vpop.f32.mrb[0].mxu0
  %v5131 = vadd.f32 %v5067, %v5130
  %v5132 = vpop.f32.mrb[0].mxu0
  %v5133 = vpop.f32.mrb[0].mxu0
  %v5134 = vadd.f32 %v5070, %v5133
  %v5135 = vpop.f32.mrb[0].mxu0
  %5136 = vmatprep.mubr.bf16.mxu0 %v4832
  %5137 = vmatmul.mubr.bf16.gmra.mrb[0].mxu0 %v4831
  %v5138 = vpop.f32.mrb[0].mxu0
  %v5139 = vadd.f32 %v5075, %v5138
  %v5140 = vpop.f32.mrb[0].mxu0
  %v5141 = vpop.f32.mrb[0].mxu0
  %v5142 = vpop.f32.mrb[0].mxu0
  %5143 = vdwg.mxu0
  %5144 = vmatprep.subr.bf16.mxu0 0
  %5145 = vmatpush1.bf16.msra.mxu0 %v1820
  %5146 = vmatprep.subr.bf16.mxu0 0
  %5147 = vmatpush1.bf16.msra.mxu0 %v1821
  %5148 = vmatprep.subr.bf16.mxu0 0
  %5149 = vmatpush1.bf16.msra.mxu0 %v1822
  %5150 = vmatprep.subr.bf16.mxu0 0
  %5151 = vmatpush1.bf16.msra.mxu0 %v1823
  %5152 = vmatprep.subr.bf16.mxu0 0
  %5153 = vmatpush1.bf16.msra.mxu0 %v1824
  %5154 = vmatprep.subr.bf16.mxu0 0
  %5155 = vmatpush1.bf16.msra.mxu0 %v1825
  %5156 = vmatprep.subr.bf16.mxu0 0
  %5157 = vmatpush1.bf16.msra.mxu0 %v1826
  %5158 = vmatprep.subr.bf16.mxu0 0
  %5159 = vmatpush1.bf16.msra.mxu0 %v1827
  %5160 = vmatprep.subr.bf16.mxu0 0
  %5161 = vmatpush1.bf16.msra.mxu0 %v1828
  %5162 = vmatprep.subr.bf16.mxu0 0
  %5163 = vmatpush1.bf16.msra.mxu0 %v1829
  %5164 = vmatprep.subr.bf16.mxu0 0
  %5165 = vmatpush1.bf16.msra.mxu0 %v1830
  %5166 = vmatprep.subr.bf16.mxu0 0
  %5167 = vmatpush1.bf16.msra.mxu0 %v1831
  %5168 = vmatprep.subr.bf16.mxu0 0
  %5169 = vmatpush1.bf16.msra.mxu0 %v1832
  %5170 = vmatprep.subr.bf16.mxu0 0
  %5171 = vmatpush1.bf16.msra.mxu0 %v1833
  %5172 = vmatprep.subr.bf16.mxu0 0
  %5173 = vmatpush1.bf16.msra.mxu0 %v1834
  %5174 = vmatprep.subr.bf16.mxu0 0
  %5175 = vmatpush1.bf16.msra.mxu0 %v1835
  %5176 = vmatprep.mubr.bf16.mxu0 %v4759
  %5177 = vmatmul.mubr.bf16.gmra.mrb[0].mxu0 %v4758
  %v5178 = vpop.f32.mrb[0].mxu0
  %v5179 = vadd.f32 %v5115, %v5178
  %v5180 = vpop.f32.mrb[0].mxu0
  %v5181 = vpop.f32.mrb[0].mxu0
  %v5182 = vadd.f32 %v5118, %v5181
  %v5183 = vpop.f32.mrb[0].mxu0
  %5184 = vmatprep.mubr.bf16.mxu0 %v4784
  %5185 = vmatmul.mubr.bf16.gmra.mrb[0].mxu0 %v4783
  %v5186 = vpop.f32.mrb[0].mxu0
  %v5187 = vadd.f32 %v5123, %v5186
  %v5188 = vpop.f32.mrb[0].mxu0
  %v5189 = vpop.f32.mrb[0].mxu0
  %v5190 = vadd.f32 %v5126, %v5189
  %v5191 = vpop.f32.mrb[0].mxu0
  %5192 = vmatprep.mubr.bf16.mxu0 %v4809
  %5193 = vmatmul.mubr.bf16.gmra.mrb[0].mxu0 %v4808
  %v5194 = vpop.f32.mrb[0].mxu0
  %v5195 = vadd.f32 %v5131, %v5194
  %v5196 = vpop.f32.mrb[0].mxu0
  %v5197 = vpop.f32.mrb[0].mxu0
  %v5198 = vadd.f32 %v5134, %v5197
  %v5199 = vpop.f32.mrb[0].mxu0
  %5200 = vmatprep.mubr.bf16.mxu0 %v4834
  %5201 = vmatmul.mubr.bf16.gmra.mrb[0].mxu0 %v4833
  %v5202 = vpop.f32.mrb[0].mxu0
  %v5203 = vadd.f32 %v5139, %v5202
  %v5204 = vpop.f32.mrb[0].mxu0
  %v5205 = vpop.f32.mrb[0].mxu0
  %v5206 = vpop.f32.mrb[0].mxu0
  %5207 = vdwg.mxu0
  %5208 = vmatprep.subr.bf16.mxu0 0
  %5209 = vmatpush1.bf16.msra.mxu0 %v1836
  %5210 = vmatprep.subr.bf16.mxu0 0
  %5211 = vmatpush1.bf16.msra.mxu0 %v1837
  %5212 = vmatprep.subr.bf16.mxu0 0
  %5213 = vmatpush1.bf16.msra.mxu0 %v1838
  %5214 = vmatprep.subr.bf16.mxu0 0
  %5215 = vmatpush1.bf16.msra.mxu0 %v1839
  %5216 = vmatprep.subr.bf16.mxu0 0
  %5217 = vmatpush1.bf16.msra.mxu0 %v1840
  %5218 = vmatprep.subr.bf16.mxu0 0
  %5219 = vmatpush1.bf16.msra.mxu0 %v1841
  %5220 = vmatprep.subr.bf16.mxu0 0
  %5221 = vmatpush1.bf16.msra.mxu0 %v1842
  %5222 = vmatprep.subr.bf16.mxu0 0
  %5223 = vmatpush1.bf16.msra.mxu0 %v1843
  %5224 = vmatprep.subr.bf16.mxu0 0
  %5225 = vmatpush1.bf16.msra.mxu0 %v1844
  %5226 = vmatprep.subr.bf16.mxu0 0
  %5227 = vmatpush1.bf16.msra.mxu0 %v1845
  %5228 = vmatprep.subr.bf16.mxu0 0
  %5229 = vmatpush1.bf16.msra.mxu0 %v1846
  %5230 = vmatprep.subr.bf16.mxu0 0
  %5231 = vmatpush1.bf16.msra.mxu0 %v1847
  %5232 = vmatprep.subr.bf16.mxu0 0
  %5233 = vmatpush1.bf16.msra.mxu0 %v1848
  %5234 = vmatprep.subr.bf16.mxu0 0
  %5235 = vmatpush1.bf16.msra.mxu0 %v1849
  %5236 = vmatprep.subr.bf16.mxu0 0
  %5237 = vmatpush1.bf16.msra.mxu0 %v1850
  %5238 = vmatprep.subr.bf16.mxu0 0
  %5239 = vmatpush1.bf16.msra.mxu0 %v1851
  %5240 = vmatprep.mubr.bf16.mxu0 %v4761
  %5241 = vmatmul.mubr.bf16.gmra.mrb[0].mxu0 %v4760
  %v5242 = vpop.f32.mrb[0].mxu0
  %v5243 = vadd.f32 %v5179, %v5242
  %v5244 = vpop.f32.mrb[0].mxu0
  %v5245 = vpop.f32.mrb[0].mxu0
  %v5246 = vadd.f32 %v5182, %v5245
  %v5247 = vpop.f32.mrb[0].mxu0
  %5248 = vmatprep.mubr.bf16.mxu0 %v4786
  %5249 = vmatmul.mubr.bf16.gmra.mrb[0].mxu0 %v4785
  %v5250 = vpop.f32.mrb[0].mxu0
  %v5251 = vadd.f32 %v5187, %v5250
  %v5252 = vpop.f32.mrb[0].mxu0
  %v5253 = vpop.f32.mrb[0].mxu0
  %v5254 = vadd.f32 %v5190, %v5253
  %v5255 = vpop.f32.mrb[0].mxu0
  %5256 = vmatprep.mubr.bf16.mxu0 %v4811
  %5257 = vmatmul.mubr.bf16.gmra.mrb[0].mxu0 %v4810
  %v5258 = vpop.f32.mrb[0].mxu0
  %v5259 = vadd.f32 %v5195, %v5258
  %v5260 = vpop.f32.mrb[0].mxu0
  %v5261 = vpop.f32.mrb[0].mxu0
  %v5262 = vadd.f32 %v5198, %v5261
  %v5263 = vpop.f32.mrb[0].mxu0
  %5264 = vmatprep.mubr.bf16.mxu0 %v4836
  %5265 = vmatmul.mubr.bf16.gmra.mrb[0].mxu0 %v4835
  %v5266 = vpop.f32.mrb[0].mxu0
  %v5267 = vadd.f32 %v5203, %v5266
  %v5268 = vpop.f32.mrb[0].mxu0
  %v5269 = vpop.f32.mrb[0].mxu0
  %v5270 = vpop.f32.mrb[0].mxu0
  %5271 = vdwg.mxu0
  %5272 = vmatprep.subr.bf16.mxu0 0
  %5273 = vmatpush1.bf16.msra.mxu0 %v1852
  %5274 = vmatprep.subr.bf16.mxu0 0
  %5275 = vmatpush1.bf16.msra.mxu0 %v1853
  %5276 = vmatprep.subr.bf16.mxu0 0
  %5277 = vmatpush1.bf16.msra.mxu0 %v1854
  %5278 = vmatprep.subr.bf16.mxu0 0
  %5279 = vmatpush1.bf16.msra.mxu0 %v1855
  %5280 = vmatprep.subr.bf16.mxu0 0
  %5281 = vmatpush1.bf16.msra.mxu0 %v1856
  %5282 = vmatprep.subr.bf16.mxu0 0
  %5283 = vmatpush1.bf16.msra.mxu0 %v1857
  %5284 = vmatprep.subr.bf16.mxu0 0
  %5285 = vmatpush1.bf16.msra.mxu0 %v1858
  %5286 = vmatprep.subr.bf16.mxu0 0
  %5287 = vmatpush1.bf16.msra.mxu0 %v1859
  %5288 = vmatprep.subr.bf16.mxu0 0
  %5289 = vmatpush1.bf16.msra.mxu0 %v1860
  %5290 = vmatprep.subr.bf16.mxu0 0
  %5291 = vmatpush1.bf16.msra.mxu0 %v1861
  %5292 = vmatprep.subr.bf16.mxu0 0
  %5293 = vmatpush1.bf16.msra.mxu0 %v1862
  %5294 = vmatprep.subr.bf16.mxu0 0
  %5295 = vmatpush1.bf16.msra.mxu0 %v1863
  %5296 = vmatprep.subr.bf16.mxu0 0
  %5297 = vmatpush1.bf16.msra.mxu0 %v1864
  %5298 = vmatprep.subr.bf16.mxu0 0
  %5299 = vmatpush1.bf16.msra.mxu0 %v1865
  %5300 = vmatprep.subr.bf16.mxu0 0
  %5301 = vmatpush1.bf16.msra.mxu0 %v1866
  %5302 = vmatprep.subr.bf16.mxu0 0
  %5303 = vmatpush1.bf16.msra.mxu0 %v1867
  %5304 = vmatprep.mubr.bf16.mxu0 %v4763
  %5305 = vmatmul.mubr.bf16.gmra.mrb[0].mxu0 %v4762
  %v5306 = vpop.f32.mrb[0].mxu0
  %v5307 = vadd.f32 %v5243, %v5306
  %v5308 = vpop.f32.mrb[0].mxu0
  %v5309 = vpop.f32.mrb[0].mxu0
  %v5310 = vadd.f32 %v5246, %v5309
  %v5311 = vpop.f32.mrb[0].mxu0
  %5312 = vmatprep.mubr.bf16.mxu0 %v4788
  %5313 = vmatmul.mubr.bf16.gmra.mrb[0].mxu0 %v4787
  %v5314 = vpop.f32.mrb[0].mxu0
  %v5315 = vadd.f32 %v5251, %v5314
  %v5316 = vpop.f32.mrb[0].mxu0
  %v5317 = vpop.f32.mrb[0].mxu0
  %v5318 = vadd.f32 %v5254, %v5317
  %v5319 = vpop.f32.mrb[0].mxu0
  %5320 = vmatprep.mubr.bf16.mxu0 %v4813
  %5321 = vmatmul.mubr.bf16.gmra.mrb[0].mxu0 %v4812
  %v5322 = vpop.f32.mrb[0].mxu0
  %v5323 = vadd.f32 %v5259, %v5322
  %v5324 = vpop.f32.mrb[0].mxu0
  %v5325 = vpop.f32.mrb[0].mxu0
  %v5326 = vadd.f32 %v5262, %v5325
  %v5327 = vpop.f32.mrb[0].mxu0
  %5328 = vmatprep.mubr.bf16.mxu0 %v4838
  %5329 = vmatmul.mubr.bf16.gmra.mrb[0].mxu0 %v4837
  %v5330 = vpop.f32.mrb[0].mxu0
  %v5331 = vadd.f32 %v5267, %v5330
  %v5332 = vpop.f32.mrb[0].mxu0
  %v5333 = vpop.f32.mrb[0].mxu0
  %v5334 = vpop.f32.mrb[0].mxu0
  %5335 = vdwg.mxu0
  %5336 = vmatprep.subr.bf16.mxu0 0
  %5337 = vmatpush1.bf16.msra.mxu0 %v1868
  %5338 = vmatprep.subr.bf16.mxu0 0
  %5339 = vmatpush1.bf16.msra.mxu0 %v1869
  %5340 = vmatprep.subr.bf16.mxu0 0
  %5341 = vmatpush1.bf16.msra.mxu0 %v1870
  %5342 = vmatprep.subr.bf16.mxu0 0
  %5343 = vmatpush1.bf16.msra.mxu0 %v1871
  %5344 = vmatprep.subr.bf16.mxu0 0
  %5345 = vmatpush1.bf16.msra.mxu0 %v1872
  %5346 = vmatprep.subr.bf16.mxu0 0
  %5347 = vmatpush1.bf16.msra.mxu0 %v1873
  %5348 = vmatprep.subr.bf16.mxu0 0
  %5349 = vmatpush1.bf16.msra.mxu0 %v1874
  %5350 = vmatprep.subr.bf16.mxu0 0
  %5351 = vmatpush1.bf16.msra.mxu0 %v1875
  %5352 = vmatprep.subr.bf16.mxu0 0
  %5353 = vmatpush1.bf16.msra.mxu0 %v1876
  %5354 = vmatprep.subr.bf16.mxu0 0
  %5355 = vmatpush1.bf16.msra.mxu0 %v1877
  %5356 = vmatprep.subr.bf16.mxu0 0
  %5357 = vmatpush1.bf16.msra.mxu0 %v1878
  %5358 = vmatprep.subr.bf16.mxu0 0
  %5359 = vmatpush1.bf16.msra.mxu0 %v1879
  %5360 = vmatprep.subr.bf16.mxu0 0
  %5361 = vmatpush1.bf16.msra.mxu0 %v1880
  %5362 = vmatprep.subr.bf16.mxu0 0
  %5363 = vmatpush1.bf16.msra.mxu0 %v1881
  %5364 = vmatprep.subr.bf16.mxu0 0
  %5365 = vmatpush1.bf16.msra.mxu0 %v1882
  %5366 = vmatprep.subr.bf16.mxu0 0
  %5367 = vmatpush1.bf16.msra.mxu0 %v1883
  %5368 = vmatprep.mubr.bf16.mxu0 %v4765
  %5369 = vmatmul.mubr.bf16.gmra.mrb[0].mxu0 %v4764
  %v5370 = vpop.f32.mrb[0].mxu0
  %v5371 = vadd.f32 %v5307, %v5370
  %v5372 = vpop.f32.mrb[0].mxu0
  %v5373 = vpop.f32.mrb[0].mxu0
  %v5374 = vadd.f32 %v5310, %v5373
  %v5375 = vpop.f32.mrb[0].mxu0
  %5376 = vmatprep.mubr.bf16.mxu0 %v4790
  %5377 = vmatmul.mubr.bf16.gmra.mrb[0].mxu0 %v4789
  %v5378 = vpop.f32.mrb[0].mxu0
  %v5379 = vadd.f32 %v5315, %v5378
  %v5380 = vpop.f32.mrb[0].mxu0
  %v5381 = vpop.f32.mrb[0].mxu0
  %v5382 = vadd.f32 %v5318, %v5381
  %v5383 = vpop.f32.mrb[0].mxu0
  %5384 = vmatprep.mubr.bf16.mxu0 %v4815
  %5385 = vmatmul.mubr.bf16.gmra.mrb[0].mxu0 %v4814
  %v5386 = vpop.f32.mrb[0].mxu0
  %v5387 = vadd.f32 %v5323, %v5386
  %v5388 = vpop.f32.mrb[0].mxu0
  %v5389 = vpop.f32.mrb[0].mxu0
  %v5390 = vadd.f32 %v5326, %v5389
  %v5391 = vpop.f32.mrb[0].mxu0
  %5392 = vmatprep.mubr.bf16.mxu0 %v4840
  %5393 = vmatmul.mubr.bf16.gmra.mrb[0].mxu0 %v4839
  %v5394 = vpop.f32.mrb[0].mxu0
  %v5395 = vadd.f32 %v5331, %v5394
  %v5396 = vpop.f32.mrb[0].mxu0
  %v5397 = vpop.f32.mrb[0].mxu0
  %v5398 = vpop.f32.mrb[0].mxu0
  %5399 = vdwg.mxu0
  %5400 = vmatprep.subr.bf16.mxu0 0
  %5401 = vmatpush1.bf16.msra.mxu0 %v1884
  %5402 = vmatprep.subr.bf16.mxu0 0
  %5403 = vmatpush1.bf16.msra.mxu0 %v1885
  %5404 = vmatprep.subr.bf16.mxu0 0
  %5405 = vmatpush1.bf16.msra.mxu0 %v1886
  %5406 = vmatprep.subr.bf16.mxu0 0
  %5407 = vmatpush1.bf16.msra.mxu0 %v1887
  %5408 = vmatprep.subr.bf16.mxu0 0
  %5409 = vmatpush1.bf16.msra.mxu0 %v1888
  %5410 = vmatprep.subr.bf16.mxu0 0
  %5411 = vmatpush1.bf16.msra.mxu0 %v1889
  %5412 = vmatprep.subr.bf16.mxu0 0
  %5413 = vmatpush1.bf16.msra.mxu0 %v1890
  %5414 = vmatprep.subr.bf16.mxu0 0
  %5415 = vmatpush1.bf16.msra.mxu0 %v1891
  %5416 = vmatprep.subr.bf16.mxu0 0
  %5417 = vmatpush1.bf16.msra.mxu0 %v1892
  %5418 = vmatprep.subr.bf16.mxu0 0
  %5419 = vmatpush1.bf16.msra.mxu0 %v1893
  %5420 = vmatprep.subr.bf16.mxu0 0
  %5421 = vmatpush1.bf16.msra.mxu0 %v1894
  %5422 = vmatprep.subr.bf16.mxu0 0
  %5423 = vmatpush1.bf16.msra.mxu0 %v1895
  %5424 = vmatprep.subr.bf16.mxu0 0
  %5425 = vmatpush1.bf16.msra.mxu0 %v1896
  %5426 = vmatprep.subr.bf16.mxu0 0
  %5427 = vmatpush1.bf16.msra.mxu0 %v1897
  %5428 = vmatprep.subr.bf16.mxu0 0
  %5429 = vmatpush1.bf16.msra.mxu0 %v1898
  %5430 = vmatprep.subr.bf16.mxu0 0
  %5431 = vmatpush1.bf16.msra.mxu0 %v1899
  %5432 = vmatprep.mubr.bf16.mxu0 %v4767
  %5433 = vmatmul.mubr.bf16.gmra.mrb[0].mxu0 %v4766
  %v5434 = vpop.f32.mrb[0].mxu0
  %v5435 = vadd.f32 %v5371, %v5434
  %v5436 = vpop.f32.mrb[0].mxu0
  %v5437 = vpop.f32.mrb[0].mxu0
  %v5438 = vadd.f32 %v5374, %v5437
  %v5439 = vpop.f32.mrb[0].mxu0
  %5440 = vmatprep.mubr.bf16.mxu0 %v4792
  %5441 = vmatmul.mubr.bf16.gmra.mrb[0].mxu0 %v4791
  %v5442 = vpop.f32.mrb[0].mxu0
  %v5443 = vadd.f32 %v5379, %v5442
  %v5444 = vpop.f32.mrb[0].mxu0
  %v5445 = vpop.f32.mrb[0].mxu0
  %v5446 = vadd.f32 %v5382, %v5445
  %v5447 = vpop.f32.mrb[0].mxu0
  %5448 = vmatprep.mubr.bf16.mxu0 %v4817
  %5449 = vmatmul.mubr.bf16.gmra.mrb[0].mxu0 %v4816
  %v5450 = vpop.f32.mrb[0].mxu0
  %v5451 = vadd.f32 %v5387, %v5450
  %v5452 = vpop.f32.mrb[0].mxu0
  %v5453 = vpop.f32.mrb[0].mxu0
  %v5454 = vadd.f32 %v5390, %v5453
  %v5455 = vpop.f32.mrb[0].mxu0
  %5456 = vmatprep.mubr.bf16.mxu0 %v4842
  %5457 = vmatmul.mubr.bf16.gmra.mrb[0].mxu0 %v4841
  %v5458 = vpop.f32.mrb[0].mxu0
  %v5459 = vadd.f32 %v5395, %v5458
  %v5460 = vpop.f32.mrb[0].mxu0
  %v5461 = vpop.f32.mrb[0].mxu0
  %v5462 = vpop.f32.mrb[0].mxu0
  %5463 = vdwg.mxu0
  %5464 = vmatprep.subr.bf16.mxu0 0
  %5465 = vmatpush1.bf16.msra.mxu0 %v1900
  %5466 = vmatprep.subr.bf16.mxu0 0
  %5467 = vmatpush1.bf16.msra.mxu0 %v1901
  %5468 = vmatprep.subr.bf16.mxu0 0
  %5469 = vmatpush1.bf16.msra.mxu0 %v1902
  %5470 = vmatprep.subr.bf16.mxu0 0
  %5471 = vmatpush1.bf16.msra.mxu0 %v1903
  %5472 = vmatprep.subr.bf16.mxu0 0
  %5473 = vmatpush1.bf16.msra.mxu0 %v1904
  %5474 = vmatprep.subr.bf16.mxu0 0
  %5475 = vmatpush1.bf16.msra.mxu0 %v1905
  %5476 = vmatprep.subr.bf16.mxu0 0
  %5477 = vmatpush1.bf16.msra.mxu0 %v1906
  %5478 = vmatprep.subr.bf16.mxu0 0
  %5479 = vmatpush1.bf16.msra.mxu0 %v1907
  %5480 = vmatprep.subr.bf16.mxu0 0
  %5481 = vmatpush1.bf16.msra.mxu0 %v1908
  %5482 = vmatprep.subr.bf16.mxu0 0
  %5483 = vmatpush1.bf16.msra.mxu0 %v1909
  %5484 = vmatprep.subr.bf16.mxu0 0
  %5485 = vmatpush1.bf16.msra.mxu0 %v1910
  %5486 = vmatprep.subr.bf16.mxu0 0
  %5487 = vmatpush1.bf16.msra.mxu0 %v1911
  %5488 = vmatprep.subr.bf16.mxu0 0
  %5489 = vmatpush1.bf16.msra.mxu0 %v1912
  %5490 = vmatprep.subr.bf16.mxu0 0
  %5491 = vmatpush1.bf16.msra.mxu0 %v1913
  %5492 = vmatprep.subr.bf16.mxu0 0
  %5493 = vmatpush1.bf16.msra.mxu0 %v1914
  %5494 = vmatprep.subr.bf16.mxu0 0
  %5495 = vmatpush1.bf16.msra.mxu0 %v1915
  %5496 = vmatprep.mubr.bf16.mxu0 %v4769
  %5497 = vmatmul.mubr.bf16.gmra.mrb[0].mxu0 %v4768
  %v5498 = vpop.f32.mrb[0].mxu0
  %v5499 = vadd.f32 %v5435, %v5498
  %v5500 = vpop.f32.mrb[0].mxu0
  %v5501 = vpop.f32.mrb[0].mxu0
  %v5502 = vadd.f32 %v5438, %v5501
  %v5503 = vpop.f32.mrb[0].mxu0
  %5504 = vmatprep.mubr.bf16.mxu0 %v4794
  %5505 = vmatmul.mubr.bf16.gmra.mrb[0].mxu0 %v4793
  %v5506 = vpop.f32.mrb[0].mxu0
  %v5507 = vadd.f32 %v5443, %v5506
  %v5508 = vpop.f32.mrb[0].mxu0
  %v5509 = vpop.f32.mrb[0].mxu0
  %v5510 = vadd.f32 %v5446, %v5509
  %v5511 = vpop.f32.mrb[0].mxu0
  %5512 = vmatprep.mubr.bf16.mxu0 %v4819
  %5513 = vmatmul.mubr.bf16.gmra.mrb[0].mxu0 %v4818
  %v5514 = vpop.f32.mrb[0].mxu0
  %v5515 = vadd.f32 %v5451, %v5514
  %v5516 = vpop.f32.mrb[0].mxu0
  %v5517 = vpop.f32.mrb[0].mxu0
  %v5518 = vadd.f32 %v5454, %v5517
  %v5519 = vpop.f32.mrb[0].mxu0
  %5520 = vmatprep.mubr.bf16.mxu0 %v4844
  %5521 = vmatmul.mubr.bf16.gmra.mrb[0].mxu0 %v4843
  %v5522 = vpop.f32.mrb[0].mxu0
  %v5523 = vadd.f32 %v5459, %v5522
  %v5524 = vpop.f32.mrb[0].mxu0
  %v5525 = vpop.f32.mrb[0].mxu0
  %v5526 = vpop.f32.mrb[0].mxu0
  %5527 = vdwg.mxu0
  %5528 = vmatprep.subr.bf16.mxu0 0
  %5529 = vmatpush1.bf16.msra.mxu0 %v1916
  %5530 = vmatprep.subr.bf16.mxu0 0
  %5531 = vmatpush1.bf16.msra.mxu0 %v1917
  %5532 = vmatprep.subr.bf16.mxu0 0
  %5533 = vmatpush1.bf16.msra.mxu0 %v1918
  %5534 = vmatprep.subr.bf16.mxu0 0
  %5535 = vmatpush1.bf16.msra.mxu0 %v1919
  %5536 = vmatprep.subr.bf16.mxu0 0
  %5537 = vmatpush1.bf16.msra.mxu0 %v1920
  %5538 = vmatprep.subr.bf16.mxu0 0
  %5539 = vmatpush1.bf16.msra.mxu0 %v1921
  %5540 = vmatprep.subr.bf16.mxu0 0
  %5541 = vmatpush1.bf16.msra.mxu0 %v1922
  %5542 = vmatprep.subr.bf16.mxu0 0
  %5543 = vmatpush1.bf16.msra.mxu0 %v1923
  %5544 = vmatprep.subr.bf16.mxu0 0
  %5545 = vmatpush1.bf16.msra.mxu0 %v1924
  %5546 = vmatprep.subr.bf16.mxu0 0
  %5547 = vmatpush1.bf16.msra.mxu0 %v1925
  %5548 = vmatprep.subr.bf16.mxu0 0
  %5549 = vmatpush1.bf16.msra.mxu0 %v1926
  %5550 = vmatprep.subr.bf16.mxu0 0
  %5551 = vmatpush1.bf16.msra.mxu0 %v1927
  %5552 = vmatprep.subr.bf16.mxu0 0
  %5553 = vmatpush1.bf16.msra.mxu0 %v1928
  %5554 = vmatprep.subr.bf16.mxu0 0
  %5555 = vmatpush1.bf16.msra.mxu0 %v1929
  %5556 = vmatprep.subr.bf16.mxu0 0
  %5557 = vmatpush1.bf16.msra.mxu0 %v1930
  %5558 = vmatprep.subr.bf16.mxu0 0
  %5559 = vmatpush1.bf16.msra.mxu0 %v1931
  %5560 = vmatprep.mubr.bf16.mxu0 %v4771
  %5561 = vmatmul.mubr.bf16.gmra.mrb[0].mxu0 %v4770
  %v5562 = vpop.f32.mrb[0].mxu0
  %v5563 = vadd.f32 %v5499, %v5562
  %v5564 = vpop.f32.mrb[0].mxu0
  %v5565 = vpop.f32.mrb[0].mxu0
  %v5566 = vadd.f32 %v5502, %v5565
  %v5567 = vpop.f32.mrb[0].mxu0
  %5568 = vmatprep.mubr.bf16.mxu0 %v4796
  %5569 = vmatmul.mubr.bf16.gmra.mrb[0].mxu0 %v4795
  %v5570 = vpop.f32.mrb[0].mxu0
  %v5571 = vadd.f32 %v5507, %v5570
  %v5572 = vpop.f32.mrb[0].mxu0
  %v5573 = vpop.f32.mrb[0].mxu0
  %v5574 = vadd.f32 %v5510, %v5573
  %v5575 = vpop.f32.mrb[0].mxu0
  %5576 = vmatprep.mubr.bf16.mxu0 %v4821
  %5577 = vmatmul.mubr.bf16.gmra.mrb[0].mxu0 %v4820
  %v5578 = vpop.f32.mrb[0].mxu0
  %v5579 = vadd.f32 %v5515, %v5578
  %v5580 = vpop.f32.mrb[0].mxu0
  %v5581 = vpop.f32.mrb[0].mxu0
  %v5582 = vadd.f32 %v5518, %v5581
  %v5583 = vpop.f32.mrb[0].mxu0
  %5584 = vmatprep.mubr.bf16.mxu0 %v4846
  %5585 = vmatmul.mubr.bf16.gmra.mrb[0].mxu0 %v4845
  %v5586 = vpop.f32.mrb[0].mxu0
  %v5587 = vadd.f32 %v5523, %v5586
  %v5588 = vpop.f32.mrb[0].mxu0
  %v5589 = vpop.f32.mrb[0].mxu0
  %v5590 = vpop.f32.mrb[0].mxu0
  %5591 = vdwg.mxu0
  %5592 = vmatprep.subr.bf16.mxu0 0
  %5593 = vmatpush1.bf16.msra.mxu0 %v1932
  %5594 = vmatprep.subr.bf16.mxu0 0
  %5595 = vmatpush1.bf16.msra.mxu0 %v1933
  %5596 = vmatprep.subr.bf16.mxu0 0
  %5597 = vmatpush1.bf16.msra.mxu0 %v1934
  %5598 = vmatprep.subr.bf16.mxu0 0
  %5599 = vmatpush1.bf16.msra.mxu0 %v1935
  %5600 = vmatprep.subr.bf16.mxu0 0
  %5601 = vmatpush1.bf16.msra.mxu0 %v1936
  %5602 = vmatprep.subr.bf16.mxu0 0
  %5603 = vmatpush1.bf16.msra.mxu0 %v1937
  %5604 = vmatprep.subr.bf16.mxu0 0
  %5605 = vmatpush1.bf16.msra.mxu0 %v1938
  %5606 = vmatprep.subr.bf16.mxu0 0
  %5607 = vmatpush1.bf16.msra.mxu0 %v1939
  %5608 = vmatprep.subr.bf16.mxu0 0
  %5609 = vmatpush1.bf16.msra.mxu0 %v1940
  %5610 = vmatprep.subr.bf16.mxu0 0
  %5611 = vmatpush1.bf16.msra.mxu0 %v1941
  %5612 = vmatprep.subr.bf16.mxu0 0
  %5613 = vmatpush1.bf16.msra.mxu0 %v1942
  %5614 = vmatprep.subr.bf16.mxu0 0
  %5615 = vmatpush1.bf16.msra.mxu0 %v1943
  %5616 = vmatprep.subr.bf16.mxu0 0
  %5617 = vmatpush1.bf16.msra.mxu0 %v1944
  %5618 = vmatprep.subr.bf16.mxu0 0
  %5619 = vmatpush1.bf16.msra.mxu0 %v1945
  %5620 = vmatprep.subr.bf16.mxu0 0
  %5621 = vmatpush1.bf16.msra.mxu0 %v1946
  %5622 = vmatprep.subr.bf16.mxu0 0
  %5623 = vmatpush1.bf16.msra.mxu0 %v1947
  %5624 = vmatprep.mubr.bf16.mxu0 %v4773
  %5625 = vmatmul.mubr.bf16.gmra.mrb[0].mxu0 %v4772
  %v5626 = vpop.f32.mrb[0].mxu0
  %v5627 = vadd.f32 %v5563, %v5626
  %v5628 = vpop.f32.mrb[0].mxu0
  %v5629 = vpop.f32.mrb[0].mxu0
  %v5630 = vadd.f32 %v5566, %v5629
  %v5631 = vpop.f32.mrb[0].mxu0
  %5632 = vmatprep.mubr.bf16.mxu0 %v4798
  %5633 = vmatmul.mubr.bf16.gmra.mrb[0].mxu0 %v4797
  %v5634 = vpop.f32.mrb[0].mxu0
  %v5635 = vadd.f32 %v5571, %v5634
  %v5636 = vpop.f32.mrb[0].mxu0
  %v5637 = vpop.f32.mrb[0].mxu0
  %v5638 = vadd.f32 %v5574, %v5637
  %v5639 = vpop.f32.mrb[0].mxu0
  %5640 = vmatprep.mubr.bf16.mxu0 %v4823
  %5641 = vmatmul.mubr.bf16.gmra.mrb[0].mxu0 %v4822
  %v5642 = vpop.f32.mrb[0].mxu0
  %v5643 = vadd.f32 %v5579, %v5642
  %v5644 = vpop.f32.mrb[0].mxu0
  %v5645 = vpop.f32.mrb[0].mxu0
  %v5646 = vadd.f32 %v5582, %v5645
  %v5647 = vpop.f32.mrb[0].mxu0
  %5648 = vmatprep.mubr.bf16.mxu0 %v4848
  %5649 = vmatmul.mubr.bf16.gmra.mrb[0].mxu0 %v4847
  %v5650 = vpop.f32.mrb[0].mxu0
  %v5651 = vadd.f32 %v5587, %v5650
  %v5652 = vpop.f32.mrb[0].mxu0
  %v5653 = vpop.f32.mrb[0].mxu0
  %v5654 = vpop.f32.mrb[0].mxu0
  %5655 = vdwg.mxu0
  %5656 = vmatprep.subr.bf16.mxu0 0
  %5657 = vmatpush1.bf16.msra.mxu0 %v1948
  %5658 = vmatprep.subr.bf16.mxu0 0
  %5659 = vmatpush1.bf16.msra.mxu0 %v1949
  %5660 = vmatprep.subr.bf16.mxu0 0
  %5661 = vmatpush1.bf16.msra.mxu0 %v1950
  %5662 = vmatprep.subr.bf16.mxu0 0
  %5663 = vmatpush1.bf16.msra.mxu0 %v1951
  %5664 = vmatprep.subr.bf16.mxu0 0
  %5665 = vmatpush1.bf16.msra.mxu0 %v1952
  %5666 = vmatprep.subr.bf16.mxu0 0
  %5667 = vmatpush1.bf16.msra.mxu0 %v1953
  %5668 = vmatprep.subr.bf16.mxu0 0
  %5669 = vmatpush1.bf16.msra.mxu0 %v1954
  %5670 = vmatprep.subr.bf16.mxu0 0
  %5671 = vmatpush1.bf16.msra.mxu0 %v1955
  %5672 = vmatprep.subr.bf16.mxu0 0
  %5673 = vmatpush1.bf16.msra.mxu0 %v1956
  %5674 = vmatprep.subr.bf16.mxu0 0
  %5675 = vmatpush1.bf16.msra.mxu0 %v1957
  %5676 = vmatprep.subr.bf16.mxu0 0
  %5677 = vmatpush1.bf16.msra.mxu0 %v1958
  %5678 = vmatprep.subr.bf16.mxu0 0
  %5679 = vmatpush1.bf16.msra.mxu0 %v1959
  %5680 = vmatprep.subr.bf16.mxu0 0
  %5681 = vmatpush1.bf16.msra.mxu0 %v1960
  %5682 = vmatprep.subr.bf16.mxu0 0
  %5683 = vmatpush1.bf16.msra.mxu0 %v1961
  %5684 = vmatprep.subr.bf16.mxu0 0
  %5685 = vmatpush1.bf16.msra.mxu0 %v1962
  %5686 = vmatprep.subr.bf16.mxu0 0
  %5687 = vmatpush1.bf16.msra.mxu0 %v1963
  %5688 = vmatprep.mubr.bf16.mxu0 %v4775
  %5689 = vmatmul.mubr.bf16.gmra.mrb[0].mxu0 %v4774
  %v5690 = vpop.f32.mrb[0].mxu0
  %v5691 = vadd.f32 %v5627, %v5690
  %v5692 = vpop.f32.mrb[0].mxu0
  %v5693 = vpop.f32.mrb[0].mxu0
  %v5694 = vadd.f32 %v5630, %v5693
  %v5695 = vpop.f32.mrb[0].mxu0
  %5696 = vmatprep.mubr.bf16.mxu0 %v4800
  %5697 = vmatmul.mubr.bf16.gmra.mrb[0].mxu0 %v4799
  %v5698 = vpop.f32.mrb[0].mxu0
  %v5699 = vadd.f32 %v5635, %v5698
  %v5700 = vpop.f32.mrb[0].mxu0
  %v5701 = vpop.f32.mrb[0].mxu0
  %v5702 = vadd.f32 %v5638, %v5701
  %v5703 = vpop.f32.mrb[0].mxu0
  %5704 = vmatprep.mubr.bf16.mxu0 %v4825
  %5705 = vmatmul.mubr.bf16.gmra.mrb[0].mxu0 %v4824
  %v5706 = vpop.f32.mrb[0].mxu0
  %v5707 = vadd.f32 %v5643, %v5706
  %v5708 = vpop.f32.mrb[0].mxu0
  %v5709 = vpop.f32.mrb[0].mxu0
  %v5710 = vadd.f32 %v5646, %v5709
  %v5711 = vpop.f32.mrb[0].mxu0
  %5712 = vmatprep.mubr.bf16.mxu0 %v4850
  %5713 = vmatmul.mubr.bf16.gmra.mrb[0].mxu0 %v4849
  %v5714 = vpop.f32.mrb[0].mxu0
  %v5715 = vadd.f32 %v5651, %v5714
  %v5716 = vpop.f32.mrb[0].mxu0
  %v5717 = vpop.f32.mrb[0].mxu0
  %v5718 = vpop.f32.mrb[0].mxu0
  %5719 = vdwg.mxu0
  %5720 = vmatprep.subr.bf16.mxu0 0
  %5721 = vmatpush1.bf16.msra.mxu0 %v1964
  %5722 = vmatprep.subr.bf16.mxu0 0
  %5723 = vmatpush1.bf16.msra.mxu0 %v1965
  %5724 = vmatprep.subr.bf16.mxu0 0
  %5725 = vmatpush1.bf16.msra.mxu0 %v1966
  %5726 = vmatprep.subr.bf16.mxu0 0
  %5727 = vmatpush1.bf16.msra.mxu0 %v1967
  %5728 = vmatprep.subr.bf16.mxu0 0
  %5729 = vmatpush1.bf16.msra.mxu0 %v1968
  %5730 = vmatprep.subr.bf16.mxu0 0
  %5731 = vmatpush1.bf16.msra.mxu0 %v1969
  %5732 = vmatprep.subr.bf16.mxu0 0
  %5733 = vmatpush1.bf16.msra.mxu0 %v1970
  %5734 = vmatprep.subr.bf16.mxu0 0
  %5735 = vmatpush1.bf16.msra.mxu0 %v1971
  %5736 = vmatprep.subr.bf16.mxu0 0
  %5737 = vmatpush1.bf16.msra.mxu0 0
  %5738 = vmatprep.subr.bf16.mxu0 0
  %5739 = vmatpush1.bf16.msra.mxu0 0
  %5740 = vmatprep.subr.bf16.mxu0 0
  %5741 = vmatpush1.bf16.msra.mxu0 0
  %5742 = vmatprep.subr.bf16.mxu0 0
  %5743 = vmatpush1.bf16.msra.mxu0 0
  %5744 = vmatprep.subr.bf16.mxu0 0
  %5745 = vmatpush1.bf16.msra.mxu0 0
  %5746 = vmatprep.subr.bf16.mxu0 0
  %5747 = vmatpush1.bf16.msra.mxu0 0
  %5748 = vmatprep.subr.bf16.mxu0 0
  %5749 = vmatpush1.bf16.msra.mxu0 0
  %5750 = vmatprep.subr.bf16.mxu0 0
  %5751 = vmatpush1.bf16.msra.mxu0 0
  %5752 = vmatprep.mubr.bf16.mxu0 0
  %5753 = vmatmul.mubr.bf16.gmra.mrb[0].mxu0 %v4776
  %v5754 = vpop.f32.mrb[0].mxu0
  %v5755 = vadd.f32 %v5691, %v5754
  %v5756 = vpop.f32.mrb[0].mxu0
  %v5757 = vpop.f32.mrb[0].mxu0
  %v5758 = vadd.f32 %v5694, %v5757
  %v5759 = vpop.f32.mrb[0].mxu0
  %5760 = vmatprep.mubr.bf16.mxu0 0
  %5761 = vmatmul.mubr.bf16.gmra.mrb[0].mxu0 %v4801
  %v5762 = vpop.f32.mrb[0].mxu0
  %v5763 = vadd.f32 %v5699, %v5762
  %v5764 = vpop.f32.mrb[0].mxu0
  %v5765 = vpop.f32.mrb[0].mxu0
  %v5766 = vadd.f32 %v5702, %v5765
  %v5767 = vpop.f32.mrb[0].mxu0
  %5768 = vmatprep.mubr.bf16.mxu0 0
  %5769 = vmatmul.mubr.bf16.gmra.mrb[0].mxu0 %v4826
  %v5770 = vpop.f32.mrb[0].mxu0
  %v5771 = vadd.f32 %v5707, %v5770
  %v5772 = vpop.f32.mrb[0].mxu0
  %v5773 = vpop.f32.mrb[0].mxu0
  %v5774 = vadd.f32 %v5710, %v5773
  %v5775 = vpop.f32.mrb[0].mxu0
  %5776 = vmatprep.mubr.bf16.mxu0 0
  %5777 = vmatmul.mubr.bf16.gmra.mrb[0].mxu0 %v4851
  %v5778 = vpop.f32.mrb[0].mxu0
  %v5779 = vadd.f32 %v5715, %v5778
  %v5780 = vpop.f32.mrb[0].mxu0
  %v5781 = vpop.f32.mrb[0].mxu0
  %v5782 = vpop.f32.mrb[0].mxu0
  %5783 = vdwg.mxu0
  %s5784 = scalar_lea.vmem %s0, 2100
  %v5785 = vld [vmem:[%s5784] sm:$0xff]
  %v5786 = vld [vmem:[%s5784 + $0x8] sm:$0xff]
  %v5787 = vld [vmem:[%s5784 + $0x10] sm:$0xff]
  %v5788 = vld [vmem:[%s5784 + $0x18] sm:$0xff]
  %v5789 = vld [vmem:[%s5784 + $0x20] sm:$0xff]
  %v5790 = vld [vmem:[%s5784 + $0x28] sm:$0xff]
  %v5791 = vld [vmem:[%s5784 + $0x30] sm:$0xff]
  %v5792 = vld [vmem:[%s5784 + $0x38] sm:$0xff]
  %v5793 = vld [vmem:[%s5784 + $0x40] sm:$0xff]
  %v5794 = vld [vmem:[%s5784 + $0x48] sm:$0xff]
  %v5795 = vld [vmem:[%s5784 + $0x50] sm:$0xff]
  %v5796 = vld [vmem:[%s5784 + $0x58] sm:$0xff]
  %v5797 = vld [vmem:[%s5784 + $0x60] sm:$0xf]
  %v5798 = vld [vmem:[%s5784 + $0x64] sm:$0xff]
  %v5799 = vld [vmem:[%s5784 + $0x6c] sm:$0xff]
  %v5800 = vld [vmem:[%s5784 + $0x74] sm:$0xff]
  %v5801 = vld [vmem:[%s5784 + $0x7c] sm:$0xff]
  %v5802 = vld [vmem:[%s5784 + $0x84] sm:$0xff]
  %v5803 = vld [vmem:[%s5784 + $0x8c] sm:$0xff]
  %v5804 = vld [vmem:[%s5784 + $0x94] sm:$0xff]
  %v5805 = vld [vmem:[%s5784 + $0x9c] sm:$0xff]
  %v5806 = vld [vmem:[%s5784 + $0xa4] sm:$0xff]
  %v5807 = vld [vmem:[%s5784 + $0xac] sm:$0xff]
  %v5808 = vld [vmem:[%s5784 + $0xb4] sm:$0xff]
  %v5809 = vld [vmem:[%s5784 + $0xbc] sm:$0xff]
  %v5810 = vld [vmem:[%s5784 + $0xc4] sm:$0xf]
  %v5811 = vld [vmem:[%s5784 + $0xc8] sm:$0xff]
  %v5812 = vld [vmem:[%s5784 + $0xd0] sm:$0xff]
  %v5813 = vld [vmem:[%s5784 + $0xd8] sm:$0xff]
  %v5814 = vld [vmem:[%s5784 + $0xe0] sm:$0xff]
  %v5815 = vld [vmem:[%s5784 + $0xe8] sm:$0xff]
  %v5816 = vld [vmem:[%s5784 + $0xf0] sm:$0xff]
  %v5817 = vld [vmem:[%s5784 + $0xf8] sm:$0xff]
  %v5818 = vld [vmem:[%s5784 + $0x100] sm:$0xff]
  %v5819 = vld [vmem:[%s5784 + $0x108] sm:$0xff]
  %v5820 = vld [vmem:[%s5784 + $0x110] sm:$0xff]
  %v5821 = vld [vmem:[%s5784 + $0x118] sm:$0xff]
  %v5822 = vld [vmem:[%s5784 + $0x120] sm:$0xff]
  %v5823 = vld [vmem:[%s5784 + $0x128] sm:$0xf]
  %v5824 = vld [vmem:[%s5784 + $0x12c] sm:$0xff]
  %v5825 = vld [vmem:[%s5784 + $0x134] sm:$0xff]
  %v5826 = vld [vmem:[%s5784 + $0x13c] sm:$0xff]
  %v5827 = vld [vmem:[%s5784 + $0x144] sm:$0xff]
  %v5828 = vld [vmem:[%s5784 + $0x14c] sm:$0xff]
  %v5829 = vld [vmem:[%s5784 + $0x154] sm:$0xff]
  %v5830 = vld [vmem:[%s5784 + $0x15c] sm:$0xff]
  %v5831 = vld [vmem:[%s5784 + $0x164] sm:$0xff]
  %v5832 = vld [vmem:[%s5784 + $0x16c] sm:$0xff]
  %v5833 = vld [vmem:[%s5784 + $0x174] sm:$0xff]
  %v5834 = vld [vmem:[%s5784 + $0x17c] sm:$0xff]
  %v5835 = vld [vmem:[%s5784 + $0x184] sm:$0xff]
  %v5836 = vld [vmem:[%s5784 + $0x18c] sm:$0xf]
  %v5837 = vld [vmem:[%s5784 + $0x190] sm:$0xff]
  %v5838 = vld [vmem:[%s5784 + $0x198] sm:$0xff]
  %v5839 = vld [vmem:[%s5784 + $0x1a0] sm:$0xff]
  %v5840 = vld [vmem:[%s5784 + $0x1a8] sm:$0xff]
  %v5841 = vld [vmem:[%s5784 + $0x1b0] sm:$0xff]
  %v5842 = vld [vmem:[%s5784 + $0x1b8] sm:$0xff]
  %v5843 = vld [vmem:[%s5784 + $0x1c0] sm:$0xff]
  %v5844 = vld [vmem:[%s5784 + $0x1c8] sm:$0xff]
  %v5845 = vld [vmem:[%s5784 + $0x1d0] sm:$0xff]
  %v5846 = vld [vmem:[%s5784 + $0x1d8] sm:$0xff]
  %v5847 = vld [vmem:[%s5784 + $0x1e0] sm:$0xff]
  %v5848 = vld [vmem:[%s5784 + $0x1e8] sm:$0xff]
  %v5849 = vld [vmem:[%s5784 + $0x1f0] sm:$0xf]
  %v5850 = vld [vmem:[%s5784 + $0x1f4] sm:$0xff]
  %v5851 = vld [vmem:[%s5784 + $0x1fc] sm:$0xff]
  %v5852 = vld [vmem:[%s5784 + $0x204] sm:$0xff]
  %v5853 = vld [vmem:[%s5784 + $0x20c] sm:$0xff]
  %v5854 = vld [vmem:[%s5784 + $0x214] sm:$0xff]
  %v5855 = vld [vmem:[%s5784 + $0x21c] sm:$0xff]
  %v5856 = vld [vmem:[%s5784 + $0x224] sm:$0xff]
  %v5857 = vld [vmem:[%s5784 + $0x22c] sm:$0xff]
  %v5858 = vld [vmem:[%s5784 + $0x234] sm:$0xff]
  %v5859 = vld [vmem:[%s5784 + $0x23c] sm:$0xff]
  %v5860 = vld [vmem:[%s5784 + $0x244] sm:$0xff]
  %v5861 = vld [vmem:[%s5784 + $0x24c] sm:$0xff]
  %v5862 = vld [vmem:[%s5784 + $0x254] sm:$0xf]
  %v5863 = vld [vmem:[%s5784 + $0x258] sm:$0x11]
  %v5864 = vld [vmem:[%s5784 + $0x260] sm:$0x11]
  %v5865 = vld [vmem:[%s5784 + $0x268] sm:$0x11]
  %v5866 = vld [vmem:[%s5784 + $0x270] sm:$0x11]
  %v5867 = vld [vmem:[%s5784 + $0x278] sm:$0x11]
  %v5868 = vld [vmem:[%s5784 + $0x280] sm:$0x11]
  %v5869 = vld [vmem:[%s5784 + $0x288] sm:$0x11]
  %v5870 = vld [vmem:[%s5784 + $0x290] sm:$0x11]
  %v5871 = vld [vmem:[%s5784 + $0x298] sm:$0x11]
  %v5872 = vld [vmem:[%s5784 + $0x2a0] sm:$0x11]
  %v5873 = vld [vmem:[%s5784 + $0x2a8] sm:$0x11]
  %v5874 = vld [vmem:[%s5784 + $0x2b0] sm:$0x11]
  %v5875 = vld [vmem:[%s5784 + $0x2b8] sm:$0x1]
  %v5967 = vunpack.c.l.b16 %v5785
  %v5968 = vunpack.c.h.b16 %v5785
  %v5969 = vunpack.c.l.b16 %v5786
  %v5970 = vunpack.c.h.b16 %v5786
  %v5971 = vunpack.c.l.b16 %v5787
  %v5972 = vunpack.c.h.b16 %v5787
  %v5973 = vunpack.c.l.b16 %v5788
  %v5974 = vunpack.c.h.b16 %v5788
  %v5975 = vunpack.c.l.b16 %v5789
  %v5976 = vunpack.c.h.b16 %v5789
  %v5977 = vunpack.c.l.b16 %v5790
  %v5978 = vunpack.c.h.b16 %v5790
  %v5979 = vunpack.c.l.b16 %v5791
  %v5980 = vunpack.c.h.b16 %v5791
  %v5981 = vunpack.c.l.b16 %v5792
  %v5982 = vunpack.c.h.b16 %v5792
  %v5983 = vunpack.c.l.b16 %v5793
  %v5984 = vunpack.c.h.b16 %v5793
  %v5985 = vunpack.c.l.b16 %v5794
  %v5986 = vunpack.c.h.b16 %v5794
  %v5987 = vunpack.c.l.b16 %v5795
  %v5988 = vunpack.c.h.b16 %v5795
  %v5989 = vunpack.c.l.b16 %v5796
  %v5990 = vunpack.c.h.b16 %v5796
  %v5991 = vunpack.c.l.b16 %v5797
  %v5992 = vunpack.c.l.b16 %v5798
  %v5993 = vunpack.c.h.b16 %v5798
  %v5994 = vunpack.c.l.b16 %v5799
  %v5995 = vunpack.c.h.b16 %v5799
  %v5996 = vunpack.c.l.b16 %v5800
  %v5997 = vunpack.c.h.b16 %v5800
  %v5998 = vunpack.c.l.b16 %v5801
  %v5999 = vunpack.c.h.b16 %v5801
  %v6000 = vunpack.c.l.b16 %v5802
  %v6001 = vunpack.c.h.b16 %v5802
  %v6002 = vunpack.c.l.b16 %v5803
  %v6003 = vunpack.c.h.b16 %v5803
  %v6004 = vunpack.c.l.b16 %v5804
  %v6005 = vunpack.c.h.b16 %v5804
  %v6006 = vunpack.c.l.b16 %v5805
  %v6007 = vunpack.c.h.b16 %v5805
  %v6008 = vunpack.c.l.b16 %v5806
  %v6009 = vunpack.c.h.b16 %v5806
  %v6010 = vunpack.c.l.b16 %v5807
  %v6011 = vunpack.c.h.b16 %v5807
  %v6012 = vunpack.c.l.b16 %v5808
  %v6013 = vunpack.c.h.b16 %v5808
  %v6014 = vunpack.c.l.b16 %v5809
  %v6015 = vunpack.c.h.b16 %v5809
  %v6016 = vunpack.c.l.b16 %v5810
  %v6017 = vunpack.c.l.b16 %v5811
  %v6018 = vunpack.c.h.b16 %v5811
  %v6019 = vunpack.c.l.b16 %v5812
  %v6020 = vunpack.c.h.b16 %v5812
  %v6021 = vunpack.c.l.b16 %v5813
  %v6022 = vunpack.c.h.b16 %v5813
  %v6023 = vunpack.c.l.b16 %v5814
  %v6024 = vunpack.c.h.b16 %v5814
  %v6025 = vunpack.c.l.b16 %v5815
  %v6026 = vunpack.c.h.b16 %v5815
  %v6027 = vunpack.c.l.b16 %v5816
  %v6028 = vunpack.c.h.b16 %v5816
  %v6029 = vunpack.c.l.b16 %v5817
  %v6030 = vunpack.c.h.b16 %v5817
  %v6031 = vunpack.c.l.b16 %v5818
  %v6032 = vunpack.c.h.b16 %v5818
  %v6033 = vunpack.c.l.b16 %v5819
  %v6034 = vunpack.c.h.b16 %v5819
  %v6035 = vunpack.c.l.b16 %v5820
  %v6036 = vunpack.c.h.b16 %v5820
  %v6037 = vunpack.c.l.b16 %v5821
  %v6038 = vunpack.c.h.b16 %v5821
  %v6039 = vunpack.c.l.b16 %v5822
  %v6040 = vunpack.c.h.b16 %v5822
  %v6041 = vunpack.c.l.b16 %v5823
  %v6042 = vunpack.c.l.b16 %v5824
  %v6043 = vunpack.c.h.b16 %v5824
  %v6044 = vunpack.c.l.b16 %v5825
  %v6045 = vunpack.c.h.b16 %v5825
  %v6046 = vunpack.c.l.b16 %v5826
  %v6047 = vunpack.c.h.b16 %v5826
  %v6048 = vunpack.c.l.b16 %v5827
  %v6049 = vunpack.c.h.b16 %v5827
  %v6050 = vunpack.c.l.b16 %v5828
  %v6051 = vunpack.c.h.b16 %v5828
  %v6052 = vunpack.c.l.b16 %v5829
  %v6053 = vunpack.c.h.b16 %v5829
  %v6054 = vunpack.c.l.b16 %v5830
  %v6055 = vunpack.c.h.b16 %v5830
  %v6056 = vunpack.c.l.b16 %v5831
  %v6057 = vunpack.c.h.b16 %v5831
  %v6058 = vunpack.c.l.b16 %v5832
  %v6059 = vunpack.c.h.b16 %v5832
  %v6060 = vunpack.c.l.b16 %v5833
  %v6061 = vunpack.c.h.b16 %v5833
  %v6062 = vunpack.c.l.b16 %v5834
  %v6063 = vunpack.c.h.b16 %v5834
  %v6064 = vunpack.c.l.b16 %v5835
  %v6065 = vunpack.c.h.b16 %v5835
  %v6066 = vunpack.c.l.b16 %v5836
  %v6067 = vunpack.c.l.b16 %v5837
  %v6068 = vunpack.c.h.b16 %v5837
  %v6069 = vunpack.c.l.b16 %v5838
  %v6070 = vunpack.c.h.b16 %v5838
  %v6071 = vunpack.c.l.b16 %v5839
  %v6072 = vunpack.c.h.b16 %v5839
  %v6073 = vunpack.c.l.b16 %v5840
  %v6074 = vunpack.c.h.b16 %v5840
  %v6075 = vunpack.c.l.b16 %v5841
  %v6076 = vunpack.c.h.b16 %v5841
  %v6077 = vunpack.c.l.b16 %v5842
  %v6078 = vunpack.c.h.b16 %v5842
  %v6079 = vunpack.c.l.b16 %v5843
  %v6080 = vunpack.c.h.b16 %v5843
  %v6081 = vunpack.c.l.b16 %v5844
  %v6082 = vunpack.c.h.b16 %v5844
  %v6083 = vunpack.c.l.b16 %v5845
  %v6084 = vunpack.c.h.b16 %v5845
  %v6085 = vunpack.c.l.b16 %v5846
  %v6086 = vunpack.c.h.b16 %v5846
  %v6087 = vunpack.c.l.b16 %v5847
  %v6088 = vunpack.c.h.b16 %v5847
  %v6089 = vunpack.c.l.b16 %v5848
  %v6090 = vunpack.c.h.b16 %v5848
  %v6091 = vunpack.c.l.b16 %v5849
  %v6092 = vunpack.c.l.b16 %v5850
  %v6093 = vunpack.c.h.b16 %v5850
  %v6094 = vunpack.c.l.b16 %v5851
  %v6095 = vunpack.c.h.b16 %v5851
  %v6096 = vunpack.c.l.b16 %v5852
  %v6097 = vunpack.c.h.b16 %v5852
  %v6098 = vunpack.c.l.b16 %v5853
  %v6099 = vunpack.c.h.b16 %v5853
  %v6100 = vunpack.c.l.b16 %v5854
  %v6101 = vunpack.c.h.b16 %v5854
  %v6102 = vunpack.c.l.b16 %v5855
  %v6103 = vunpack.c.h.b16 %v5855
  %v6104 = vunpack.c.l.b16 %v5856
  %v6105 = vunpack.c.h.b16 %v5856
  %v6106 = vunpack.c.l.b16 %v5857
  %v6107 = vunpack.c.h.b16 %v5857
  %v6108 = vunpack.c.l.b16 %v5858
  %v6109 = vunpack.c.h.b16 %v5858
  %v6110 = vunpack.c.l.b16 %v5859
  %v6111 = vunpack.c.h.b16 %v5859
  %v6112 = vunpack.c.l.b16 %v5860
  %v6113 = vunpack.c.h.b16 %v5860
  %v6114 = vunpack.c.l.b16 %v5861
  %v6115 = vunpack.c.h.b16 %v5861
  %v6116 = vunpack.c.l.b16 %v5862
  %v6117 = vunpack.c.l.b16 %v5863
  %v6118 = vunpack.c.h.b16 %v5863
  %v6119 = vunpack.c.l.b16 %v5864
  %v6120 = vunpack.c.h.b16 %v5864
  %v6121 = vunpack.c.l.b16 %v5865
  %v6122 = vunpack.c.h.b16 %v5865
  %v6123 = vunpack.c.l.b16 %v5866
  %v6124 = vunpack.c.h.b16 %v5866
  %v6125 = vunpack.c.l.b16 %v5867
  %v6126 = vunpack.c.h.b16 %v5867
  %v6127 = vunpack.c.l.b16 %v5868
  %v6128 = vunpack.c.h.b16 %v5868
  %v6129 = vunpack.c.l.b16 %v5869
  %v6130 = vunpack.c.h.b16 %v5869
  %v6131 = vunpack.c.l.b16 %v5870
  %v6132 = vunpack.c.h.b16 %v5870
  %v6133 = vunpack.c.l.b16 %v5871
  %v6134 = vunpack.c.h.b16 %v5871
  %v6135 = vunpack.c.l.b16 %v5872
  %v6136 = vunpack.c.h.b16 %v5872
  %v6137 = vunpack.c.l.b16 %v5873
  %v6138 = vunpack.c.h.b16 %v5873
  %v6139 = vunpack.c.l.b16 %v5874
  %v6140 = vunpack.c.h.b16 %v5874
  %v6141 = vunpack.c.l.b16 %v5875
  %v6142 = vpack.c.b16 %v5992, %v5967
  %v6143 = vpack.c.b16 %v5993, %v5968
  %v6144 = vpack.c.b16 %v5994, %v5969
  %v6145 = vpack.c.b16 %v5995, %v5970
  %v6146 = vpack.c.b16 %v5996, %v5971
  %v6147 = vpack.c.b16 %v5997, %v5972
  %v6148 = vpack.c.b16 %v5998, %v5973
  %v6149 = vpack.c.b16 %v5999, %v5974
  %v6150 = vpack.c.b16 %v6000, %v5975
  %v6151 = vpack.c.b16 %v6001, %v5976
  %v6152 = vpack.c.b16 %v6002, %v5977
  %v6153 = vpack.c.b16 %v6003, %v5978
  %v6154 = vpack.c.b16 %v6004, %v5979
  %v6155 = vpack.c.b16 %v6005, %v5980
  %v6156 = vpack.c.b16 %v6006, %v5981
  %v6157 = vpack.c.b16 %v6007, %v5982
  %v6158 = vpack.c.b16 %v6008, %v5983
  %v6159 = vpack.c.b16 %v6009, %v5984
  %v6160 = vpack.c.b16 %v6010, %v5985
  %v6161 = vpack.c.b16 %v6011, %v5986
  %v6162 = vpack.c.b16 %v6012, %v5987
  %v6163 = vpack.c.b16 %v6013, %v5988
  %v6164 = vpack.c.b16 %v6014, %v5989
  %v6165 = vpack.c.b16 %v6015, %v5990
  %v6166 = vpack.c.b16 %v6016, %v5991
  %v6167 = vpack.c.b16 %v6042, %v6017
  %v6168 = vpack.c.b16 %v6043, %v6018
  %v6169 = vpack.c.b16 %v6044, %v6019
  %v6170 = vpack.c.b16 %v6045, %v6020
  %v6171 = vpack.c.b16 %v6046, %v6021
  %v6172 = vpack.c.b16 %v6047, %v6022
  %v6173 = vpack.c.b16 %v6048, %v6023
  %v6174 = vpack.c.b16 %v6049, %v6024
  %v6175 = vpack.c.b16 %v6050, %v6025
  %v6176 = vpack.c.b16 %v6051, %v6026
  %v6177 = vpack.c.b16 %v6052, %v6027
  %v6178 = vpack.c.b16 %v6053, %v6028
  %v6179 = vpack.c.b16 %v6054, %v6029
  %v6180 = vpack.c.b16 %v6055, %v6030
  %v6181 = vpack.c.b16 %v6056, %v6031
  %v6182 = vpack.c.b16 %v6057, %v6032
  %v6183 = vpack.c.b16 %v6058, %v6033
  %v6184 = vpack.c.b16 %v6059, %v6034
  %v6185 = vpack.c.b16 %v6060, %v6035
  %v6186 = vpack.c.b16 %v6061, %v6036
  %v6187 = vpack.c.b16 %v6062, %v6037
  %v6188 = vpack.c.b16 %v6063, %v6038
  %v6189 = vpack.c.b16 %v6064, %v6039
  %v6190 = vpack.c.b16 %v6065, %v6040
  %v6191 = vpack.c.b16 %v6066, %v6041
  %v6192 = vpack.c.b16 %v6092, %v6067
  %v6193 = vpack.c.b16 %v6093, %v6068
  %v6194 = vpack.c.b16 %v6094, %v6069
  %v6195 = vpack.c.b16 %v6095, %v6070
  %v6196 = vpack.c.b16 %v6096, %v6071
  %v6197 = vpack.c.b16 %v6097, %v6072
  %v6198 = vpack.c.b16 %v6098, %v6073
  %v6199 = vpack.c.b16 %v6099, %v6074
  %v6200 = vpack.c.b16 %v6100, %v6075
  %v6201 = vpack.c.b16 %v6101, %v6076
  %v6202 = vpack.c.b16 %v6102, %v6077
  %v6203 = vpack.c.b16 %v6103, %v6078
  %v6204 = vpack.c.b16 %v6104, %v6079
  %v6205 = vpack.c.b16 %v6105, %v6080
  %v6206 = vpack.c.b16 %v6106, %v6081
  %v6207 = vpack.c.b16 %v6107, %v6082
  %v6208 = vpack.c.b16 %v6108, %v6083
  %v6209 = vpack.c.b16 %v6109, %v6084
  %v6210 = vpack.c.b16 %v6110, %v6085
  %v6211 = vpack.c.b16 %v6111, %v6086
  %v6212 = vpack.c.b16 %v6112, %v6087
  %v6213 = vpack.c.b16 %v6113, %v6088
  %v6214 = vpack.c.b16 %v6114, %v6089
  %v6215 = vpack.c.b16 %v6115, %v6090
  %v6216 = vpack.c.b16 %v6116, %v6091
  %v6217 = vpack.c.b16 %v6117, %v6117
  %v6218 = vpack.c.b16 %v6118, %v6118
  %v6219 = vpack.c.b16 %v6119, %v6119
  %v6220 = vpack.c.b16 %v6120, %v6120
  %v6221 = vpack.c.b16 %v6121, %v6121
  %v6222 = vpack.c.b16 %v6122, %v6122
  %v6223 = vpack.c.b16 %v6123, %v6123
  %v6224 = vpack.c.b16 %v6124, %v6124
  %v6225 = vpack.c.b16 %v6125, %v6125
  %v6226 = vpack.c.b16 %v6126, %v6126
  %v6227 = vpack.c.b16 %v6127, %v6127
  %v6228 = vpack.c.b16 %v6128, %v6128
  %v6229 = vpack.c.b16 %v6129, %v6129
  %v6230 = vpack.c.b16 %v6130, %v6130
  %v6231 = vpack.c.b16 %v6131, %v6131
  %v6232 = vpack.c.b16 %v6132, %v6132
  %v6233 = vpack.c.b16 %v6133, %v6133
  %v6234 = vpack.c.b16 %v6134, %v6134
  %v6235 = vpack.c.b16 %v6135, %v6135
  %v6236 = vpack.c.b16 %v6136, %v6136
  %v6237 = vpack.c.b16 %v6137, %v6137
  %v6238 = vpack.c.b16 %v6138, %v6138
  %v6239 = vpack.c.b16 %v6139, %v6139
  %v6240 = vpack.c.b16 %v6140, %v6140
  %v6241 = vpack.c.b16 %v6141, %v6141
  %6342 = vmatprep.subr.bf16.mxu0 0
  %6343 = vmatpush1.bf16.msra.mxu0 %v1772
  %6344 = vmatprep.subr.bf16.mxu0 0
  %6345 = vmatpush1.bf16.msra.mxu0 %v1773
  %6346 = vmatprep.subr.bf16.mxu0 0
  %6347 = vmatpush1.bf16.msra.mxu0 %v1774
  %6348 = vmatprep.subr.bf16.mxu0 0
  %6349 = vmatpush1.bf16.msra.mxu0 %v1775
  %6350 = vmatprep.subr.bf16.mxu0 0
  %6351 = vmatpush1.bf16.msra.mxu0 %v1776
  %6352 = vmatprep.subr.bf16.mxu0 0
  %6353 = vmatpush1.bf16.msra.mxu0 %v1777
  %6354 = vmatprep.subr.bf16.mxu0 0
  %6355 = vmatpush1.bf16.msra.mxu0 %v1778
  %6356 = vmatprep.subr.bf16.mxu0 0
  %6357 = vmatpush1.bf16.msra.mxu0 %v1779
  %6358 = vmatprep.subr.bf16.mxu0 0
  %6359 = vmatpush1.bf16.msra.mxu0 %v1780
  %6360 = vmatprep.subr.bf16.mxu0 0
  %6361 = vmatpush1.bf16.msra.mxu0 %v1781
  %6362 = vmatprep.subr.bf16.mxu0 0
  %6363 = vmatpush1.bf16.msra.mxu0 %v1782
  %6364 = vmatprep.subr.bf16.mxu0 0
  %6365 = vmatpush1.bf16.msra.mxu0 %v1783
  %6366 = vmatprep.subr.bf16.mxu0 0
  %6367 = vmatpush1.bf16.msra.mxu0 %v1784
  %6368 = vmatprep.subr.bf16.mxu0 0
  %6369 = vmatpush1.bf16.msra.mxu0 %v1785
  %6370 = vmatprep.subr.bf16.mxu0 0
  %6371 = vmatpush1.bf16.msra.mxu0 %v1786
  %6372 = vmatprep.subr.bf16.mxu0 0
  %6373 = vmatpush1.bf16.msra.mxu0 %v1787
  %6374 = vmatprep.mubr.bf16.mxu0 %v6143
  %6375 = vmatmul.mubr.bf16.gmra.mrb[0].mxu0 %v6142
  %v6376 = vpop.f32.mrb[0].mxu0
  %v6377 = vadd.f32 0.0, %v6376
  %v6378 = vpop.f32.mrb[0].mxu0
  %v6379 = vpop.f32.mrb[0].mxu0
  %v6380 = vadd.f32 0.0, %v6379
  %v6381 = vpop.f32.mrb[0].mxu0
  %6382 = vmatprep.mubr.bf16.mxu0 %v6168
  %6383 = vmatmul.mubr.bf16.gmra.mrb[0].mxu0 %v6167
  %v6384 = vpop.f32.mrb[0].mxu0
  %v6385 = vadd.f32 0.0, %v6384
  %v6386 = vpop.f32.mrb[0].mxu0
  %v6387 = vpop.f32.mrb[0].mxu0
  %v6388 = vadd.f32 0.0, %v6387
  %v6389 = vpop.f32.mrb[0].mxu0
  %6390 = vmatprep.mubr.bf16.mxu0 %v6193
  %6391 = vmatmul.mubr.bf16.gmra.mrb[0].mxu0 %v6192
  %v6392 = vpop.f32.mrb[0].mxu0
  %v6393 = vadd.f32 0.0, %v6392
  %v6394 = vpop.f32.mrb[0].mxu0
  %v6395 = vpop.f32.mrb[0].mxu0
  %v6396 = vadd.f32 0.0, %v6395
  %v6397 = vpop.f32.mrb[0].mxu0
  %6398 = vmatprep.mubr.bf16.mxu0 %v6218
  %6399 = vmatmul.mubr.bf16.gmra.mrb[0].mxu0 %v6217
  %v6400 = vpop.f32.mrb[0].mxu0
  %v6401 = vadd.f32 0.0, %v6400
  %v6402 = vpop.f32.mrb[0].mxu0
  %v6403 = vpop.f32.mrb[0].mxu0
  %v6404 = vpop.f32.mrb[0].mxu0
  %6405 = vdwg.mxu0
  %6406 = vmatprep.subr.bf16.mxu0 0
  %6407 = vmatpush1.bf16.msra.mxu0 %v1788
  %6408 = vmatprep.subr.bf16.mxu0 0
  %6409 = vmatpush1.bf16.msra.mxu0 %v1789
  %6410 = vmatprep.subr.bf16.mxu0 0
  %6411 = vmatpush1.bf16.msra.mxu0 %v1790
  %6412 = vmatprep.subr.bf16.mxu0 0
  %6413 = vmatpush1.bf16.msra.mxu0 %v1791
  %6414 = vmatprep.subr.bf16.mxu0 0
  %6415 = vmatpush1.bf16.msra.mxu0 %v1792
  %6416 = vmatprep.subr.bf16.mxu0 0
  %6417 = vmatpush1.bf16.msra.mxu0 %v1793
  %6418 = vmatprep.subr.bf16.mxu0 0
  %6419 = vmatpush1.bf16.msra.mxu0 %v1794
  %6420 = vmatprep.subr.bf16.mxu0 0
  %6421 = vmatpush1.bf16.msra.mxu0 %v1795
  %6422 = vmatprep.subr.bf16.mxu0 0
  %6423 = vmatpush1.bf16.msra.mxu0 %v1796
  %6424 = vmatprep.subr.bf16.mxu0 0
  %6425 = vmatpush1.bf16.msra.mxu0 %v1797
  %6426 = vmatprep.subr.bf16.mxu0 0
  %6427 = vmatpush1.bf16.msra.mxu0 %v1798
  %6428 = vmatprep.subr.bf16.mxu0 0
  %6429 = vmatpush1.bf16.msra.mxu0 %v1799
  %6430 = vmatprep.subr.bf16.mxu0 0
  %6431 = vmatpush1.bf16.msra.mxu0 %v1800
  %6432 = vmatprep.subr.bf16.mxu0 0
  %6433 = vmatpush1.bf16.msra.mxu0 %v1801
  %6434 = vmatprep.subr.bf16.mxu0 0
  %6435 = vmatpush1.bf16.msra.mxu0 %v1802
  %6436 = vmatprep.subr.bf16.mxu0 0
  %6437 = vmatpush1.bf16.msra.mxu0 %v1803
  %6438 = vmatprep.mubr.bf16.mxu0 %v6145
  %6439 = vmatmul.mubr.bf16.gmra.mrb[0].mxu0 %v6144
  %v6440 = vpop.f32.mrb[0].mxu0
  %v6441 = vadd.f32 %v6377, %v6440
  %v6442 = vpop.f32.mrb[0].mxu0
  %v6443 = vpop.f32.mrb[0].mxu0
  %v6444 = vadd.f32 %v6380, %v6443
  %v6445 = vpop.f32.mrb[0].mxu0
  %6446 = vmatprep.mubr.bf16.mxu0 %v6170
  %6447 = vmatmul.mubr.bf16.gmra.mrb[0].mxu0 %v6169
  %v6448 = vpop.f32.mrb[0].mxu0
  %v6449 = vadd.f32 %v6385, %v6448
  %v6450 = vpop.f32.mrb[0].mxu0
  %v6451 = vpop.f32.mrb[0].mxu0
  %v6452 = vadd.f32 %v6388, %v6451
  %v6453 = vpop.f32.mrb[0].mxu0
  %6454 = vmatprep.mubr.bf16.mxu0 %v6195
  %6455 = vmatmul.mubr.bf16.gmra.mrb[0].mxu0 %v6194
  %v6456 = vpop.f32.mrb[0].mxu0
  %v6457 = vadd.f32 %v6393, %v6456
  %v6458 = vpop.f32.mrb[0].mxu0
  %v6459 = vpop.f32.mrb[0].mxu0
  %v6460 = vadd.f32 %v6396, %v6459
  %v6461 = vpop.f32.mrb[0].mxu0
  %6462 = vmatprep.mubr.bf16.mxu0 %v6220
  %6463 = vmatmul.mubr.bf16.gmra.mrb[0].mxu0 %v6219
  %v6464 = vpop.f32.mrb[0].mxu0
  %v6465 = vadd.f32 %v6401, %v6464
  %v6466 = vpop.f32.mrb[0].mxu0
  %v6467 = vpop.f32.mrb[0].mxu0
  %v6468 = vpop.f32.mrb[0].mxu0
  %6469 = vdwg.mxu0
  %6470 = vmatprep.subr.bf16.mxu0 0
  %6471 = vmatpush1.bf16.msra.mxu0 %v1804
  %6472 = vmatprep.subr.bf16.mxu0 0
  %6473 = vmatpush1.bf16.msra.mxu0 %v1805
  %6474 = vmatprep.subr.bf16.mxu0 0
  %6475 = vmatpush1.bf16.msra.mxu0 %v1806
  %6476 = vmatprep.subr.bf16.mxu0 0
  %6477 = vmatpush1.bf16.msra.mxu0 %v1807
  %6478 = vmatprep.subr.bf16.mxu0 0
  %6479 = vmatpush1.bf16.msra.mxu0 %v1808
  %6480 = vmatprep.subr.bf16.mxu0 0
  %6481 = vmatpush1.bf16.msra.mxu0 %v1809
  %6482 = vmatprep.subr.bf16.mxu0 0
  %6483 = vmatpush1.bf16.msra.mxu0 %v1810
  %6484 = vmatprep.subr.bf16.mxu0 0
  %6485 = vmatpush1.bf16.msra.mxu0 %v1811
  %6486 = vmatprep.subr.bf16.mxu0 0
  %6487 = vmatpush1.bf16.msra.mxu0 %v1812
  %6488 = vmatprep.subr.bf16.mxu0 0
  %6489 = vmatpush1.bf16.msra.mxu0 %v1813
  %6490 = vmatprep.subr.bf16.mxu0 0
  %6491 = vmatpush1.bf16.msra.mxu0 %v1814
  %6492 = vmatprep.subr.bf16.mxu0 0
  %6493 = vmatpush1.bf16.msra.mxu0 %v1815
  %6494 = vmatprep.subr.bf16.mxu0 0
  %6495 = vmatpush1.bf16.msra.mxu0 %v1816
  %6496 = vmatprep.subr.bf16.mxu0 0
  %6497 = vmatpush1.bf16.msra.mxu0 %v1817
  %6498 = vmatprep.subr.bf16.mxu0 0
  %6499 = vmatpush1.bf16.msra.mxu0 %v1818
  %6500 = vmatprep.subr.bf16.mxu0 0
  %6501 = vmatpush1.bf16.msra.mxu0 %v1819
  %6502 = vmatprep.mubr.bf16.mxu0 %v6147
  %6503 = vmatmul.mubr.bf16.gmra.mrb[0].mxu0 %v6146
  %v6504 = vpop.f32.mrb[0].mxu0
  %v6505 = vadd.f32 %v6441, %v6504
  %v6506 = vpop.f32.mrb[0].mxu0
  %v6507 = vpop.f32.mrb[0].mxu0
  %v6508 = vadd.f32 %v6444, %v6507
  %v6509 = vpop.f32.mrb[0].mxu0
  %6510 = vmatprep.mubr.bf16.mxu0 %v6172
  %6511 = vmatmul.mubr.bf16.gmra.mrb[0].mxu0 %v6171
  %v6512 = vpop.f32.mrb[0].mxu0
  %v6513 = vadd.f32 %v6449, %v6512
  %v6514 = vpop.f32.mrb[0].mxu0
  %v6515 = vpop.f32.mrb[0].mxu0
  %v6516 = vadd.f32 %v6452, %v6515
  %v6517 = vpop.f32.mrb[0].mxu0
  %6518 = vmatprep.mubr.bf16.mxu0 %v6197
  %6519 = vmatmul.mubr.bf16.gmra.mrb[0].mxu0 %v6196
  %v6520 = vpop.f32.mrb[0].mxu0
  %v6521 = vadd.f32 %v6457, %v6520
  %v6522 = vpop.f32.mrb[0].mxu0
  %v6523 = vpop.f32.mrb[0].mxu0
  %v6524 = vadd.f32 %v6460, %v6523
  %v6525 = vpop.f32.mrb[0].mxu0
  %6526 = vmatprep.mubr.bf16.mxu0 %v6222
  %6527 = vmatmul.mubr.bf16.gmra.mrb[0].mxu0 %v6221
  %v6528 = vpop.f32.mrb[0].mxu0
  %v6529 = vadd.f32 %v6465, %v6528
  %v6530 = vpop.f32.mrb[0].mxu0
  %v6531 = vpop.f32.mrb[0].mxu0
  %v6532 = vpop.f32.mrb[0].mxu0
  %6533 = vdwg.mxu0
  %6534 = vmatprep.subr.bf16.mxu0 0
  %6535 = vmatpush1.bf16.msra.mxu0 %v1820
  %6536 = vmatprep.subr.bf16.mxu0 0
  %6537 = vmatpush1.bf16.msra.mxu0 %v1821
  %6538 = vmatprep.subr.bf16.mxu0 0
  %6539 = vmatpush1.bf16.msra.mxu0 %v1822
  %6540 = vmatprep.subr.bf16.mxu0 0
  %6541 = vmatpush1.bf16.msra.mxu0 %v1823
  %6542 = vmatprep.subr.bf16.mxu0 0
  %6543 = vmatpush1.bf16.msra.mxu0 %v1824
  %6544 = vmatprep.subr.bf16.mxu0 0
  %6545 = vmatpush1.bf16.msra.mxu0 %v1825
  %6546 = vmatprep.subr.bf16.mxu0 0
  %6547 = vmatpush1.bf16.msra.mxu0 %v1826
  %6548 = vmatprep.subr.bf16.mxu0 0
  %6549 = vmatpush1.bf16.msra.mxu0 %v1827
  %6550 = vmatprep.subr.bf16.mxu0 0
  %6551 = vmatpush1.bf16.msra.mxu0 %v1828
  %6552 = vmatprep.subr.bf16.mxu0 0
  %6553 = vmatpush1.bf16.msra.mxu0 %v1829
  %6554 = vmatprep.subr.bf16.mxu0 0
  %6555 = vmatpush1.bf16.msra.mxu0 %v1830
  %6556 = vmatprep.subr.bf16.mxu0 0
  %6557 = vmatpush1.bf16.msra.mxu0 %v1831
  %6558 = vmatprep.subr.bf16.mxu0 0
  %6559 = vmatpush1.bf16.msra.mxu0 %v1832
  %6560 = vmatprep.subr.bf16.mxu0 0
  %6561 = vmatpush1.bf16.msra.mxu0 %v1833
  %6562 = vmatprep.subr.bf16.mxu0 0
  %6563 = vmatpush1.bf16.msra.mxu0 %v1834
  %6564 = vmatprep.subr.bf16.mxu0 0
  %6565 = vmatpush1.bf16.msra.mxu0 %v1835
  %6566 = vmatprep.mubr.bf16.mxu0 %v6149
  %6567 = vmatmul.mubr.bf16.gmra.mrb[0].mxu0 %v6148
  %v6568 = vpop.f32.mrb[0].mxu0
  %v6569 = vadd.f32 %v6505, %v6568
  %v6570 = vpop.f32.mrb[0].mxu0
  %v6571 = vpop.f32.mrb[0].mxu0
  %v6572 = vadd.f32 %v6508, %v6571
  %v6573 = vpop.f32.mrb[0].mxu0
  %6574 = vmatprep.mubr.bf16.mxu0 %v6174
  %6575 = vmatmul.mubr.bf16.gmra.mrb[0].mxu0 %v6173
  %v6576 = vpop.f32.mrb[0].mxu0
  %v6577 = vadd.f32 %v6513, %v6576
  %v6578 = vpop.f32.mrb[0].mxu0
  %v6579 = vpop.f32.mrb[0].mxu0
  %v6580 = vadd.f32 %v6516, %v6579
  %v6581 = vpop.f32.mrb[0].mxu0
  %6582 = vmatprep.mubr.bf16.mxu0 %v6199
  %6583 = vmatmul.mubr.bf16.gmra.mrb[0].mxu0 %v6198
  %v6584 = vpop.f32.mrb[0].mxu0
  %v6585 = vadd.f32 %v6521, %v6584
  %v6586 = vpop.f32.mrb[0].mxu0
  %v6587 = vpop.f32.mrb[0].mxu0
  %v6588 = vadd.f32 %v6524, %v6587
  %v6589 = vpop.f32.mrb[0].mxu0
  %6590 = vmatprep.mubr.bf16.mxu0 %v6224
  %6591 = vmatmul.mubr.bf16.gmra.mrb[0].mxu0 %v6223
  %v6592 = vpop.f32.mrb[0].mxu0
  %v6593 = vadd.f32 %v6529, %v6592
  %v6594 = vpop.f32.mrb[0].mxu0
  %v6595 = vpop.f32.mrb[0].mxu0
  %v6596 = vpop.f32.mrb[0].mxu0
  %6597 = vdwg.mxu0
  %6598 = vmatprep.subr.bf16.mxu0 0
  %6599 = vmatpush1.bf16.msra.mxu0 %v1836
  %6600 = vmatprep.subr.bf16.mxu0 0
  %6601 = vmatpush1.bf16.msra.mxu0 %v1837
  %6602 = vmatprep.subr.bf16.mxu0 0
  %6603 = vmatpush1.bf16.msra.mxu0 %v1838
  %6604 = vmatprep.subr.bf16.mxu0 0
  %6605 = vmatpush1.bf16.msra.mxu0 %v1839
  %6606 = vmatprep.subr.bf16.mxu0 0
  %6607 = vmatpush1.bf16.msra.mxu0 %v1840
  %6608 = vmatprep.subr.bf16.mxu0 0
  %6609 = vmatpush1.bf16.msra.mxu0 %v1841
  %6610 = vmatprep.subr.bf16.mxu0 0
  %6611 = vmatpush1.bf16.msra.mxu0 %v1842
  %6612 = vmatprep.subr.bf16.mxu0 0
  %6613 = vmatpush1.bf16.msra.mxu0 %v1843
  %6614 = vmatprep.subr.bf16.mxu0 0
  %6615 = vmatpush1.bf16.msra.mxu0 %v1844
  %6616 = vmatprep.subr.bf16.mxu0 0
  %6617 = vmatpush1.bf16.msra.mxu0 %v1845
  %6618 = vmatprep.subr.bf16.mxu0 0
  %6619 = vmatpush1.bf16.msra.mxu0 %v1846
  %6620 = vmatprep.subr.bf16.mxu0 0
  %6621 = vmatpush1.bf16.msra.mxu0 %v1847
  %6622 = vmatprep.subr.bf16.mxu0 0
  %6623 = vmatpush1.bf16.msra.mxu0 %v1848
  %6624 = vmatprep.subr.bf16.mxu0 0
  %6625 = vmatpush1.bf16.msra.mxu0 %v1849
  %6626 = vmatprep.subr.bf16.mxu0 0
  %6627 = vmatpush1.bf16.msra.mxu0 %v1850
  %6628 = vmatprep.subr.bf16.mxu0 0
  %6629 = vmatpush1.bf16.msra.mxu0 %v1851
  %6630 = vmatprep.mubr.bf16.mxu0 %v6151
  %6631 = vmatmul.mubr.bf16.gmra.mrb[0].mxu0 %v6150
  %v6632 = vpop.f32.mrb[0].mxu0
  %v6633 = vadd.f32 %v6569, %v6632
  %v6634 = vpop.f32.mrb[0].mxu0
  %v6635 = vpop.f32.mrb[0].mxu0
  %v6636 = vadd.f32 %v6572, %v6635
  %v6637 = vpop.f32.mrb[0].mxu0
  %6638 = vmatprep.mubr.bf16.mxu0 %v6176
  %6639 = vmatmul.mubr.bf16.gmra.mrb[0].mxu0 %v6175
  %v6640 = vpop.f32.mrb[0].mxu0
  %v6641 = vadd.f32 %v6577, %v6640
  %v6642 = vpop.f32.mrb[0].mxu0
  %v6643 = vpop.f32.mrb[0].mxu0
  %v6644 = vadd.f32 %v6580, %v6643
  %v6645 = vpop.f32.mrb[0].mxu0
  %6646 = vmatprep.mubr.bf16.mxu0 %v6201
  %6647 = vmatmul.mubr.bf16.gmra.mrb[0].mxu0 %v6200
  %v6648 = vpop.f32.mrb[0].mxu0
  %v6649 = vadd.f32 %v6585, %v6648
  %v6650 = vpop.f32.mrb[0].mxu0
  %v6651 = vpop.f32.mrb[0].mxu0
  %v6652 = vadd.f32 %v6588, %v6651
  %v6653 = vpop.f32.mrb[0].mxu0
  %6654 = vmatprep.mubr.bf16.mxu0 %v6226
  %6655 = vmatmul.mubr.bf16.gmra.mrb[0].mxu0 %v6225
  %v6656 = vpop.f32.mrb[0].mxu0
  %v6657 = vadd.f32 %v6593, %v6656
  %v6658 = vpop.f32.mrb[0].mxu0
  %v6659 = vpop.f32.mrb[0].mxu0
  %v6660 = vpop.f32.mrb[0].mxu0
  %6661 = vdwg.mxu0
  %6662 = vmatprep.subr.bf16.mxu0 0
  %6663 = vmatpush1.bf16.msra.mxu0 %v1852
  %6664 = vmatprep.subr.bf16.mxu0 0
  %6665 = vmatpush1.bf16.msra.mxu0 %v1853
  %6666 = vmatprep.subr.bf16.mxu0 0
  %6667 = vmatpush1.bf16.msra.mxu0 %v1854
  %6668 = vmatprep.subr.bf16.mxu0 0
  %6669 = vmatpush1.bf16.msra.mxu0 %v1855
  %6670 = vmatprep.subr.bf16.mxu0 0
  %6671 = vmatpush1.bf16.msra.mxu0 %v1856
  %6672 = vmatprep.subr.bf16.mxu0 0
  %6673 = vmatpush1.bf16.msra.mxu0 %v1857
  %6674 = vmatprep.subr.bf16.mxu0 0
  %6675 = vmatpush1.bf16.msra.mxu0 %v1858
  %6676 = vmatprep.subr.bf16.mxu0 0
  %6677 = vmatpush1.bf16.msra.mxu0 %v1859
  %6678 = vmatprep.subr.bf16.mxu0 0
  %6679 = vmatpush1.bf16.msra.mxu0 %v1860
  %6680 = vmatprep.subr.bf16.mxu0 0
  %6681 = vmatpush1.bf16.msra.mxu0 %v1861
  %6682 = vmatprep.subr.bf16.mxu0 0
  %6683 = vmatpush1.bf16.msra.mxu0 %v1862
  %6684 = vmatprep.subr.bf16.mxu0 0
  %6685 = vmatpush1.bf16.msra.mxu0 %v1863
  %6686 = vmatprep.subr.bf16.mxu0 0
  %6687 = vmatpush1.bf16.msra.mxu0 %v1864
  %6688 = vmatprep.subr.bf16.mxu0 0
  %6689 = vmatpush1.bf16.msra.mxu0 %v1865
  %6690 = vmatprep.subr.bf16.mxu0 0
  %6691 = vmatpush1.bf16.msra.mxu0 %v1866
  %6692 = vmatprep.subr.bf16.mxu0 0
  %6693 = vmatpush1.bf16.msra.mxu0 %v1867
  %6694 = vmatprep.mubr.bf16.mxu0 %v6153
  %6695 = vmatmul.mubr.bf16.gmra.mrb[0].mxu0 %v6152
  %v6696 = vpop.f32.mrb[0].mxu0
  %v6697 = vadd.f32 %v6633, %v6696
  %v6698 = vpop.f32.mrb[0].mxu0
  %v6699 = vpop.f32.mrb[0].mxu0
  %v6700 = vadd.f32 %v6636, %v6699
  %v6701 = vpop.f32.mrb[0].mxu0
  %6702 = vmatprep.mubr.bf16.mxu0 %v6178
  %6703 = vmatmul.mubr.bf16.gmra.mrb[0].mxu0 %v6177
  %v6704 = vpop.f32.mrb[0].mxu0
  %v6705 = vadd.f32 %v6641, %v6704
  %v6706 = vpop.f32.mrb[0].mxu0
  %v6707 = vpop.f32.mrb[0].mxu0
  %v6708 = vadd.f32 %v6644, %v6707
  %v6709 = vpop.f32.mrb[0].mxu0
  %6710 = vmatprep.mubr.bf16.mxu0 %v6203
  %6711 = vmatmul.mubr.bf16.gmra.mrb[0].mxu0 %v6202
  %v6712 = vpop.f32.mrb[0].mxu0
  %v6713 = vadd.f32 %v6649, %v6712
  %v6714 = vpop.f32.mrb[0].mxu0
  %v6715 = vpop.f32.mrb[0].mxu0
  %v6716 = vadd.f32 %v6652, %v6715
  %v6717 = vpop.f32.mrb[0].mxu0
  %6718 = vmatprep.mubr.bf16.mxu0 %v6228
  %6719 = vmatmul.mubr.bf16.gmra.mrb[0].mxu0 %v6227
  %v6720 = vpop.f32.mrb[0].mxu0
  %v6721 = vadd.f32 %v6657, %v6720
  %v6722 = vpop.f32.mrb[0].mxu0
  %v6723 = vpop.f32.mrb[0].mxu0
  %v6724 = vpop.f32.mrb[0].mxu0
  %6725 = vdwg.mxu0
  %6726 = vmatprep.subr.bf16.mxu0 0
  %6727 = vmatpush1.bf16.msra.mxu0 %v1868
  %6728 = vmatprep.subr.bf16.mxu0 0
  %6729 = vmatpush1.bf16.msra.mxu0 %v1869
  %6730 = vmatprep.subr.bf16.mxu0 0
  %6731 = vmatpush1.bf16.msra.mxu0 %v1870
  %6732 = vmatprep.subr.bf16.mxu0 0
  %6733 = vmatpush1.bf16.msra.mxu0 %v1871
  %6734 = vmatprep.subr.bf16.mxu0 0
  %6735 = vmatpush1.bf16.msra.mxu0 %v1872
  %6736 = vmatprep.subr.bf16.mxu0 0
  %6737 = vmatpush1.bf16.msra.mxu0 %v1873
  %6738 = vmatprep.subr.bf16.mxu0 0
  %6739 = vmatpush1.bf16.msra.mxu0 %v1874
  %6740 = vmatprep.subr.bf16.mxu0 0
  %6741 = vmatpush1.bf16.msra.mxu0 %v1875
  %6742 = vmatprep.subr.bf16.mxu0 0
  %6743 = vmatpush1.bf16.msra.mxu0 %v1876
  %6744 = vmatprep.subr.bf16.mxu0 0
  %6745 = vmatpush1.bf16.msra.mxu0 %v1877
  %6746 = vmatprep.subr.bf16.mxu0 0
  %6747 = vmatpush1.bf16.msra.mxu0 %v1878
  %6748 = vmatprep.subr.bf16.mxu0 0
  %6749 = vmatpush1.bf16.msra.mxu0 %v1879
  %6750 = vmatprep.subr.bf16.mxu0 0
  %6751 = vmatpush1.bf16.msra.mxu0 %v1880
  %6752 = vmatprep.subr.bf16.mxu0 0
  %6753 = vmatpush1.bf16.msra.mxu0 %v1881
  %6754 = vmatprep.subr.bf16.mxu0 0
  %6755 = vmatpush1.bf16.msra.mxu0 %v1882
  %6756 = vmatprep.subr.bf16.mxu0 0
  %6757 = vmatpush1.bf16.msra.mxu0 %v1883
  %6758 = vmatprep.mubr.bf16.mxu0 %v6155
  %6759 = vmatmul.mubr.bf16.gmra.mrb[0].mxu0 %v6154
  %v6760 = vpop.f32.mrb[0].mxu0
  %v6761 = vadd.f32 %v6697, %v6760
  %v6762 = vpop.f32.mrb[0].mxu0
  %v6763 = vpop.f32.mrb[0].mxu0
  %v6764 = vadd.f32 %v6700, %v6763
  %v6765 = vpop.f32.mrb[0].mxu0
  %6766 = vmatprep.mubr.bf16.mxu0 %v6180
  %6767 = vmatmul.mubr.bf16.gmra.mrb[0].mxu0 %v6179
  %v6768 = vpop.f32.mrb[0].mxu0
  %v6769 = vadd.f32 %v6705, %v6768
  %v6770 = vpop.f32.mrb[0].mxu0
  %v6771 = vpop.f32.mrb[0].mxu0
  %v6772 = vadd.f32 %v6708, %v6771
  %v6773 = vpop.f32.mrb[0].mxu0
  %6774 = vmatprep.mubr.bf16.mxu0 %v6205
  %6775 = vmatmul.mubr.bf16.gmra.mrb[0].mxu0 %v6204
  %v6776 = vpop.f32.mrb[0].mxu0
  %v6777 = vadd.f32 %v6713, %v6776
  %v6778 = vpop.f32.mrb[0].mxu0
  %v6779 = vpop.f32.mrb[0].mxu0
  %v6780 = vadd.f32 %v6716, %v6779
  %v6781 = vpop.f32.mrb[0].mxu0
  %6782 = vmatprep.mubr.bf16.mxu0 %v6230
  %6783 = vmatmul.mubr.bf16.gmra.mrb[0].mxu0 %v6229
  %v6784 = vpop.f32.mrb[0].mxu0
  %v6785 = vadd.f32 %v6721, %v6784
  %v6786 = vpop.f32.mrb[0].mxu0
  %v6787 = vpop.f32.mrb[0].mxu0
  %v6788 = vpop.f32.mrb[0].mxu0
  %6789 = vdwg.mxu0
  %6790 = vmatprep.subr.bf16.mxu0 0
  %6791 = vmatpush1.bf16.msra.mxu0 %v1884
  %6792 = vmatprep.subr.bf16.mxu0 0
  %6793 = vmatpush1.bf16.msra.mxu0 %v1885
  %6794 = vmatprep.subr.bf16.mxu0 0
  %6795 = vmatpush1.bf16.msra.mxu0 %v1886
  %6796 = vmatprep.subr.bf16.mxu0 0
  %6797 = vmatpush1.bf16.msra.mxu0 %v1887
  %6798 = vmatprep.subr.bf16.mxu0 0
  %6799 = vmatpush1.bf16.msra.mxu0 %v1888
  %6800 = vmatprep.subr.bf16.mxu0 0
  %6801 = vmatpush1.bf16.msra.mxu0 %v1889
  %6802 = vmatprep.subr.bf16.mxu0 0
  %6803 = vmatpush1.bf16.msra.mxu0 %v1890
  %6804 = vmatprep.subr.bf16.mxu0 0
  %6805 = vmatpush1.bf16.msra.mxu0 %v1891
  %6806 = vmatprep.subr.bf16.mxu0 0
  %6807 = vmatpush1.bf16.msra.mxu0 %v1892
  %6808 = vmatprep.subr.bf16.mxu0 0
  %6809 = vmatpush1.bf16.msra.mxu0 %v1893
  %6810 = vmatprep.subr.bf16.mxu0 0
  %6811 = vmatpush1.bf16.msra.mxu0 %v1894
  %6812 = vmatprep.subr.bf16.mxu0 0
  %6813 = vmatpush1.bf16.msra.mxu0 %v1895
  %6814 = vmatprep.subr.bf16.mxu0 0
  %6815 = vmatpush1.bf16.msra.mxu0 %v1896
  %6816 = vmatprep.subr.bf16.mxu0 0
  %6817 = vmatpush1.bf16.msra.mxu0 %v1897
  %6818 = vmatprep.subr.bf16.mxu0 0
  %6819 = vmatpush1.bf16.msra.mxu0 %v1898
  %6820 = vmatprep.subr.bf16.mxu0 0
  %6821 = vmatpush1.bf16.msra.mxu0 %v1899
  %6822 = vmatprep.mubr.bf16.mxu0 %v6157
  %6823 = vmatmul.mubr.bf16.gmra.mrb[0].mxu0 %v6156
  %v6824 = vpop.f32.mrb[0].mxu0
  %v6825 = vadd.f32 %v6761, %v6824
  %v6826 = vpop.f32.mrb[0].mxu0
  %v6827 = vpop.f32.mrb[0].mxu0
  %v6828 = vadd.f32 %v6764, %v6827
  %v6829 = vpop.f32.mrb[0].mxu0
  %6830 = vmatprep.mubr.bf16.mxu0 %v6182
  %6831 = vmatmul.mubr.bf16.gmra.mrb[0].mxu0 %v6181
  %v6832 = vpop.f32.mrb[0].mxu0
  %v6833 = vadd.f32 %v6769, %v6832
  %v6834 = vpop.f32.mrb[0].mxu0
  %v6835 = vpop.f32.mrb[0].mxu0
  %v6836 = vadd.f32 %v6772, %v6835
  %v6837 = vpop.f32.mrb[0].mxu0
  %6838 = vmatprep.mubr.bf16.mxu0 %v6207
  %6839 = vmatmul.mubr.bf16.gmra.mrb[0].mxu0 %v6206
  %v6840 = vpop.f32.mrb[0].mxu0
  %v6841 = vadd.f32 %v6777, %v6840
  %v6842 = vpop.f32.mrb[0].mxu0
  %v6843 = vpop.f32.mrb[0].mxu0
  %v6844 = vadd.f32 %v6780, %v6843
  %v6845 = vpop.f32.mrb[0].mxu0
  %6846 = vmatprep.mubr.bf16.mxu0 %v6232
  %6847 = vmatmul.mubr.bf16.gmra.mrb[0].mxu0 %v6231
  %v6848 = vpop.f32.mrb[0].mxu0
  %v6849 = vadd.f32 %v6785, %v6848
  %v6850 = vpop.f32.mrb[0].mxu0
  %v6851 = vpop.f32.mrb[0].mxu0
  %v6852 = vpop.f32.mrb[0].mxu0
  %6853 = vdwg.mxu0
  %6854 = vmatprep.subr.bf16.mxu0 0
  %6855 = vmatpush1.bf16.msra.mxu0 %v1900
  %6856 = vmatprep.subr.bf16.mxu0 0
  %6857 = vmatpush1.bf16.msra.mxu0 %v1901
  %6858 = vmatprep.subr.bf16.mxu0 0
  %6859 = vmatpush1.bf16.msra.mxu0 %v1902
  %6860 = vmatprep.subr.bf16.mxu0 0
  %6861 = vmatpush1.bf16.msra.mxu0 %v1903
  %6862 = vmatprep.subr.bf16.mxu0 0
  %6863 = vmatpush1.bf16.msra.mxu0 %v1904
  %6864 = vmatprep.subr.bf16.mxu0 0
  %6865 = vmatpush1.bf16.msra.mxu0 %v1905
  %6866 = vmatprep.subr.bf16.mxu0 0
  %6867 = vmatpush1.bf16.msra.mxu0 %v1906
  %6868 = vmatprep.subr.bf16.mxu0 0
  %6869 = vmatpush1.bf16.msra.mxu0 %v1907
  %6870 = vmatprep.subr.bf16.mxu0 0
  %6871 = vmatpush1.bf16.msra.mxu0 %v1908
  %6872 = vmatprep.subr.bf16.mxu0 0
  %6873 = vmatpush1.bf16.msra.mxu0 %v1909
  %6874 = vmatprep.subr.bf16.mxu0 0
  %6875 = vmatpush1.bf16.msra.mxu0 %v1910
  %6876 = vmatprep.subr.bf16.mxu0 0
  %6877 = vmatpush1.bf16.msra.mxu0 %v1911
  %6878 = vmatprep.subr.bf16.mxu0 0
  %6879 = vmatpush1.bf16.msra.mxu0 %v1912
  %6880 = vmatprep.subr.bf16.mxu0 0
  %6881 = vmatpush1.bf16.msra.mxu0 %v1913
  %6882 = vmatprep.subr.bf16.mxu0 0
  %6883 = vmatpush1.bf16.msra.mxu0 %v1914
  %6884 = vmatprep.subr.bf16.mxu0 0
  %6885 = vmatpush1.bf16.msra.mxu0 %v1915
  %6886 = vmatprep.mubr.bf16.mxu0 %v6159
  %6887 = vmatmul.mubr.bf16.gmra.mrb[0].mxu0 %v6158
  %v6888 = vpop.f32.mrb[0].mxu0
  %v6889 = vadd.f32 %v6825, %v6888
  %v6890 = vpop.f32.mrb[0].mxu0
  %v6891 = vpop.f32.mrb[0].mxu0
  %v6892 = vadd.f32 %v6828, %v6891
  %v6893 = vpop.f32.mrb[0].mxu0
  %6894 = vmatprep.mubr.bf16.mxu0 %v6184
  %6895 = vmatmul.mubr.bf16.gmra.mrb[0].mxu0 %v6183
  %v6896 = vpop.f32.mrb[0].mxu0
  %v6897 = vadd.f32 %v6833, %v6896
  %v6898 = vpop.f32.mrb[0].mxu0
  %v6899 = vpop.f32.mrb[0].mxu0
  %v6900 = vadd.f32 %v6836, %v6899
  %v6901 = vpop.f32.mrb[0].mxu0
  %6902 = vmatprep.mubr.bf16.mxu0 %v6209
  %6903 = vmatmul.mubr.bf16.gmra.mrb[0].mxu0 %v6208
  %v6904 = vpop.f32.mrb[0].mxu0
  %v6905 = vadd.f32 %v6841, %v6904
  %v6906 = vpop.f32.mrb[0].mxu0
  %v6907 = vpop.f32.mrb[0].mxu0
  %v6908 = vadd.f32 %v6844, %v6907
  %v6909 = vpop.f32.mrb[0].mxu0
  %6910 = vmatprep.mubr.bf16.mxu0 %v6234
  %6911 = vmatmul.mubr.bf16.gmra.mrb[0].mxu0 %v6233
  %v6912 = vpop.f32.mrb[0].mxu0
  %v6913 = vadd.f32 %v6849, %v6912
  %v6914 = vpop.f32.mrb[0].mxu0
  %v6915 = vpop.f32.mrb[0].mxu0
  %v6916 = vpop.f32.mrb[0].mxu0
  %6917 = vdwg.mxu0
  %6918 = vmatprep.subr.bf16.mxu0 0
  %6919 = vmatpush1.bf16.msra.mxu0 %v1916
  %6920 = vmatprep.subr.bf16.mxu0 0
  %6921 = vmatpush1.bf16.msra.mxu0 %v1917
  %6922 = vmatprep.subr.bf16.mxu0 0
  %6923 = vmatpush1.bf16.msra.mxu0 %v1918
  %6924 = vmatprep.subr.bf16.mxu0 0
  %6925 = vmatpush1.bf16.msra.mxu0 %v1919
  %6926 = vmatprep.subr.bf16.mxu0 0
  %6927 = vmatpush1.bf16.msra.mxu0 %v1920
  %6928 = vmatprep.subr.bf16.mxu0 0
  %6929 = vmatpush1.bf16.msra.mxu0 %v1921
  %6930 = vmatprep.subr.bf16.mxu0 0
  %6931 = vmatpush1.bf16.msra.mxu0 %v1922
  %6932 = vmatprep.subr.bf16.mxu0 0
  %6933 = vmatpush1.bf16.msra.mxu0 %v1923
  %6934 = vmatprep.subr.bf16.mxu0 0
  %6935 = vmatpush1.bf16.msra.mxu0 %v1924
  %6936 = vmatprep.subr.bf16.mxu0 0
  %6937 = vmatpush1.bf16.msra.mxu0 %v1925
  %6938 = vmatprep.subr.bf16.mxu0 0
  %6939 = vmatpush1.bf16.msra.mxu0 %v1926
  %6940 = vmatprep.subr.bf16.mxu0 0
  %6941 = vmatpush1.bf16.msra.mxu0 %v1927
  %6942 = vmatprep.subr.bf16.mxu0 0
  %6943 = vmatpush1.bf16.msra.mxu0 %v1928
  %6944 = vmatprep.subr.bf16.mxu0 0
  %6945 = vmatpush1.bf16.msra.mxu0 %v1929
  %6946 = vmatprep.subr.bf16.mxu0 0
  %6947 = vmatpush1.bf16.msra.mxu0 %v1930
  %6948 = vmatprep.subr.bf16.mxu0 0
  %6949 = vmatpush1.bf16.msra.mxu0 %v1931
  %6950 = vmatprep.mubr.bf16.mxu0 %v6161
  %6951 = vmatmul.mubr.bf16.gmra.mrb[0].mxu0 %v6160
  %v6952 = vpop.f32.mrb[0].mxu0
  %v6953 = vadd.f32 %v6889, %v6952
  %v6954 = vpop.f32.mrb[0].mxu0
  %v6955 = vpop.f32.mrb[0].mxu0
  %v6956 = vadd.f32 %v6892, %v6955
  %v6957 = vpop.f32.mrb[0].mxu0
  %6958 = vmatprep.mubr.bf16.mxu0 %v6186
  %6959 = vmatmul.mubr.bf16.gmra.mrb[0].mxu0 %v6185
  %v6960 = vpop.f32.mrb[0].mxu0
  %v6961 = vadd.f32 %v6897, %v6960
  %v6962 = vpop.f32.mrb[0].mxu0
  %v6963 = vpop.f32.mrb[0].mxu0
  %v6964 = vadd.f32 %v6900, %v6963
  %v6965 = vpop.f32.mrb[0].mxu0
  %6966 = vmatprep.mubr.bf16.mxu0 %v6211
  %6967 = vmatmul.mubr.bf16.gmra.mrb[0].mxu0 %v6210
  %v6968 = vpop.f32.mrb[0].mxu0
  %v6969 = vadd.f32 %v6905, %v6968
  %v6970 = vpop.f32.mrb[0].mxu0
  %v6971 = vpop.f32.mrb[0].mxu0
  %v6972 = vadd.f32 %v6908, %v6971
  %v6973 = vpop.f32.mrb[0].mxu0
  %6974 = vmatprep.mubr.bf16.mxu0 %v6236
  %6975 = vmatmul.mubr.bf16.gmra.mrb[0].mxu0 %v6235
  %v6976 = vpop.f32.mrb[0].mxu0
  %v6977 = vadd.f32 %v6913, %v6976
  %v6978 = vpop.f32.mrb[0].mxu0
  %v6979 = vpop.f32.mrb[0].mxu0
  %v6980 = vpop.f32.mrb[0].mxu0
  %6981 = vdwg.mxu0
  %6982 = vmatprep.subr.bf16.mxu0 0
  %6983 = vmatpush1.bf16.msra.mxu0 %v1932
  %6984 = vmatprep.subr.bf16.mxu0 0
  %6985 = vmatpush1.bf16.msra.mxu0 %v1933
  %6986 = vmatprep.subr.bf16.mxu0 0
  %6987 = vmatpush1.bf16.msra.mxu0 %v1934
  %6988 = vmatprep.subr.bf16.mxu0 0
  %6989 = vmatpush1.bf16.msra.mxu0 %v1935
  %6990 = vmatprep.subr.bf16.mxu0 0
  %6991 = vmatpush1.bf16.msra.mxu0 %v1936
  %6992 = vmatprep.subr.bf16.mxu0 0
  %6993 = vmatpush1.bf16.msra.mxu0 %v1937
  %6994 = vmatprep.subr.bf16.mxu0 0
  %6995 = vmatpush1.bf16.msra.mxu0 %v1938
  %6996 = vmatprep.subr.bf16.mxu0 0
  %6997 = vmatpush1.bf16.msra.mxu0 %v1939
  %6998 = vmatprep.subr.bf16.mxu0 0
  %6999 = vmatpush1.bf16.msra.mxu0 %v1940
  %7000 = vmatprep.subr.bf16.mxu0 0
  %7001 = vmatpush1.bf16.msra.mxu0 %v1941
  %7002 = vmatprep.subr.bf16.mxu0 0
  %7003 = vmatpush1.bf16.msra.mxu0 %v1942
  %7004 = vmatprep.subr.bf16.mxu0 0
  %7005 = vmatpush1.bf16.msra.mxu0 %v1943
  %7006 = vmatprep.subr.bf16.mxu0 0
  %7007 = vmatpush1.bf16.msra.mxu0 %v1944
  %7008 = vmatprep.subr.bf16.mxu0 0
  %7009 = vmatpush1.bf16.msra.mxu0 %v1945
  %7010 = vmatprep.subr.bf16.mxu0 0
  %7011 = vmatpush1.bf16.msra.mxu0 %v1946
  %7012 = vmatprep.subr.bf16.mxu0 0
  %7013 = vmatpush1.bf16.msra.mxu0 %v1947
  %7014 = vmatprep.mubr.bf16.mxu0 %v6163
  %7015 = vmatmul.mubr.bf16.gmra.mrb[0].mxu0 %v6162
  %v7016 = vpop.f32.mrb[0].mxu0
  %v7017 = vadd.f32 %v6953, %v7016
  %v7018 = vpop.f32.mrb[0].mxu0
  %v7019 = vpop.f32.mrb[0].mxu0
  %v7020 = vadd.f32 %v6956, %v7019
  %v7021 = vpop.f32.mrb[0].mxu0
  %7022 = vmatprep.mubr.bf16.mxu0 %v6188
  %7023 = vmatmul.mubr.bf16.gmra.mrb[0].mxu0 %v6187
  %v7024 = vpop.f32.mrb[0].mxu0
  %v7025 = vadd.f32 %v6961, %v7024
  %v7026 = vpop.f32.mrb[0].mxu0
  %v7027 = vpop.f32.mrb[0].mxu0
  %v7028 = vadd.f32 %v6964, %v7027
  %v7029 = vpop.f32.mrb[0].mxu0
  %7030 = vmatprep.mubr.bf16.mxu0 %v6213
  %7031 = vmatmul.mubr.bf16.gmra.mrb[0].mxu0 %v6212
  %v7032 = vpop.f32.mrb[0].mxu0
  %v7033 = vadd.f32 %v6969, %v7032
  %v7034 = vpop.f32.mrb[0].mxu0
  %v7035 = vpop.f32.mrb[0].mxu0
  %v7036 = vadd.f32 %v6972, %v7035
  %v7037 = vpop.f32.mrb[0].mxu0
  %7038 = vmatprep.mubr.bf16.mxu0 %v6238
  %7039 = vmatmul.mubr.bf16.gmra.mrb[0].mxu0 %v6237
  %v7040 = vpop.f32.mrb[0].mxu0
  %v7041 = vadd.f32 %v6977, %v7040
  %v7042 = vpop.f32.mrb[0].mxu0
  %v7043 = vpop.f32.mrb[0].mxu0
  %v7044 = vpop.f32.mrb[0].mxu0
  %7045 = vdwg.mxu0
  %7046 = vmatprep.subr.bf16.mxu0 0
  %7047 = vmatpush1.bf16.msra.mxu0 %v1948
  %7048 = vmatprep.subr.bf16.mxu0 0
  %7049 = vmatpush1.bf16.msra.mxu0 %v1949
  %7050 = vmatprep.subr.bf16.mxu0 0
  %7051 = vmatpush1.bf16.msra.mxu0 %v1950
  %7052 = vmatprep.subr.bf16.mxu0 0
  %7053 = vmatpush1.bf16.msra.mxu0 %v1951
  %7054 = vmatprep.subr.bf16.mxu0 0
  %7055 = vmatpush1.bf16.msra.mxu0 %v1952
  %7056 = vmatprep.subr.bf16.mxu0 0
  %7057 = vmatpush1.bf16.msra.mxu0 %v1953
  %7058 = vmatprep.subr.bf16.mxu0 0
  %7059 = vmatpush1.bf16.msra.mxu0 %v1954
  %7060 = vmatprep.subr.bf16.mxu0 0
  %7061 = vmatpush1.bf16.msra.mxu0 %v1955
  %7062 = vmatprep.subr.bf16.mxu0 0
  %7063 = vmatpush1.bf16.msra.mxu0 %v1956
  %7064 = vmatprep.subr.bf16.mxu0 0
  %7065 = vmatpush1.bf16.msra.mxu0 %v1957
  %7066 = vmatprep.subr.bf16.mxu0 0
  %7067 = vmatpush1.bf16.msra.mxu0 %v1958
  %7068 = vmatprep.subr.bf16.mxu0 0
  %7069 = vmatpush1.bf16.msra.mxu0 %v1959
  %7070 = vmatprep.subr.bf16.mxu0 0
  %7071 = vmatpush1.bf16.msra.mxu0 %v1960
  %7072 = vmatprep.subr.bf16.mxu0 0
  %7073 = vmatpush1.bf16.msra.mxu0 %v1961
  %7074 = vmatprep.subr.bf16.mxu0 0
  %7075 = vmatpush1.bf16.msra.mxu0 %v1962
  %7076 = vmatprep.subr.bf16.mxu0 0
  %7077 = vmatpush1.bf16.msra.mxu0 %v1963
  %7078 = vmatprep.mubr.bf16.mxu0 %v6165
  %7079 = vmatmul.mubr.bf16.gmra.mrb[0].mxu0 %v6164
  %v7080 = vpop.f32.mrb[0].mxu0
  %v7081 = vadd.f32 %v7017, %v7080
  %v7082 = vpop.f32.mrb[0].mxu0
  %v7083 = vpop.f32.mrb[0].mxu0
  %v7084 = vadd.f32 %v7020, %v7083
  %v7085 = vpop.f32.mrb[0].mxu0
  %7086 = vmatprep.mubr.bf16.mxu0 %v6190
  %7087 = vmatmul.mubr.bf16.gmra.mrb[0].mxu0 %v6189
  %v7088 = vpop.f32.mrb[0].mxu0
  %v7089 = vadd.f32 %v7025, %v7088
  %v7090 = vpop.f32.mrb[0].mxu0
  %v7091 = vpop.f32.mrb[0].mxu0
  %v7092 = vadd.f32 %v7028, %v7091
  %v7093 = vpop.f32.mrb[0].mxu0
  %7094 = vmatprep.mubr.bf16.mxu0 %v6215
  %7095 = vmatmul.mubr.bf16.gmra.mrb[0].mxu0 %v6214
  %v7096 = vpop.f32.mrb[0].mxu0
  %v7097 = vadd.f32 %v7033, %v7096
  %v7098 = vpop.f32.mrb[0].mxu0
  %v7099 = vpop.f32.mrb[0].mxu0
  %v7100 = vadd.f32 %v7036, %v7099
  %v7101 = vpop.f32.mrb[0].mxu0
  %7102 = vmatprep.mubr.bf16.mxu0 %v6240
  %7103 = vmatmul.mubr.bf16.gmra.mrb[0].mxu0 %v6239
  %v7104 = vpop.f32.mrb[0].mxu0
  %v7105 = vadd.f32 %v7041, %v7104
  %v7106 = vpop.f32.mrb[0].mxu0
  %v7107 = vpop.f32.mrb[0].mxu0
  %v7108 = vpop.f32.mrb[0].mxu0
  %7109 = vdwg.mxu0
  %7110 = vmatprep.subr.bf16.mxu0 0
  %7111 = vmatpush1.bf16.msra.mxu0 %v1964
  %7112 = vmatprep.subr.bf16.mxu0 0
  %7113 = vmatpush1.bf16.msra.mxu0 %v1965
  %7114 = vmatprep.subr.bf16.mxu0 0
  %7115 = vmatpush1.bf16.msra.mxu0 %v1966
  %7116 = vmatprep.subr.bf16.mxu0 0
  %7117 = vmatpush1.bf16.msra.mxu0 %v1967
  %7118 = vmatprep.subr.bf16.mxu0 0
  %7119 = vmatpush1.bf16.msra.mxu0 %v1968
  %7120 = vmatprep.subr.bf16.mxu0 0
  %7121 = vmatpush1.bf16.msra.mxu0 %v1969
  %7122 = vmatprep.subr.bf16.mxu0 0
  %7123 = vmatpush1.bf16.msra.mxu0 %v1970
  %7124 = vmatprep.subr.bf16.mxu0 0
  %7125 = vmatpush1.bf16.msra.mxu0 %v1971
  %7126 = vmatprep.subr.bf16.mxu0 0
  %7127 = vmatpush1.bf16.msra.mxu0 0
  %7128 = vmatprep.subr.bf16.mxu0 0
  %7129 = vmatpush1.bf16.msra.mxu0 0
  %7130 = vmatprep.subr.bf16.mxu0 0
  %7131 = vmatpush1.bf16.msra.mxu0 0
  %7132 = vmatprep.subr.bf16.mxu0 0
  %7133 = vmatpush1.bf16.msra.mxu0 0
  %7134 = vmatprep.subr.bf16.mxu0 0
  %7135 = vmatpush1.bf16.msra.mxu0 0
  %7136 = vmatprep.subr.bf16.mxu0 0
  %7137 = vmatpush1.bf16.msra.mxu0 0
  %7138 = vmatprep.subr.bf16.mxu0 0
  %7139 = vmatpush1.bf16.msra.mxu0 0
  %7140 = vmatprep.subr.bf16.mxu0 0
  %7141 = vmatpush1.bf16.msra.mxu0 0
  %7142 = vmatprep.mubr.bf16.mxu0 0
  %7143 = vmatmul.mubr.bf16.gmra.mrb[0].mxu0 %v6166
  %v7144 = vpop.f32.mrb[0].mxu0
  %v7145 = vadd.f32 %v7081, %v7144
  %v7146 = vpop.f32.mrb[0].mxu0
  %v7147 = vpop.f32.mrb[0].mxu0
  %v7148 = vadd.f32 %v7084, %v7147
  %v7149 = vpop.f32.mrb[0].mxu0
  %7150 = vmatprep.mubr.bf16.mxu0 0
  %7151 = vmatmul.mubr.bf16.gmra.mrb[0].mxu0 %v6191
  %v7152 = vpop.f32.mrb[0].mxu0
  %v7153 = vadd.f32 %v7089, %v7152
  %v7154 = vpop.f32.mrb[0].mxu0
  %v7155 = vpop.f32.mrb[0].mxu0
  %v7156 = vadd.f32 %v7092, %v7155
  %v7157 = vpop.f32.mrb[0].mxu0
  %7158 = vmatprep.mubr.bf16.mxu0 0
  %7159 = vmatmul.mubr.bf16.gmra.mrb[0].mxu0 %v6216
  %v7160 = vpop.f32.mrb[0].mxu0
  %v7161 = vadd.f32 %v7097, %v7160
  %v7162 = vpop.f32.mrb[0].mxu0
  %v7163 = vpop.f32.mrb[0].mxu0
  %v7164 = vadd.f32 %v7100, %v7163
  %v7165 = vpop.f32.mrb[0].mxu0
  %7166 = vmatprep.mubr.bf16.mxu0 0
  %7167 = vmatmul.mubr.bf16.gmra.mrb[0].mxu0 %v6241
  %v7168 = vpop.f32.mrb[0].mxu0
  %v7169 = vadd.f32 %v7105, %v7168
  %v7170 = vpop.f32.mrb[0].mxu0
  %v7171 = vpop.f32.mrb[0].mxu0
  %v7172 = vpop.f32.mrb[0].mxu0
  %7173 = vdwg.mxu0
  %v7174 = vmax.f32 %v2975, %v4365
  %v7175 = vmax.f32 %v2978, %v4368
  %v7176 = vmax.f32 %v2983, %v4373
  %v7177 = vmax.f32 %v2986, %v4376
  %v7178 = vmax.f32 %v2991, %v4381
  %v7179 = vmax.f32 %v2994, %v4384
  %v7180 = vmax.f32 %v2999, %v4389
  %v7181 = vmax.f32 %v5755, %v7145
  %v7182 = vmax.f32 %v5758, %v7148
  %v7183 = vmax.f32 %v5763, %v7153
  %v7184 = vmax.f32 %v5766, %v7156
  %v7185 = vmax.f32 %v5771, %v7161
  %v7186 = vmax.f32 %v5774, %v7164
  %v7187 = vmax.f32 %v5779, %v7169
  %v7188 = vmax.f32 %v7174, %v7181
  %v7189 = vmax.f32 %v7175, %v7182
  %v7190 = vmax.f32 %v7176, %v7183
  %v7191 = vmax.f32 %v7177, %v7184
  %v7192 = vmax.f32 %v7178, %v7185
  %v7193 = vmax.f32 %v7179, %v7186
  %v7194 = vmax.f32 %v7180, %v7187
  %v7195 = vld [vmem:[%s2] sm:$0x1]
  %v7197 = vlaneseq
  %v7198 = vshrl.u32 %v7197, 7
  %v7199 = vsub.s32 0, %v7198
  %v7200 = vrot.slane %v7195, %v7199
  %v7202 = vadd.f32 %v7188, %v7200
  %v7203 = vadd.f32 %v7189, %v7200
  %v7204 = vadd.f32 %v7190, %v7200
  %v7205 = vadd.f32 %v7191, %v7200
  %v7206 = vadd.f32 %v7192, %v7200
  %v7207 = vadd.f32 %v7193, %v7200
  %v7208 = vadd.f32 %v7194, %v7200
  %v7209 = vmax.f32 %v7202, 0.0
  %v7210 = vmax.f32 %v7203, 0.0
  %v7211 = vmax.f32 %v7204, 0.0
  %v7212 = vmax.f32 %v7205, 0.0
  %v7213 = vmax.f32 %v7206, 0.0
  %v7214 = vmax.f32 %v7207, 0.0
  %v7215 = vmax.f32 %v7208, 0.0
  %v7216 = vpack.c.bf16 %v7210, %v7209
  %v7217 = vpack.c.bf16 %v7212, %v7211
  %v7218 = vpack.c.bf16 %v7214, %v7213
  %v7219 = vpack.c.bf16 %v7215, %v7215
  %v7224 = vunpack.c.l.b16 %v7216
  %v7225 = vunpack.c.h.b16 %v7216
  %v7226 = vunpack.c.l.b16 %v7217
  %v7227 = vunpack.c.h.b16 %v7217
  %v7228 = vunpack.c.l.b16 %v7218
  %v7229 = vunpack.c.h.b16 %v7218
  %v7230 = vunpack.c.l.b16 %v7219
  %v7231 = vpack.c.b16 %v7224, %v7224
  %v7232 = vpack.c.b16 %v7225, %v7225
  %v7233 = vpack.c.b16 %v7226, %v7226
  %v7234 = vpack.c.b16 %v7227, %v7227
  %v7235 = vpack.c.b16 %v7228, %v7228
  %v7236 = vpack.c.b16 %v7229, %v7229
  %v7237 = vpack.c.b16 %v7230, %v7230
  %7245 = vst [vmem:[%s3] sm:$0xf] %v7231
  %7246 = vst [vmem:[%s3 + $0x4] sm:$0xf] %v7232
  %7247 = vst [vmem:[%s3 + $0x8] sm:$0xf] %v7233
  %7248 = vst [vmem:[%s3 + $0xc] sm:$0xf] %v7234
  %7249 = vst [vmem:[%s3 + $0x10] sm:$0xf] %v7235
  %7250 = vst [vmem:[%s3 + $0x14] sm:$0xf] %v7236
  %7251 = vst [vmem:[%s3 + $0x18] sm:$0x1] %v7237
  // Predicated region
  $region14: #{lenet_forward.4} parent=0 // pred_check
    _
  $region15: #{lenet_forward.4} parent=0 // pred_check_branch
    %7253 = sbr.rel (0) target = $region17
  $region16: #{lenet_forward.4} parent=0 // pred_region
    _
  $region17: #{lenet_forward.4} parent=0 // pred_fallthru
    _
  // Predicated region
  $region18: #{lenet_forward.4} parent=0 // pred_check
    _
  $region19: #{lenet_forward.4} parent=0 // pred_check_branch
    %7255 = sbr.rel (0) target = $region21
  $region20: #{lenet_forward.4} parent=0 // pred_region
    _
  $region21: #{lenet_forward.4} parent=0 // pred_fallthru
    _

</llo_original>
